<compile_context>
chip_gen: v7x
topology: tpu7x:2x2x1
jax: 0.10.0
libtpu: 0.0.40
codegen_flags: <defaults>
</compile_context>

<pallas_src>
import functools

import jax
import jax.numpy as jnp
from jax.experimental import pallas as pl
from jax.experimental.pallas import tpu as pltpu

LANE = 128


# ----------------------------------------------------------------------------
# Pallas kernels
# ----------------------------------------------------------------------------
def _proj_kernel(x_ref, w_ref, b_ref, o_ref):
    """o = x @ w + b  (one big MXU matmul; hoisted LSTM input projection)."""
    o_ref[...] = (jnp.dot(x_ref[...], w_ref[...], preferred_element_type=jnp.float32)
                  + b_ref[...]).astype(o_ref.dtype)


def _lstm_cell(gx, h, c, whh, m, hp):
    """One masked LSTM step in the 128-lane-padded layout.

    gx : (N, 4*hp) precomputed x @ W_ih + b for this timestep
    h,c: (N, hp) state; whh: (hp, 4*hp); m: (N, 1) {0,1} mask (t < len).
    PyTorch gate order i, f, g, o; each gate is lane-aligned at k*hp.
    Padded lanes carry gates == 0 -> i=f=o=0.5, g=0 -> padded h, c stay 0.
    """
    gates = gx + jnp.dot(h, whh, preferred_element_type=jnp.float32)
    i = jax.nn.sigmoid(gates[:, 0 * hp:1 * hp])
    f = jax.nn.sigmoid(gates[:, 1 * hp:2 * hp])
    g = jnp.tanh(gates[:, 2 * hp:3 * hp])
    o = jax.nn.sigmoid(gates[:, 3 * hp:4 * hp])
    c_new = f * c + i * g
    h_new = o * jnp.tanh(c_new)
    h_out = m * h_new + (1.0 - m) * h
    c_out = m * c_new + (1.0 - m) * c
    return h_out, c_out, m * h_new


def _lstm_last_kernel(g_ref, whh_ref, lens_ref, hlast_ref, h_scr, c_scr, *, hp):
    """Unidirectional masked LSTM returning only the final hidden state.

    g_ref: (T, N, 4*hp) precomputed gate inputs (time-major), whole sequence
    resident in VMEM; single program, no per-step grid.
    """
    T = g_ref.shape[0]
    h_scr[...] = jnp.zeros_like(h_scr)
    c_scr[...] = jnp.zeros_like(c_scr)
    whh = whh_ref[...]
    lens = lens_ref[...]                      # (N, 1) int32
    # T is small & static: a Python loop traces to fully-unrolled straight-line
    # code (what lax.fori_loop(..., unroll=True) would give).
    for t in range(T):
        m = (t < lens).astype(jnp.float32)    # (N, 1)
        h, c, _ = _lstm_cell(g_ref[t], h_scr[...], c_scr[...], whh, m, hp)
        h_scr[...] = h
        c_scr[...] = c
    hlast_ref[...] = h_scr[...]               # written once, after the loop


def _bilstm_kernel(g_ref, whh_f_ref, whh_b_ref, lens_ref, outf_ref, outb_ref,
                   hf_scr, cf_scr, hb_scr, cb_scr, *, hp):
    """Fused forward+backward masked LSTM layer (one time loop, two dots/step).

    g_ref: (T, N, 8*hp); lanes [0:4hp] = forward gate inputs, [4hp:8hp] = backward.
    The backward direction reads time index T-1-t with the same t<len mask,
    which is mathematically identical to reverse->forward->reverse with zero
    init; padded (t>=len) outputs are 0 in both directions.
    """
    T = g_ref.shape[0]
    G4 = 4 * hp
    hf_scr[...] = jnp.zeros_like(hf_scr)
    cf_scr[...] = jnp.zeros_like(cf_scr)
    hb_scr[...] = jnp.zeros_like(hb_scr)
    cb_scr[...] = jnp.zeros_like(cb_scr)
    whh_f = whh_f_ref[...]
    whh_b = whh_b_ref[...]
    lens = lens_ref[...]                      # (N, 1) int32
    for s in range(T):
        tb = T - 1 - s
        m_f = (s < lens).astype(jnp.float32)
        m_b = (tb < lens).astype(jnp.float32)
        row_f = g_ref[s]                      # (N, 8*hp)
        row_b = g_ref[tb]
        hf, cf, of = _lstm_cell(row_f[:, :G4], hf_scr[...], cf_scr[...], whh_f, m_f, hp)
        hb, cb, ob = _lstm_cell(row_b[:, G4:], hb_scr[...], cb_scr[...], whh_b, m_b, hp)
        hf_scr[...] = hf
        cf_scr[...] = cf
        hb_scr[...] = hb
        cb_scr[...] = cb
        outf_ref[s] = of                      # lane-dense (N, hp) store
        outb_ref[tb] = ob


def _linear_softmax_kernel(x_ref, w_ref, b_ref, o_ref, *, n_valid):
    """o = softmax(x @ w + b) over the first n_valid logical output lanes.

    Output lane dim is padded to 128 for a lane-dense store; padded logits are
    masked to -1e30 so they contribute exp(.) == 0 to the softmax.
    """
    logits = (jnp.dot(x_ref[...], w_ref[...], preferred_element_type=jnp.float32)
              + b_ref[...])
    col = jax.lax.broadcasted_iota(jnp.int32, logits.shape, 1)
    logits = jnp.where(col < n_valid, logits, -1e30)
    mx = jnp.max(logits, axis=-1, keepdims=True)
    e = jnp.exp(logits - mx)
    denom = jnp.sum(e, axis=-1, keepdims=True)
    o_ref[...] = (e * pl.reciprocal(denom, approx=True)).astype(o_ref.dtype)


# ----------------------------------------------------------------------------
# pallas_call wrappers
# ----------------------------------------------------------------------------
def _cparams():
    # Single-program kernels; explicit conservative VMEM budget keeps the same
    # kernel portable to v7x's 64 MiB VMEM.
    return pltpu.CompilerParams(dimension_semantics=("arbitrary",),
                                vmem_limit_bytes=32 * 1024 * 1024)


def pallas_linear(x, w, b):
    M, K = x.shape
    N = w.shape[1]
    return pl.pallas_call(
        _proj_kernel,
        out_shape=jax.ShapeDtypeStruct((M, N), jnp.float32),
        grid=(1,),
        in_specs=[pl.BlockSpec((M, K), lambda i: (0, 0)),
                  pl.BlockSpec((K, N), lambda i: (0, 0)),
                  pl.BlockSpec((1, N), lambda i: (0, 0))],
        out_specs=pl.BlockSpec((M, N), lambda i: (0, 0)),
        compiler_params=_cparams(),
    )(x, w, b)


def pallas_lstm_last(g, whh, lens):
    T, N, G4 = g.shape
    hp = whh.shape[0]
    return pl.pallas_call(
        functools.partial(_lstm_last_kernel, hp=hp),
        out_shape=jax.ShapeDtypeStruct((N, hp), jnp.float32),
        grid=(1,),
        in_specs=[pl.BlockSpec((T, N, G4), lambda i: (0, 0, 0)),
                  pl.BlockSpec((hp, G4), lambda i: (0, 0)),
                  pl.BlockSpec((N, 1), lambda i: (0, 0))],
        out_specs=pl.BlockSpec((N, hp), lambda i: (0, 0)),
        scratch_shapes=[pltpu.VMEM((N, hp), jnp.float32),
                        pltpu.VMEM((N, hp), jnp.float32)],
        compiler_params=_cparams(),
    )(g, whh, lens)


def pallas_bilstm(g, whh_f, whh_b, lens):
    T, N, G8 = g.shape
    hp = whh_f.shape[0]
    out_f, out_b = pl.pallas_call(
        functools.partial(_bilstm_kernel, hp=hp),
        out_shape=(jax.ShapeDtypeStruct((T, N, hp), jnp.float32),
                   jax.ShapeDtypeStruct((T, N, hp), jnp.float32)),
        grid=(1,),
        in_specs=[pl.BlockSpec((T, N, G8), lambda i: (0, 0, 0)),
                  pl.BlockSpec((hp, 4 * hp), lambda i: (0, 0)),
                  pl.BlockSpec((hp, 4 * hp), lambda i: (0, 0)),
                  pl.BlockSpec((N, 1), lambda i: (0, 0))],
        out_specs=(pl.BlockSpec((T, N, hp), lambda i: (0, 0, 0)),
                   pl.BlockSpec((T, N, hp), lambda i: (0, 0, 0))),
        scratch_shapes=[pltpu.VMEM((N, hp), jnp.float32) for _ in range(4)],
        compiler_params=_cparams(),
    )(g, whh_f, whh_b, lens)
    return out_f, out_b


def pallas_linear_softmax(x, w, b, n_valid):
    M, K = x.shape
    N = w.shape[1]
    return pl.pallas_call(
        functools.partial(_linear_softmax_kernel, n_valid=n_valid),
        out_shape=jax.ShapeDtypeStruct((M, N), jnp.float32),
        grid=(1,),
        in_specs=[pl.BlockSpec((M, K), lambda i: (0, 0)),
                  pl.BlockSpec((K, N), lambda i: (0, 0)),
                  pl.BlockSpec((1, N), lambda i: (0, 0))],
        out_specs=pl.BlockSpec((M, N), lambda i: (0, 0)),
        compiler_params=_cparams(),
    )(x, w, b)


# ----------------------------------------------------------------------------
# Parameter padding to the 128-lane-aligned kernel layout
# ----------------------------------------------------------------------------
def _ceil_to(x, m):
    return ((x + m - 1) // m) * m


def _pad_gate_cols(w, h, hp):
    """(K, 4h) -> (K, 4hp): gate k columns placed at [k*hp : k*hp+h], rest 0."""
    out = jnp.zeros((w.shape[0], 4 * hp), jnp.float32)
    for k in range(4):
        out = out.at[:, k * hp:k * hp + h].set(w[:, k * h:(k + 1) * h])
    return out


def _pad_rows_to(w, rows):
    """(K, C) -> (rows, C) with rows 0:K copied, rest 0."""
    out = jnp.zeros((rows, w.shape[1]), jnp.float32)
    return out.at[:w.shape[0]].set(w)


def _pad_rows_bidir_input(w, h_in, hp_in):
    """Logical rows [fwd h_in ; bwd h_in] -> padded rows [0:h_in] and [hp_in:hp_in+h_in]."""
    out = jnp.zeros((2 * hp_in, w.shape[1]), jnp.float32)
    out = out.at[:h_in].set(w[:h_in])
    out = out.at[hp_in:hp_in + h_in].set(w[h_in:2 * h_in])
    return out


def prepare_kernel_params(raw):
    """Repack the logical (PyTorch-layout, transposed) weights into the padded layout."""
    btw = raw["char_whh"].shape[0]          # char-LSTM hidden
    hid = raw["l0f"][1].shape[0]            # sentence-LSTM hidden (per direction)
    tag = raw["out_w"].shape[1]
    hcp = _ceil_to(btw, LANE)
    hsp = _ceil_to(hid, LANE)
    tagp = _ceil_to(tag, LANE)

    kp = {"emb": raw["emb"].astype(jnp.float32)}

    # char-level LSTM
    kp["char_wih"] = _pad_gate_cols(raw["char_wih"], btw, hcp)                     # (E, 4hcp)
    kp["char_whh"] = _pad_rows_to(_pad_gate_cols(raw["char_whh"], btw, hcp), hcp)  # (hcp, 4hcp)
    kp["char_b"] = _pad_gate_cols(raw["char_b"], btw, hcp)                         # (1, 4hcp)

    # sentence layer 0 (input = padded char hidden, dim hcp)
    w_f, h_f, b_f = raw["l0f"]
    w_b, h_b, b_b = raw["l0b"]
    kp["w0_ih"] = jnp.concatenate(
        [_pad_rows_to(_pad_gate_cols(w_f, hid, hsp), hcp),
         _pad_rows_to(_pad_gate_cols(w_b, hid, hsp), hcp)], axis=1)                # (hcp, 8hsp)
    kp["b0"] = jnp.concatenate(
        [_pad_gate_cols(b_f, hid, hsp), _pad_gate_cols(b_b, hid, hsp)], axis=1)    # (1, 8hsp)
    kp["whh0f"] = _pad_rows_to(_pad_gate_cols(h_f, hid, hsp), hsp)
    kp["whh0b"] = _pad_rows_to(_pad_gate_cols(h_b, hid, hsp), hsp)

    # sentence layer 1 (input = padded [fwd | bwd] hidden, dim 2*hsp)
    w_f, h_f, b_f = raw["l1f"]
    w_b, h_b, b_b = raw["l1b"]
    kp["w1_ih"] = jnp.concatenate(
        [_pad_rows_bidir_input(_pad_gate_cols(w_f, hid, hsp), hid, hsp),
         _pad_rows_bidir_input(_pad_gate_cols(w_b, hid, hsp), hid, hsp)], axis=1)  # (2hsp, 8hsp)
    kp["b1"] = jnp.concatenate(
        [_pad_gate_cols(b_f, hid, hsp), _pad_gate_cols(b_b, hid, hsp)], axis=1)
    kp["whh1f"] = _pad_rows_to(_pad_gate_cols(h_f, hid, hsp), hsp)
    kp["whh1b"] = _pad_rows_to(_pad_gate_cols(h_b, hid, hsp), hsp)

    # output Linear (lane-padded tagset)
    ow = jnp.zeros((raw["out_w"].shape[0], tagp), jnp.float32).at[:, :tag].set(raw["out_w"])
    kp["out_w"] = _pad_rows_bidir_input(ow, hid, hsp)                              # (2hsp, tagp)
    kp["out_b"] = jnp.zeros((1, tagp), jnp.float32).at[:, :tag].set(raw["out_b"])
    return kp


# ----------------------------------------------------------------------------
# TransducerB forward (Pallas kernels + thin XLA glue)
# ----------------------------------------------------------------------------
@functools.partial(jax.jit, static_argnames=("tagset",))
def transducer_b_forward(kp, sentence, sentence_lens, w_lens, *, tagset):
    """sentence: (B, W, L) int32 char ids; sentence_lens: (B,); w_lens: (B*W,)."""
    B, W, L = sentence.shape
    NW = B * W

    # ----- char-level LSTM (nn.LSTM(emb, btw_rnns)); only last hidden is needed -----
    idx_tm = sentence.reshape(NW, L).T                            # (L, NW) int
    emb_tm = kp["emb"][idx_tm]                                    # (L, NW, E) gather (glue)
    E = emb_tm.shape[-1]
    g_char = pallas_linear(emb_tm.reshape(L * NW, E), kp["char_wih"], kp["char_b"])
    g_char = g_char.reshape(L, NW, -1)                            # (L, NW, 4*HCp)
    w_lens2 = w_lens.astype(jnp.int32).reshape(NW, 1)
    h_last = pallas_lstm_last(g_char, kp["char_whh"], w_lens2)    # (NW, HCp); len-0 words -> 0

    # ----- sentence-level 2-layer bidirectional LSTM -----
    s_lens2 = sentence_lens.astype(jnp.int32).reshape(B, 1)
    g0 = pallas_linear(h_last, kp["w0_ih"], kp["b0"])             # (NW, 8*HSp) both directions
    g0 = g0.reshape(B, W, -1).transpose(1, 0, 2)                  # (W, B, 8*HSp) tiny transpose
    o0f, o0b = pallas_bilstm(g0, kp["whh0f"], kp["whh0b"], s_lens2)

    x1 = jnp.concatenate([o0f, o0b], axis=-1)                     # (W, B, 2*HSp)
    g1 = pallas_linear(x1.reshape(W * B, -1), kp["w1_ih"], kp["b1"]).reshape(W, B, -1)
    o1f, o1b = pallas_bilstm(g1, kp["whh1f"], kp["whh1b"], s_lens2)

    # ----- Linear + Softmax(dim=2) -----
    rnn2 = jnp.concatenate([o1f, o1b], axis=-1).transpose(1, 0, 2)  # (B, W, 2*HSp)
    flat = rnn2.reshape(B * W, -1)
    probs = pallas_linear_softmax(flat, kp["out_w"], kp["out_b"], tagset)  # (B*W, TAGp)
    return probs[:, :tagset].reshape(B, W, tagset)


# ----------------------------------------------------------------------------
# Pure-JAX reference (unpadded) for correctness checking
# ----------------------------------------------------------------------------
def _ref_masked_lstm_scan(x_seq, t_seq, lens, wih, whh, b):
    N = x_seq.shape[1]
    H = whh.shape[0]

    def step(carry, inp):
        h, c = carry
        x_t, t = inp
        gates = x_t @ wih + h @ whh + b
        i, f, g, o = jnp.split(gates, 4, axis=1)
        i = jax.nn.sigmoid(i)
        f = jax.nn.sigmoid(f)
        g = jnp.tanh(g)
        o = jax.nn.sigmoid(o)
        c_new = f * c + i * g
        h_new = o * jnp.tanh(c_new)
        m = (t < lens).astype(jnp.float32)[:, None]
        c2 = m * c_new + (1.0 - m) * c
        h2 = m * h_new + (1.0 - m) * h
        return (h2, c2), m * h_new

    init = (jnp.zeros((N, H), jnp.float32), jnp.zeros((N, H), jnp.float32))
    (h_fin, _), outs = jax.lax.scan(step, init, (x_seq, t_seq))
    return outs, h_fin


def _ref_bidir_layer(x_tm, lens, pf, pb):
    T = x_tm.shape[0]
    ts = jnp.arange(T, dtype=jnp.int32)
    out_f, _ = _ref_masked_lstm_scan(x_tm, ts, lens, *pf)
    out_b_rev, _ = _ref_masked_lstm_scan(x_tm[::-1], ts[::-1], lens, *pb)
    return jnp.concatenate([out_f, out_b_rev[::-1]], axis=-1)


def transducer_b_reference(raw, sentence, sentence_lens, w_lens):
    B, W, L = sentence.shape
    NW = B * W
    emb = raw["emb"][sentence.reshape(NW, L)]                     # (NW, L, E)
    x_tm = jnp.transpose(emb, (1, 0, 2)).astype(jnp.float32)
    ts = jnp.arange(L, dtype=jnp.int32)
    _, h_last = _ref_masked_lstm_scan(x_tm, ts, w_lens.astype(jnp.int32),
                                      raw["char_wih"], raw["char_whh"], raw["char_b"])
    x2 = jnp.transpose(h_last.reshape(B, W, -1), (1, 0, 2))       # (W, B, BTW)
    sl = sentence_lens.astype(jnp.int32)
    l0 = _ref_bidir_layer(x2, sl, raw["l0f"], raw["l0b"])
    l1 = _ref_bidir_layer(l0, sl, raw["l1f"], raw["l1b"])
    rnn2 = jnp.transpose(l1, (1, 0, 2))                           # (B, W, 2H)
    logits = rnn2 @ raw["out_w"] + raw["out_b"]
    return jax.nn.softmax(logits, axis=-1)


# ----------------------------------------------------------------------------
# Deterministic parameter construction (logical / unpadded layout)
# ----------------------------------------------------------------------------
def make_params(key, voc, emb_dim, btw_rnns, hidden_dim, tagset):
    ks = iter(jax.random.split(key, 32))

    def u(shape, scale):
        return jax.random.uniform(next(ks), shape, jnp.float32, -scale, scale)

    def lstm_params(in_dim, hid):
        k = 1.0 / jnp.sqrt(hid)
        wih = u((in_dim, 4 * hid), k)                       # W_ih^T
        whh = u((hid, 4 * hid), k)                          # W_hh^T
        b = u((1, 4 * hid), k) + u((1, 4 * hid), k)         # b_ih + b_hh
        return (wih, whh, b)

    params = {"emb": jax.random.normal(next(ks), (voc, emb_dim), jnp.float32)}
    params["char_wih"], params["char_whh"], params["char_b"] = lstm_params(emb_dim, btw_rnns)
    params["l0f"] = lstm_params(btw_rnns, hidden_dim)
    params["l0b"] = lstm_params(btw_rnns, hidden_dim)
    params["l1f"] = lstm_params(2 * hidden_dim, hidden_dim)
    params["l1b"] = lstm_params(2 * hidden_dim, hidden_dim)
    k_out = 1.0 / jnp.sqrt(2 * hidden_dim)
    params["out_w"] = u((2 * hidden_dim, tagset), k_out)    # Linear weight^T
    params["out_b"] = u((1, tagset), k_out)
    return params


# ----------------------------------------------------------------------------
if __name__ == "__main__":
    # Small hyper-parameters (init_hyper_parameters_from_values path)
    VOC = 50          # voc_length
    TAGSET = 10       # tagset_size
    EMB = 16          # embedding_dim
    BTW = 32          # btw_rnns (char-LSTM hidden)
    HID = 32          # hidden_dim (sentence-LSTM hidden; output is 2*HID)
    B, W, L = 2, 6, 8  # sentences, words per sentence, chars per word

    key = jax.random.PRNGKey(0)
    k_par, k_sent, k_wlen, k_slen = jax.random.split(key, 4)

    raw_params = make_params(k_par, VOC, EMB, BTW, HID, TAGSET)
    kernel_params = prepare_kernel_params(raw_params)

    sentence = jax.random.randint(k_sent, (B, W, L), 1, VOC, dtype=jnp.int32)
    w_lens = jax.random.randint(k_wlen, (B * W,), 0, L + 1, dtype=jnp.int32)
    w_lens = w_lens.at[0].set(L)                     # at least one full-length word
    sentence_lens = jax.random.randint(k_slen, (B,), 1, W + 1, dtype=jnp.int32)
    sentence_lens = sentence_lens.at[0].set(W)       # max sentence length == W (required by .view)

    out = transducer_b_forward(kernel_params, sentence, sentence_lens, w_lens, tagset=TAGSET)
    out = jax.block_until_ready(out)

    assert out.shape == (B, W, TAGSET), out.shape
    # valid rows are (approximately, due to approx reciprocal) proper distributions
    assert bool(jnp.all(jnp.abs(jnp.sum(out, axis=-1) - 1.0) < 2e-2))
    # match the pure-JAX masked-LSTM reference
    ref = transducer_b_reference(raw_params, sentence, sentence_lens, w_lens)
    max_err = float(jnp.max(jnp.abs(out - ref)))
    assert max_err < 2e-2, max_err
    print("KERNEL_OK")
</pallas_src>

<mosaic_0001>
module attributes {stable_mosaic.version = 11 : i64} {
  func.func @_proj_kernel(%arg0: i32, %arg1: memref<96x16xf32, #tpu.memory_space<vmem>>, %arg2: memref<16x512xf32, #tpu.memory_space<vmem>>, %arg3: memref<1x512xf32, #tpu.memory_space<vmem>>, %arg4: memref<96x512xf32, #tpu.memory_space<vmem>>) attributes {dimension_semantics = [#tpu.dimension_semantics<arbitrary>], iteration_bounds = array<i64: 1>, scalar_prefetch = 0 : i64, scratch_operands = 0 : i64, tpu.core_type = #tpu.core_type<tc>, window_params = [{pipeline_mode = #tpu.pipeline_mode<synchronous>, transform_indices = @transform_0, window_bounds = array<i64: 96, 16>}, {pipeline_mode = #tpu.pipeline_mode<synchronous>, transform_indices = @transform_1, window_bounds = array<i64: 16, 512>}, {pipeline_mode = #tpu.pipeline_mode<synchronous>, transform_indices = @transform_2, window_bounds = array<i64: 1, 512>}, {pipeline_mode = #tpu.pipeline_mode<synchronous>, transform_indices = @transform_3, window_bounds = array<i64: 96, 512>}]} {
    %c0 = arith.constant 0 : index
    %c0_0 = arith.constant 0 : index
    %0 = vector.load %arg1[%c0, %c0_0] : memref<96x16xf32, #tpu.memory_space<vmem>>, vector<96x16xf32>
    %c0_1 = arith.constant 0 : index
    %c0_2 = arith.constant 0 : index
    %1 = vector.load %arg2[%c0_1, %c0_2] : memref<16x512xf32, #tpu.memory_space<vmem>>, vector<16x512xf32>
    %cst = arith.constant dense<0.000000e+00> : vector<96x512xf32>
    %2 = tpu.matmul %0, %1, %cst {dimension_numbers = #tpu.dot_dimension_numbers<[1], [0], [0], [1], [0, 0, 1, 1], [], []>} : vector<96x16xf32>, vector<16x512xf32>, vector<96x512xf32> -> vector<96x512xf32>
    %c0_3 = arith.constant 0 : index
    %c0_4 = arith.constant 0 : index
    %3 = vector.load %arg3[%c0_3, %c0_4] : memref<1x512xf32, #tpu.memory_space<vmem>>, vector<1x512xf32>
    %4 = vector.broadcast %3 : vector<1x512xf32> to vector<96x512xf32>
    %5 = arith.addf %2, %4 : vector<96x512xf32>
    %c0_5 = arith.constant 0 : index
    %c0_6 = arith.constant 0 : index
    %6 = vector.load %arg4[%c0_5, %c0_6] : memref<96x512xf32, #tpu.memory_space<vmem>>, vector<96x512xf32>
    tpu.vector_store %arg4[%c0_5, %c0_6], %5 {strides = array<i32>} : memref<96x512xf32, #tpu.memory_space<vmem>>, vector<96x512xf32>,
    return
  }
  func.func @transform_0(%arg0: i32) -> (i32, i32) {
    %c0_i32 = arith.constant 0 : i32
    %c0_i32_0 = arith.constant 0 : i32
    %c0_i32_1 = arith.constant 0 : i32
    return %c0_i32, %c0_i32_0 : i32, i32
  }
  func.func @transform_1(%arg0: i32) -> (i32, i32) {
    %c0_i32 = arith.constant 0 : i32
    %c0_i32_0 = arith.constant 0 : i32
    %c0_i32_1 = arith.constant 0 : i32
    return %c0_i32, %c0_i32_0 : i32, i32
  }
  func.func @transform_2(%arg0: i32) -> (i32, i32) {
    %c0_i32 = arith.constant 0 : i32
    %c0_i32_0 = arith.constant 0 : i32
    %c0_i32_1 = arith.constant 0 : i32
    return %c0_i32, %c0_i32_0 : i32, i32
  }
  func.func @transform_3(%arg0: i32) -> (i32, i32) {
    %c0_i32 = arith.constant 0 : i32
    %c0_i32_0 = arith.constant 0 : i32
    %c0_i32_1 = arith.constant 0 : i32
    return %c0_i32, %c0_i32_0 : i32, i32
  }
}

module attributes {stable_mosaic.version = 11 : i64} {
  func.func @_lstm_last_kernel(%arg0: i32, %arg1: memref<8x12x512xf32, #tpu.memory_space<vmem>>, %arg2: memref<128x512xf32, #tpu.memory_space<vmem>>, %arg3: memref<12x1xi32, #tpu.memory_space<vmem>>, %arg4: memref<12x128xf32, #tpu.memory_space<vmem>>, %arg5: memref<12x128xf32, #tpu.memory_space<vmem>>, %arg6: memref<12x128xf32, #tpu.memory_space<vmem>>) attributes {dimension_semantics = [#tpu.dimension_semantics<arbitrary>], iteration_bounds = array<i64: 1>, scalar_prefetch = 0 : i64, scratch_operands = 2 : i64, tpu.core_type = #tpu.core_type<tc>, window_params = [{pipeline_mode = #tpu.pipeline_mode<synchronous>, transform_indices = @transform_0, window_bounds = array<i64: 8, 12, 512>}, {pipeline_mode = #tpu.pipeline_mode<synchronous>, transform_indices = @transform_1, window_bounds = array<i64: 128, 512>}, {pipeline_mode = #tpu.pipeline_mode<synchronous>, transform_indices = @transform_2, window_bounds = array<i64: 12, 1>}, {pipeline_mode = #tpu.pipeline_mode<synchronous>, transform_indices = @transform_3, window_bounds = array<i64: 12, 128>}]} {
    %cst = arith.constant 0.000000e+00 : f32
    %0 = vector.broadcast %cst : f32 to vector<12x128xf32>
    %c0 = arith.constant 0 : index
    %c0_0 = arith.constant 0 : index
    %1 = vector.load %arg5[%c0, %c0_0] : memref<12x128xf32, #tpu.memory_space<vmem>>, vector<12x128xf32>
    tpu.vector_store %arg5[%c0, %c0_0], %0 {strides = array<i32>} : memref<12x128xf32, #tpu.memory_space<vmem>>, vector<12x128xf32>,
    %cst_1 = arith.constant 0.000000e+00 : f32
    %2 = vector.broadcast %cst_1 : f32 to vector<12x128xf32>
    %c0_2 = arith.constant 0 : index
    %c0_3 = arith.constant 0 : index
    %3 = vector.load %arg6[%c0_2, %c0_3] : memref<12x128xf32, #tpu.memory_space<vmem>>, vector<12x128xf32>
    tpu.vector_store %arg6[%c0_2, %c0_3], %2 {strides = array<i32>} : memref<12x128xf32, #tpu.memory_space<vmem>>, vector<12x128xf32>,
    %c0_4 = arith.constant 0 : index
    %c0_5 = arith.constant 0 : index
    %4 = vector.load %arg2[%c0_4, %c0_5] : memref<128x512xf32, #tpu.memory_space<vmem>>, vector<128x512xf32>
    %c0_6 = arith.constant 0 : index
    %c0_7 = arith.constant 0 : index
    %5 = vector.load %arg3[%c0_6, %c0_7] : memref<12x1xi32, #tpu.memory_space<vmem>>, vector<12x1xi32>
    %c0_i32 = arith.constant 0 : i32
    %6 = vector.broadcast %c0_i32 : i32 to vector<12x1xi32>
    %7 = arith.cmpi sgt, %5, %6 : vector<12x1xi32>
    %8 = arith.extui %7 : vector<12x1xi1> to vector<12x1xi32>
    %9 = arith.sitofp %8 : vector<12x1xi32> to vector<12x1xf32>
    %c0_8 = arith.constant 0 : index
    %c0_9 = arith.constant 0 : index
    %c0_10 = arith.constant 0 : index
    %10 = vector.load %arg1[%c0_8, %c0_9, %c0_10] : memref<8x12x512xf32, #tpu.memory_space<vmem>>, vector<1x12x512xf32>
    %11 = vector.shape_cast %10 : vector<1x12x512xf32> to vector<12x512xf32>
    %c0_11 = arith.constant 0 : index
    %c0_12 = arith.constant 0 : index
    %12 = vector.load %arg5[%c0_11, %c0_12] : memref<12x128xf32, #tpu.memory_space<vmem>>, vector<12x128xf32>
    %c0_13 = arith.constant 0 : index
    %c0_14 = arith.constant 0 : index
    %13 = vector.load %arg6[%c0_13, %c0_14] : memref<12x128xf32, #tpu.memory_space<vmem>>, vector<12x128xf32>
    %cst_15 = arith.constant dense<0.000000e+00> : vector<12x512xf32>
    %14 = tpu.matmul %12, %4, %cst_15 {dimension_numbers = #tpu.dot_dimension_numbers<[1], [0], [0], [1], [0, 0, 1, 1], [], []>} : vector<12x128xf32>, vector<128x512xf32>, vector<12x512xf32> -> vector<12x512xf32>
    %15 = arith.addf %11, %14 : vector<12x512xf32>
    %16 = vector.extract_strided_slice %15 {offsets = [0, 0], sizes = [12, 128], strides = [1, 1]} : vector<12x512xf32> to vector<12x128xf32>
    %17 = arith.negf %16 : vector<12x128xf32>
    %18 = math.exp %17 : vector<12x128xf32>
    %cst_16 = arith.constant 1.000000e+00 : f32
    %19 = vector.broadcast %cst_16 : f32 to vector<12x128xf32>
    %20 = arith.addf %19, %18 : vector<12x128xf32>
    %21 = arith.divf %19, %20 : vector<12x128xf32>
    %22 = vector.extract_strided_slice %15 {offsets = [0, 128], sizes = [12, 128], strides = [1, 1]} : vector<12x512xf32> to vector<12x128xf32>
    %23 = arith.negf %22 : vector<12x128xf32>
    %24 = math.exp %23 : vector<12x128xf32>
    %cst_17 = arith.constant 1.000000e+00 : f32
    %25 = vector.broadcast %cst_17 : f32 to vector<12x128xf32>
    %26 = arith.addf %25, %24 : vector<12x128xf32>
    %27 = arith.divf %25, %26 : vector<12x128xf32>
    %28 = vector.extract_strided_slice %15 {offsets = [0, 256], sizes = [12, 128], strides = [1, 1]} : vector<12x512xf32> to vector<12x128xf32>
    %29 = math.tanh %28 : vector<12x128xf32>
    %30 = vector.extract_strided_slice %15 {offsets = [0, 384], sizes = [12, 128], strides = [1, 1]} : vector<12x512xf32> to vector<12x128xf32>
    %31 = arith.negf %30 : vector<12x128xf32>
    %32 = math.exp %31 : vector<12x128xf32>
    %cst_18 = arith.constant 1.000000e+00 : f32
    %33 = vector.broadcast %cst_18 : f32 to vector<12x128xf32>
    %34 = arith.addf %33, %32 : vector<12x128xf32>
    %35 = arith.divf %33, %34 : vector<12x128xf32>
    %36 = arith.mulf %27, %13 : vector<12x128xf32>
    %37 = arith.mulf %21, %29 : vector<12x128xf32>
    %38 = arith.addf %36, %37 : vector<12x128xf32>
    %39 = math.tanh %38 : vector<12x128xf32>
    %40 = arith.mulf %35, %39 : vector<12x128xf32>
    %41 = vector.broadcast %9 : vector<12x1xf32> to vector<12x128xf32>
    %42 = arith.mulf %41, %40 : vector<12x128xf32>
    %cst_19 = arith.constant 1.000000e+00 : f32
    %43 = vector.broadcast %cst_19 : f32 to vector<12x1xf32>
    %44 = arith.subf %43, %9 : vector<12x1xf32>
    %45 = vector.broadcast %44 : vector<12x1xf32> to vector<12x128xf32>
    %46 = arith.mulf %45, %12 : vector<12x128xf32>
    %47 = arith.addf %42, %46 : vector<12x128xf32>
    %48 = vector.broadcast %9 : vector<12x1xf32> to vector<12x128xf32>
    %49 = arith.mulf %48, %38 : vector<12x128xf32>
    %cst_20 = arith.constant 1.000000e+00 : f32
    %50 = vector.broadcast %cst_20 : f32 to vector<12x1xf32>
    %51 = arith.subf %50, %9 : vector<12x1xf32>
    %52 = vector.broadcast %51 : vector<12x1xf32> to vector<12x128xf32>
    %53 = arith.mulf %52, %13 : vector<12x128xf32>
    %54 = arith.addf %49, %53 : vector<12x128xf32>
    %c0_21 = arith.constant 0 : index
    %c0_22 = arith.constant 0 : index
    %55 = vector.load %arg5[%c0_21, %c0_22] : memref<12x128xf32, #tpu.memory_space<vmem>>, vector<12x128xf32>
    tpu.vector_store %arg5[%c0_21, %c0_22], %47 {strides = array<i32>} : memref<12x128xf32, #tpu.memory_space<vmem>>, vector<12x128xf32>,
    %c0_23 = arith.constant 0 : index
    %c0_24 = arith.constant 0 : index
    %56 = vector.load %arg6[%c0_23, %c0_24] : memref<12x128xf32, #tpu.memory_space<vmem>>, vector<12x128xf32>
    tpu.vector_store %arg6[%c0_23, %c0_24], %54 {strides = array<i32>} : memref<12x128xf32, #tpu.memory_space<vmem>>, vector<12x128xf32>,
    %c1_i32 = arith.constant 1 : i32
    %57 = vector.broadcast %c1_i32 : i32 to vector<12x1xi32>
    %58 = arith.cmpi sgt, %5, %57 : vector<12x1xi32>
    %59 = arith.extui %58 : vector<12x1xi1> to vector<12x1xi32>
    %60 = arith.sitofp %59 : vector<12x1xi32> to vector<12x1xf32>
    %c1 = arith.constant 1 : index
    %c0_25 = arith.constant 0 : index
    %c0_26 = arith.constant 0 : index
    %61 = vector.load %arg1[%c1, %c0_25, %c0_26] : memref<8x12x512xf32, #tpu.memory_space<vmem>>, vector<1x12x512xf32>
    %62 = vector.shape_cast %61 : vector<1x12x512xf32> to vector<12x512xf32>
    %c0_27 = arith.constant 0 : index
    %c0_28 = arith.constant 0 : index
    %63 = vector.load %arg5[%c0_27, %c0_28] : memref<12x128xf32, #tpu.memory_space<vmem>>, vector<12x128xf32>
    %c0_29 = arith.constant 0 : index
    %c0_30 = arith.constant 0 : index
    %64 = vector.load %arg6[%c0_29, %c0_30] : memref<12x128xf32, #tpu.memory_space<vmem>>, vector<12x128xf32>
    %cst_31 = arith.constant dense<0.000000e+00> : vector<12x512xf32>
    %65 = tpu.matmul %63, %4, %cst_31 {dimension_numbers = #tpu.dot_dimension_numbers<[1], [0], [0], [1], [0, 0, 1, 1], [], []>} : vector<12x128xf32>, vector<128x512xf32>, vector<12x512xf32> -> vector<12x512xf32>
    %66 = arith.addf %62, %65 : vector<12x512xf32>
    %67 = vector.extract_strided_slice %66 {offsets = [0, 0], sizes = [12, 128], strides = [1, 1]} : vector<12x512xf32> to vector<12x128xf32>
    %68 = arith.negf %67 : vector<12x128xf32>
    %69 = math.exp %68 : vector<12x128xf32>
    %cst_32 = arith.constant 1.000000e+00 : f32
    %70 = vector.broadcast %cst_32 : f32 to vector<12x128xf32>
    %71 = arith.addf %70, %69 : vector<12x128xf32>
    %72 = arith.divf %70, %71 : vector<12x128xf32>
    %73 = vector.extract_strided_slice %66 {offsets = [0, 128], sizes = [12, 128], strides = [1, 1]} : vector<12x512xf32> to vector<12x128xf32>
    %74 = arith.negf %73 : vector<12x128xf32>
    %75 = math.exp %74 : vector<12x128xf32>
    %cst_33 = arith.constant 1.000000e+00 : f32
    %76 = vector.broadcast %cst_33 : f32 to vector<12x128xf32>
    %77 = arith.addf %76, %75 : vector<12x128xf32>
    %78 = arith.divf %76, %77 : vector<12x128xf32>
    %79 = vector.extract_strided_slice %66 {offsets = [0, 256], sizes = [12, 128], strides = [1, 1]} : vector<12x512xf32> to vector<12x128xf32>
    %80 = math.tanh %79 : vector<12x128xf32>
    %81 = vector.extract_strided_slice %66 {offsets = [0, 384], sizes = [12, 128], strides = [1, 1]} : vector<12x512xf32> to vector<12x128xf32>
    %82 = arith.negf %81 : vector<12x128xf32>
    %83 = math.exp %82 : vector<12x128xf32>
    %cst_34 = arith.constant 1.000000e+00 : f32
    %84 = vector.broadcast %cst_34 : f32 to vector<12x128xf32>
    %85 = arith.addf %84, %83 : vector<12x128xf32>
    %86 = arith.divf %84, %85 : vector<12x128xf32>
    %87 = arith.mulf %78, %64 : vector<12x128xf32>
    %88 = arith.mulf %72, %80 : vector<12x128xf32>
    %89 = arith.addf %87, %88 : vector<12x128xf32>
    %90 = math.tanh %89 : vector<12x128xf32>
    %91 = arith.mulf %86, %90 : vector<12x128xf32>
    %92 = vector.broadcast %60 : vector<12x1xf32> to vector<12x128xf32>
    %93 = arith.mulf %92, %91 : vector<12x128xf32>
    %cst_35 = arith.constant 1.000000e+00 : f32
    %94 = vector.broadcast %cst_35 : f32 to vector<12x1xf32>
    %95 = arith.subf %94, %60 : vector<12x1xf32>
    %96 = vector.broadcast %95 : vector<12x1xf32> to vector<12x128xf32>
    %97 = arith.mulf %96, %63 : vector<12x128xf32>
    %98 = arith.addf %93, %97 : vector<12x128xf32>
    %99 = vector.broadcast %60 : vector<12x1xf32> to vector<12x128xf32>
    %100 = arith.mulf %99, %89 : vector<12x128xf32>
    %cst_36 = arith.constant 1.000000e+00 : f32
    %101 = vector.broadcast %cst_36 : f32 to vector<12x1xf32>
    %102 = arith.subf %101, %60 : vector<12x1xf32>
    %103 = vector.broadcast %102 : vector<12x1xf32> to vector<12x128xf32>
    %104 = arith.mulf %103, %64 : vector<12x128xf32>
    %105 = arith.addf %100, %104 : vector<12x128xf32>
    %c0_37 = arith.constant 0 : index
    %c0_38 = arith.constant 0 : index
    %106 = vector.load %arg5[%c0_37, %c0_38] : memref<12x128xf32, #tpu.memory_space<vmem>>, vector<12x128xf32>
    tpu.vector_store %arg5[%c0_37, %c0_38], %98 {strides = array<i32>} : memref<12x128xf32, #tpu.memory_space<vmem>>, vector<12x128xf32>,
    %c0_39 = arith.constant 0 : index
    %c0_40 = arith.constant 0 : index
    %107 = vector.load %arg6[%c0_39, %c0_40] : memref<12x128xf32, #tpu.memory_space<vmem>>, vector<12x128xf32>
    tpu.vector_store %arg6[%c0_39, %c0_40], %105 {strides = array<i32>} : memref<12x128xf32, #tpu.memory_space<vmem>>, vector<12x128xf32>,
    %c2_i32 = arith.constant 2 : i32
    %108 = vector.broadcast %c2_i32 : i32 to vector<12x1xi32>
    %109 = arith.cmpi sgt, %5, %108 : vector<12x1xi32>
    %110 = arith.extui %109 : vector<12x1xi1> to vector<12x1xi32>
    %111 = arith.sitofp %110 : vector<12x1xi32> to vector<12x1xf32>
    %c2 = arith.constant 2 : index
    %c0_41 = arith.constant 0 : index
    %c0_42 = arith.constant 0 : index
    %112 = vector.load %arg1[%c2, %c0_41, %c0_42] : memref<8x12x512xf32, #tpu.memory_space<vmem>>, vector<1x12x512xf32>
    %113 = vector.shape_cast %112 : vector<1x12x512xf32> to vector<12x512xf32>
    %c0_43 = arith.constant 0 : index
    %c0_44 = arith.constant 0 : index
    %114 = vector.load %arg5[%c0_43, %c0_44] : memref<12x128xf32, #tpu.memory_space<vmem>>, vector<12x128xf32>
    %c0_45 = arith.constant 0 : index
    %c0_46 = arith.constant 0 : index
    %115 = vector.load %arg6[%c0_45, %c0_46] : memref<12x128xf32, #tpu.memory_space<vmem>>, vector<12x128xf32>
    %cst_47 = arith.constant dense<0.000000e+00> : vector<12x512xf32>
    %116 = tpu.matmul %114, %4, %cst_47 {dimension_numbers = #tpu.dot_dimension_numbers<[1], [0], [0], [1], [0, 0, 1, 1], [], []>} : vector<12x128xf32>, vector<128x512xf32>, vector<12x512xf32> -> vector<12x512xf32>
    %117 = arith.addf %113, %116 : vector<12x512xf32>
    %118 = vector.extract_strided_slice %117 {offsets = [0, 0], sizes = [12, 128], strides = [1, 1]} : vector<12x512xf32> to vector<12x128xf32>
    %119 = arith.negf %118 : vector<12x128xf32>
    %120 = math.exp %119 : vector<12x128xf32>
    %cst_48 = arith.constant 1.000000e+00 : f32
    %121 = vector.broadcast %cst_48 : f32 to vector<12x128xf32>
    %122 = arith.addf %121, %120 : vector<12x128xf32>
    %123 = arith.divf %121, %122 : vector<12x128xf32>
    %124 = vector.extract_strided_slice %117 {offsets = [0, 128], sizes = [12, 128], strides = [1, 1]} : vector<12x512xf32> to vector<12x128xf32>
    %125 = arith.negf %124 : vector<12x128xf32>
    %126 = math.exp %125 : vector<12x128xf32>
    %cst_49 = arith.constant 1.000000e+00 : f32
    %127 = vector.broadcast %cst_49 : f32 to vector<12x128xf32>
    %128 = arith.addf %127, %126 : vector<12x128xf32>
    %129 = arith.divf %127, %128 : vector<12x128xf32>
    %130 = vector.extract_strided_slice %117 {offsets = [0, 256], sizes = [12, 128], strides = [1, 1]} : vector<12x512xf32> to vector<12x128xf32>
    %131 = math.tanh %130 : vector<12x128xf32>
    %132 = vector.extract_strided_slice %117 {offsets = [0, 384], sizes = [12, 128], strides = [1, 1]} : vector<12x512xf32> to vector<12x128xf32>
    %133 = arith.negf %132 : vector<12x128xf32>
    %134 = math.exp %133 : vector<12x128xf32>
    %cst_50 = arith.constant 1.000000e+00 : f32
    %135 = vector.broadcast %cst_50 : f32 to vector<12x128xf32>
    %136 = arith.addf %135, %134 : vector<12x128xf32>
    %137 = arith.divf %135, %136 : vector<12x128xf32>
    %138 = arith.mulf %129, %115 : vector<12x128xf32>
    %139 = arith.mulf %123, %131 : vector<12x128xf32>
    %140 = arith.addf %138, %139 : vector<12x128xf32>
    %141 = math.tanh %140 : vector<12x128xf32>
    %142 = arith.mulf %137, %141 : vector<12x128xf32>
    %143 = vector.broadcast %111 : vector<12x1xf32> to vector<12x128xf32>
    %144 = arith.mulf %143, %142 : vector<12x128xf32>
    %cst_51 = arith.constant 1.000000e+00 : f32
    %145 = vector.broadcast %cst_51 : f32 to vector<12x1xf32>
    %146 = arith.subf %145, %111 : vector<12x1xf32>
    %147 = vector.broadcast %146 : vector<12x1xf32> to vector<12x128xf32>
    %148 = arith.mulf %147, %114 : vector<12x128xf32>
    %149 = arith.addf %144, %148 : vector<12x128xf32>
    %150 = vector.broadcast %111 : vector<12x1xf32> to vector<12x128xf32>
    %151 = arith.mulf %150, %140 : vector<12x128xf32>
    %cst_52 = arith.constant 1.000000e+00 : f32
    %152 = vector.broadcast %cst_52 : f32 to vector<12x1xf32>
    %153 = arith.subf %152, %111 : vector<12x1xf32>
    %154 = vector.broadcast %153 : vector<12x1xf32> to vector<12x128xf32>
    %155 = arith.mulf %154, %115 : vector<12x128xf32>
    %156 = arith.addf %151, %155 : vector<12x128xf32>
    %c0_53 = arith.constant 0 : index
    %c0_54 = arith.constant 0 : index
    %157 = vector.load %arg5[%c0_53, %c0_54] : memref<12x128xf32, #tpu.memory_space<vmem>>, vector<12x128xf32>
    tpu.vector_store %arg5[%c0_53, %c0_54], %149 {strides = array<i32>} : memref<12x128xf32, #tpu.memory_space<vmem>>, vector<12x128xf32>,
    %c0_55 = arith.constant 0 : index
    %c0_56 = arith.constant 0 : index
    %158 = vector.load %arg6[%c0_55, %c0_56] : memref<12x128xf32, #tpu.memory_space<vmem>>, vector<12x128xf32>
    tpu.vector_store %arg6[%c0_55, %c0_56], %156 {strides = array<i32>} : memref<12x128xf32, #tpu.memory_space<vmem>>, vector<12x128xf32>,
    %c3_i32 = arith.constant 3 : i32
    %159 = vector.broadcast %c3_i32 : i32 to vector<12x1xi32>
    %160 = arith.cmpi sgt, %5, %159 : vector<12x1xi32>
    %161 = arith.extui %160 : vector<12x1xi1> to vector<12x1xi32>
    %162 = arith.sitofp %161 : vector<12x1xi32> to vector<12x1xf32>
    %c3 = arith.constant 3 : index
    %c0_57 = arith.constant 0 : index
    %c0_58 = arith.constant 0 : index
    %163 = vector.load %arg1[%c3, %c0_57, %c0_58] : memref<8x12x512xf32, #tpu.memory_space<vmem>>, vector<1x12x512xf32>
    %164 = vector.shape_cast %163 : vector<1x12x512xf32> to vector<12x512xf32>
    %c0_59 = arith.constant 0 : index
    %c0_60 = arith.constant 0 : index
    %165 = vector.load %arg5[%c0_59, %c0_60] : memref<12x128xf32, #tpu.memory_space<vmem>>, vector<12x128xf32>
    %c0_61 = arith.constant 0 : index
    %c0_62 = arith.constant 0 : index
    %166 = vector.load %arg6[%c0_61, %c0_62] : memref<12x128xf32, #tpu.memory_space<vmem>>, vector<12x128xf32>
    %cst_63 = arith.constant dense<0.000000e+00> : vector<12x512xf32>
    %167 = tpu.matmul %165, %4, %cst_63 {dimension_numbers = #tpu.dot_dimension_numbers<[1], [0], [0], [1], [0, 0, 1, 1], [], []>} : vector<12x128xf32>, vector<128x512xf32>, vector<12x512xf32> -> vector<12x512xf32>
    %168 = arith.addf %164, %167 : vector<12x512xf32>
    %169 = vector.extract_strided_slice %168 {offsets = [0, 0], sizes = [12, 128], strides = [1, 1]} : vector<12x512xf32> to vector<12x128xf32>
    %170 = arith.negf %169 : vector<12x128xf32>
    %171 = math.exp %170 : vector<12x128xf32>
    %cst_64 = arith.constant 1.000000e+00 : f32
    %172 = vector.broadcast %cst_64 : f32 to vector<12x128xf32>
    %173 = arith.addf %172, %171 : vector<12x128xf32>
    %174 = arith.divf %172, %173 : vector<12x128xf32>
    %175 = vector.extract_strided_slice %168 {offsets = [0, 128], sizes = [12, 128], strides = [1, 1]} : vector<12x512xf32> to vector<12x128xf32>
    %176 = arith.negf %175 : vector<12x128xf32>
    %177 = math.exp %176 : vector<12x128xf32>
    %cst_65 = arith.constant 1.000000e+00 : f32
    %178 = vector.broadcast %cst_65 : f32 to vector<12x128xf32>
    %179 = arith.addf %178, %177 : vector<12x128xf32>
    %180 = arith.divf %178, %179 : vector<12x128xf32>
    %181 = vector.extract_strided_slice %168 {offsets = [0, 256], sizes = [12, 128], strides = [1, 1]} : vector<12x512xf32> to vector<12x128xf32>
    %182 = math.tanh %181 : vector<12x128xf32>
    %183 = vector.extract_strided_slice %168 {offsets = [0, 384], sizes = [12, 128], strides = [1, 1]} : vector<12x512xf32> to vector<12x128xf32>
    %184 = arith.negf %183 : vector<12x128xf32>
    %185 = math.exp %184 : vector<12x128xf32>
    %cst_66 = arith.constant 1.000000e+00 : f32
    %186 = vector.broadcast %cst_66 : f32 to vector<12x128xf32>
    %187 = arith.addf %186, %185 : vector<12x128xf32>
    %188 = arith.divf %186, %187 : vector<12x128xf32>
    %189 = arith.mulf %180, %166 : vector<12x128xf32>
    %190 = arith.mulf %174, %182 : vector<12x128xf32>
    %191 = arith.addf %189, %190 : vector<12x128xf32>
    %192 = math.tanh %191 : vector<12x128xf32>
    %193 = arith.mulf %188, %192 : vector<12x128xf32>
    %194 = vector.broadcast %162 : vector<12x1xf32> to vector<12x128xf32>
    %195 = arith.mulf %194, %193 : vector<12x128xf32>
    %cst_67 = arith.constant 1.000000e+00 : f32
    %196 = vector.broadcast %cst_67 : f32 to vector<12x1xf32>
    %197 = arith.subf %196, %162 : vector<12x1xf32>
    %198 = vector.broadcast %197 : vector<12x1xf32> to vector<12x128xf32>
    %199 = arith.mulf %198, %165 : vector<12x128xf32>
    %200 = arith.addf %195, %199 : vector<12x128xf32>
    %201 = vector.broadcast %162 : vector<12x1xf32> to vector<12x128xf32>
    %202 = arith.mulf %201, %191 : vector<12x128xf32>
    %cst_68 = arith.constant 1.000000e+00 : f32
    %203 = vector.broadcast %cst_68 : f32 to vector<12x1xf32>
    %204 = arith.subf %203, %162 : vector<12x1xf32>
    %205 = vector.broadcast %204 : vector<12x1xf32> to vector<12x128xf32>
    %206 = arith.mulf %205, %166 : vector<12x128xf32>
    %207 = arith.addf %202, %206 : vector<12x128xf32>
    %c0_69 = arith.constant 0 : index
    %c0_70 = arith.constant 0 : index
    %208 = vector.load %arg5[%c0_69, %c0_70] : memref<12x128xf32, #tpu.memory_space<vmem>>, vector<12x128xf32>
    tpu.vector_store %arg5[%c0_69, %c0_70], %200 {strides = array<i32>} : memref<12x128xf32, #tpu.memory_space<vmem>>, vector<12x128xf32>,
    %c0_71 = arith.constant 0 : index
    %c0_72 = arith.constant 0 : index
    %209 = vector.load %arg6[%c0_71, %c0_72] : memref<12x128xf32, #tpu.memory_space<vmem>>, vector<12x128xf32>
    tpu.vector_store %arg6[%c0_71, %c0_72], %207 {strides = array<i32>} : memref<12x128xf32, #tpu.memory_space<vmem>>, vector<12x128xf32>,
    %c4_i32 = arith.constant 4 : i32
    %210 = vector.broadcast %c4_i32 : i32 to vector<12x1xi32>
    %211 = arith.cmpi sgt, %5, %210 : vector<12x1xi32>
    %212 = arith.extui %211 : vector<12x1xi1> to vector<12x1xi32>
    %213 = arith.sitofp %212 : vector<12x1xi32> to vector<12x1xf32>
    %c4 = arith.constant 4 : index
    %c0_73 = arith.constant 0 : index
    %c0_74 = arith.constant 0 : index
    %214 = vector.load %arg1[%c4, %c0_73, %c0_74] : memref<8x12x512xf32, #tpu.memory_space<vmem>>, vector<1x12x512xf32>
    %215 = vector.shape_cast %214 : vector<1x12x512xf32> to vector<12x512xf32>
    %c0_75 = arith.constant 0 : index
    %c0_76 = arith.constant 0 : index
    %216 = vector.load %arg5[%c0_75, %c0_76] : memref<12x128xf32, #tpu.memory_space<vmem>>, vector<12x128xf32>
    %c0_77 = arith.constant 0 : index
    %c0_78 = arith.constant 0 : index
    %217 = vector.load %arg6[%c0_77, %c0_78] : memref<12x128xf32, #tpu.memory_space<vmem>>, vector<12x128xf32>
    %cst_79 = arith.constant dense<0.000000e+00> : vector<12x512xf32>
    %218 = tpu.matmul %216, %4, %cst_79 {dimension_numbers = #tpu.dot_dimension_numbers<[1], [0], [0], [1], [0, 0, 1, 1], [], []>} : vector<12x128xf32>, vector<128x512xf32>, vector<12x512xf32> -> vector<12x512xf32>
    %219 = arith.addf %215, %218 : vector<12x512xf32>
    %220 = vector.extract_strided_slice %219 {offsets = [0, 0], sizes = [12, 128], strides = [1, 1]} : vector<12x512xf32> to vector<12x128xf32>
    %221 = arith.negf %220 : vector<12x128xf32>
    %222 = math.exp %221 : vector<12x128xf32>
    %cst_80 = arith.constant 1.000000e+00 : f32
    %223 = vector.broadcast %cst_80 : f32 to vector<12x128xf32>
    %224 = arith.addf %223, %222 : vector<12x128xf32>
    %225 = arith.divf %223, %224 : vector<12x128xf32>
    %226 = vector.extract_strided_slice %219 {offsets = [0, 128], sizes = [12, 128], strides = [1, 1]} : vector<12x512xf32> to vector<12x128xf32>
    %227 = arith.negf %226 : vector<12x128xf32>
    %228 = math.exp %227 : vector<12x128xf32>
    %cst_81 = arith.constant 1.000000e+00 : f32
    %229 = vector.broadcast %cst_81 : f32 to vector<12x128xf32>
    %230 = arith.addf %229, %228 : vector<12x128xf32>
    %231 = arith.divf %229, %230 : vector<12x128xf32>
    %232 = vector.extract_strided_slice %219 {offsets = [0, 256], sizes = [12, 128], strides = [1, 1]} : vector<12x512xf32> to vector<12x128xf32>
    %233 = math.tanh %232 : vector<12x128xf32>
    %234 = vector.extract_strided_slice %219 {offsets = [0, 384], sizes = [12, 128], strides = [1, 1]} : vector<12x512xf32> to vector<12x128xf32>
    %235 = arith.negf %234 : vector<12x128xf32>
    %236 = math.exp %235 : vector<12x128xf32>
    %cst_82 = arith.constant 1.000000e+00 : f32
    %237 = vector.broadcast %cst_82 : f32 to vector<12x128xf32>
    %238 = arith.addf %237, %236 : vector<12x128xf32>
    %239 = arith.divf %237, %238 : vector<12x128xf32>
    %240 = arith.mulf %231, %217 : vector<12x128xf32>
    %241 = arith.mulf %225, %233 : vector<12x128xf32>
    %242 = arith.addf %240, %241 : vector<12x128xf32>
    %243 = math.tanh %242 : vector<12x128xf32>
    %244 = arith.mulf %239, %243 : vector<12x128xf32>
    %245 = vector.broadcast %213 : vector<12x1xf32> to vector<12x128xf32>
    %246 = arith.mulf %245, %244 : vector<12x128xf32>
    %cst_83 = arith.constant 1.000000e+00 : f32
    %247 = vector.broadcast %cst_83 : f32 to vector<12x1xf32>
    %248 = arith.subf %247, %213 : vector<12x1xf32>
    %249 = vector.broadcast %248 : vector<12x1xf32> to vector<12x128xf32>
    %250 = arith.mulf %249, %216 : vector<12x128xf32>
    %251 = arith.addf %246, %250 : vector<12x128xf32>
    %252 = vector.broadcast %213 : vector<12x1xf32> to vector<12x128xf32>
    %253 = arith.mulf %252, %242 : vector<12x128xf32>
    %cst_84 = arith.constant 1.000000e+00 : f32
    %254 = vector.broadcast %cst_84 : f32 to vector<12x1xf32>
    %255 = arith.subf %254, %213 : vector<12x1xf32>
    %256 = vector.broadcast %255 : vector<12x1xf32> to vector<12x128xf32>
    %257 = arith.mulf %256, %217 : vector<12x128xf32>
    %258 = arith.addf %253, %257 : vector<12x128xf32>
    %c0_85 = arith.constant 0 : index
    %c0_86 = arith.constant 0 : index
    %259 = vector.load %arg5[%c0_85, %c0_86] : memref<12x128xf32, #tpu.memory_space<vmem>>, vector<12x128xf32>
    tpu.vector_store %arg5[%c0_85, %c0_86], %251 {strides = array<i32>} : memref<12x128xf32, #tpu.memory_space<vmem>>, vector<12x128xf32>,
    %c0_87 = arith.constant 0 : index
    %c0_88 = arith.constant 0 : index
    %260 = vector.load %arg6[%c0_87, %c0_88] : memref<12x128xf32, #tpu.memory_space<vmem>>, vector<12x128xf32>
    tpu.vector_store %arg6[%c0_87, %c0_88], %258 {strides = array<i32>} : memref<12x128xf32, #tpu.memory_space<vmem>>, vector<12x128xf32>,
    %c5_i32 = arith.constant 5 : i32
    %261 = vector.broadcast %c5_i32 : i32 to vector<12x1xi32>
    %262 = arith.cmpi sgt, %5, %261 : vector<12x1xi32>
    %263 = arith.extui %262 : vector<12x1xi1> to vector<12x1xi32>
    %264 = arith.sitofp %263 : vector<12x1xi32> to vector<12x1xf32>
    %c5 = arith.constant 5 : index
    %c0_89 = arith.constant 0 : index
    %c0_90 = arith.constant 0 : index
    %265 = vector.load %arg1[%c5, %c0_89, %c0_90] : memref<8x12x512xf32, #tpu.memory_space<vmem>>, vector<1x12x512xf32>
    %266 = vector.shape_cast %265 : vector<1x12x512xf32> to vector<12x512xf32>
    %c0_91 = arith.constant 0 : index
    %c0_92 = arith.constant 0 : index
    %267 = vector.load %arg5[%c0_91, %c0_92] : memref<12x128xf32, #tpu.memory_space<vmem>>, vector<12x128xf32>
    %c0_93 = arith.constant 0 : index
    %c0_94 = arith.constant 0 : index
    %268 = vector.load %arg6[%c0_93, %c0_94] : memref<12x128xf32, #tpu.memory_space<vmem>>, vector<12x128xf32>
    %cst_95 = arith.constant dense<0.000000e+00> : vector<12x512xf32>
    %269 = tpu.matmul %267, %4, %cst_95 {dimension_numbers = #tpu.dot_dimension_numbers<[1], [0], [0], [1], [0, 0, 1, 1], [], []>} : vector<12x128xf32>, vector<128x512xf32>, vector<12x512xf32> -> vector<12x512xf32>
    %270 = arith.addf %266, %269 : vector<12x512xf32>
    %271 = vector.extract_strided_slice %270 {offsets = [0, 0], sizes = [12, 128], strides = [1, 1]} : vector<12x512xf32> to vector<12x128xf32>
    %272 = arith.negf %271 : vector<12x128xf32>
    %273 = math.exp %272 : vector<12x128xf32>
    %cst_96 = arith.constant 1.000000e+00 : f32
    %274 = vector.broadcast %cst_96 : f32 to vector<12x128xf32>
    %275 = arith.addf %274, %273 : vector<12x128xf32>
    %276 = arith.divf %274, %275 : vector<12x128xf32>
    %277 = vector.extract_strided_slice %270 {offsets = [0, 128], sizes = [12, 128], strides = [1, 1]} : vector<12x512xf32> to vector<12x128xf32>
    %278 = arith.negf %277 : vector<12x128xf32>
    %279 = math.exp %278 : vector<12x128xf32>
    %cst_97 = arith.constant 1.000000e+00 : f32
    %280 = vector.broadcast %cst_97 : f32 to vector<12x128xf32>
    %281 = arith.addf %280, %279 : vector<12x128xf32>
    %282 = arith.divf %280, %281 : vector<12x128xf32>
    %283 = vector.extract_strided_slice %270 {offsets = [0, 256], sizes = [12, 128], strides = [1, 1]} : vector<12x512xf32> to vector<12x128xf32>
    %284 = math.tanh %283 : vector<12x128xf32>
    %285 = vector.extract_strided_slice %270 {offsets = [0, 384], sizes = [12, 128], strides = [1, 1]} : vector<12x512xf32> to vector<12x128xf32>
    %286 = arith.negf %285 : vector<12x128xf32>
    %287 = math.exp %286 : vector<12x128xf32>
    %cst_98 = arith.constant 1.000000e+00 : f32
    %288 = vector.broadcast %cst_98 : f32 to vector<12x128xf32>
    %289 = arith.addf %288, %287 : vector<12x128xf32>
    %290 = arith.divf %288, %289 : vector<12x128xf32>
    %291 = arith.mulf %282, %268 : vector<12x128xf32>
    %292 = arith.mulf %276, %284 : vector<12x128xf32>
    %293 = arith.addf %291, %292 : vector<12x128xf32>
    %294 = math.tanh %293 : vector<12x128xf32>
    %295 = arith.mulf %290, %294 : vector<12x128xf32>
    %296 = vector.broadcast %264 : vector<12x1xf32> to vector<12x128xf32>
    %297 = arith.mulf %296, %295 : vector<12x128xf32>
    %cst_99 = arith.constant 1.000000e+00 : f32
    %298 = vector.broadcast %cst_99 : f32 to vector<12x1xf32>
    %299 = arith.subf %298, %264 : vector<12x1xf32>
    %300 = vector.broadcast %299 : vector<12x1xf32> to vector<12x128xf32>
    %301 = arith.mulf %300, %267 : vector<12x128xf32>
    %302 = arith.addf %297, %301 : vector<12x128xf32>
    %303 = vector.broadcast %264 : vector<12x1xf32> to vector<12x128xf32>
    %304 = arith.mulf %303, %293 : vector<12x128xf32>
    %cst_100 = arith.constant 1.000000e+00 : f32
    %305 = vector.broadcast %cst_100 : f32 to vector<12x1xf32>
    %306 = arith.subf %305, %264 : vector<12x1xf32>
    %307 = vector.broadcast %306 : vector<12x1xf32> to vector<12x128xf32>
    %308 = arith.mulf %307, %268 : vector<12x128xf32>
    %309 = arith.addf %304, %308 : vector<12x128xf32>
    %c0_101 = arith.constant 0 : index
    %c0_102 = arith.constant 0 : index
    %310 = vector.load %arg5[%c0_101, %c0_102] : memref<12x128xf32, #tpu.memory_space<vmem>>, vector<12x128xf32>
    tpu.vector_store %arg5[%c0_101, %c0_102], %302 {strides = array<i32>} : memref<12x128xf32, #tpu.memory_space<vmem>>, vector<12x128xf32>,
    %c0_103 = arith.constant 0 : index
    %c0_104 = arith.constant 0 : index
    %311 = vector.load %arg6[%c0_103, %c0_104] : memref<12x128xf32, #tpu.memory_space<vmem>>, vector<12x128xf32>
    tpu.vector_store %arg6[%c0_103, %c0_104], %309 {strides = array<i32>} : memref<12x128xf32, #tpu.memory_space<vmem>>, vector<12x128xf32>,
    %c6_i32 = arith.constant 6 : i32
    %312 = vector.broadcast %c6_i32 : i32 to vector<12x1xi32>
    %313 = arith.cmpi sgt, %5, %312 : vector<12x1xi32>
    %314 = arith.extui %313 : vector<12x1xi1> to vector<12x1xi32>
    %315 = arith.sitofp %314 : vector<12x1xi32> to vector<12x1xf32>
    %c6 = arith.constant 6 : index
    %c0_105 = arith.constant 0 : index
    %c0_106 = arith.constant 0 : index
    %316 = vector.load %arg1[%c6, %c0_105, %c0_106] : memref<8x12x512xf32, #tpu.memory_space<vmem>>, vector<1x12x512xf32>
    %317 = vector.shape_cast %316 : vector<1x12x512xf32> to vector<12x512xf32>
    %c0_107 = arith.constant 0 : index
    %c0_108 = arith.constant 0 : index
    %318 = vector.load %arg5[%c0_107, %c0_108] : memref<12x128xf32, #tpu.memory_space<vmem>>, vector<12x128xf32>
    %c0_109 = arith.constant 0 : index
    %c0_110 = arith.constant 0 : index
    %319 = vector.load %arg6[%c0_109, %c0_110] : memref<12x128xf32, #tpu.memory_space<vmem>>, vector<12x128xf32>
    %cst_111 = arith.constant dense<0.000000e+00> : vector<12x512xf32>
    %320 = tpu.matmul %318, %4, %cst_111 {dimension_numbers = #tpu.dot_dimension_numbers<[1], [0], [0], [1], [0, 0, 1, 1], [], []>} : vector<12x128xf32>, vector<128x512xf32>, vector<12x512xf32> -> vector<12x512xf32>
    %321 = arith.addf %317, %320 : vector<12x512xf32>
    %322 = vector.extract_strided_slice %321 {offsets = [0, 0], sizes = [12, 128], strides = [1, 1]} : vector<12x512xf32> to vector<12x128xf32>
    %323 = arith.negf %322 : vector<12x128xf32>
    %324 = math.exp %323 : vector<12x128xf32>
    %cst_112 = arith.constant 1.000000e+00 : f32
    %325 = vector.broadcast %cst_112 : f32 to vector<12x128xf32>
    %326 = arith.addf %325, %324 : vector<12x128xf32>
    %327 = arith.divf %325, %326 : vector<12x128xf32>
    %328 = vector.extract_strided_slice %321 {offsets = [0, 128], sizes = [12, 128], strides = [1, 1]} : vector<12x512xf32> to vector<12x128xf32>
    %329 = arith.negf %328 : vector<12x128xf32>
    %330 = math.exp %329 : vector<12x128xf32>
    %cst_113 = arith.constant 1.000000e+00 : f32
    %331 = vector.broadcast %cst_113 : f32 to vector<12x128xf32>
    %332 = arith.addf %331, %330 : vector<12x128xf32>
    %333 = arith.divf %331, %332 : vector<12x128xf32>
    %334 = vector.extract_strided_slice %321 {offsets = [0, 256], sizes = [12, 128], strides = [1, 1]} : vector<12x512xf32> to vector<12x128xf32>
    %335 = math.tanh %334 : vector<12x128xf32>
    %336 = vector.extract_strided_slice %321 {offsets = [0, 384], sizes = [12, 128], strides = [1, 1]} : vector<12x512xf32> to vector<12x128xf32>
    %337 = arith.negf %336 : vector<12x128xf32>
    %338 = math.exp %337 : vector<12x128xf32>
    %cst_114 = arith.constant 1.000000e+00 : f32
    %339 = vector.broadcast %cst_114 : f32 to vector<12x128xf32>
    %340 = arith.addf %339, %338 : vector<12x128xf32>
    %341 = arith.divf %339, %340 : vector<12x128xf32>
    %342 = arith.mulf %333, %319 : vector<12x128xf32>
    %343 = arith.mulf %327, %335 : vector<12x128xf32>
    %344 = arith.addf %342, %343 : vector<12x128xf32>
    %345 = math.tanh %344 : vector<12x128xf32>
    %346 = arith.mulf %341, %345 : vector<12x128xf32>
    %347 = vector.broadcast %315 : vector<12x1xf32> to vector<12x128xf32>
    %348 = arith.mulf %347, %346 : vector<12x128xf32>
    %cst_115 = arith.constant 1.000000e+00 : f32
    %349 = vector.broadcast %cst_115 : f32 to vector<12x1xf32>
    %350 = arith.subf %349, %315 : vector<12x1xf32>
    %351 = vector.broadcast %350 : vector<12x1xf32> to vector<12x128xf32>
    %352 = arith.mulf %351, %318 : vector<12x128xf32>
    %353 = arith.addf %348, %352 : vector<12x128xf32>
    %354 = vector.broadcast %315 : vector<12x1xf32> to vector<12x128xf32>
    %355 = arith.mulf %354, %344 : vector<12x128xf32>
    %cst_116 = arith.constant 1.000000e+00 : f32
    %356 = vector.broadcast %cst_116 : f32 to vector<12x1xf32>
    %357 = arith.subf %356, %315 : vector<12x1xf32>
    %358 = vector.broadcast %357 : vector<12x1xf32> to vector<12x128xf32>
    %359 = arith.mulf %358, %319 : vector<12x128xf32>
    %360 = arith.addf %355, %359 : vector<12x128xf32>
    %c0_117 = arith.constant 0 : index
    %c0_118 = arith.constant 0 : index
    %361 = vector.load %arg5[%c0_117, %c0_118] : memref<12x128xf32, #tpu.memory_space<vmem>>, vector<12x128xf32>
    tpu.vector_store %arg5[%c0_117, %c0_118], %353 {strides = array<i32>} : memref<12x128xf32, #tpu.memory_space<vmem>>, vector<12x128xf32>,
    %c0_119 = arith.constant 0 : index
    %c0_120 = arith.constant 0 : index
    %362 = vector.load %arg6[%c0_119, %c0_120] : memref<12x128xf32, #tpu.memory_space<vmem>>, vector<12x128xf32>
    tpu.vector_store %arg6[%c0_119, %c0_120], %360 {strides = array<i32>} : memref<12x128xf32, #tpu.memory_space<vmem>>, vector<12x128xf32>,
    %c7_i32 = arith.constant 7 : i32
    %363 = vector.broadcast %c7_i32 : i32 to vector<12x1xi32>
    %364 = arith.cmpi sgt, %5, %363 : vector<12x1xi32>
    %365 = arith.extui %364 : vector<12x1xi1> to vector<12x1xi32>
    %366 = arith.sitofp %365 : vector<12x1xi32> to vector<12x1xf32>
    %c7 = arith.constant 7 : index
    %c0_121 = arith.constant 0 : index
    %c0_122 = arith.constant 0 : index
    %367 = vector.load %arg1[%c7, %c0_121, %c0_122] : memref<8x12x512xf32, #tpu.memory_space<vmem>>, vector<1x12x512xf32>
    %368 = vector.shape_cast %367 : vector<1x12x512xf32> to vector<12x512xf32>
    %c0_123 = arith.constant 0 : index
    %c0_124 = arith.constant 0 : index
    %369 = vector.load %arg5[%c0_123, %c0_124] : memref<12x128xf32, #tpu.memory_space<vmem>>, vector<12x128xf32>
    %c0_125 = arith.constant 0 : index
    %c0_126 = arith.constant 0 : index
    %370 = vector.load %arg6[%c0_125, %c0_126] : memref<12x128xf32, #tpu.memory_space<vmem>>, vector<12x128xf32>
    %cst_127 = arith.constant dense<0.000000e+00> : vector<12x512xf32>
    %371 = tpu.matmul %369, %4, %cst_127 {dimension_numbers = #tpu.dot_dimension_numbers<[1], [0], [0], [1], [0, 0, 1, 1], [], []>} : vector<12x128xf32>, vector<128x512xf32>, vector<12x512xf32> -> vector<12x512xf32>
    %372 = arith.addf %368, %371 : vector<12x512xf32>
    %373 = vector.extract_strided_slice %372 {offsets = [0, 0], sizes = [12, 128], strides = [1, 1]} : vector<12x512xf32> to vector<12x128xf32>
    %374 = arith.negf %373 : vector<12x128xf32>
    %375 = math.exp %374 : vector<12x128xf32>
    %cst_128 = arith.constant 1.000000e+00 : f32
    %376 = vector.broadcast %cst_128 : f32 to vector<12x128xf32>
    %377 = arith.addf %376, %375 : vector<12x128xf32>
    %378 = arith.divf %376, %377 : vector<12x128xf32>
    %379 = vector.extract_strided_slice %372 {offsets = [0, 128], sizes = [12, 128], strides = [1, 1]} : vector<12x512xf32> to vector<12x128xf32>
    %380 = arith.negf %379 : vector<12x128xf32>
    %381 = math.exp %380 : vector<12x128xf32>
    %cst_129 = arith.constant 1.000000e+00 : f32
    %382 = vector.broadcast %cst_129 : f32 to vector<12x128xf32>
    %383 = arith.addf %382, %381 : vector<12x128xf32>
    %384 = arith.divf %382, %383 : vector<12x128xf32>
    %385 = vector.extract_strided_slice %372 {offsets = [0, 256], sizes = [12, 128], strides = [1, 1]} : vector<12x512xf32> to vector<12x128xf32>
    %386 = math.tanh %385 : vector<12x128xf32>
    %387 = vector.extract_strided_slice %372 {offsets = [0, 384], sizes = [12, 128], strides = [1, 1]} : vector<12x512xf32> to vector<12x128xf32>
    %388 = arith.negf %387 : vector<12x128xf32>
    %389 = math.exp %388 : vector<12x128xf32>
    %cst_130 = arith.constant 1.000000e+00 : f32
    %390 = vector.broadcast %cst_130 : f32 to vector<12x128xf32>
    %391 = arith.addf %390, %389 : vector<12x128xf32>
    %392 = arith.divf %390, %391 : vector<12x128xf32>
    %393 = arith.mulf %384, %370 : vector<12x128xf32>
    %394 = arith.mulf %378, %386 : vector<12x128xf32>
    %395 = arith.addf %393, %394 : vector<12x128xf32>
    %396 = math.tanh %395 : vector<12x128xf32>
    %397 = arith.mulf %392, %396 : vector<12x128xf32>
    %398 = vector.broadcast %366 : vector<12x1xf32> to vector<12x128xf32>
    %399 = arith.mulf %398, %397 : vector<12x128xf32>
    %cst_131 = arith.constant 1.000000e+00 : f32
    %400 = vector.broadcast %cst_131 : f32 to vector<12x1xf32>
    %401 = arith.subf %400, %366 : vector<12x1xf32>
    %402 = vector.broadcast %401 : vector<12x1xf32> to vector<12x128xf32>
    %403 = arith.mulf %402, %369 : vector<12x128xf32>
    %404 = arith.addf %399, %403 : vector<12x128xf32>
    %405 = vector.broadcast %366 : vector<12x1xf32> to vector<12x128xf32>
    %406 = arith.mulf %405, %395 : vector<12x128xf32>
    %cst_132 = arith.constant 1.000000e+00 : f32
    %407 = vector.broadcast %cst_132 : f32 to vector<12x1xf32>
    %408 = arith.subf %407, %366 : vector<12x1xf32>
    %409 = vector.broadcast %408 : vector<12x1xf32> to vector<12x128xf32>
    %410 = arith.mulf %409, %370 : vector<12x128xf32>
    %411 = arith.addf %406, %410 : vector<12x128xf32>
    %c0_133 = arith.constant 0 : index
    %c0_134 = arith.constant 0 : index
    %412 = vector.load %arg5[%c0_133, %c0_134] : memref<12x128xf32, #tpu.memory_space<vmem>>, vector<12x128xf32>
    tpu.vector_store %arg5[%c0_133, %c0_134], %404 {strides = array<i32>} : memref<12x128xf32, #tpu.memory_space<vmem>>, vector<12x128xf32>,
    %c0_135 = arith.constant 0 : index
    %c0_136 = arith.constant 0 : index
    %413 = vector.load %arg6[%c0_135, %c0_136] : memref<12x128xf32, #tpu.memory_space<vmem>>, vector<12x128xf32>
    tpu.vector_store %arg6[%c0_135, %c0_136], %411 {strides = array<i32>} : memref<12x128xf32, #tpu.memory_space<vmem>>, vector<12x128xf32>,
    %c0_137 = arith.constant 0 : index
    %c0_138 = arith.constant 0 : index
    %414 = vector.load %arg5[%c0_137, %c0_138] : memref<12x128xf32, #tpu.memory_space<vmem>>, vector<12x128xf32>
    %c0_139 = arith.constant 0 : index
    %c0_140 = arith.constant 0 : index
    %415 = vector.load %arg4[%c0_139, %c0_140] : memref<12x128xf32, #tpu.memory_space<vmem>>, vector<12x128xf32>
    tpu.vector_store %arg4[%c0_139, %c0_140], %414 {strides = array<i32>} : memref<12x128xf32, #tpu.memory_space<vmem>>, vector<12x128xf32>,
    return
  }
  func.func @transform_0(%arg0: i32) -> (i32, i32, i32) {
    %c0_i32 = arith.constant 0 : i32
    %c0_i32_0 = arith.constant 0 : i32
    %c0_i32_1 = arith.constant 0 : i32
    %c0_i32_2 = arith.constant 0 : i32
    return %c0_i32, %c0_i32_0, %c0_i32_1 : i32, i32, i32
  }
  func.func @transform_1(%arg0: i32) -> (i32, i32) {
    %c0_i32 = arith.constant 0 : i32
    %c0_i32_0 = arith.constant 0 : i32
    %c0_i32_1 = arith.constant 0 : i32
    return %c0_i32, %c0_i32_0 : i32, i32
  }
  func.func @transform_2(%arg0: i32) -> (i32, i32) {
    %c0_i32 = arith.constant 0 : i32
    %c0_i32_0 = arith.constant 0 : i32
    %c0_i32_1 = arith.constant 0 : i32
    return %c0_i32, %c0_i32_0 : i32, i32
  }
  func.func @transform_3(%arg0: i32) -> (i32, i32) {
    %c0_i32 = arith.constant 0 : i32
    %c0_i32_0 = arith.constant 0 : i32
    %c0_i32_1 = arith.constant 0 : i32
    return %c0_i32, %c0_i32_0 : i32, i32
  }
}

module attributes {stable_mosaic.version = 11 : i64} {
  func.func @_proj_kernel(%arg0: i32, %arg1: memref<12x128xf32, #tpu.memory_space<vmem>>, %arg2: memref<128x1024xf32, #tpu.memory_space<vmem>>, %arg3: memref<1x1024xf32, #tpu.memory_space<vmem>>, %arg4: memref<12x1024xf32, #tpu.memory_space<vmem>>) attributes {dimension_semantics = [#tpu.dimension_semantics<arbitrary>], iteration_bounds = array<i64: 1>, scalar_prefetch = 0 : i64, scratch_operands = 0 : i64, tpu.core_type = #tpu.core_type<tc>, window_params = [{pipeline_mode = #tpu.pipeline_mode<synchronous>, transform_indices = @transform_0, window_bounds = array<i64: 12, 128>}, {pipeline_mode = #tpu.pipeline_mode<synchronous>, transform_indices = @transform_1, window_bounds = array<i64: 128, 1024>}, {pipeline_mode = #tpu.pipeline_mode<synchronous>, transform_indices = @transform_2, window_bounds = array<i64: 1, 1024>}, {pipeline_mode = #tpu.pipeline_mode<synchronous>, transform_indices = @transform_3, window_bounds = array<i64: 12, 1024>}]} {
    %c0 = arith.constant 0 : index
    %c0_0 = arith.constant 0 : index
    %0 = vector.load %arg1[%c0, %c0_0] : memref<12x128xf32, #tpu.memory_space<vmem>>, vector<12x128xf32>
    %c0_1 = arith.constant 0 : index
    %c0_2 = arith.constant 0 : index
    %1 = vector.load %arg2[%c0_1, %c0_2] : memref<128x1024xf32, #tpu.memory_space<vmem>>, vector<128x1024xf32>
    %cst = arith.constant dense<0.000000e+00> : vector<12x1024xf32>
    %2 = tpu.matmul %0, %1, %cst {dimension_numbers = #tpu.dot_dimension_numbers<[1], [0], [0], [1], [0, 0, 1, 1], [], []>} : vector<12x128xf32>, vector<128x1024xf32>, vector<12x1024xf32> -> vector<12x1024xf32>
    %c0_3 = arith.constant 0 : index
    %c0_4 = arith.constant 0 : index
    %3 = vector.load %arg3[%c0_3, %c0_4] : memref<1x1024xf32, #tpu.memory_space<vmem>>, vector<1x1024xf32>
    %4 = vector.broadcast %3 : vector<1x1024xf32> to vector<12x1024xf32>
    %5 = arith.addf %2, %4 : vector<12x1024xf32>
    %c0_5 = arith.constant 0 : index
    %c0_6 = arith.constant 0 : index
    %6 = vector.load %arg4[%c0_5, %c0_6] : memref<12x1024xf32, #tpu.memory_space<vmem>>, vector<12x1024xf32>
    tpu.vector_store %arg4[%c0_5, %c0_6], %5 {strides = array<i32>} : memref<12x1024xf32, #tpu.memory_space<vmem>>, vector<12x1024xf32>,
    return
  }
  func.func @transform_0(%arg0: i32) -> (i32, i32) {
    %c0_i32 = arith.constant 0 : i32
    %c0_i32_0 = arith.constant 0 : i32
    %c0_i32_1 = arith.constant 0 : i32
    return %c0_i32, %c0_i32_0 : i32, i32
  }
  func.func @transform_1(%arg0: i32) -> (i32, i32) {
    %c0_i32 = arith.constant 0 : i32
    %c0_i32_0 = arith.constant 0 : i32
    %c0_i32_1 = arith.constant 0 : i32
    return %c0_i32, %c0_i32_0 : i32, i32
  }
  func.func @transform_2(%arg0: i32) -> (i32, i32) {
    %c0_i32 = arith.constant 0 : i32
    %c0_i32_0 = arith.constant 0 : i32
    %c0_i32_1 = arith.constant 0 : i32
    return %c0_i32, %c0_i32_0 : i32, i32
  }
  func.func @transform_3(%arg0: i32) -> (i32, i32) {
    %c0_i32 = arith.constant 0 : i32
    %c0_i32_0 = arith.constant 0 : i32
    %c0_i32_1 = arith.constant 0 : i32
    return %c0_i32, %c0_i32_0 : i32, i32
  }
}

module attributes {stable_mosaic.version = 11 : i64} {
  func.func @_bilstm_kernel(%arg0: i32, %arg1: memref<6x2x1024xf32, #tpu.memory_space<vmem>>, %arg2: memref<128x512xf32, #tpu.memory_space<vmem>>, %arg3: memref<128x512xf32, #tpu.memory_space<vmem>>, %arg4: memref<2x1xi32, #tpu.memory_space<vmem>>, %arg5: memref<6x2x128xf32, #tpu.memory_space<vmem>>, %arg6: memref<6x2x128xf32, #tpu.memory_space<vmem>>, %arg7: memref<2x128xf32, #tpu.memory_space<vmem>>, %arg8: memref<2x128xf32, #tpu.memory_space<vmem>>, %arg9: memref<2x128xf32, #tpu.memory_space<vmem>>, %arg10: memref<2x128xf32, #tpu.memory_space<vmem>>) attributes {dimension_semantics = [#tpu.dimension_semantics<arbitrary>], iteration_bounds = array<i64: 1>, scalar_prefetch = 0 : i64, scratch_operands = 4 : i64, tpu.core_type = #tpu.core_type<tc>, window_params = [{pipeline_mode = #tpu.pipeline_mode<synchronous>, transform_indices = @transform_0, window_bounds = array<i64: 6, 2, 1024>}, {pipeline_mode = #tpu.pipeline_mode<synchronous>, transform_indices = @transform_1, window_bounds = array<i64: 128, 512>}, {pipeline_mode = #tpu.pipeline_mode<synchronous>, transform_indices = @transform_2, window_bounds = array<i64: 128, 512>}, {pipeline_mode = #tpu.pipeline_mode<synchronous>, transform_indices = @transform_3, window_bounds = array<i64: 2, 1>}, {pipeline_mode = #tpu.pipeline_mode<synchronous>, transform_indices = @transform_4, window_bounds = array<i64: 6, 2, 128>}, {pipeline_mode = #tpu.pipeline_mode<synchronous>, transform_indices = @transform_5, window_bounds = array<i64: 6, 2, 128>}]} {
    %cst = arith.constant 0.000000e+00 : f32
    %0 = vector.broadcast %cst : f32 to vector<2x128xf32>
    %c0 = arith.constant 0 : index
    %c0_0 = arith.constant 0 : index
    %1 = vector.load %arg7[%c0, %c0_0] : memref<2x128xf32, #tpu.memory_space<vmem>>, vector<2x128xf32>
    tpu.vector_store %arg7[%c0, %c0_0], %0 {strides = array<i32>} : memref<2x128xf32, #tpu.memory_space<vmem>>, vector<2x128xf32>,
    %cst_1 = arith.constant 0.000000e+00 : f32
    %2 = vector.broadcast %cst_1 : f32 to vector<2x128xf32>
    %c0_2 = arith.constant 0 : index
    %c0_3 = arith.constant 0 : index
    %3 = vector.load %arg8[%c0_2, %c0_3] : memref<2x128xf32, #tpu.memory_space<vmem>>, vector<2x128xf32>
    tpu.vector_store %arg8[%c0_2, %c0_3], %2 {strides = array<i32>} : memref<2x128xf32, #tpu.memory_space<vmem>>, vector<2x128xf32>,
    %cst_4 = arith.constant 0.000000e+00 : f32
    %4 = vector.broadcast %cst_4 : f32 to vector<2x128xf32>
    %c0_5 = arith.constant 0 : index
    %c0_6 = arith.constant 0 : index
    %5 = vector.load %arg9[%c0_5, %c0_6] : memref<2x128xf32, #tpu.memory_space<vmem>>, vector<2x128xf32>
    tpu.vector_store %arg9[%c0_5, %c0_6], %4 {strides = array<i32>} : memref<2x128xf32, #tpu.memory_space<vmem>>, vector<2x128xf32>,
    %cst_7 = arith.constant 0.000000e+00 : f32
    %6 = vector.broadcast %cst_7 : f32 to vector<2x128xf32>
    %c0_8 = arith.constant 0 : index
    %c0_9 = arith.constant 0 : index
    %7 = vector.load %arg10[%c0_8, %c0_9] : memref<2x128xf32, #tpu.memory_space<vmem>>, vector<2x128xf32>
    tpu.vector_store %arg10[%c0_8, %c0_9], %6 {strides = array<i32>} : memref<2x128xf32, #tpu.memory_space<vmem>>, vector<2x128xf32>,
    %c0_10 = arith.constant 0 : index
    %c0_11 = arith.constant 0 : index
    %8 = vector.load %arg2[%c0_10, %c0_11] : memref<128x512xf32, #tpu.memory_space<vmem>>, vector<128x512xf32>
    %c0_12 = arith.constant 0 : index
    %c0_13 = arith.constant 0 : index
    %9 = vector.load %arg3[%c0_12, %c0_13] : memref<128x512xf32, #tpu.memory_space<vmem>>, vector<128x512xf32>
    %c0_14 = arith.constant 0 : index
    %c0_15 = arith.constant 0 : index
    %10 = vector.load %arg4[%c0_14, %c0_15] : memref<2x1xi32, #tpu.memory_space<vmem>>, vector<2x1xi32>
    %c0_i32 = arith.constant 0 : i32
    %11 = vector.broadcast %c0_i32 : i32 to vector<2x1xi32>
    %12 = arith.cmpi sgt, %10, %11 : vector<2x1xi32>
    %13 = arith.extui %12 : vector<2x1xi1> to vector<2x1xi32>
    %14 = arith.sitofp %13 : vector<2x1xi32> to vector<2x1xf32>
    %c5_i32 = arith.constant 5 : i32
    %15 = vector.broadcast %c5_i32 : i32 to vector<2x1xi32>
    %16 = arith.cmpi sgt, %10, %15 : vector<2x1xi32>
    %17 = arith.extui %16 : vector<2x1xi1> to vector<2x1xi32>
    %18 = arith.sitofp %17 : vector<2x1xi32> to vector<2x1xf32>
    %c0_16 = arith.constant 0 : index
    %c0_17 = arith.constant 0 : index
    %c0_18 = arith.constant 0 : index
    %19 = vector.load %arg1[%c0_16, %c0_17, %c0_18] : memref<6x2x1024xf32, #tpu.memory_space<vmem>>, vector<1x2x1024xf32>
    %20 = vector.shape_cast %19 : vector<1x2x1024xf32> to vector<2x1024xf32>
    %c5 = arith.constant 5 : index
    %c0_19 = arith.constant 0 : index
    %c0_20 = arith.constant 0 : index
    %21 = vector.load %arg1[%c5, %c0_19, %c0_20] : memref<6x2x1024xf32, #tpu.memory_space<vmem>>, vector<1x2x1024xf32>
    %22 = vector.shape_cast %21 : vector<1x2x1024xf32> to vector<2x1024xf32>
    %23 = vector.extract_strided_slice %20 {offsets = [0, 0], sizes = [2, 512], strides = [1, 1]} : vector<2x1024xf32> to vector<2x512xf32>
    %c0_21 = arith.constant 0 : index
    %c0_22 = arith.constant 0 : index
    %24 = vector.load %arg7[%c0_21, %c0_22] : memref<2x128xf32, #tpu.memory_space<vmem>>, vector<2x128xf32>
    %c0_23 = arith.constant 0 : index
    %c0_24 = arith.constant 0 : index
    %25 = vector.load %arg8[%c0_23, %c0_24] : memref<2x128xf32, #tpu.memory_space<vmem>>, vector<2x128xf32>
    %cst_25 = arith.constant dense<0.000000e+00> : vector<2x512xf32>
    %26 = tpu.matmul %24, %8, %cst_25 {dimension_numbers = #tpu.dot_dimension_numbers<[1], [0], [0], [1], [0, 0, 1, 1], [], []>} : vector<2x128xf32>, vector<128x512xf32>, vector<2x512xf32> -> vector<2x512xf32>
    %27 = arith.addf %23, %26 : vector<2x512xf32>
    %28 = vector.extract_strided_slice %27 {offsets = [0, 0], sizes = [2, 128], strides = [1, 1]} : vector<2x512xf32> to vector<2x128xf32>
    %29 = arith.negf %28 : vector<2x128xf32>
    %30 = math.exp %29 : vector<2x128xf32>
    %cst_26 = arith.constant 1.000000e+00 : f32
    %31 = vector.broadcast %cst_26 : f32 to vector<2x128xf32>
    %32 = arith.addf %31, %30 : vector<2x128xf32>
    %33 = arith.divf %31, %32 : vector<2x128xf32>
    %34 = vector.extract_strided_slice %27 {offsets = [0, 128], sizes = [2, 128], strides = [1, 1]} : vector<2x512xf32> to vector<2x128xf32>
    %35 = arith.negf %34 : vector<2x128xf32>
    %36 = math.exp %35 : vector<2x128xf32>
    %cst_27 = arith.constant 1.000000e+00 : f32
    %37 = vector.broadcast %cst_27 : f32 to vector<2x128xf32>
    %38 = arith.addf %37, %36 : vector<2x128xf32>
    %39 = arith.divf %37, %38 : vector<2x128xf32>
    %40 = vector.extract_strided_slice %27 {offsets = [0, 256], sizes = [2, 128], strides = [1, 1]} : vector<2x512xf32> to vector<2x128xf32>
    %41 = math.tanh %40 : vector<2x128xf32>
    %42 = vector.extract_strided_slice %27 {offsets = [0, 384], sizes = [2, 128], strides = [1, 1]} : vector<2x512xf32> to vector<2x128xf32>
    %43 = arith.negf %42 : vector<2x128xf32>
    %44 = math.exp %43 : vector<2x128xf32>
    %cst_28 = arith.constant 1.000000e+00 : f32
    %45 = vector.broadcast %cst_28 : f32 to vector<2x128xf32>
    %46 = arith.addf %45, %44 : vector<2x128xf32>
    %47 = arith.divf %45, %46 : vector<2x128xf32>
    %48 = arith.mulf %39, %25 : vector<2x128xf32>
    %49 = arith.mulf %33, %41 : vector<2x128xf32>
    %50 = arith.addf %48, %49 : vector<2x128xf32>
    %51 = math.tanh %50 : vector<2x128xf32>
    %52 = arith.mulf %47, %51 : vector<2x128xf32>
    %53 = vector.broadcast %14 : vector<2x1xf32> to vector<2x128xf32>
    %54 = arith.mulf %53, %52 : vector<2x128xf32>
    %cst_29 = arith.constant 1.000000e+00 : f32
    %55 = vector.broadcast %cst_29 : f32 to vector<2x1xf32>
    %56 = arith.subf %55, %14 : vector<2x1xf32>
    %57 = vector.broadcast %56 : vector<2x1xf32> to vector<2x128xf32>
    %58 = arith.mulf %57, %24 : vector<2x128xf32>
    %59 = arith.addf %54, %58 : vector<2x128xf32>
    %60 = vector.broadcast %14 : vector<2x1xf32> to vector<2x128xf32>
    %61 = arith.mulf %60, %50 : vector<2x128xf32>
    %cst_30 = arith.constant 1.000000e+00 : f32
    %62 = vector.broadcast %cst_30 : f32 to vector<2x1xf32>
    %63 = arith.subf %62, %14 : vector<2x1xf32>
    %64 = vector.broadcast %63 : vector<2x1xf32> to vector<2x128xf32>
    %65 = arith.mulf %64, %25 : vector<2x128xf32>
    %66 = arith.addf %61, %65 : vector<2x128xf32>
    %67 = vector.broadcast %14 : vector<2x1xf32> to vector<2x128xf32>
    %68 = arith.mulf %67, %52 : vector<2x128xf32>
    %69 = vector.extract_strided_slice %22 {offsets = [0, 512], sizes = [2, 512], strides = [1, 1]} : vector<2x1024xf32> to vector<2x512xf32>
    %c0_31 = arith.constant 0 : index
    %c0_32 = arith.constant 0 : index
    %70 = vector.load %arg9[%c0_31, %c0_32] : memref<2x128xf32, #tpu.memory_space<vmem>>, vector<2x128xf32>
    %c0_33 = arith.constant 0 : index
    %c0_34 = arith.constant 0 : index
    %71 = vector.load %arg10[%c0_33, %c0_34] : memref<2x128xf32, #tpu.memory_space<vmem>>, vector<2x128xf32>
    %cst_35 = arith.constant dense<0.000000e+00> : vector<2x512xf32>
    %72 = tpu.matmul %70, %9, %cst_35 {dimension_numbers = #tpu.dot_dimension_numbers<[1], [0], [0], [1], [0, 0, 1, 1], [], []>} : vector<2x128xf32>, vector<128x512xf32>, vector<2x512xf32> -> vector<2x512xf32>
    %73 = arith.addf %69, %72 : vector<2x512xf32>
    %74 = vector.extract_strided_slice %73 {offsets = [0, 0], sizes = [2, 128], strides = [1, 1]} : vector<2x512xf32> to vector<2x128xf32>
    %75 = arith.negf %74 : vector<2x128xf32>
    %76 = math.exp %75 : vector<2x128xf32>
    %cst_36 = arith.constant 1.000000e+00 : f32
    %77 = vector.broadcast %cst_36 : f32 to vector<2x128xf32>
    %78 = arith.addf %77, %76 : vector<2x128xf32>
    %79 = arith.divf %77, %78 : vector<2x128xf32>
    %80 = vector.extract_strided_slice %73 {offsets = [0, 128], sizes = [2, 128], strides = [1, 1]} : vector<2x512xf32> to vector<2x128xf32>
    %81 = arith.negf %80 : vector<2x128xf32>
    %82 = math.exp %81 : vector<2x128xf32>
    %cst_37 = arith.constant 1.000000e+00 : f32
    %83 = vector.broadcast %cst_37 : f32 to vector<2x128xf32>
    %84 = arith.addf %83, %82 : vector<2x128xf32>
    %85 = arith.divf %83, %84 : vector<2x128xf32>
    %86 = vector.extract_strided_slice %73 {offsets = [0, 256], sizes = [2, 128], strides = [1, 1]} : vector<2x512xf32> to vector<2x128xf32>
    %87 = math.tanh %86 : vector<2x128xf32>
    %88 = vector.extract_strided_slice %73 {offsets = [0, 384], sizes = [2, 128], strides = [1, 1]} : vector<2x512xf32> to vector<2x128xf32>
    %89 = arith.negf %88 : vector<2x128xf32>
    %90 = math.exp %89 : vector<2x128xf32>
    %cst_38 = arith.constant 1.000000e+00 : f32
    %91 = vector.broadcast %cst_38 : f32 to vector<2x128xf32>
    %92 = arith.addf %91, %90 : vector<2x128xf32>
    %93 = arith.divf %91, %92 : vector<2x128xf32>
    %94 = arith.mulf %85, %71 : vector<2x128xf32>
    %95 = arith.mulf %79, %87 : vector<2x128xf32>
    %96 = arith.addf %94, %95 : vector<2x128xf32>
    %97 = math.tanh %96 : vector<2x128xf32>
    %98 = arith.mulf %93, %97 : vector<2x128xf32>
    %99 = vector.broadcast %18 : vector<2x1xf32> to vector<2x128xf32>
    %100 = arith.mulf %99, %98 : vector<2x128xf32>
    %cst_39 = arith.constant 1.000000e+00 : f32
    %101 = vector.broadcast %cst_39 : f32 to vector<2x1xf32>
    %102 = arith.subf %101, %18 : vector<2x1xf32>
    %103 = vector.broadcast %102 : vector<2x1xf32> to vector<2x128xf32>
    %104 = arith.mulf %103, %70 : vector<2x128xf32>
    %105 = arith.addf %100, %104 : vector<2x128xf32>
    %106 = vector.broadcast %18 : vector<2x1xf32> to vector<2x128xf32>
    %107 = arith.mulf %106, %96 : vector<2x128xf32>
    %cst_40 = arith.constant 1.000000e+00 : f32
    %108 = vector.broadcast %cst_40 : f32 to vector<2x1xf32>
    %109 = arith.subf %108, %18 : vector<2x1xf32>
    %110 = vector.broadcast %109 : vector<2x1xf32> to vector<2x128xf32>
    %111 = arith.mulf %110, %71 : vector<2x128xf32>
    %112 = arith.addf %107, %111 : vector<2x128xf32>
    %113 = vector.broadcast %18 : vector<2x1xf32> to vector<2x128xf32>
    %114 = arith.mulf %113, %98 : vector<2x128xf32>
    %c0_41 = arith.constant 0 : index
    %c0_42 = arith.constant 0 : index
    %115 = vector.load %arg7[%c0_41, %c0_42] : memref<2x128xf32, #tpu.memory_space<vmem>>, vector<2x128xf32>
    tpu.vector_store %arg7[%c0_41, %c0_42], %59 {strides = array<i32>} : memref<2x128xf32, #tpu.memory_space<vmem>>, vector<2x128xf32>,
    %c0_43 = arith.constant 0 : index
    %c0_44 = arith.constant 0 : index
    %116 = vector.load %arg8[%c0_43, %c0_44] : memref<2x128xf32, #tpu.memory_space<vmem>>, vector<2x128xf32>
    tpu.vector_store %arg8[%c0_43, %c0_44], %66 {strides = array<i32>} : memref<2x128xf32, #tpu.memory_space<vmem>>, vector<2x128xf32>,
    %c0_45 = arith.constant 0 : index
    %c0_46 = arith.constant 0 : index
    %117 = vector.load %arg9[%c0_45, %c0_46] : memref<2x128xf32, #tpu.memory_space<vmem>>, vector<2x128xf32>
    tpu.vector_store %arg9[%c0_45, %c0_46], %105 {strides = array<i32>} : memref<2x128xf32, #tpu.memory_space<vmem>>, vector<2x128xf32>,
    %c0_47 = arith.constant 0 : index
    %c0_48 = arith.constant 0 : index
    %118 = vector.load %arg10[%c0_47, %c0_48] : memref<2x128xf32, #tpu.memory_space<vmem>>, vector<2x128xf32>
    tpu.vector_store %arg10[%c0_47, %c0_48], %112 {strides = array<i32>} : memref<2x128xf32, #tpu.memory_space<vmem>>, vector<2x128xf32>,
    %c0_49 = arith.constant 0 : index
    %c0_50 = arith.constant 0 : index
    %c0_51 = arith.constant 0 : index
    %119 = vector.load %arg5[%c0_49, %c0_50, %c0_51] : memref<6x2x128xf32, #tpu.memory_space<vmem>>, vector<1x2x128xf32>
    %120 = vector.shape_cast %119 : vector<1x2x128xf32> to vector<2x128xf32>
    %121 = vector.shape_cast %68 : vector<2x128xf32> to vector<1x2x128xf32>
    tpu.vector_store %arg5[%c0_49, %c0_50, %c0_51], %121 {strides = array<i32>} : memref<6x2x128xf32, #tpu.memory_space<vmem>>, vector<1x2x128xf32>,
    %c5_52 = arith.constant 5 : index
    %c0_53 = arith.constant 0 : index
    %c0_54 = arith.constant 0 : index
    %122 = vector.load %arg6[%c5_52, %c0_53, %c0_54] : memref<6x2x128xf32, #tpu.memory_space<vmem>>, vector<1x2x128xf32>
    %123 = vector.shape_cast %122 : vector<1x2x128xf32> to vector<2x128xf32>
    %124 = vector.shape_cast %114 : vector<2x128xf32> to vector<1x2x128xf32>
    tpu.vector_store %arg6[%c5_52, %c0_53, %c0_54], %124 {strides = array<i32>} : memref<6x2x128xf32, #tpu.memory_space<vmem>>, vector<1x2x128xf32>,
    %c1_i32 = arith.constant 1 : i32
    %125 = vector.broadcast %c1_i32 : i32 to vector<2x1xi32>
    %126 = arith.cmpi sgt, %10, %125 : vector<2x1xi32>
    %127 = arith.extui %126 : vector<2x1xi1> to vector<2x1xi32>
    %128 = arith.sitofp %127 : vector<2x1xi32> to vector<2x1xf32>
    %c4_i32 = arith.constant 4 : i32
    %129 = vector.broadcast %c4_i32 : i32 to vector<2x1xi32>
    %130 = arith.cmpi sgt, %10, %129 : vector<2x1xi32>
    %131 = arith.extui %130 : vector<2x1xi1> to vector<2x1xi32>
    %132 = arith.sitofp %131 : vector<2x1xi32> to vector<2x1xf32>
    %c1 = arith.constant 1 : index
    %c0_55 = arith.constant 0 : index
    %c0_56 = arith.constant 0 : index
    %133 = vector.load %arg1[%c1, %c0_55, %c0_56] : memref<6x2x1024xf32, #tpu.memory_space<vmem>>, vector<1x2x1024xf32>
    %134 = vector.shape_cast %133 : vector<1x2x1024xf32> to vector<2x1024xf32>
    %c4 = arith.constant 4 : index
    %c0_57 = arith.constant 0 : index
    %c0_58 = arith.constant 0 : index
    %135 = vector.load %arg1[%c4, %c0_57, %c0_58] : memref<6x2x1024xf32, #tpu.memory_space<vmem>>, vector<1x2x1024xf32>
    %136 = vector.shape_cast %135 : vector<1x2x1024xf32> to vector<2x1024xf32>
    %137 = vector.extract_strided_slice %134 {offsets = [0, 0], sizes = [2, 512], strides = [1, 1]} : vector<2x1024xf32> to vector<2x512xf32>
    %c0_59 = arith.constant 0 : index
    %c0_60 = arith.constant 0 : index
    %138 = vector.load %arg7[%c0_59, %c0_60] : memref<2x128xf32, #tpu.memory_space<vmem>>, vector<2x128xf32>
    %c0_61 = arith.constant 0 : index
    %c0_62 = arith.constant 0 : index
    %139 = vector.load %arg8[%c0_61, %c0_62] : memref<2x128xf32, #tpu.memory_space<vmem>>, vector<2x128xf32>
    %cst_63 = arith.constant dense<0.000000e+00> : vector<2x512xf32>
    %140 = tpu.matmul %138, %8, %cst_63 {dimension_numbers = #tpu.dot_dimension_numbers<[1], [0], [0], [1], [0, 0, 1, 1], [], []>} : vector<2x128xf32>, vector<128x512xf32>, vector<2x512xf32> -> vector<2x512xf32>
    %141 = arith.addf %137, %140 : vector<2x512xf32>
    %142 = vector.extract_strided_slice %141 {offsets = [0, 0], sizes = [2, 128], strides = [1, 1]} : vector<2x512xf32> to vector<2x128xf32>
    %143 = arith.negf %142 : vector<2x128xf32>
    %144 = math.exp %143 : vector<2x128xf32>
    %cst_64 = arith.constant 1.000000e+00 : f32
    %145 = vector.broadcast %cst_64 : f32 to vector<2x128xf32>
    %146 = arith.addf %145, %144 : vector<2x128xf32>
    %147 = arith.divf %145, %146 : vector<2x128xf32>
    %148 = vector.extract_strided_slice %141 {offsets = [0, 128], sizes = [2, 128], strides = [1, 1]} : vector<2x512xf32> to vector<2x128xf32>
    %149 = arith.negf %148 : vector<2x128xf32>
    %150 = math.exp %149 : vector<2x128xf32>
    %cst_65 = arith.constant 1.000000e+00 : f32
    %151 = vector.broadcast %cst_65 : f32 to vector<2x128xf32>
    %152 = arith.addf %151, %150 : vector<2x128xf32>
    %153 = arith.divf %151, %152 : vector<2x128xf32>
    %154 = vector.extract_strided_slice %141 {offsets = [0, 256], sizes = [2, 128], strides = [1, 1]} : vector<2x512xf32> to vector<2x128xf32>
    %155 = math.tanh %154 : vector<2x128xf32>
    %156 = vector.extract_strided_slice %141 {offsets = [0, 384], sizes = [2, 128], strides = [1, 1]} : vector<2x512xf32> to vector<2x128xf32>
    %157 = arith.negf %156 : vector<2x128xf32>
    %158 = math.exp %157 : vector<2x128xf32>
    %cst_66 = arith.constant 1.000000e+00 : f32
    %159 = vector.broadcast %cst_66 : f32 to vector<2x128xf32>
    %160 = arith.addf %159, %158 : vector<2x128xf32>
    %161 = arith.divf %159, %160 : vector<2x128xf32>
    %162 = arith.mulf %153, %139 : vector<2x128xf32>
    %163 = arith.mulf %147, %155 : vector<2x128xf32>
    %164 = arith.addf %162, %163 : vector<2x128xf32>
    %165 = math.tanh %164 : vector<2x128xf32>
    %166 = arith.mulf %161, %165 : vector<2x128xf32>
    %167 = vector.broadcast %128 : vector<2x1xf32> to vector<2x128xf32>
    %168 = arith.mulf %167, %166 : vector<2x128xf32>
    %cst_67 = arith.constant 1.000000e+00 : f32
    %169 = vector.broadcast %cst_67 : f32 to vector<2x1xf32>
    %170 = arith.subf %169, %128 : vector<2x1xf32>
    %171 = vector.broadcast %170 : vector<2x1xf32> to vector<2x128xf32>
    %172 = arith.mulf %171, %138 : vector<2x128xf32>
    %173 = arith.addf %168, %172 : vector<2x128xf32>
    %174 = vector.broadcast %128 : vector<2x1xf32> to vector<2x128xf32>
    %175 = arith.mulf %174, %164 : vector<2x128xf32>
    %cst_68 = arith.constant 1.000000e+00 : f32
    %176 = vector.broadcast %cst_68 : f32 to vector<2x1xf32>
    %177 = arith.subf %176, %128 : vector<2x1xf32>
    %178 = vector.broadcast %177 : vector<2x1xf32> to vector<2x128xf32>
    %179 = arith.mulf %178, %139 : vector<2x128xf32>
    %180 = arith.addf %175, %179 : vector<2x128xf32>
    %181 = vector.broadcast %128 : vector<2x1xf32> to vector<2x128xf32>
    %182 = arith.mulf %181, %166 : vector<2x128xf32>
    %183 = vector.extract_strided_slice %136 {offsets = [0, 512], sizes = [2, 512], strides = [1, 1]} : vector<2x1024xf32> to vector<2x512xf32>
    %c0_69 = arith.constant 0 : index
    %c0_70 = arith.constant 0 : index
    %184 = vector.load %arg9[%c0_69, %c0_70] : memref<2x128xf32, #tpu.memory_space<vmem>>, vector<2x128xf32>
    %c0_71 = arith.constant 0 : index
    %c0_72 = arith.constant 0 : index
    %185 = vector.load %arg10[%c0_71, %c0_72] : memref<2x128xf32, #tpu.memory_space<vmem>>, vector<2x128xf32>
    %cst_73 = arith.constant dense<0.000000e+00> : vector<2x512xf32>
    %186 = tpu.matmul %184, %9, %cst_73 {dimension_numbers = #tpu.dot_dimension_numbers<[1], [0], [0], [1], [0, 0, 1, 1], [], []>} : vector<2x128xf32>, vector<128x512xf32>, vector<2x512xf32> -> vector<2x512xf32>
    %187 = arith.addf %183, %186 : vector<2x512xf32>
    %188 = vector.extract_strided_slice %187 {offsets = [0, 0], sizes = [2, 128], strides = [1, 1]} : vector<2x512xf32> to vector<2x128xf32>
    %189 = arith.negf %188 : vector<2x128xf32>
    %190 = math.exp %189 : vector<2x128xf32>
    %cst_74 = arith.constant 1.000000e+00 : f32
    %191 = vector.broadcast %cst_74 : f32 to vector<2x128xf32>
    %192 = arith.addf %191, %190 : vector<2x128xf32>
    %193 = arith.divf %191, %192 : vector<2x128xf32>
    %194 = vector.extract_strided_slice %187 {offsets = [0, 128], sizes = [2, 128], strides = [1, 1]} : vector<2x512xf32> to vector<2x128xf32>
    %195 = arith.negf %194 : vector<2x128xf32>
    %196 = math.exp %195 : vector<2x128xf32>
    %cst_75 = arith.constant 1.000000e+00 : f32
    %197 = vector.broadcast %cst_75 : f32 to vector<2x128xf32>
    %198 = arith.addf %197, %196 : vector<2x128xf32>
    %199 = arith.divf %197, %198 : vector<2x128xf32>
    %200 = vector.extract_strided_slice %187 {offsets = [0, 256], sizes = [2, 128], strides = [1, 1]} : vector<2x512xf32> to vector<2x128xf32>
    %201 = math.tanh %200 : vector<2x128xf32>
    %202 = vector.extract_strided_slice %187 {offsets = [0, 384], sizes = [2, 128], strides = [1, 1]} : vector<2x512xf32> to vector<2x128xf32>
    %203 = arith.negf %202 : vector<2x128xf32>
    %204 = math.exp %203 : vector<2x128xf32>
    %cst_76 = arith.constant 1.000000e+00 : f32
    %205 = vector.broadcast %cst_76 : f32 to vector<2x128xf32>
    %206 = arith.addf %205, %204 : vector<2x128xf32>
    %207 = arith.divf %205, %206 : vector<2x128xf32>
    %208 = arith.mulf %199, %185 : vector<2x128xf32>
    %209 = arith.mulf %193, %201 : vector<2x128xf32>
    %210 = arith.addf %208, %209 : vector<2x128xf32>
    %211 = math.tanh %210 : vector<2x128xf32>
    %212 = arith.mulf %207, %211 : vector<2x128xf32>
    %213 = vector.broadcast %132 : vector<2x1xf32> to vector<2x128xf32>
    %214 = arith.mulf %213, %212 : vector<2x128xf32>
    %cst_77 = arith.constant 1.000000e+00 : f32
    %215 = vector.broadcast %cst_77 : f32 to vector<2x1xf32>
    %216 = arith.subf %215, %132 : vector<2x1xf32>
    %217 = vector.broadcast %216 : vector<2x1xf32> to vector<2x128xf32>
    %218 = arith.mulf %217, %184 : vector<2x128xf32>
    %219 = arith.addf %214, %218 : vector<2x128xf32>
    %220 = vector.broadcast %132 : vector<2x1xf32> to vector<2x128xf32>
    %221 = arith.mulf %220, %210 : vector<2x128xf32>
    %cst_78 = arith.constant 1.000000e+00 : f32
    %222 = vector.broadcast %cst_78 : f32 to vector<2x1xf32>
    %223 = arith.subf %222, %132 : vector<2x1xf32>
    %224 = vector.broadcast %223 : vector<2x1xf32> to vector<2x128xf32>
    %225 = arith.mulf %224, %185 : vector<2x128xf32>
    %226 = arith.addf %221, %225 : vector<2x128xf32>
    %227 = vector.broadcast %132 : vector<2x1xf32> to vector<2x128xf32>
    %228 = arith.mulf %227, %212 : vector<2x128xf32>
    %c0_79 = arith.constant 0 : index
    %c0_80 = arith.constant 0 : index
    %229 = vector.load %arg7[%c0_79, %c0_80] : memref<2x128xf32, #tpu.memory_space<vmem>>, vector<2x128xf32>
    tpu.vector_store %arg7[%c0_79, %c0_80], %173 {strides = array<i32>} : memref<2x128xf32, #tpu.memory_space<vmem>>, vector<2x128xf32>,
    %c0_81 = arith.constant 0 : index
    %c0_82 = arith.constant 0 : index
    %230 = vector.load %arg8[%c0_81, %c0_82] : memref<2x128xf32, #tpu.memory_space<vmem>>, vector<2x128xf32>
    tpu.vector_store %arg8[%c0_81, %c0_82], %180 {strides = array<i32>} : memref<2x128xf32, #tpu.memory_space<vmem>>, vector<2x128xf32>,
    %c0_83 = arith.constant 0 : index
    %c0_84 = arith.constant 0 : index
    %231 = vector.load %arg9[%c0_83, %c0_84] : memref<2x128xf32, #tpu.memory_space<vmem>>, vector<2x128xf32>
    tpu.vector_store %arg9[%c0_83, %c0_84], %219 {strides = array<i32>} : memref<2x128xf32, #tpu.memory_space<vmem>>, vector<2x128xf32>,
    %c0_85 = arith.constant 0 : index
    %c0_86 = arith.constant 0 : index
    %232 = vector.load %arg10[%c0_85, %c0_86] : memref<2x128xf32, #tpu.memory_space<vmem>>, vector<2x128xf32>
    tpu.vector_store %arg10[%c0_85, %c0_86], %226 {strides = array<i32>} : memref<2x128xf32, #tpu.memory_space<vmem>>, vector<2x128xf32>,
    %c1_87 = arith.constant 1 : index
    %c0_88 = arith.constant 0 : index
    %c0_89 = arith.constant 0 : index
    %233 = vector.load %arg5[%c1_87, %c0_88, %c0_89] : memref<6x2x128xf32, #tpu.memory_space<vmem>>, vector<1x2x128xf32>
    %234 = vector.shape_cast %233 : vector<1x2x128xf32> to vector<2x128xf32>
    %235 = vector.shape_cast %182 : vector<2x128xf32> to vector<1x2x128xf32>
    tpu.vector_store %arg5[%c1_87, %c0_88, %c0_89], %235 {strides = array<i32>} : memref<6x2x128xf32, #tpu.memory_space<vmem>>, vector<1x2x128xf32>,
    %c4_90 = arith.constant 4 : index
    %c0_91 = arith.constant 0 : index
    %c0_92 = arith.constant 0 : index
    %236 = vector.load %arg6[%c4_90, %c0_91, %c0_92] : memref<6x2x128xf32, #tpu.memory_space<vmem>>, vector<1x2x128xf32>
    %237 = vector.shape_cast %236 : vector<1x2x128xf32> to vector<2x128xf32>
    %238 = vector.shape_cast %228 : vector<2x128xf32> to vector<1x2x128xf32>
    tpu.vector_store %arg6[%c4_90, %c0_91, %c0_92], %238 {strides = array<i32>} : memref<6x2x128xf32, #tpu.memory_space<vmem>>, vector<1x2x128xf32>,
    %c2_i32 = arith.constant 2 : i32
    %239 = vector.broadcast %c2_i32 : i32 to vector<2x1xi32>
    %240 = arith.cmpi sgt, %10, %239 : vector<2x1xi32>
    %241 = arith.extui %240 : vector<2x1xi1> to vector<2x1xi32>
    %242 = arith.sitofp %241 : vector<2x1xi32> to vector<2x1xf32>
    %c3_i32 = arith.constant 3 : i32
    %243 = vector.broadcast %c3_i32 : i32 to vector<2x1xi32>
    %244 = arith.cmpi sgt, %10, %243 : vector<2x1xi32>
    %245 = arith.extui %244 : vector<2x1xi1> to vector<2x1xi32>
    %246 = arith.sitofp %245 : vector<2x1xi32> to vector<2x1xf32>
    %c2 = arith.constant 2 : index
    %c0_93 = arith.constant 0 : index
    %c0_94 = arith.constant 0 : index
    %247 = vector.load %arg1[%c2, %c0_93, %c0_94] : memref<6x2x1024xf32, #tpu.memory_space<vmem>>, vector<1x2x1024xf32>
    %248 = vector.shape_cast %247 : vector<1x2x1024xf32> to vector<2x1024xf32>
    %c3 = arith.constant 3 : index
    %c0_95 = arith.constant 0 : index
    %c0_96 = arith.constant 0 : index
    %249 = vector.load %arg1[%c3, %c0_95, %c0_96] : memref<6x2x1024xf32, #tpu.memory_space<vmem>>, vector<1x2x1024xf32>
    %250 = vector.shape_cast %249 : vector<1x2x1024xf32> to vector<2x1024xf32>
    %251 = vector.extract_strided_slice %248 {offsets = [0, 0], sizes = [2, 512], strides = [1, 1]} : vector<2x1024xf32> to vector<2x512xf32>
    %c0_97 = arith.constant 0 : index
    %c0_98 = arith.constant 0 : index
    %252 = vector.load %arg7[%c0_97, %c0_98] : memref<2x128xf32, #tpu.memory_space<vmem>>, vector<2x128xf32>
    %c0_99 = arith.constant 0 : index
    %c0_100 = arith.constant 0 : index
    %253 = vector.load %arg8[%c0_99, %c0_100] : memref<2x128xf32, #tpu.memory_space<vmem>>, vector<2x128xf32>
    %cst_101 = arith.constant dense<0.000000e+00> : vector<2x512xf32>
    %254 = tpu.matmul %252, %8, %cst_101 {dimension_numbers = #tpu.dot_dimension_numbers<[1], [0], [0], [1], [0, 0, 1, 1], [], []>} : vector<2x128xf32>, vector<128x512xf32>, vector<2x512xf32> -> vector<2x512xf32>
    %255 = arith.addf %251, %254 : vector<2x512xf32>
    %256 = vector.extract_strided_slice %255 {offsets = [0, 0], sizes = [2, 128], strides = [1, 1]} : vector<2x512xf32> to vector<2x128xf32>
    %257 = arith.negf %256 : vector<2x128xf32>
    %258 = math.exp %257 : vector<2x128xf32>
    %cst_102 = arith.constant 1.000000e+00 : f32
    %259 = vector.broadcast %cst_102 : f32 to vector<2x128xf32>
    %260 = arith.addf %259, %258 : vector<2x128xf32>
    %261 = arith.divf %259, %260 : vector<2x128xf32>
    %262 = vector.extract_strided_slice %255 {offsets = [0, 128], sizes = [2, 128], strides = [1, 1]} : vector<2x512xf32> to vector<2x128xf32>
    %263 = arith.negf %262 : vector<2x128xf32>
    %264 = math.exp %263 : vector<2x128xf32>
    %cst_103 = arith.constant 1.000000e+00 : f32
    %265 = vector.broadcast %cst_103 : f32 to vector<2x128xf32>
    %266 = arith.addf %265, %264 : vector<2x128xf32>
    %267 = arith.divf %265, %266 : vector<2x128xf32>
    %268 = vector.extract_strided_slice %255 {offsets = [0, 256], sizes = [2, 128], strides = [1, 1]} : vector<2x512xf32> to vector<2x128xf32>
    %269 = math.tanh %268 : vector<2x128xf32>
    %270 = vector.extract_strided_slice %255 {offsets = [0, 384], sizes = [2, 128], strides = [1, 1]} : vector<2x512xf32> to vector<2x128xf32>
    %271 = arith.negf %270 : vector<2x128xf32>
    %272 = math.exp %271 : vector<2x128xf32>
    %cst_104 = arith.constant 1.000000e+00 : f32
    %273 = vector.broadcast %cst_104 : f32 to vector<2x128xf32>
    %274 = arith.addf %273, %272 : vector<2x128xf32>
    %275 = arith.divf %273, %274 : vector<2x128xf32>
    %276 = arith.mulf %267, %253 : vector<2x128xf32>
    %277 = arith.mulf %261, %269 : vector<2x128xf32>
    %278 = arith.addf %276, %277 : vector<2x128xf32>
    %279 = math.tanh %278 : vector<2x128xf32>
    %280 = arith.mulf %275, %279 : vector<2x128xf32>
    %281 = vector.broadcast %242 : vector<2x1xf32> to vector<2x128xf32>
    %282 = arith.mulf %281, %280 : vector<2x128xf32>
    %cst_105 = arith.constant 1.000000e+00 : f32
    %283 = vector.broadcast %cst_105 : f32 to vector<2x1xf32>
    %284 = arith.subf %283, %242 : vector<2x1xf32>
    %285 = vector.broadcast %284 : vector<2x1xf32> to vector<2x128xf32>
    %286 = arith.mulf %285, %252 : vector<2x128xf32>
    %287 = arith.addf %282, %286 : vector<2x128xf32>
    %288 = vector.broadcast %242 : vector<2x1xf32> to vector<2x128xf32>
    %289 = arith.mulf %288, %278 : vector<2x128xf32>
    %cst_106 = arith.constant 1.000000e+00 : f32
    %290 = vector.broadcast %cst_106 : f32 to vector<2x1xf32>
    %291 = arith.subf %290, %242 : vector<2x1xf32>
    %292 = vector.broadcast %291 : vector<2x1xf32> to vector<2x128xf32>
    %293 = arith.mulf %292, %253 : vector<2x128xf32>
    %294 = arith.addf %289, %293 : vector<2x128xf32>
    %295 = vector.broadcast %242 : vector<2x1xf32> to vector<2x128xf32>
    %296 = arith.mulf %295, %280 : vector<2x128xf32>
    %297 = vector.extract_strided_slice %250 {offsets = [0, 512], sizes = [2, 512], strides = [1, 1]} : vector<2x1024xf32> to vector<2x512xf32>
    %c0_107 = arith.constant 0 : index
    %c0_108 = arith.constant 0 : index
    %298 = vector.load %arg9[%c0_107, %c0_108] : memref<2x128xf32, #tpu.memory_space<vmem>>, vector<2x128xf32>
    %c0_109 = arith.constant 0 : index
    %c0_110 = arith.constant 0 : index
    %299 = vector.load %arg10[%c0_109, %c0_110] : memref<2x128xf32, #tpu.memory_space<vmem>>, vector<2x128xf32>
    %cst_111 = arith.constant dense<0.000000e+00> : vector<2x512xf32>
    %300 = tpu.matmul %298, %9, %cst_111 {dimension_numbers = #tpu.dot_dimension_numbers<[1], [0], [0], [1], [0, 0, 1, 1], [], []>} : vector<2x128xf32>, vector<128x512xf32>, vector<2x512xf32> -> vector<2x512xf32>
    %301 = arith.addf %297, %300 : vector<2x512xf32>
    %302 = vector.extract_strided_slice %301 {offsets = [0, 0], sizes = [2, 128], strides = [1, 1]} : vector<2x512xf32> to vector<2x128xf32>
    %303 = arith.negf %302 : vector<2x128xf32>
    %304 = math.exp %303 : vector<2x128xf32>
    %cst_112 = arith.constant 1.000000e+00 : f32
    %305 = vector.broadcast %cst_112 : f32 to vector<2x128xf32>
    %306 = arith.addf %305, %304 : vector<2x128xf32>
    %307 = arith.divf %305, %306 : vector<2x128xf32>
    %308 = vector.extract_strided_slice %301 {offsets = [0, 128], sizes = [2, 128], strides = [1, 1]} : vector<2x512xf32> to vector<2x128xf32>
    %309 = arith.negf %308 : vector<2x128xf32>
    %310 = math.exp %309 : vector<2x128xf32>
    %cst_113 = arith.constant 1.000000e+00 : f32
    %311 = vector.broadcast %cst_113 : f32 to vector<2x128xf32>
    %312 = arith.addf %311, %310 : vector<2x128xf32>
    %313 = arith.divf %311, %312 : vector<2x128xf32>
    %314 = vector.extract_strided_slice %301 {offsets = [0, 256], sizes = [2, 128], strides = [1, 1]} : vector<2x512xf32> to vector<2x128xf32>
    %315 = math.tanh %314 : vector<2x128xf32>
    %316 = vector.extract_strided_slice %301 {offsets = [0, 384], sizes = [2, 128], strides = [1, 1]} : vector<2x512xf32> to vector<2x128xf32>
    %317 = arith.negf %316 : vector<2x128xf32>
    %318 = math.exp %317 : vector<2x128xf32>
    %cst_114 = arith.constant 1.000000e+00 : f32
    %319 = vector.broadcast %cst_114 : f32 to vector<2x128xf32>
    %320 = arith.addf %319, %318 : vector<2x128xf32>
    %321 = arith.divf %319, %320 : vector<2x128xf32>
    %322 = arith.mulf %313, %299 : vector<2x128xf32>
    %323 = arith.mulf %307, %315 : vector<2x128xf32>
    %324 = arith.addf %322, %323 : vector<2x128xf32>
    %325 = math.tanh %324 : vector<2x128xf32>
    %326 = arith.mulf %321, %325 : vector<2x128xf32>
    %327 = vector.broadcast %246 : vector<2x1xf32> to vector<2x128xf32>
    %328 = arith.mulf %327, %326 : vector<2x128xf32>
    %cst_115 = arith.constant 1.000000e+00 : f32
    %329 = vector.broadcast %cst_115 : f32 to vector<2x1xf32>
    %330 = arith.subf %329, %246 : vector<2x1xf32>
    %331 = vector.broadcast %330 : vector<2x1xf32> to vector<2x128xf32>
    %332 = arith.mulf %331, %298 : vector<2x128xf32>
    %333 = arith.addf %328, %332 : vector<2x128xf32>
    %334 = vector.broadcast %246 : vector<2x1xf32> to vector<2x128xf32>
    %335 = arith.mulf %334, %324 : vector<2x128xf32>
    %cst_116 = arith.constant 1.000000e+00 : f32
    %336 = vector.broadcast %cst_116 : f32 to vector<2x1xf32>
    %337 = arith.subf %336, %246 : vector<2x1xf32>
    %338 = vector.broadcast %337 : vector<2x1xf32> to vector<2x128xf32>
    %339 = arith.mulf %338, %299 : vector<2x128xf32>
    %340 = arith.addf %335, %339 : vector<2x128xf32>
    %341 = vector.broadcast %246 : vector<2x1xf32> to vector<2x128xf32>
    %342 = arith.mulf %341, %326 : vector<2x128xf32>
    %c0_117 = arith.constant 0 : index
    %c0_118 = arith.constant 0 : index
    %343 = vector.load %arg7[%c0_117, %c0_118] : memref<2x128xf32, #tpu.memory_space<vmem>>, vector<2x128xf32>
    tpu.vector_store %arg7[%c0_117, %c0_118], %287 {strides = array<i32>} : memref<2x128xf32, #tpu.memory_space<vmem>>, vector<2x128xf32>,
    %c0_119 = arith.constant 0 : index
    %c0_120 = arith.constant 0 : index
    %344 = vector.load %arg8[%c0_119, %c0_120] : memref<2x128xf32, #tpu.memory_space<vmem>>, vector<2x128xf32>
    tpu.vector_store %arg8[%c0_119, %c0_120], %294 {strides = array<i32>} : memref<2x128xf32, #tpu.memory_space<vmem>>, vector<2x128xf32>,
    %c0_121 = arith.constant 0 : index
    %c0_122 = arith.constant 0 : index
    %345 = vector.load %arg9[%c0_121, %c0_122] : memref<2x128xf32, #tpu.memory_space<vmem>>, vector<2x128xf32>
    tpu.vector_store %arg9[%c0_121, %c0_122], %333 {strides = array<i32>} : memref<2x128xf32, #tpu.memory_space<vmem>>, vector<2x128xf32>,
    %c0_123 = arith.constant 0 : index
    %c0_124 = arith.constant 0 : index
    %346 = vector.load %arg10[%c0_123, %c0_124] : memref<2x128xf32, #tpu.memory_space<vmem>>, vector<2x128xf32>
    tpu.vector_store %arg10[%c0_123, %c0_124], %340 {strides = array<i32>} : memref<2x128xf32, #tpu.memory_space<vmem>>, vector<2x128xf32>,
    %c2_125 = arith.constant 2 : index
    %c0_126 = arith.constant 0 : index
    %c0_127 = arith.constant 0 : index
    %347 = vector.load %arg5[%c2_125, %c0_126, %c0_127] : memref<6x2x128xf32, #tpu.memory_space<vmem>>, vector<1x2x128xf32>
    %348 = vector.shape_cast %347 : vector<1x2x128xf32> to vector<2x128xf32>
    %349 = vector.shape_cast %296 : vector<2x128xf32> to vector<1x2x128xf32>
    tpu.vector_store %arg5[%c2_125, %c0_126, %c0_127], %349 {strides = array<i32>} : memref<6x2x128xf32, #tpu.memory_space<vmem>>, vector<1x2x128xf32>,
    %c3_128 = arith.constant 3 : index
    %c0_129 = arith.constant 0 : index
    %c0_130 = arith.constant 0 : index
    %350 = vector.load %arg6[%c3_128, %c0_129, %c0_130] : memref<6x2x128xf32, #tpu.memory_space<vmem>>, vector<1x2x128xf32>
    %351 = vector.shape_cast %350 : vector<1x2x128xf32> to vector<2x128xf32>
    %352 = vector.shape_cast %342 : vector<2x128xf32> to vector<1x2x128xf32>
    tpu.vector_store %arg6[%c3_128, %c0_129, %c0_130], %352 {strides = array<i32>} : memref<6x2x128xf32, #tpu.memory_space<vmem>>, vector<1x2x128xf32>,
    %c3_i32_131 = arith.constant 3 : i32
    %353 = vector.broadcast %c3_i32_131 : i32 to vector<2x1xi32>
    %354 = arith.cmpi sgt, %10, %353 : vector<2x1xi32>
    %355 = arith.extui %354 : vector<2x1xi1> to vector<2x1xi32>
    %356 = arith.sitofp %355 : vector<2x1xi32> to vector<2x1xf32>
    %c2_i32_132 = arith.constant 2 : i32
    %357 = vector.broadcast %c2_i32_132 : i32 to vector<2x1xi32>
    %358 = arith.cmpi sgt, %10, %357 : vector<2x1xi32>
    %359 = arith.extui %358 : vector<2x1xi1> to vector<2x1xi32>
    %360 = arith.sitofp %359 : vector<2x1xi32> to vector<2x1xf32>
    %c3_133 = arith.constant 3 : index
    %c0_134 = arith.constant 0 : index
    %c0_135 = arith.constant 0 : index
    %361 = vector.load %arg1[%c3_133, %c0_134, %c0_135] : memref<6x2x1024xf32, #tpu.memory_space<vmem>>, vector<1x2x1024xf32>
    %362 = vector.shape_cast %361 : vector<1x2x1024xf32> to vector<2x1024xf32>
    %c2_136 = arith.constant 2 : index
    %c0_137 = arith.constant 0 : index
    %c0_138 = arith.constant 0 : index
    %363 = vector.load %arg1[%c2_136, %c0_137, %c0_138] : memref<6x2x1024xf32, #tpu.memory_space<vmem>>, vector<1x2x1024xf32>
    %364 = vector.shape_cast %363 : vector<1x2x1024xf32> to vector<2x1024xf32>
    %365 = vector.extract_strided_slice %362 {offsets = [0, 0], sizes = [2, 512], strides = [1, 1]} : vector<2x1024xf32> to vector<2x512xf32>
    %c0_139 = arith.constant 0 : index
    %c0_140 = arith.constant 0 : index
    %366 = vector.load %arg7[%c0_139, %c0_140] : memref<2x128xf32, #tpu.memory_space<vmem>>, vector<2x128xf32>
    %c0_141 = arith.constant 0 : index
    %c0_142 = arith.constant 0 : index
    %367 = vector.load %arg8[%c0_141, %c0_142] : memref<2x128xf32, #tpu.memory_space<vmem>>, vector<2x128xf32>
    %cst_143 = arith.constant dense<0.000000e+00> : vector<2x512xf32>
    %368 = tpu.matmul %366, %8, %cst_143 {dimension_numbers = #tpu.dot_dimension_numbers<[1], [0], [0], [1], [0, 0, 1, 1], [], []>} : vector<2x128xf32>, vector<128x512xf32>, vector<2x512xf32> -> vector<2x512xf32>
    %369 = arith.addf %365, %368 : vector<2x512xf32>
    %370 = vector.extract_strided_slice %369 {offsets = [0, 0], sizes = [2, 128], strides = [1, 1]} : vector<2x512xf32> to vector<2x128xf32>
    %371 = arith.negf %370 : vector<2x128xf32>
    %372 = math.exp %371 : vector<2x128xf32>
    %cst_144 = arith.constant 1.000000e+00 : f32
    %373 = vector.broadcast %cst_144 : f32 to vector<2x128xf32>
    %374 = arith.addf %373, %372 : vector<2x128xf32>
    %375 = arith.divf %373, %374 : vector<2x128xf32>
    %376 = vector.extract_strided_slice %369 {offsets = [0, 128], sizes = [2, 128], strides = [1, 1]} : vector<2x512xf32> to vector<2x128xf32>
    %377 = arith.negf %376 : vector<2x128xf32>
    %378 = math.exp %377 : vector<2x128xf32>
    %cst_145 = arith.constant 1.000000e+00 : f32
    %379 = vector.broadcast %cst_145 : f32 to vector<2x128xf32>
    %380 = arith.addf %379, %378 : vector<2x128xf32>
    %381 = arith.divf %379, %380 : vector<2x128xf32>
    %382 = vector.extract_strided_slice %369 {offsets = [0, 256], sizes = [2, 128], strides = [1, 1]} : vector<2x512xf32> to vector<2x128xf32>
    %383 = math.tanh %382 : vector<2x128xf32>
    %384 = vector.extract_strided_slice %369 {offsets = [0, 384], sizes = [2, 128], strides = [1, 1]} : vector<2x512xf32> to vector<2x128xf32>
    %385 = arith.negf %384 : vector<2x128xf32>
    %386 = math.exp %385 : vector<2x128xf32>
    %cst_146 = arith.constant 1.000000e+00 : f32
    %387 = vector.broadcast %cst_146 : f32 to vector<2x128xf32>
    %388 = arith.addf %387, %386 : vector<2x128xf32>
    %389 = arith.divf %387, %388 : vector<2x128xf32>
    %390 = arith.mulf %381, %367 : vector<2x128xf32>
    %391 = arith.mulf %375, %383 : vector<2x128xf32>
    %392 = arith.addf %390, %391 : vector<2x128xf32>
    %393 = math.tanh %392 : vector<2x128xf32>
    %394 = arith.mulf %389, %393 : vector<2x128xf32>
    %395 = vector.broadcast %356 : vector<2x1xf32> to vector<2x128xf32>
    %396 = arith.mulf %395, %394 : vector<2x128xf32>
    %cst_147 = arith.constant 1.000000e+00 : f32
    %397 = vector.broadcast %cst_147 : f32 to vector<2x1xf32>
    %398 = arith.subf %397, %356 : vector<2x1xf32>
    %399 = vector.broadcast %398 : vector<2x1xf32> to vector<2x128xf32>
    %400 = arith.mulf %399, %366 : vector<2x128xf32>
    %401 = arith.addf %396, %400 : vector<2x128xf32>
    %402 = vector.broadcast %356 : vector<2x1xf32> to vector<2x128xf32>
    %403 = arith.mulf %402, %392 : vector<2x128xf32>
    %cst_148 = arith.constant 1.000000e+00 : f32
    %404 = vector.broadcast %cst_148 : f32 to vector<2x1xf32>
    %405 = arith.subf %404, %356 : vector<2x1xf32>
    %406 = vector.broadcast %405 : vector<2x1xf32> to vector<2x128xf32>
    %407 = arith.mulf %406, %367 : vector<2x128xf32>
    %408 = arith.addf %403, %407 : vector<2x128xf32>
    %409 = vector.broadcast %356 : vector<2x1xf32> to vector<2x128xf32>
    %410 = arith.mulf %409, %394 : vector<2x128xf32>
    %411 = vector.extract_strided_slice %364 {offsets = [0, 512], sizes = [2, 512], strides = [1, 1]} : vector<2x1024xf32> to vector<2x512xf32>
    %c0_149 = arith.constant 0 : index
    %c0_150 = arith.constant 0 : index
    %412 = vector.load %arg9[%c0_149, %c0_150] : memref<2x128xf32, #tpu.memory_space<vmem>>, vector<2x128xf32>
    %c0_151 = arith.constant 0 : index
    %c0_152 = arith.constant 0 : index
    %413 = vector.load %arg10[%c0_151, %c0_152] : memref<2x128xf32, #tpu.memory_space<vmem>>, vector<2x128xf32>
    %cst_153 = arith.constant dense<0.000000e+00> : vector<2x512xf32>
    %414 = tpu.matmul %412, %9, %cst_153 {dimension_numbers = #tpu.dot_dimension_numbers<[1], [0], [0], [1], [0, 0, 1, 1], [], []>} : vector<2x128xf32>, vector<128x512xf32>, vector<2x512xf32> -> vector<2x512xf32>
    %415 = arith.addf %411, %414 : vector<2x512xf32>
    %416 = vector.extract_strided_slice %415 {offsets = [0, 0], sizes = [2, 128], strides = [1, 1]} : vector<2x512xf32> to vector<2x128xf32>
    %417 = arith.negf %416 : vector<2x128xf32>
    %418 = math.exp %417 : vector<2x128xf32>
    %cst_154 = arith.constant 1.000000e+00 : f32
    %419 = vector.broadcast %cst_154 : f32 to vector<2x128xf32>
    %420 = arith.addf %419, %418 : vector<2x128xf32>
    %421 = arith.divf %419, %420 : vector<2x128xf32>
    %422 = vector.extract_strided_slice %415 {offsets = [0, 128], sizes = [2, 128], strides = [1, 1]} : vector<2x512xf32> to vector<2x128xf32>
    %423 = arith.negf %422 : vector<2x128xf32>
    %424 = math.exp %423 : vector<2x128xf32>
    %cst_155 = arith.constant 1.000000e+00 : f32
    %425 = vector.broadcast %cst_155 : f32 to vector<2x128xf32>
    %426 = arith.addf %425, %424 : vector<2x128xf32>
    %427 = arith.divf %425, %426 : vector<2x128xf32>
    %428 = vector.extract_strided_slice %415 {offsets = [0, 256], sizes = [2, 128], strides = [1, 1]} : vector<2x512xf32> to vector<2x128xf32>
    %429 = math.tanh %428 : vector<2x128xf32>
    %430 = vector.extract_strided_slice %415 {offsets = [0, 384], sizes = [2, 128], strides = [1, 1]} : vector<2x512xf32> to vector<2x128xf32>
    %431 = arith.negf %430 : vector<2x128xf32>
    %432 = math.exp %431 : vector<2x128xf32>
    %cst_156 = arith.constant 1.000000e+00 : f32
    %433 = vector.broadcast %cst_156 : f32 to vector<2x128xf32>
    %434 = arith.addf %433, %432 : vector<2x128xf32>
    %435 = arith.divf %433, %434 : vector<2x128xf32>
    %436 = arith.mulf %427, %413 : vector<2x128xf32>
    %437 = arith.mulf %421, %429 : vector<2x128xf32>
    %438 = arith.addf %436, %437 : vector<2x128xf32>
    %439 = math.tanh %438 : vector<2x128xf32>
    %440 = arith.mulf %435, %439 : vector<2x128xf32>
    %441 = vector.broadcast %360 : vector<2x1xf32> to vector<2x128xf32>
    %442 = arith.mulf %441, %440 : vector<2x128xf32>
    %cst_157 = arith.constant 1.000000e+00 : f32
    %443 = vector.broadcast %cst_157 : f32 to vector<2x1xf32>
    %444 = arith.subf %443, %360 : vector<2x1xf32>
    %445 = vector.broadcast %444 : vector<2x1xf32> to vector<2x128xf32>
    %446 = arith.mulf %445, %412 : vector<2x128xf32>
    %447 = arith.addf %442, %446 : vector<2x128xf32>
    %448 = vector.broadcast %360 : vector<2x1xf32> to vector<2x128xf32>
    %449 = arith.mulf %448, %438 : vector<2x128xf32>
    %cst_158 = arith.constant 1.000000e+00 : f32
    %450 = vector.broadcast %cst_158 : f32 to vector<2x1xf32>
    %451 = arith.subf %450, %360 : vector<2x1xf32>
    %452 = vector.broadcast %451 : vector<2x1xf32> to vector<2x128xf32>
    %453 = arith.mulf %452, %413 : vector<2x128xf32>
    %454 = arith.addf %449, %453 : vector<2x128xf32>
    %455 = vector.broadcast %360 : vector<2x1xf32> to vector<2x128xf32>
    %456 = arith.mulf %455, %440 : vector<2x128xf32>
    %c0_159 = arith.constant 0 : index
    %c0_160 = arith.constant 0 : index
    %457 = vector.load %arg7[%c0_159, %c0_160] : memref<2x128xf32, #tpu.memory_space<vmem>>, vector<2x128xf32>
    tpu.vector_store %arg7[%c0_159, %c0_160], %401 {strides = array<i32>} : memref<2x128xf32, #tpu.memory_space<vmem>>, vector<2x128xf32>,
    %c0_161 = arith.constant 0 : index
    %c0_162 = arith.constant 0 : index
    %458 = vector.load %arg8[%c0_161, %c0_162] : memref<2x128xf32, #tpu.memory_space<vmem>>, vector<2x128xf32>
    tpu.vector_store %arg8[%c0_161, %c0_162], %408 {strides = array<i32>} : memref<2x128xf32, #tpu.memory_space<vmem>>, vector<2x128xf32>,
    %c0_163 = arith.constant 0 : index
    %c0_164 = arith.constant 0 : index
    %459 = vector.load %arg9[%c0_163, %c0_164] : memref<2x128xf32, #tpu.memory_space<vmem>>, vector<2x128xf32>
    tpu.vector_store %arg9[%c0_163, %c0_164], %447 {strides = array<i32>} : memref<2x128xf32, #tpu.memory_space<vmem>>, vector<2x128xf32>,
    %c0_165 = arith.constant 0 : index
    %c0_166 = arith.constant 0 : index
    %460 = vector.load %arg10[%c0_165, %c0_166] : memref<2x128xf32, #tpu.memory_space<vmem>>, vector<2x128xf32>
    tpu.vector_store %arg10[%c0_165, %c0_166], %454 {strides = array<i32>} : memref<2x128xf32, #tpu.memory_space<vmem>>, vector<2x128xf32>,
    %c3_167 = arith.constant 3 : index
    %c0_168 = arith.constant 0 : index
    %c0_169 = arith.constant 0 : index
    %461 = vector.load %arg5[%c3_167, %c0_168, %c0_169] : memref<6x2x128xf32, #tpu.memory_space<vmem>>, vector<1x2x128xf32>
    %462 = vector.shape_cast %461 : vector<1x2x128xf32> to vector<2x128xf32>
    %463 = vector.shape_cast %410 : vector<2x128xf32> to vector<1x2x128xf32>
    tpu.vector_store %arg5[%c3_167, %c0_168, %c0_169], %463 {strides = array<i32>} : memref<6x2x128xf32, #tpu.memory_space<vmem>>, vector<1x2x128xf32>,
    %c2_170 = arith.constant 2 : index
    %c0_171 = arith.constant 0 : index
    %c0_172 = arith.constant 0 : index
    %464 = vector.load %arg6[%c2_170, %c0_171, %c0_172] : memref<6x2x128xf32, #tpu.memory_space<vmem>>, vector<1x2x128xf32>
    %465 = vector.shape_cast %464 : vector<1x2x128xf32> to vector<2x128xf32>
    %466 = vector.shape_cast %456 : vector<2x128xf32> to vector<1x2x128xf32>
    tpu.vector_store %arg6[%c2_170, %c0_171, %c0_172], %466 {strides = array<i32>} : memref<6x2x128xf32, #tpu.memory_space<vmem>>, vector<1x2x128xf32>,
    %c4_i32_173 = arith.constant 4 : i32
    %467 = vector.broadcast %c4_i32_173 : i32 to vector<2x1xi32>
    %468 = arith.cmpi sgt, %10, %467 : vector<2x1xi32>
    %469 = arith.extui %468 : vector<2x1xi1> to vector<2x1xi32>
    %470 = arith.sitofp %469 : vector<2x1xi32> to vector<2x1xf32>
    %c1_i32_174 = arith.constant 1 : i32
    %471 = vector.broadcast %c1_i32_174 : i32 to vector<2x1xi32>
    %472 = arith.cmpi sgt, %10, %471 : vector<2x1xi32>
    %473 = arith.extui %472 : vector<2x1xi1> to vector<2x1xi32>
    %474 = arith.sitofp %473 : vector<2x1xi32> to vector<2x1xf32>
    %c4_175 = arith.constant 4 : index
    %c0_176 = arith.constant 0 : index
    %c0_177 = arith.constant 0 : index
    %475 = vector.load %arg1[%c4_175, %c0_176, %c0_177] : memref<6x2x1024xf32, #tpu.memory_space<vmem>>, vector<1x2x1024xf32>
    %476 = vector.shape_cast %475 : vector<1x2x1024xf32> to vector<2x1024xf32>
    %c1_178 = arith.constant 1 : index
    %c0_179 = arith.constant 0 : index
    %c0_180 = arith.constant 0 : index
    %477 = vector.load %arg1[%c1_178, %c0_179, %c0_180] : memref<6x2x1024xf32, #tpu.memory_space<vmem>>, vector<1x2x1024xf32>
    %478 = vector.shape_cast %477 : vector<1x2x1024xf32> to vector<2x1024xf32>
    %479 = vector.extract_strided_slice %476 {offsets = [0, 0], sizes = [2, 512], strides = [1, 1]} : vector<2x1024xf32> to vector<2x512xf32>
    %c0_181 = arith.constant 0 : index
    %c0_182 = arith.constant 0 : index
    %480 = vector.load %arg7[%c0_181, %c0_182] : memref<2x128xf32, #tpu.memory_space<vmem>>, vector<2x128xf32>
    %c0_183 = arith.constant 0 : index
    %c0_184 = arith.constant 0 : index
    %481 = vector.load %arg8[%c0_183, %c0_184] : memref<2x128xf32, #tpu.memory_space<vmem>>, vector<2x128xf32>
    %cst_185 = arith.constant dense<0.000000e+00> : vector<2x512xf32>
    %482 = tpu.matmul %480, %8, %cst_185 {dimension_numbers = #tpu.dot_dimension_numbers<[1], [0], [0], [1], [0, 0, 1, 1], [], []>} : vector<2x128xf32>, vector<128x512xf32>, vector<2x512xf32> -> vector<2x512xf32>
    %483 = arith.addf %479, %482 : vector<2x512xf32>
    %484 = vector.extract_strided_slice %483 {offsets = [0, 0], sizes = [2, 128], strides = [1, 1]} : vector<2x512xf32> to vector<2x128xf32>
    %485 = arith.negf %484 : vector<2x128xf32>
    %486 = math.exp %485 : vector<2x128xf32>
    %cst_186 = arith.constant 1.000000e+00 : f32
    %487 = vector.broadcast %cst_186 : f32 to vector<2x128xf32>
    %488 = arith.addf %487, %486 : vector<2x128xf32>
    %489 = arith.divf %487, %488 : vector<2x128xf32>
    %490 = vector.extract_strided_slice %483 {offsets = [0, 128], sizes = [2, 128], strides = [1, 1]} : vector<2x512xf32> to vector<2x128xf32>
    %491 = arith.negf %490 : vector<2x128xf32>
    %492 = math.exp %491 : vector<2x128xf32>
    %cst_187 = arith.constant 1.000000e+00 : f32
    %493 = vector.broadcast %cst_187 : f32 to vector<2x128xf32>
    %494 = arith.addf %493, %492 : vector<2x128xf32>
    %495 = arith.divf %493, %494 : vector<2x128xf32>
    %496 = vector.extract_strided_slice %483 {offsets = [0, 256], sizes = [2, 128], strides = [1, 1]} : vector<2x512xf32> to vector<2x128xf32>
    %497 = math.tanh %496 : vector<2x128xf32>
    %498 = vector.extract_strided_slice %483 {offsets = [0, 384], sizes = [2, 128], strides = [1, 1]} : vector<2x512xf32> to vector<2x128xf32>
    %499 = arith.negf %498 : vector<2x128xf32>
    %500 = math.exp %499 : vector<2x128xf32>
    %cst_188 = arith.constant 1.000000e+00 : f32
    %501 = vector.broadcast %cst_188 : f32 to vector<2x128xf32>
    %502 = arith.addf %501, %500 : vector<2x128xf32>
    %503 = arith.divf %501, %502 : vector<2x128xf32>
    %504 = arith.mulf %495, %481 : vector<2x128xf32>
    %505 = arith.mulf %489, %497 : vector<2x128xf32>
    %506 = arith.addf %504, %505 : vector<2x128xf32>
    %507 = math.tanh %506 : vector<2x128xf32>
    %508 = arith.mulf %503, %507 : vector<2x128xf32>
    %509 = vector.broadcast %470 : vector<2x1xf32> to vector<2x128xf32>
    %510 = arith.mulf %509, %508 : vector<2x128xf32>
    %cst_189 = arith.constant 1.000000e+00 : f32
    %511 = vector.broadcast %cst_189 : f32 to vector<2x1xf32>
    %512 = arith.subf %511, %470 : vector<2x1xf32>
    %513 = vector.broadcast %512 : vector<2x1xf32> to vector<2x128xf32>
    %514 = arith.mulf %513, %480 : vector<2x128xf32>
    %515 = arith.addf %510, %514 : vector<2x128xf32>
    %516 = vector.broadcast %470 : vector<2x1xf32> to vector<2x128xf32>
    %517 = arith.mulf %516, %506 : vector<2x128xf32>
    %cst_190 = arith.constant 1.000000e+00 : f32
    %518 = vector.broadcast %cst_190 : f32 to vector<2x1xf32>
    %519 = arith.subf %518, %470 : vector<2x1xf32>
    %520 = vector.broadcast %519 : vector<2x1xf32> to vector<2x128xf32>
    %521 = arith.mulf %520, %481 : vector<2x128xf32>
    %522 = arith.addf %517, %521 : vector<2x128xf32>
    %523 = vector.broadcast %470 : vector<2x1xf32> to vector<2x128xf32>
    %524 = arith.mulf %523, %508 : vector<2x128xf32>
    %525 = vector.extract_strided_slice %478 {offsets = [0, 512], sizes = [2, 512], strides = [1, 1]} : vector<2x1024xf32> to vector<2x512xf32>
    %c0_191 = arith.constant 0 : index
    %c0_192 = arith.constant 0 : index
    %526 = vector.load %arg9[%c0_191, %c0_192] : memref<2x128xf32, #tpu.memory_space<vmem>>, vector<2x128xf32>
    %c0_193 = arith.constant 0 : index
    %c0_194 = arith.constant 0 : index
    %527 = vector.load %arg10[%c0_193, %c0_194] : memref<2x128xf32, #tpu.memory_space<vmem>>, vector<2x128xf32>
    %cst_195 = arith.constant dense<0.000000e+00> : vector<2x512xf32>
    %528 = tpu.matmul %526, %9, %cst_195 {dimension_numbers = #tpu.dot_dimension_numbers<[1], [0], [0], [1], [0, 0, 1, 1], [], []>} : vector<2x128xf32>, vector<128x512xf32>, vector<2x512xf32> -> vector<2x512xf32>
    %529 = arith.addf %525, %528 : vector<2x512xf32>
    %530 = vector.extract_strided_slice %529 {offsets = [0, 0], sizes = [2, 128], strides = [1, 1]} : vector<2x512xf32> to vector<2x128xf32>
    %531 = arith.negf %530 : vector<2x128xf32>
    %532 = math.exp %531 : vector<2x128xf32>
    %cst_196 = arith.constant 1.000000e+00 : f32
    %533 = vector.broadcast %cst_196 : f32 to vector<2x128xf32>
    %534 = arith.addf %533, %532 : vector<2x128xf32>
    %535 = arith.divf %533, %534 : vector<2x128xf32>
    %536 = vector.extract_strided_slice %529 {offsets = [0, 128], sizes = [2, 128], strides = [1, 1]} : vector<2x512xf32> to vector<2x128xf32>
    %537 = arith.negf %536 : vector<2x128xf32>
    %538 = math.exp %537 : vector<2x128xf32>
    %cst_197 = arith.constant 1.000000e+00 : f32
    %539 = vector.broadcast %cst_197 : f32 to vector<2x128xf32>
    %540 = arith.addf %539, %538 : vector<2x128xf32>
    %541 = arith.divf %539, %540 : vector<2x128xf32>
    %542 = vector.extract_strided_slice %529 {offsets = [0, 256], sizes = [2, 128], strides = [1, 1]} : vector<2x512xf32> to vector<2x128xf32>
    %543 = math.tanh %542 : vector<2x128xf32>
    %544 = vector.extract_strided_slice %529 {offsets = [0, 384], sizes = [2, 128], strides = [1, 1]} : vector<2x512xf32> to vector<2x128xf32>
    %545 = arith.negf %544 : vector<2x128xf32>
    %546 = math.exp %545 : vector<2x128xf32>
    %cst_198 = arith.constant 1.000000e+00 : f32
    %547 = vector.broadcast %cst_198 : f32 to vector<2x128xf32>
    %548 = arith.addf %547, %546 : vector<2x128xf32>
    %549 = arith.divf %547, %548 : vector<2x128xf32>
    %550 = arith.mulf %541, %527 : vector<2x128xf32>
    %551 = arith.mulf %535, %543 : vector<2x128xf32>
    %552 = arith.addf %550, %551 : vector<2x128xf32>
    %553 = math.tanh %552 : vector<2x128xf32>
    %554 = arith.mulf %549, %553 : vector<2x128xf32>
    %555 = vector.broadcast %474 : vector<2x1xf32> to vector<2x128xf32>
    %556 = arith.mulf %555, %554 : vector<2x128xf32>
    %cst_199 = arith.constant 1.000000e+00 : f32
    %557 = vector.broadcast %cst_199 : f32 to vector<2x1xf32>
    %558 = arith.subf %557, %474 : vector<2x1xf32>
    %559 = vector.broadcast %558 : vector<2x1xf32> to vector<2x128xf32>
    %560 = arith.mulf %559, %526 : vector<2x128xf32>
    %561 = arith.addf %556, %560 : vector<2x128xf32>
    %562 = vector.broadcast %474 : vector<2x1xf32> to vector<2x128xf32>
    %563 = arith.mulf %562, %552 : vector<2x128xf32>
    %cst_200 = arith.constant 1.000000e+00 : f32
    %564 = vector.broadcast %cst_200 : f32 to vector<2x1xf32>
    %565 = arith.subf %564, %474 : vector<2x1xf32>
    %566 = vector.broadcast %565 : vector<2x1xf32> to vector<2x128xf32>
    %567 = arith.mulf %566, %527 : vector<2x128xf32>
    %568 = arith.addf %563, %567 : vector<2x128xf32>
    %569 = vector.broadcast %474 : vector<2x1xf32> to vector<2x128xf32>
    %570 = arith.mulf %569, %554 : vector<2x128xf32>
    %c0_201 = arith.constant 0 : index
    %c0_202 = arith.constant 0 : index
    %571 = vector.load %arg7[%c0_201, %c0_202] : memref<2x128xf32, #tpu.memory_space<vmem>>, vector<2x128xf32>
    tpu.vector_store %arg7[%c0_201, %c0_202], %515 {strides = array<i32>} : memref<2x128xf32, #tpu.memory_space<vmem>>, vector<2x128xf32>,
    %c0_203 = arith.constant 0 : index
    %c0_204 = arith.constant 0 : index
    %572 = vector.load %arg8[%c0_203, %c0_204] : memref<2x128xf32, #tpu.memory_space<vmem>>, vector<2x128xf32>
    tpu.vector_store %arg8[%c0_203, %c0_204], %522 {strides = array<i32>} : memref<2x128xf32, #tpu.memory_space<vmem>>, vector<2x128xf32>,
    %c0_205 = arith.constant 0 : index
    %c0_206 = arith.constant 0 : index
    %573 = vector.load %arg9[%c0_205, %c0_206] : memref<2x128xf32, #tpu.memory_space<vmem>>, vector<2x128xf32>
    tpu.vector_store %arg9[%c0_205, %c0_206], %561 {strides = array<i32>} : memref<2x128xf32, #tpu.memory_space<vmem>>, vector<2x128xf32>,
    %c0_207 = arith.constant 0 : index
    %c0_208 = arith.constant 0 : index
    %574 = vector.load %arg10[%c0_207, %c0_208] : memref<2x128xf32, #tpu.memory_space<vmem>>, vector<2x128xf32>
    tpu.vector_store %arg10[%c0_207, %c0_208], %568 {strides = array<i32>} : memref<2x128xf32, #tpu.memory_space<vmem>>, vector<2x128xf32>,
    %c4_209 = arith.constant 4 : index
    %c0_210 = arith.constant 0 : index
    %c0_211 = arith.constant 0 : index
    %575 = vector.load %arg5[%c4_209, %c0_210, %c0_211] : memref<6x2x128xf32, #tpu.memory_space<vmem>>, vector<1x2x128xf32>
    %576 = vector.shape_cast %575 : vector<1x2x128xf32> to vector<2x128xf32>
    %577 = vector.shape_cast %524 : vector<2x128xf32> to vector<1x2x128xf32>
    tpu.vector_store %arg5[%c4_209, %c0_210, %c0_211], %577 {strides = array<i32>} : memref<6x2x128xf32, #tpu.memory_space<vmem>>, vector<1x2x128xf32>,
    %c1_212 = arith.constant 1 : index
    %c0_213 = arith.constant 0 : index
    %c0_214 = arith.constant 0 : index
    %578 = vector.load %arg6[%c1_212, %c0_213, %c0_214] : memref<6x2x128xf32, #tpu.memory_space<vmem>>, vector<1x2x128xf32>
    %579 = vector.shape_cast %578 : vector<1x2x128xf32> to vector<2x128xf32>
    %580 = vector.shape_cast %570 : vector<2x128xf32> to vector<1x2x128xf32>
    tpu.vector_store %arg6[%c1_212, %c0_213, %c0_214], %580 {strides = array<i32>} : memref<6x2x128xf32, #tpu.memory_space<vmem>>, vector<1x2x128xf32>,
    %c5_i32_215 = arith.constant 5 : i32
    %581 = vector.broadcast %c5_i32_215 : i32 to vector<2x1xi32>
    %582 = arith.cmpi sgt, %10, %581 : vector<2x1xi32>
    %583 = arith.extui %582 : vector<2x1xi1> to vector<2x1xi32>
    %584 = arith.sitofp %583 : vector<2x1xi32> to vector<2x1xf32>
    %c0_i32_216 = arith.constant 0 : i32
    %585 = vector.broadcast %c0_i32_216 : i32 to vector<2x1xi32>
    %586 = arith.cmpi sgt, %10, %585 : vector<2x1xi32>
    %587 = arith.extui %586 : vector<2x1xi1> to vector<2x1xi32>
    %588 = arith.sitofp %587 : vector<2x1xi32> to vector<2x1xf32>
    %c5_217 = arith.constant 5 : index
    %c0_218 = arith.constant 0 : index
    %c0_219 = arith.constant 0 : index
    %589 = vector.load %arg1[%c5_217, %c0_218, %c0_219] : memref<6x2x1024xf32, #tpu.memory_space<vmem>>, vector<1x2x1024xf32>
    %590 = vector.shape_cast %589 : vector<1x2x1024xf32> to vector<2x1024xf32>
    %c0_220 = arith.constant 0 : index
    %c0_221 = arith.constant 0 : index
    %c0_222 = arith.constant 0 : index
    %591 = vector.load %arg1[%c0_220, %c0_221, %c0_222] : memref<6x2x1024xf32, #tpu.memory_space<vmem>>, vector<1x2x1024xf32>
    %592 = vector.shape_cast %591 : vector<1x2x1024xf32> to vector<2x1024xf32>
    %593 = vector.extract_strided_slice %590 {offsets = [0, 0], sizes = [2, 512], strides = [1, 1]} : vector<2x1024xf32> to vector<2x512xf32>
    %c0_223 = arith.constant 0 : index
    %c0_224 = arith.constant 0 : index
    %594 = vector.load %arg7[%c0_223, %c0_224] : memref<2x128xf32, #tpu.memory_space<vmem>>, vector<2x128xf32>
    %c0_225 = arith.constant 0 : index
    %c0_226 = arith.constant 0 : index
    %595 = vector.load %arg8[%c0_225, %c0_226] : memref<2x128xf32, #tpu.memory_space<vmem>>, vector<2x128xf32>
    %cst_227 = arith.constant dense<0.000000e+00> : vector<2x512xf32>
    %596 = tpu.matmul %594, %8, %cst_227 {dimension_numbers = #tpu.dot_dimension_numbers<[1], [0], [0], [1], [0, 0, 1, 1], [], []>} : vector<2x128xf32>, vector<128x512xf32>, vector<2x512xf32> -> vector<2x512xf32>
    %597 = arith.addf %593, %596 : vector<2x512xf32>
    %598 = vector.extract_strided_slice %597 {offsets = [0, 0], sizes = [2, 128], strides = [1, 1]} : vector<2x512xf32> to vector<2x128xf32>
    %599 = arith.negf %598 : vector<2x128xf32>
    %600 = math.exp %599 : vector<2x128xf32>
    %cst_228 = arith.constant 1.000000e+00 : f32
    %601 = vector.broadcast %cst_228 : f32 to vector<2x128xf32>
    %602 = arith.addf %601, %600 : vector<2x128xf32>
    %603 = arith.divf %601, %602 : vector<2x128xf32>
    %604 = vector.extract_strided_slice %597 {offsets = [0, 128], sizes = [2, 128], strides = [1, 1]} : vector<2x512xf32> to vector<2x128xf32>
    %605 = arith.negf %604 : vector<2x128xf32>
    %606 = math.exp %605 : vector<2x128xf32>
    %cst_229 = arith.constant 1.000000e+00 : f32
    %607 = vector.broadcast %cst_229 : f32 to vector<2x128xf32>
    %608 = arith.addf %607, %606 : vector<2x128xf32>
    %609 = arith.divf %607, %608 : vector<2x128xf32>
    %610 = vector.extract_strided_slice %597 {offsets = [0, 256], sizes = [2, 128], strides = [1, 1]} : vector<2x512xf32> to vector<2x128xf32>
    %611 = math.tanh %610 : vector<2x128xf32>
    %612 = vector.extract_strided_slice %597 {offsets = [0, 384], sizes = [2, 128], strides = [1, 1]} : vector<2x512xf32> to vector<2x128xf32>
    %613 = arith.negf %612 : vector<2x128xf32>
    %614 = math.exp %613 : vector<2x128xf32>
    %cst_230 = arith.constant 1.000000e+00 : f32
    %615 = vector.broadcast %cst_230 : f32 to vector<2x128xf32>
    %616 = arith.addf %615, %614 : vector<2x128xf32>
    %617 = arith.divf %615, %616 : vector<2x128xf32>
    %618 = arith.mulf %609, %595 : vector<2x128xf32>
    %619 = arith.mulf %603, %611 : vector<2x128xf32>
    %620 = arith.addf %618, %619 : vector<2x128xf32>
    %621 = math.tanh %620 : vector<2x128xf32>
    %622 = arith.mulf %617, %621 : vector<2x128xf32>
    %623 = vector.broadcast %584 : vector<2x1xf32> to vector<2x128xf32>
    %624 = arith.mulf %623, %622 : vector<2x128xf32>
    %cst_231 = arith.constant 1.000000e+00 : f32
    %625 = vector.broadcast %cst_231 : f32 to vector<2x1xf32>
    %626 = arith.subf %625, %584 : vector<2x1xf32>
    %627 = vector.broadcast %626 : vector<2x1xf32> to vector<2x128xf32>
    %628 = arith.mulf %627, %594 : vector<2x128xf32>
    %629 = arith.addf %624, %628 : vector<2x128xf32>
    %630 = vector.broadcast %584 : vector<2x1xf32> to vector<2x128xf32>
    %631 = arith.mulf %630, %620 : vector<2x128xf32>
    %cst_232 = arith.constant 1.000000e+00 : f32
    %632 = vector.broadcast %cst_232 : f32 to vector<2x1xf32>
    %633 = arith.subf %632, %584 : vector<2x1xf32>
    %634 = vector.broadcast %633 : vector<2x1xf32> to vector<2x128xf32>
    %635 = arith.mulf %634, %595 : vector<2x128xf32>
    %636 = arith.addf %631, %635 : vector<2x128xf32>
    %637 = vector.broadcast %584 : vector<2x1xf32> to vector<2x128xf32>
    %638 = arith.mulf %637, %622 : vector<2x128xf32>
    %639 = vector.extract_strided_slice %592 {offsets = [0, 512], sizes = [2, 512], strides = [1, 1]} : vector<2x1024xf32> to vector<2x512xf32>
    %c0_233 = arith.constant 0 : index
    %c0_234 = arith.constant 0 : index
    %640 = vector.load %arg9[%c0_233, %c0_234] : memref<2x128xf32, #tpu.memory_space<vmem>>, vector<2x128xf32>
    %c0_235 = arith.constant 0 : index
    %c0_236 = arith.constant 0 : index
    %641 = vector.load %arg10[%c0_235, %c0_236] : memref<2x128xf32, #tpu.memory_space<vmem>>, vector<2x128xf32>
    %cst_237 = arith.constant dense<0.000000e+00> : vector<2x512xf32>
    %642 = tpu.matmul %640, %9, %cst_237 {dimension_numbers = #tpu.dot_dimension_numbers<[1], [0], [0], [1], [0, 0, 1, 1], [], []>} : vector<2x128xf32>, vector<128x512xf32>, vector<2x512xf32> -> vector<2x512xf32>
    %643 = arith.addf %639, %642 : vector<2x512xf32>
    %644 = vector.extract_strided_slice %643 {offsets = [0, 0], sizes = [2, 128], strides = [1, 1]} : vector<2x512xf32> to vector<2x128xf32>
    %645 = arith.negf %644 : vector<2x128xf32>
    %646 = math.exp %645 : vector<2x128xf32>
    %cst_238 = arith.constant 1.000000e+00 : f32
    %647 = vector.broadcast %cst_238 : f32 to vector<2x128xf32>
    %648 = arith.addf %647, %646 : vector<2x128xf32>
    %649 = arith.divf %647, %648 : vector<2x128xf32>
    %650 = vector.extract_strided_slice %643 {offsets = [0, 128], sizes = [2, 128], strides = [1, 1]} : vector<2x512xf32> to vector<2x128xf32>
    %651 = arith.negf %650 : vector<2x128xf32>
    %652 = math.exp %651 : vector<2x128xf32>
    %cst_239 = arith.constant 1.000000e+00 : f32
    %653 = vector.broadcast %cst_239 : f32 to vector<2x128xf32>
    %654 = arith.addf %653, %652 : vector<2x128xf32>
    %655 = arith.divf %653, %654 : vector<2x128xf32>
    %656 = vector.extract_strided_slice %643 {offsets = [0, 256], sizes = [2, 128], strides = [1, 1]} : vector<2x512xf32> to vector<2x128xf32>
    %657 = math.tanh %656 : vector<2x128xf32>
    %658 = vector.extract_strided_slice %643 {offsets = [0, 384], sizes = [2, 128], strides = [1, 1]} : vector<2x512xf32> to vector<2x128xf32>
    %659 = arith.negf %658 : vector<2x128xf32>
    %660 = math.exp %659 : vector<2x128xf32>
    %cst_240 = arith.constant 1.000000e+00 : f32
    %661 = vector.broadcast %cst_240 : f32 to vector<2x128xf32>
    %662 = arith.addf %661, %660 : vector<2x128xf32>
    %663 = arith.divf %661, %662 : vector<2x128xf32>
    %664 = arith.mulf %655, %641 : vector<2x128xf32>
    %665 = arith.mulf %649, %657 : vector<2x128xf32>
    %666 = arith.addf %664, %665 : vector<2x128xf32>
    %667 = math.tanh %666 : vector<2x128xf32>
    %668 = arith.mulf %663, %667 : vector<2x128xf32>
    %669 = vector.broadcast %588 : vector<2x1xf32> to vector<2x128xf32>
    %670 = arith.mulf %669, %668 : vector<2x128xf32>
    %cst_241 = arith.constant 1.000000e+00 : f32
    %671 = vector.broadcast %cst_241 : f32 to vector<2x1xf32>
    %672 = arith.subf %671, %588 : vector<2x1xf32>
    %673 = vector.broadcast %672 : vector<2x1xf32> to vector<2x128xf32>
    %674 = arith.mulf %673, %640 : vector<2x128xf32>
    %675 = arith.addf %670, %674 : vector<2x128xf32>
    %676 = vector.broadcast %588 : vector<2x1xf32> to vector<2x128xf32>
    %677 = arith.mulf %676, %666 : vector<2x128xf32>
    %cst_242 = arith.constant 1.000000e+00 : f32
    %678 = vector.broadcast %cst_242 : f32 to vector<2x1xf32>
    %679 = arith.subf %678, %588 : vector<2x1xf32>
    %680 = vector.broadcast %679 : vector<2x1xf32> to vector<2x128xf32>
    %681 = arith.mulf %680, %641 : vector<2x128xf32>
    %682 = arith.addf %677, %681 : vector<2x128xf32>
    %683 = vector.broadcast %588 : vector<2x1xf32> to vector<2x128xf32>
    %684 = arith.mulf %683, %668 : vector<2x128xf32>
    %c0_243 = arith.constant 0 : index
    %c0_244 = arith.constant 0 : index
    %685 = vector.load %arg7[%c0_243, %c0_244] : memref<2x128xf32, #tpu.memory_space<vmem>>, vector<2x128xf32>
    tpu.vector_store %arg7[%c0_243, %c0_244], %629 {strides = array<i32>} : memref<2x128xf32, #tpu.memory_space<vmem>>, vector<2x128xf32>,
    %c0_245 = arith.constant 0 : index
    %c0_246 = arith.constant 0 : index
    %686 = vector.load %arg8[%c0_245, %c0_246] : memref<2x128xf32, #tpu.memory_space<vmem>>, vector<2x128xf32>
    tpu.vector_store %arg8[%c0_245, %c0_246], %636 {strides = array<i32>} : memref<2x128xf32, #tpu.memory_space<vmem>>, vector<2x128xf32>,
    %c0_247 = arith.constant 0 : index
    %c0_248 = arith.constant 0 : index
    %687 = vector.load %arg9[%c0_247, %c0_248] : memref<2x128xf32, #tpu.memory_space<vmem>>, vector<2x128xf32>
    tpu.vector_store %arg9[%c0_247, %c0_248], %675 {strides = array<i32>} : memref<2x128xf32, #tpu.memory_space<vmem>>, vector<2x128xf32>,
    %c0_249 = arith.constant 0 : index
    %c0_250 = arith.constant 0 : index
    %688 = vector.load %arg10[%c0_249, %c0_250] : memref<2x128xf32, #tpu.memory_space<vmem>>, vector<2x128xf32>
    tpu.vector_store %arg10[%c0_249, %c0_250], %682 {strides = array<i32>} : memref<2x128xf32, #tpu.memory_space<vmem>>, vector<2x128xf32>,
    %c5_251 = arith.constant 5 : index
    %c0_252 = arith.constant 0 : index
    %c0_253 = arith.constant 0 : index
    %689 = vector.load %arg5[%c5_251, %c0_252, %c0_253] : memref<6x2x128xf32, #tpu.memory_space<vmem>>, vector<1x2x128xf32>
    %690 = vector.shape_cast %689 : vector<1x2x128xf32> to vector<2x128xf32>
    %691 = vector.shape_cast %638 : vector<2x128xf32> to vector<1x2x128xf32>
    tpu.vector_store %arg5[%c5_251, %c0_252, %c0_253], %691 {strides = array<i32>} : memref<6x2x128xf32, #tpu.memory_space<vmem>>, vector<1x2x128xf32>,
    %c0_254 = arith.constant 0 : index
    %c0_255 = arith.constant 0 : index
    %c0_256 = arith.constant 0 : index
    %692 = vector.load %arg6[%c0_254, %c0_255, %c0_256] : memref<6x2x128xf32, #tpu.memory_space<vmem>>, vector<1x2x128xf32>
    %693 = vector.shape_cast %692 : vector<1x2x128xf32> to vector<2x128xf32>
    %694 = vector.shape_cast %684 : vector<2x128xf32> to vector<1x2x128xf32>
    tpu.vector_store %arg6[%c0_254, %c0_255, %c0_256], %694 {strides = array<i32>} : memref<6x2x128xf32, #tpu.memory_space<vmem>>, vector<1x2x128xf32>,
    return
  }
  func.func @transform_0(%arg0: i32) -> (i32, i32, i32) {
    %c0_i32 = arith.constant 0 : i32
    %c0_i32_0 = arith.constant 0 : i32
    %c0_i32_1 = arith.constant 0 : i32
    %c0_i32_2 = arith.constant 0 : i32
    return %c0_i32, %c0_i32_0, %c0_i32_1 : i32, i32, i32
  }
  func.func @transform_1(%arg0: i32) -> (i32, i32) {
    %c0_i32 = arith.constant 0 : i32
    %c0_i32_0 = arith.constant 0 : i32
    %c0_i32_1 = arith.constant 0 : i32
    return %c0_i32, %c0_i32_0 : i32, i32
  }
  func.func @transform_2(%arg0: i32) -> (i32, i32) {
    %c0_i32 = arith.constant 0 : i32
    %c0_i32_0 = arith.constant 0 : i32
    %c0_i32_1 = arith.constant 0 : i32
    return %c0_i32, %c0_i32_0 : i32, i32
  }
  func.func @transform_3(%arg0: i32) -> (i32, i32) {
    %c0_i32 = arith.constant 0 : i32
    %c0_i32_0 = arith.constant 0 : i32
    %c0_i32_1 = arith.constant 0 : i32
    return %c0_i32, %c0_i32_0 : i32, i32
  }
  func.func @transform_4(%arg0: i32) -> (i32, i32, i32) {
    %c0_i32 = arith.constant 0 : i32
    %c0_i32_0 = arith.constant 0 : i32
    %c0_i32_1 = arith.constant 0 : i32
    %c0_i32_2 = arith.constant 0 : i32
    return %c0_i32, %c0_i32_0, %c0_i32_1 : i32, i32, i32
  }
  func.func @transform_5(%arg0: i32) -> (i32, i32, i32) {
    %c0_i32 = arith.constant 0 : i32
    %c0_i32_0 = arith.constant 0 : i32
    %c0_i32_1 = arith.constant 0 : i32
    %c0_i32_2 = arith.constant 0 : i32
    return %c0_i32, %c0_i32_0, %c0_i32_1 : i32, i32, i32
  }
}

module attributes {stable_mosaic.version = 11 : i64} {
  func.func @_proj_kernel(%arg0: i32, %arg1: memref<12x256xf32, #tpu.memory_space<vmem>>, %arg2: memref<256x1024xf32, #tpu.memory_space<vmem>>, %arg3: memref<1x1024xf32, #tpu.memory_space<vmem>>, %arg4: memref<12x1024xf32, #tpu.memory_space<vmem>>) attributes {dimension_semantics = [#tpu.dimension_semantics<arbitrary>], iteration_bounds = array<i64: 1>, scalar_prefetch = 0 : i64, scratch_operands = 0 : i64, tpu.core_type = #tpu.core_type<tc>, window_params = [{pipeline_mode = #tpu.pipeline_mode<synchronous>, transform_indices = @transform_0, window_bounds = array<i64: 12, 256>}, {pipeline_mode = #tpu.pipeline_mode<synchronous>, transform_indices = @transform_1, window_bounds = array<i64: 256, 1024>}, {pipeline_mode = #tpu.pipeline_mode<synchronous>, transform_indices = @transform_2, window_bounds = array<i64: 1, 1024>}, {pipeline_mode = #tpu.pipeline_mode<synchronous>, transform_indices = @transform_3, window_bounds = array<i64: 12, 1024>}]} {
    %c0 = arith.constant 0 : index
    %c0_0 = arith.constant 0 : index
    %0 = vector.load %arg1[%c0, %c0_0] : memref<12x256xf32, #tpu.memory_space<vmem>>, vector<12x256xf32>
    %c0_1 = arith.constant 0 : index
    %c0_2 = arith.constant 0 : index
    %1 = vector.load %arg2[%c0_1, %c0_2] : memref<256x1024xf32, #tpu.memory_space<vmem>>, vector<256x1024xf32>
    %cst = arith.constant dense<0.000000e+00> : vector<12x1024xf32>
    %2 = tpu.matmul %0, %1, %cst {dimension_numbers = #tpu.dot_dimension_numbers<[1], [0], [0], [1], [0, 0, 1, 1], [], []>} : vector<12x256xf32>, vector<256x1024xf32>, vector<12x1024xf32> -> vector<12x1024xf32>
    %c0_3 = arith.constant 0 : index
    %c0_4 = arith.constant 0 : index
    %3 = vector.load %arg3[%c0_3, %c0_4] : memref<1x1024xf32, #tpu.memory_space<vmem>>, vector<1x1024xf32>
    %4 = vector.broadcast %3 : vector<1x1024xf32> to vector<12x1024xf32>
    %5 = arith.addf %2, %4 : vector<12x1024xf32>
    %c0_5 = arith.constant 0 : index
    %c0_6 = arith.constant 0 : index
    %6 = vector.load %arg4[%c0_5, %c0_6] : memref<12x1024xf32, #tpu.memory_space<vmem>>, vector<12x1024xf32>
    tpu.vector_store %arg4[%c0_5, %c0_6], %5 {strides = array<i32>} : memref<12x1024xf32, #tpu.memory_space<vmem>>, vector<12x1024xf32>,
    return
  }
  func.func @transform_0(%arg0: i32) -> (i32, i32) {
    %c0_i32 = arith.constant 0 : i32
    %c0_i32_0 = arith.constant 0 : i32
    %c0_i32_1 = arith.constant 0 : i32
    return %c0_i32, %c0_i32_0 : i32, i32
  }
  func.func @transform_1(%arg0: i32) -> (i32, i32) {
    %c0_i32 = arith.constant 0 : i32
    %c0_i32_0 = arith.constant 0 : i32
    %c0_i32_1 = arith.constant 0 : i32
    return %c0_i32, %c0_i32_0 : i32, i32
  }
  func.func @transform_2(%arg0: i32) -> (i32, i32) {
    %c0_i32 = arith.constant 0 : i32
    %c0_i32_0 = arith.constant 0 : i32
    %c0_i32_1 = arith.constant 0 : i32
    return %c0_i32, %c0_i32_0 : i32, i32
  }
  func.func @transform_3(%arg0: i32) -> (i32, i32) {
    %c0_i32 = arith.constant 0 : i32
    %c0_i32_0 = arith.constant 0 : i32
    %c0_i32_1 = arith.constant 0 : i32
    return %c0_i32, %c0_i32_0 : i32, i32
  }
}

module attributes {stable_mosaic.version = 11 : i64} {
  func.func @_linear_softmax_kernel(%arg0: i32, %arg1: memref<12x256xf32, #tpu.memory_space<vmem>>, %arg2: memref<256x128xf32, #tpu.memory_space<vmem>>, %arg3: memref<1x128xf32, #tpu.memory_space<vmem>>, %arg4: memref<12x128xf32, #tpu.memory_space<vmem>>) attributes {dimension_semantics = [#tpu.dimension_semantics<arbitrary>], iteration_bounds = array<i64: 1>, scalar_prefetch = 0 : i64, scratch_operands = 0 : i64, tpu.core_type = #tpu.core_type<tc>, window_params = [{pipeline_mode = #tpu.pipeline_mode<synchronous>, transform_indices = @transform_0, window_bounds = array<i64: 12, 256>}, {pipeline_mode = #tpu.pipeline_mode<synchronous>, transform_indices = @transform_1, window_bounds = array<i64: 256, 128>}, {pipeline_mode = #tpu.pipeline_mode<synchronous>, transform_indices = @transform_2, window_bounds = array<i64: 1, 128>}, {pipeline_mode = #tpu.pipeline_mode<synchronous>, transform_indices = @transform_3, window_bounds = array<i64: 12, 128>}]} {
    %c0 = arith.constant 0 : index
    %c0_0 = arith.constant 0 : index
    %0 = vector.load %arg1[%c0, %c0_0] : memref<12x256xf32, #tpu.memory_space<vmem>>, vector<12x256xf32>
    %c0_1 = arith.constant 0 : index
    %c0_2 = arith.constant 0 : index
    %1 = vector.load %arg2[%c0_1, %c0_2] : memref<256x128xf32, #tpu.memory_space<vmem>>, vector<256x128xf32>
    %cst = arith.constant dense<0.000000e+00> : vector<12x128xf32>
    %2 = tpu.matmul %0, %1, %cst {dimension_numbers = #tpu.dot_dimension_numbers<[1], [0], [0], [1], [0, 0, 1, 1], [], []>} : vector<12x256xf32>, vector<256x128xf32>, vector<12x128xf32> -> vector<12x128xf32>
    %c0_3 = arith.constant 0 : index
    %c0_4 = arith.constant 0 : index
    %3 = vector.load %arg3[%c0_3, %c0_4] : memref<1x128xf32, #tpu.memory_space<vmem>>, vector<1x128xf32>
    %4 = vector.broadcast %3 : vector<1x128xf32> to vector<12x128xf32>
    %5 = arith.addf %2, %4 : vector<12x128xf32>
    %6 = tpu.iota {dimensions = array<i32: 1>} : vector<12x128xi32>
    %c10_i32 = arith.constant 10 : i32
    %7 = vector.broadcast %c10_i32 : i32 to vector<12x128xi32>
    %8 = arith.cmpi slt, %6, %7 : vector<12x128xi32>
    %cst_5 = arith.constant -1.000000e+30 : f32
    %9 = vector.broadcast %cst_5 : f32 to vector<12x128xf32>
    %10 = arith.select %8, %5, %9 : vector<12x128xi1>, vector<12x128xf32>
    %cst_6 = arith.constant dense<0xFF800000> : vector<12xf32>
    %11 = vector.multi_reduction <maximumf>, %10, %cst_6 [1] : vector<12x128xf32> to vector<12xf32>
    %12 = vector.shape_cast %11 : vector<12xf32> to vector<12x1xf32>
    %13 = vector.broadcast %12 : vector<12x1xf32> to vector<12x128xf32>
    %14 = arith.subf %10, %13 : vector<12x128xf32>
    %15 = math.exp %14 : vector<12x128xf32>
    %cst_7 = arith.constant dense<0.000000e+00> : vector<12xf32>
    %16 = vector.multi_reduction <add>, %15, %cst_7 [1] : vector<12x128xf32> to vector<12xf32>
    %17 = vector.shape_cast %16 : vector<12xf32> to vector<12x1xf32>
    %18 = tpu.reciprocal %17 {approx = true} : vector<12x1xf32> -> vector<12x1xf32>
    %19 = vector.broadcast %18 : vector<12x1xf32> to vector<12x128xf32>
    %20 = arith.mulf %15, %19 : vector<12x128xf32>
    %c0_8 = arith.constant 0 : index
    %c0_9 = arith.constant 0 : index
    %21 = vector.load %arg4[%c0_8, %c0_9] : memref<12x128xf32, #tpu.memory_space<vmem>>, vector<12x128xf32>
    tpu.vector_store %arg4[%c0_8, %c0_9], %20 {strides = array<i32>} : memref<12x128xf32, #tpu.memory_space<vmem>>, vector<12x128xf32>,
    return
  }
  func.func @transform_0(%arg0: i32) -> (i32, i32) {
    %c0_i32 = arith.constant 0 : i32
    %c0_i32_0 = arith.constant 0 : i32
    %c0_i32_1 = arith.constant 0 : i32
    return %c0_i32, %c0_i32_0 : i32, i32
  }
  func.func @transform_1(%arg0: i32) -> (i32, i32) {
    %c0_i32 = arith.constant 0 : i32
    %c0_i32_0 = arith.constant 0 : i32
    %c0_i32_1 = arith.constant 0 : i32
    return %c0_i32, %c0_i32_0 : i32, i32
  }
  func.func @transform_2(%arg0: i32) -> (i32, i32) {
    %c0_i32 = arith.constant 0 : i32
    %c0_i32_0 = arith.constant 0 : i32
    %c0_i32_1 = arith.constant 0 : i32
    return %c0_i32, %c0_i32_0 : i32, i32
  }
  func.func @transform_3(%arg0: i32) -> (i32, i32) {
    %c0_i32 = arith.constant 0 : i32
    %c0_i32_0 = arith.constant 0 : i32
    %c0_i32_1 = arith.constant 0 : i32
    return %c0_i32, %c0_i32_0 : i32, i32
  }
}

</mosaic_0001>

<llo_original>
// kernel: transducer_b_forward.7
$region0: #{transducer_b_forward.7}
  #allocation0 [shape = 'u32[]', space=smem, size = 0x4, offset = 0x4, fixed_abs, tag = 'smem constant byte address 0x4 - core index']
  #allocation1 [shape = 'u32[144,128]{1,0:T(1,128)}', space=vmem, size = 0x12000, scoped, tag = 'internal scratch']
  %s0 = inlined_call_operand.vmem [shape: f32[96,16], index: 0, kind: input, shape index: {}]
  %s1 = inlined_call_operand.vmem [shape: f32[16,512], index: 1, kind: input, shape index: {}]
  %s2 = inlined_call_operand.vmem [shape: f32[1,512], index: 2, kind: input, shape index: {}]
  %s3 = inlined_call_operand.vmem [shape: f32[96,512], index: 3, kind: output, shape index: {}]
  %s4 = sld [smem:[#allocation0]]
  $region22: #{transducer_b_forward.7} parent=0
    _
  %s6 = ssub.s32 1, %s4
  %s7 = scalar_select 0, %s6, %s4
  // Predicated region
  $region2: #{transducer_b_forward.7} parent=0 // pred_check
    _
  $region3: #{transducer_b_forward.7} parent=0 // pred_check_branch
    %9 = sbr.rel (0) target = $region5
  $region4: #{transducer_b_forward.7} parent=0 // pred_region
    _
  $region5: #{transducer_b_forward.7} parent=0 // pred_fallthru
    _
  // Predicated region
  $region6: #{transducer_b_forward.7} parent=0 // pred_check
    _
  $region7: #{transducer_b_forward.7} parent=0 // pred_check_branch
    %11 = sbr.rel (0) target = $region9
  $region8: #{transducer_b_forward.7} parent=0 // pred_region
    _
  $region9: #{transducer_b_forward.7} parent=0 // pred_fallthru
    _
  // Predicated region
  $region10: #{transducer_b_forward.7} parent=0 // pred_check
    _
  $region11: #{transducer_b_forward.7} parent=0 // pred_check_branch
    %13 = sbr.rel (0) target = $region13
  $region12: #{transducer_b_forward.7} parent=0 // pred_region
    _
  $region13: #{transducer_b_forward.7} parent=0 // pred_fallthru
    _
  %v14 = vld [vmem:[%s0] sm:$0xff]
  %v15 = vld [vmem:[%s0 + $0x8] sm:$0xff]
  %v16 = vld [vmem:[%s0 + $0x10] sm:$0xff]
  %v17 = vld [vmem:[%s0 + $0x18] sm:$0xff]
  %v18 = vld [vmem:[%s0 + $0x20] sm:$0xff]
  %v19 = vld [vmem:[%s0 + $0x28] sm:$0xff]
  %v20 = vld [vmem:[%s0 + $0x30] sm:$0xff]
  %v21 = vld [vmem:[%s0 + $0x38] sm:$0xff]
  %v22 = vld [vmem:[%s0 + $0x40] sm:$0xff]
  %v23 = vld [vmem:[%s0 + $0x48] sm:$0xff]
  %v24 = vld [vmem:[%s0 + $0x50] sm:$0xff]
  %v25 = vld [vmem:[%s0 + $0x58] sm:$0xff]
  %v26 = vld [vmem:[%s1] sm:$0xff]
  %v27 = vld [vmem:[%s1 + $0x8] sm:$0xff]
  %v28 = vld [vmem:[%s1 + $0x10] sm:$0xff]
  %v29 = vld [vmem:[%s1 + $0x18] sm:$0xff]
  %v30 = vld [vmem:[%s1 + $0x20] sm:$0xff]
  %v31 = vld [vmem:[%s1 + $0x28] sm:$0xff]
  %v32 = vld [vmem:[%s1 + $0x30] sm:$0xff]
  %v33 = vld [vmem:[%s1 + $0x38] sm:$0xff]
  %v34 = vld [vmem:[%s2] sm:$0xf]
  %v36 = vlaneseq
  %v37 = vshrl.u32 %v36, 7
  %v38 = vsub.s32 0, %v37
  %v39 = vrot.slane %v34, %v38
  %v40 = vlaneseq
  %v41 = vshrl.u32 %v40, 7
  %v42 = vsub.s32 1, %v41
  %v43 = vrot.slane %v34, %v42
  %v44 = vlaneseq
  %v45 = vshrl.u32 %v44, 7
  %v46 = vsub.s32 2, %v45
  %v47 = vrot.slane %v34, %v46
  %v48 = vlaneseq
  %v49 = vshrl.u32 %v48, 7
  %v50 = vsub.s32 3, %v49
  %v51 = vrot.slane %v34, %v50
  %vm56 = vcmask 130048
  %v58 = vsel %vm56, %v14, 0
  %v61 = vsel %vm56, %v15, 0
  %v64 = vsel %vm56, %v16, 0
  %v67 = vsel %vm56, %v17, 0
  %v70 = vsel %vm56, %v18, 0
  %v73 = vsel %vm56, %v19, 0
  %v76 = vsel %vm56, %v20, 0
  %v79 = vsel %vm56, %v21, 0
  %v82 = vsel %vm56, %v22, 0
  %v85 = vsel %vm56, %v23, 0
  %v88 = vsel %vm56, %v24, 0
  %v91 = vsel %vm56, %v25, 0
  %93 = vmatprep.subr.mxu0 %v27
  %94 = vmatpush1.msra.mxu0 %v26
  %95 = vmatprep.subr.mxu0 %v31
  %96 = vmatpush1.msra.mxu0 %v30
  %97 = vmatprep.subr.mxu0 0.0
  %98 = vmatpush1.msra.mxu0 0.0
  %99 = vmatprep.subr.mxu0 0.0
  %100 = vmatpush1.msra.mxu0 0.0
  %101 = vmatprep.subr.mxu0 0.0
  %102 = vmatpush1.msra.mxu0 0.0
  %103 = vmatprep.subr.mxu0 0.0
  %104 = vmatpush1.msra.mxu0 0.0
  %105 = vmatprep.subr.mxu0 0.0
  %106 = vmatpush1.msra.mxu0 0.0
  %107 = vmatprep.subr.mxu0 0.0
  %108 = vmatpush1.msra.mxu0 0.0
  %109 = vmatprep.subr.mxu0 0.0
  %110 = vmatpush1.msra.mxu0 0.0
  %111 = vmatprep.subr.mxu0 0.0
  %112 = vmatpush1.msra.mxu0 0.0
  %113 = vmatprep.subr.mxu0 0.0
  %114 = vmatpush1.msra.mxu0 0.0
  %115 = vmatprep.subr.mxu0 0.0
  %116 = vmatpush1.msra.mxu0 0.0
  %117 = vmatprep.subr.mxu0 0.0
  %118 = vmatpush1.msra.mxu0 0.0
  %119 = vmatprep.subr.mxu0 0.0
  %120 = vmatpush1.msra.mxu0 0.0
  %121 = vmatprep.subr.mxu0 0.0
  %122 = vmatpush1.msra.mxu0 0.0
  %123 = vmatprep.subr.mxu0 0.0
  %124 = vmatpush1.msra.mxu0 0.0
  %125 = vmatprep.subr.mxu0 0.0
  %126 = vmatpush1.msra.mxu0 0.0
  %127 = vmatprep.subr.mxu0 0.0
  %128 = vmatpush1.msra.mxu0 0.0
  %129 = vmatprep.subr.mxu0 0.0
  %130 = vmatpush1.msra.mxu0 0.0
  %131 = vmatprep.subr.mxu0 0.0
  %132 = vmatpush1.msra.mxu0 0.0
  %133 = vmatprep.subr.mxu0 0.0
  %134 = vmatpush1.msra.mxu0 0.0
  %135 = vmatprep.subr.mxu0 0.0
  %136 = vmatpush1.msra.mxu0 0.0
  %137 = vmatprep.subr.mxu0 0.0
  %138 = vmatpush1.msra.mxu0 0.0
  %139 = vmatprep.subr.mxu0 0.0
  %140 = vmatpush1.msra.mxu0 0.0
  %141 = vmatprep.subr.mxu0 0.0
  %142 = vmatpush1.msra.mxu0 0.0
  %143 = vmatprep.subr.mxu0 0.0
  %144 = vmatpush1.msra.mxu0 0.0
  %145 = vmatprep.subr.mxu0 0.0
  %146 = vmatpush1.msra.mxu0 0.0
  %147 = vmatprep.subr.mxu0 0.0
  %148 = vmatpush1.msra.mxu0 0.0
  %149 = vmatprep.subr.mxu0 0.0
  %150 = vmatpush1.msra.mxu0 0.0
  %151 = vmatprep.subr.mxu0 0.0
  %152 = vmatpush1.msra.mxu0 0.0
  %153 = vmatprep.subr.mxu0 0.0
  %154 = vmatpush1.msra.mxu0 0.0
  %155 = vmatprep.subr.mxu0 0.0
  %156 = vmatpush1.msra.mxu0 0.0
  %157 = vmatprep.mubr.f32.mxu0 0.0
  %158 = vmatmul.mubr.f32.gmra.mrb[0].mxu0 %v58
  %v159 = vpop.f32.mrb[0].mxu0
  %v160 = vadd.f32 %v39, %v159
  %v161 = vpop.f32.mrb[0].mxu0
  %v162 = vadd.f32 %v43, %v161
  %163 = vmatprep.mubr.f32.mxu0 0.0
  %164 = vmatmul.mubr.f32.gmra.mrb[0].mxu0 %v61
  %v165 = vpop.f32.mrb[0].mxu0
  %v166 = vadd.f32 %v39, %v165
  %v167 = vpop.f32.mrb[0].mxu0
  %v168 = vadd.f32 %v43, %v167
  %169 = vmatprep.mubr.f32.mxu0 0.0
  %170 = vmatmul.mubr.f32.gmra.mrb[0].mxu0 %v64
  %v171 = vpop.f32.mrb[0].mxu0
  %v172 = vadd.f32 %v39, %v171
  %v173 = vpop.f32.mrb[0].mxu0
  %v174 = vadd.f32 %v43, %v173
  %175 = vmatprep.mubr.f32.mxu0 0.0
  %176 = vmatmul.mubr.f32.gmra.mrb[0].mxu0 %v67
  %v177 = vpop.f32.mrb[0].mxu0
  %v178 = vadd.f32 %v39, %v177
  %v179 = vpop.f32.mrb[0].mxu0
  %v180 = vadd.f32 %v43, %v179
  %181 = vmatprep.mubr.f32.mxu0 0.0
  %182 = vmatmul.mubr.f32.gmra.mrb[0].mxu0 %v70
  %v183 = vpop.f32.mrb[0].mxu0
  %v184 = vadd.f32 %v39, %v183
  %v185 = vpop.f32.mrb[0].mxu0
  %v186 = vadd.f32 %v43, %v185
  %187 = vmatprep.mubr.f32.mxu0 0.0
  %188 = vmatmul.mubr.f32.gmra.mrb[0].mxu0 %v73
  %v189 = vpop.f32.mrb[0].mxu0
  %v190 = vadd.f32 %v39, %v189
  %v191 = vpop.f32.mrb[0].mxu0
  %v192 = vadd.f32 %v43, %v191
  %193 = vmatprep.mubr.f32.mxu0 0.0
  %194 = vmatmul.mubr.f32.gmra.mrb[0].mxu0 %v76
  %v195 = vpop.f32.mrb[0].mxu0
  %v196 = vadd.f32 %v39, %v195
  %v197 = vpop.f32.mrb[0].mxu0
  %v198 = vadd.f32 %v43, %v197
  %199 = vmatprep.mubr.f32.mxu0 0.0
  %200 = vmatmul.mubr.f32.gmra.mrb[0].mxu0 %v79
  %v201 = vpop.f32.mrb[0].mxu0
  %v202 = vadd.f32 %v39, %v201
  %v203 = vpop.f32.mrb[0].mxu0
  %v204 = vadd.f32 %v43, %v203
  %205 = vmatprep.mubr.f32.mxu0 0.0
  %206 = vmatmul.mubr.f32.gmra.mrb[0].mxu0 %v82
  %v207 = vpop.f32.mrb[0].mxu0
  %v208 = vadd.f32 %v39, %v207
  %v209 = vpop.f32.mrb[0].mxu0
  %v210 = vadd.f32 %v43, %v209
  %211 = vmatprep.mubr.f32.mxu0 0.0
  %212 = vmatmul.mubr.f32.gmra.mrb[0].mxu0 %v85
  %v213 = vpop.f32.mrb[0].mxu0
  %v214 = vadd.f32 %v39, %v213
  %v215 = vpop.f32.mrb[0].mxu0
  %v216 = vadd.f32 %v43, %v215
  %217 = vmatprep.mubr.f32.mxu0 0.0
  %218 = vmatmul.mubr.f32.gmra.mrb[0].mxu0 %v88
  %v219 = vpop.f32.mrb[0].mxu0
  %v220 = vadd.f32 %v39, %v219
  %v221 = vpop.f32.mrb[0].mxu0
  %v222 = vadd.f32 %v43, %v221
  %223 = vmatprep.mubr.f32.mxu0 0.0
  %224 = vmatmul.mubr.f32.gmra.mrb[0].mxu0 %v91
  %v225 = vpop.f32.mrb[0].mxu0
  %v226 = vadd.f32 %v39, %v225
  %v227 = vpop.f32.mrb[0].mxu0
  %v228 = vadd.f32 %v43, %v227
  %229 = vdwg.mxu0
  %230 = vmatprep.subr.mxu0 %v29
  %231 = vmatpush1.msra.mxu0 %v28
  %232 = vmatprep.subr.mxu0 %v33
  %233 = vmatpush1.msra.mxu0 %v32
  %234 = vmatprep.subr.mxu0 0.0
  %235 = vmatpush1.msra.mxu0 0.0
  %236 = vmatprep.subr.mxu0 0.0
  %237 = vmatpush1.msra.mxu0 0.0
  %238 = vmatprep.subr.mxu0 0.0
  %239 = vmatpush1.msra.mxu0 0.0
  %240 = vmatprep.subr.mxu0 0.0
  %241 = vmatpush1.msra.mxu0 0.0
  %242 = vmatprep.subr.mxu0 0.0
  %243 = vmatpush1.msra.mxu0 0.0
  %244 = vmatprep.subr.mxu0 0.0
  %245 = vmatpush1.msra.mxu0 0.0
  %246 = vmatprep.subr.mxu0 0.0
  %247 = vmatpush1.msra.mxu0 0.0
  %248 = vmatprep.subr.mxu0 0.0
  %249 = vmatpush1.msra.mxu0 0.0
  %250 = vmatprep.subr.mxu0 0.0
  %251 = vmatpush1.msra.mxu0 0.0
  %252 = vmatprep.subr.mxu0 0.0
  %253 = vmatpush1.msra.mxu0 0.0
  %254 = vmatprep.subr.mxu0 0.0
  %255 = vmatpush1.msra.mxu0 0.0
  %256 = vmatprep.subr.mxu0 0.0
  %257 = vmatpush1.msra.mxu0 0.0
  %258 = vmatprep.subr.mxu0 0.0
  %259 = vmatpush1.msra.mxu0 0.0
  %260 = vmatprep.subr.mxu0 0.0
  %261 = vmatpush1.msra.mxu0 0.0
  %262 = vmatprep.subr.mxu0 0.0
  %263 = vmatpush1.msra.mxu0 0.0
  %264 = vmatprep.subr.mxu0 0.0
  %265 = vmatpush1.msra.mxu0 0.0
  %266 = vmatprep.subr.mxu0 0.0
  %267 = vmatpush1.msra.mxu0 0.0
  %268 = vmatprep.subr.mxu0 0.0
  %269 = vmatpush1.msra.mxu0 0.0
  %270 = vmatprep.subr.mxu0 0.0
  %271 = vmatpush1.msra.mxu0 0.0
  %272 = vmatprep.subr.mxu0 0.0
  %273 = vmatpush1.msra.mxu0 0.0
  %274 = vmatprep.subr.mxu0 0.0
  %275 = vmatpush1.msra.mxu0 0.0
  %276 = vmatprep.subr.mxu0 0.0
  %277 = vmatpush1.msra.mxu0 0.0
  %278 = vmatprep.subr.mxu0 0.0
  %279 = vmatpush1.msra.mxu0 0.0
  %280 = vmatprep.subr.mxu0 0.0
  %281 = vmatpush1.msra.mxu0 0.0
  %282 = vmatprep.subr.mxu0 0.0
  %283 = vmatpush1.msra.mxu0 0.0
  %284 = vmatprep.subr.mxu0 0.0
  %285 = vmatpush1.msra.mxu0 0.0
  %286 = vmatprep.subr.mxu0 0.0
  %287 = vmatpush1.msra.mxu0 0.0
  %288 = vmatprep.subr.mxu0 0.0
  %289 = vmatpush1.msra.mxu0 0.0
  %290 = vmatprep.subr.mxu0 0.0
  %291 = vmatpush1.msra.mxu0 0.0
  %292 = vmatprep.subr.mxu0 0.0
  %293 = vmatpush1.msra.mxu0 0.0
  %294 = vmatprep.mubr.f32.mxu0 0.0
  %295 = vmatmul.mubr.f32.gmra.mrb[0].mxu0 %v58
  %v296 = vpop.f32.mrb[0].mxu0
  %v297 = vadd.f32 %v47, %v296
  %v298 = vpop.f32.mrb[0].mxu0
  %v299 = vadd.f32 %v51, %v298
  %300 = vmatprep.mubr.f32.mxu0 0.0
  %301 = vmatmul.mubr.f32.gmra.mrb[0].mxu0 %v61
  %v302 = vpop.f32.mrb[0].mxu0
  %v303 = vadd.f32 %v47, %v302
  %v304 = vpop.f32.mrb[0].mxu0
  %v305 = vadd.f32 %v51, %v304
  %306 = vmatprep.mubr.f32.mxu0 0.0
  %307 = vmatmul.mubr.f32.gmra.mrb[0].mxu0 %v64
  %v308 = vpop.f32.mrb[0].mxu0
  %v309 = vadd.f32 %v47, %v308
  %v310 = vpop.f32.mrb[0].mxu0
  %v311 = vadd.f32 %v51, %v310
  %312 = vmatprep.mubr.f32.mxu0 0.0
  %313 = vmatmul.mubr.f32.gmra.mrb[0].mxu0 %v67
  %v314 = vpop.f32.mrb[0].mxu0
  %v315 = vadd.f32 %v47, %v314
  %v316 = vpop.f32.mrb[0].mxu0
  %v317 = vadd.f32 %v51, %v316
  %318 = vmatprep.mubr.f32.mxu0 0.0
  %319 = vmatmul.mubr.f32.gmra.mrb[0].mxu0 %v70
  %v320 = vpop.f32.mrb[0].mxu0
  %v321 = vadd.f32 %v47, %v320
  %v322 = vpop.f32.mrb[0].mxu0
  %v323 = vadd.f32 %v51, %v322
  %324 = vmatprep.mubr.f32.mxu0 0.0
  %325 = vmatmul.mubr.f32.gmra.mrb[0].mxu0 %v73
  %v326 = vpop.f32.mrb[0].mxu0
  %v327 = vadd.f32 %v47, %v326
  %v328 = vpop.f32.mrb[0].mxu0
  %v329 = vadd.f32 %v51, %v328
  %330 = vmatprep.mubr.f32.mxu0 0.0
  %331 = vmatmul.mubr.f32.gmra.mrb[0].mxu0 %v76
  %v332 = vpop.f32.mrb[0].mxu0
  %v333 = vadd.f32 %v47, %v332
  %v334 = vpop.f32.mrb[0].mxu0
  %v335 = vadd.f32 %v51, %v334
  %336 = vmatprep.mubr.f32.mxu0 0.0
  %337 = vmatmul.mubr.f32.gmra.mrb[0].mxu0 %v79
  %v338 = vpop.f32.mrb[0].mxu0
  %v339 = vadd.f32 %v47, %v338
  %v340 = vpop.f32.mrb[0].mxu0
  %v341 = vadd.f32 %v51, %v340
  %342 = vmatprep.mubr.f32.mxu0 0.0
  %343 = vmatmul.mubr.f32.gmra.mrb[0].mxu0 %v82
  %v344 = vpop.f32.mrb[0].mxu0
  %v345 = vadd.f32 %v47, %v344
  %v346 = vpop.f32.mrb[0].mxu0
  %v347 = vadd.f32 %v51, %v346
  %348 = vmatprep.mubr.f32.mxu0 0.0
  %349 = vmatmul.mubr.f32.gmra.mrb[0].mxu0 %v85
  %v350 = vpop.f32.mrb[0].mxu0
  %v351 = vadd.f32 %v47, %v350
  %v352 = vpop.f32.mrb[0].mxu0
  %v353 = vadd.f32 %v51, %v352
  %354 = vmatprep.mubr.f32.mxu0 0.0
  %355 = vmatmul.mubr.f32.gmra.mrb[0].mxu0 %v88
  %v356 = vpop.f32.mrb[0].mxu0
  %v357 = vadd.f32 %v47, %v356
  %v358 = vpop.f32.mrb[0].mxu0
  %v359 = vadd.f32 %v51, %v358
  %360 = vmatprep.mubr.f32.mxu0 0.0
  %361 = vmatmul.mubr.f32.gmra.mrb[0].mxu0 %v91
  %v362 = vpop.f32.mrb[0].mxu0
  %v363 = vadd.f32 %v47, %v362
  %v364 = vpop.f32.mrb[0].mxu0
  %v365 = vadd.f32 %v51, %v364
  %366 = vdwg.mxu0
  %367 = vst [vmem:[%s3] sm:$0xff] %v160
  %368 = vst [vmem:[%s3 + $0x8] sm:$0xff] %v162
  %369 = vst [vmem:[%s3 + $0x10] sm:$0xff] %v297
  %370 = vst [vmem:[%s3 + $0x18] sm:$0xff] %v299
  %371 = vst [vmem:[%s3 + $0x20] sm:$0xff] %v166
  %372 = vst [vmem:[%s3 + $0x28] sm:$0xff] %v168
  %373 = vst [vmem:[%s3 + $0x30] sm:$0xff] %v303
  %374 = vst [vmem:[%s3 + $0x38] sm:$0xff] %v305
  %375 = vst [vmem:[%s3 + $0x40] sm:$0xff] %v172
  %376 = vst [vmem:[%s3 + $0x48] sm:$0xff] %v174
  %377 = vst [vmem:[%s3 + $0x50] sm:$0xff] %v309
  %378 = vst [vmem:[%s3 + $0x58] sm:$0xff] %v311
  %379 = vst [vmem:[%s3 + $0x60] sm:$0xff] %v178
  %380 = vst [vmem:[%s3 + $0x68] sm:$0xff] %v180
  %381 = vst [vmem:[%s3 + $0x70] sm:$0xff] %v315
  %382 = vst [vmem:[%s3 + $0x78] sm:$0xff] %v317
  %383 = vst [vmem:[%s3 + $0x80] sm:$0xff] %v184
  %384 = vst [vmem:[%s3 + $0x88] sm:$0xff] %v186
  %385 = vst [vmem:[%s3 + $0x90] sm:$0xff] %v321
  %386 = vst [vmem:[%s3 + $0x98] sm:$0xff] %v323
  %387 = vst [vmem:[%s3 + $0xa0] sm:$0xff] %v190
  %388 = vst [vmem:[%s3 + $0xa8] sm:$0xff] %v192
  %389 = vst [vmem:[%s3 + $0xb0] sm:$0xff] %v327
  %390 = vst [vmem:[%s3 + $0xb8] sm:$0xff] %v329
  %391 = vst [vmem:[%s3 + $0xc0] sm:$0xff] %v196
  %392 = vst [vmem:[%s3 + $0xc8] sm:$0xff] %v198
  %393 = vst [vmem:[%s3 + $0xd0] sm:$0xff] %v333
  %394 = vst [vmem:[%s3 + $0xd8] sm:$0xff] %v335
  %395 = vst [vmem:[%s3 + $0xe0] sm:$0xff] %v202
  %396 = vst [vmem:[%s3 + $0xe8] sm:$0xff] %v204
  %397 = vst [vmem:[%s3 + $0xf0] sm:$0xff] %v339
  %398 = vst [vmem:[%s3 + $0xf8] sm:$0xff] %v341
  %399 = vst [vmem:[%s3 + $0x100] sm:$0xff] %v208
  %400 = vst [vmem:[%s3 + $0x108] sm:$0xff] %v210
  %401 = vst [vmem:[%s3 + $0x110] sm:$0xff] %v345
  %402 = vst [vmem:[%s3 + $0x118] sm:$0xff] %v347
  %403 = vst [vmem:[%s3 + $0x120] sm:$0xff] %v214
  %404 = vst [vmem:[%s3 + $0x128] sm:$0xff] %v216
  %405 = vst [vmem:[%s3 + $0x130] sm:$0xff] %v351
  %406 = vst [vmem:[%s3 + $0x138] sm:$0xff] %v353
  %407 = vst [vmem:[%s3 + $0x140] sm:$0xff] %v220
  %408 = vst [vmem:[%s3 + $0x148] sm:$0xff] %v222
  %409 = vst [vmem:[%s3 + $0x150] sm:$0xff] %v357
  %410 = vst [vmem:[%s3 + $0x158] sm:$0xff] %v359
  %411 = vst [vmem:[%s3 + $0x160] sm:$0xff] %v226
  %412 = vst [vmem:[%s3 + $0x168] sm:$0xff] %v228
  %413 = vst [vmem:[%s3 + $0x170] sm:$0xff] %v363
  %414 = vst [vmem:[%s3 + $0x178] sm:$0xff] %v365
  // Predicated region
  $region14: #{transducer_b_forward.7} parent=0 // pred_check
    _
  $region15: #{transducer_b_forward.7} parent=0 // pred_check_branch
    %416 = sbr.rel (0) target = $region17
  $region16: #{transducer_b_forward.7} parent=0 // pred_region
    _
  $region17: #{transducer_b_forward.7} parent=0 // pred_fallthru
    _
  // Predicated region
  $region18: #{transducer_b_forward.7} parent=0 // pred_check
    _
  $region19: #{transducer_b_forward.7} parent=0 // pred_check_branch
    %418 = sbr.rel (0) target = $region21
  $region20: #{transducer_b_forward.7} parent=0 // pred_region
    _
  $region21: #{transducer_b_forward.7} parent=0 // pred_fallthru
    _

// kernel: transducer_b_forward.9
$region0: #{transducer_b_forward.9}
  #allocation0 [shape = 'u32[]', space=smem, size = 0x4, offset = 0x4, fixed_abs, tag = 'smem constant byte address 0x4 - core index']
  #allocation1 [shape = 'u32[144,128]{1,0:T(1,128)}', space=vmem, size = 0x12000, scoped, tag = 'internal scratch']
  %s0 = inlined_call_operand.vmem [shape: f32[12,128], index: 0, kind: input, shape index: {}]
  %s1 = inlined_call_operand.vmem [shape: f32[128,1024], index: 1, kind: input, shape index: {}]
  %s2 = inlined_call_operand.vmem [shape: f32[1,1024], index: 2, kind: input, shape index: {}]
  %s3 = inlined_call_operand.vmem [shape: f32[12,1024], index: 3, kind: output, shape index: {}]
  %s4 = sld [smem:[#allocation0]]
  $region22: #{transducer_b_forward.9} parent=0
    _
  %s6 = ssub.s32 1, %s4
  %s7 = scalar_select 0, %s6, %s4
  // Predicated region
  $region2: #{transducer_b_forward.9} parent=0 // pred_check
    _
  $region3: #{transducer_b_forward.9} parent=0 // pred_check_branch
    %9 = sbr.rel (0) target = $region5
  $region4: #{transducer_b_forward.9} parent=0 // pred_region
    _
  $region5: #{transducer_b_forward.9} parent=0 // pred_fallthru
    _
  // Predicated region
  $region6: #{transducer_b_forward.9} parent=0 // pred_check
    _
  $region7: #{transducer_b_forward.9} parent=0 // pred_check_branch
    %11 = sbr.rel (0) target = $region9
  $region8: #{transducer_b_forward.9} parent=0 // pred_region
    _
  $region9: #{transducer_b_forward.9} parent=0 // pred_fallthru
    _
  // Predicated region
  $region10: #{transducer_b_forward.9} parent=0 // pred_check
    _
  $region11: #{transducer_b_forward.9} parent=0 // pred_check_branch
    %13 = sbr.rel (0) target = $region13
  $region12: #{transducer_b_forward.9} parent=0 // pred_region
    _
  $region13: #{transducer_b_forward.9} parent=0 // pred_fallthru
    _
  %v14 = vld [vmem:[%s0] sm:$0xff]
  %v15 = vld [vmem:[%s0 + $0x8] sm:$0xf]
  %v16 = vld [vmem:[%s1] sm:$0xff]
  %v17 = vld [vmem:[%s1 + $0x8] sm:$0xff]
  %v18 = vld [vmem:[%s1 + $0x10] sm:$0xff]
  %v19 = vld [vmem:[%s1 + $0x18] sm:$0xff]
  %v20 = vld [vmem:[%s1 + $0x20] sm:$0xff]
  %v21 = vld [vmem:[%s1 + $0x28] sm:$0xff]
  %v22 = vld [vmem:[%s1 + $0x30] sm:$0xff]
  %v23 = vld [vmem:[%s1 + $0x38] sm:$0xff]
  %v24 = vld [vmem:[%s1 + $0x40] sm:$0xff]
  %v25 = vld [vmem:[%s1 + $0x48] sm:$0xff]
  %v26 = vld [vmem:[%s1 + $0x50] sm:$0xff]
  %v27 = vld [vmem:[%s1 + $0x58] sm:$0xff]
  %v28 = vld [vmem:[%s1 + $0x60] sm:$0xff]
  %v29 = vld [vmem:[%s1 + $0x68] sm:$0xff]
  %v30 = vld [vmem:[%s1 + $0x70] sm:$0xff]
  %v31 = vld [vmem:[%s1 + $0x78] sm:$0xff]
  %v32 = vld [vmem:[%s1 + $0x80] sm:$0xff]
  %v33 = vld [vmem:[%s1 + $0x88] sm:$0xff]
  %v34 = vld [vmem:[%s1 + $0x90] sm:$0xff]
  %v35 = vld [vmem:[%s1 + $0x98] sm:$0xff]
  %v36 = vld [vmem:[%s1 + $0xa0] sm:$0xff]
  %v37 = vld [vmem:[%s1 + $0xa8] sm:$0xff]
  %v38 = vld [vmem:[%s1 + $0xb0] sm:$0xff]
  %v39 = vld [vmem:[%s1 + $0xb8] sm:$0xff]
  %v40 = vld [vmem:[%s1 + $0xc0] sm:$0xff]
  %v41 = vld [vmem:[%s1 + $0xc8] sm:$0xff]
  %v42 = vld [vmem:[%s1 + $0xd0] sm:$0xff]
  %v43 = vld [vmem:[%s1 + $0xd8] sm:$0xff]
  %v44 = vld [vmem:[%s1 + $0xe0] sm:$0xff]
  %v45 = vld [vmem:[%s1 + $0xe8] sm:$0xff]
  %v46 = vld [vmem:[%s1 + $0xf0] sm:$0xff]
  %v47 = vld [vmem:[%s1 + $0xf8] sm:$0xff]
  %v48 = vld [vmem:[%s1 + $0x100] sm:$0xff]
  %v49 = vld [vmem:[%s1 + $0x108] sm:$0xff]
  %v50 = vld [vmem:[%s1 + $0x110] sm:$0xff]
  %v51 = vld [vmem:[%s1 + $0x118] sm:$0xff]
  %v52 = vld [vmem:[%s1 + $0x120] sm:$0xff]
  %v53 = vld [vmem:[%s1 + $0x128] sm:$0xff]
  %v54 = vld [vmem:[%s1 + $0x130] sm:$0xff]
  %v55 = vld [vmem:[%s1 + $0x138] sm:$0xff]
  %v56 = vld [vmem:[%s1 + $0x140] sm:$0xff]
  %v57 = vld [vmem:[%s1 + $0x148] sm:$0xff]
  %v58 = vld [vmem:[%s1 + $0x150] sm:$0xff]
  %v59 = vld [vmem:[%s1 + $0x158] sm:$0xff]
  %v60 = vld [vmem:[%s1 + $0x160] sm:$0xff]
  %v61 = vld [vmem:[%s1 + $0x168] sm:$0xff]
  %v62 = vld [vmem:[%s1 + $0x170] sm:$0xff]
  %v63 = vld [vmem:[%s1 + $0x178] sm:$0xff]
  %v64 = vld [vmem:[%s1 + $0x180] sm:$0xff]
  %v65 = vld [vmem:[%s1 + $0x188] sm:$0xff]
  %v66 = vld [vmem:[%s1 + $0x190] sm:$0xff]
  %v67 = vld [vmem:[%s1 + $0x198] sm:$0xff]
  %v68 = vld [vmem:[%s1 + $0x1a0] sm:$0xff]
  %v69 = vld [vmem:[%s1 + $0x1a8] sm:$0xff]
  %v70 = vld [vmem:[%s1 + $0x1b0] sm:$0xff]
  %v71 = vld [vmem:[%s1 + $0x1b8] sm:$0xff]
  %v72 = vld [vmem:[%s1 + $0x1c0] sm:$0xff]
  %v73 = vld [vmem:[%s1 + $0x1c8] sm:$0xff]
  %v74 = vld [vmem:[%s1 + $0x1d0] sm:$0xff]
  %v75 = vld [vmem:[%s1 + $0x1d8] sm:$0xff]
  %v76 = vld [vmem:[%s1 + $0x1e0] sm:$0xff]
  %v77 = vld [vmem:[%s1 + $0x1e8] sm:$0xff]
  %v78 = vld [vmem:[%s1 + $0x1f0] sm:$0xff]
  %v79 = vld [vmem:[%s1 + $0x1f8] sm:$0xff]
  %v80 = vld [vmem:[%s1 + $0x200] sm:$0xff]
  %v81 = vld [vmem:[%s1 + $0x208] sm:$0xff]
  %v82 = vld [vmem:[%s1 + $0x210] sm:$0xff]
  %v83 = vld [vmem:[%s1 + $0x218] sm:$0xff]
  %v84 = vld [vmem:[%s1 + $0x220] sm:$0xff]
  %v85 = vld [vmem:[%s1 + $0x228] sm:$0xff]
  %v86 = vld [vmem:[%s1 + $0x230] sm:$0xff]
  %v87 = vld [vmem:[%s1 + $0x238] sm:$0xff]
  %v88 = vld [vmem:[%s1 + $0x240] sm:$0xff]
  %v89 = vld [vmem:[%s1 + $0x248] sm:$0xff]
  %v90 = vld [vmem:[%s1 + $0x250] sm:$0xff]
  %v91 = vld [vmem:[%s1 + $0x258] sm:$0xff]
  %v92 = vld [vmem:[%s1 + $0x260] sm:$0xff]
  %v93 = vld [vmem:[%s1 + $0x268] sm:$0xff]
  %v94 = vld [vmem:[%s1 + $0x270] sm:$0xff]
  %v95 = vld [vmem:[%s1 + $0x278] sm:$0xff]
  %v96 = vld [vmem:[%s1 + $0x280] sm:$0xff]
  %v97 = vld [vmem:[%s1 + $0x288] sm:$0xff]
  %v98 = vld [vmem:[%s1 + $0x290] sm:$0xff]
  %v99 = vld [vmem:[%s1 + $0x298] sm:$0xff]
  %v100 = vld [vmem:[%s1 + $0x2a0] sm:$0xff]
  %v101 = vld [vmem:[%s1 + $0x2a8] sm:$0xff]
  %v102 = vld [vmem:[%s1 + $0x2b0] sm:$0xff]
  %v103 = vld [vmem:[%s1 + $0x2b8] sm:$0xff]
  %v104 = vld [vmem:[%s1 + $0x2c0] sm:$0xff]
  %v105 = vld [vmem:[%s1 + $0x2c8] sm:$0xff]
  %v106 = vld [vmem:[%s1 + $0x2d0] sm:$0xff]
  %v107 = vld [vmem:[%s1 + $0x2d8] sm:$0xff]
  %v108 = vld [vmem:[%s1 + $0x2e0] sm:$0xff]
  %v109 = vld [vmem:[%s1 + $0x2e8] sm:$0xff]
  %v110 = vld [vmem:[%s1 + $0x2f0] sm:$0xff]
  %v111 = vld [vmem:[%s1 + $0x2f8] sm:$0xff]
  %v112 = vld [vmem:[%s1 + $0x300] sm:$0xff]
  %v113 = vld [vmem:[%s1 + $0x308] sm:$0xff]
  %v114 = vld [vmem:[%s1 + $0x310] sm:$0xff]
  %v115 = vld [vmem:[%s1 + $0x318] sm:$0xff]
  %v116 = vld [vmem:[%s1 + $0x320] sm:$0xff]
  %v117 = vld [vmem:[%s1 + $0x328] sm:$0xff]
  %v118 = vld [vmem:[%s1 + $0x330] sm:$0xff]
  %v119 = vld [vmem:[%s1 + $0x338] sm:$0xff]
  %v120 = vld [vmem:[%s1 + $0x340] sm:$0xff]
  %v121 = vld [vmem:[%s1 + $0x348] sm:$0xff]
  %v122 = vld [vmem:[%s1 + $0x350] sm:$0xff]
  %v123 = vld [vmem:[%s1 + $0x358] sm:$0xff]
  %v124 = vld [vmem:[%s1 + $0x360] sm:$0xff]
  %v125 = vld [vmem:[%s1 + $0x368] sm:$0xff]
  %v126 = vld [vmem:[%s1 + $0x370] sm:$0xff]
  %v127 = vld [vmem:[%s1 + $0x378] sm:$0xff]
  %v128 = vld [vmem:[%s1 + $0x380] sm:$0xff]
  %v129 = vld [vmem:[%s1 + $0x388] sm:$0xff]
  %v130 = vld [vmem:[%s1 + $0x390] sm:$0xff]
  %v131 = vld [vmem:[%s1 + $0x398] sm:$0xff]
  %v132 = vld [vmem:[%s1 + $0x3a0] sm:$0xff]
  %v133 = vld [vmem:[%s1 + $0x3a8] sm:$0xff]
  %v134 = vld [vmem:[%s1 + $0x3b0] sm:$0xff]
  %v135 = vld [vmem:[%s1 + $0x3b8] sm:$0xff]
  %v136 = vld [vmem:[%s1 + $0x3c0] sm:$0xff]
  %v137 = vld [vmem:[%s1 + $0x3c8] sm:$0xff]
  %v138 = vld [vmem:[%s1 + $0x3d0] sm:$0xff]
  %v139 = vld [vmem:[%s1 + $0x3d8] sm:$0xff]
  %v140 = vld [vmem:[%s1 + $0x3e0] sm:$0xff]
  %v141 = vld [vmem:[%s1 + $0x3e8] sm:$0xff]
  %v142 = vld [vmem:[%s1 + $0x3f0] sm:$0xff]
  %v143 = vld [vmem:[%s1 + $0x3f8] sm:$0xff]
  %v144 = vld [vmem:[%s2] sm:$0xff]
  %v146 = vlaneseq
  %v147 = vshrl.u32 %v146, 7
  %v148 = vsub.s32 0, %v147
  %v149 = vrot.slane %v144, %v148
  %v150 = vlaneseq
  %v151 = vshrl.u32 %v150, 7
  %v152 = vsub.s32 1, %v151
  %v153 = vrot.slane %v144, %v152
  %v154 = vlaneseq
  %v155 = vshrl.u32 %v154, 7
  %v156 = vsub.s32 2, %v155
  %v157 = vrot.slane %v144, %v156
  %v158 = vlaneseq
  %v159 = vshrl.u32 %v158, 7
  %v160 = vsub.s32 3, %v159
  %v161 = vrot.slane %v144, %v160
  %v162 = vlaneseq
  %v163 = vshrl.u32 %v162, 7
  %v164 = vsub.s32 4, %v163
  %v165 = vrot.slane %v144, %v164
  %v166 = vlaneseq
  %v167 = vshrl.u32 %v166, 7
  %v168 = vsub.s32 5, %v167
  %v169 = vrot.slane %v144, %v168
  %v170 = vlaneseq
  %v171 = vshrl.u32 %v170, 7
  %v172 = vsub.s32 6, %v171
  %v173 = vrot.slane %v144, %v172
  %v174 = vlaneseq
  %v175 = vshrl.u32 %v174, 7
  %v176 = vsub.s32 7, %v175
  %v177 = vrot.slane %v144, %v176
  %186 = vmatprep.subr.mxu0 %v17
  %187 = vmatpush1.msra.mxu0 %v16
  %188 = vmatprep.subr.mxu0 %v25
  %189 = vmatpush1.msra.mxu0 %v24
  %190 = vmatprep.subr.mxu0 %v33
  %191 = vmatpush1.msra.mxu0 %v32
  %192 = vmatprep.subr.mxu0 %v41
  %193 = vmatpush1.msra.mxu0 %v40
  %194 = vmatprep.subr.mxu0 %v49
  %195 = vmatpush1.msra.mxu0 %v48
  %196 = vmatprep.subr.mxu0 %v57
  %197 = vmatpush1.msra.mxu0 %v56
  %198 = vmatprep.subr.mxu0 %v65
  %199 = vmatpush1.msra.mxu0 %v64
  %200 = vmatprep.subr.mxu0 %v73
  %201 = vmatpush1.msra.mxu0 %v72
  %202 = vmatprep.subr.mxu0 %v81
  %203 = vmatpush1.msra.mxu0 %v80
  %204 = vmatprep.subr.mxu0 %v89
  %205 = vmatpush1.msra.mxu0 %v88
  %206 = vmatprep.subr.mxu0 %v97
  %207 = vmatpush1.msra.mxu0 %v96
  %208 = vmatprep.subr.mxu0 %v105
  %209 = vmatpush1.msra.mxu0 %v104
  %210 = vmatprep.subr.mxu0 %v113
  %211 = vmatpush1.msra.mxu0 %v112
  %212 = vmatprep.subr.mxu0 %v121
  %213 = vmatpush1.msra.mxu0 %v120
  %214 = vmatprep.subr.mxu0 %v129
  %215 = vmatpush1.msra.mxu0 %v128
  %216 = vmatprep.subr.mxu0 %v137
  %217 = vmatpush1.msra.mxu0 %v136
  %218 = vmatprep.subr.mxu0 0.0
  %219 = vmatpush1.msra.mxu0 0.0
  %220 = vmatprep.subr.mxu0 0.0
  %221 = vmatpush1.msra.mxu0 0.0
  %222 = vmatprep.subr.mxu0 0.0
  %223 = vmatpush1.msra.mxu0 0.0
  %224 = vmatprep.subr.mxu0 0.0
  %225 = vmatpush1.msra.mxu0 0.0
  %226 = vmatprep.subr.mxu0 0.0
  %227 = vmatpush1.msra.mxu0 0.0
  %228 = vmatprep.subr.mxu0 0.0
  %229 = vmatpush1.msra.mxu0 0.0
  %230 = vmatprep.subr.mxu0 0.0
  %231 = vmatpush1.msra.mxu0 0.0
  %232 = vmatprep.subr.mxu0 0.0
  %233 = vmatpush1.msra.mxu0 0.0
  %234 = vmatprep.subr.mxu0 0.0
  %235 = vmatpush1.msra.mxu0 0.0
  %236 = vmatprep.subr.mxu0 0.0
  %237 = vmatpush1.msra.mxu0 0.0
  %238 = vmatprep.subr.mxu0 0.0
  %239 = vmatpush1.msra.mxu0 0.0
  %240 = vmatprep.subr.mxu0 0.0
  %241 = vmatpush1.msra.mxu0 0.0
  %242 = vmatprep.subr.mxu0 0.0
  %243 = vmatpush1.msra.mxu0 0.0
  %244 = vmatprep.subr.mxu0 0.0
  %245 = vmatpush1.msra.mxu0 0.0
  %246 = vmatprep.subr.mxu0 0.0
  %247 = vmatpush1.msra.mxu0 0.0
  %248 = vmatprep.subr.mxu0 0.0
  %249 = vmatpush1.msra.mxu0 0.0
  %250 = vmatprep.mubr.f32.mxu0 0.0
  %251 = vmatmul.mubr.f32.gmra.mrb[0].mxu0 %v14
  %v252 = vpop.f32.mrb[0].mxu0
  %v253 = vadd.f32 %v149, %v252
  %v254 = vpop.f32.mrb[0].mxu0
  %v255 = vadd.f32 %v153, %v254
  %256 = vmatprep.mubr.f32.mxu0 0.0
  %257 = vmatmul.mubr.f32.gmra.mrb[0].mxu0 %v15
  %v258 = vpop.f32.mrb[0].mxu0
  %v259 = vadd.f32 %v149, %v258
  %v260 = vpop.f32.mrb[0].mxu0
  %v261 = vadd.f32 %v153, %v260
  %262 = vdwg.mxu0
  %263 = vmatprep.subr.mxu0 %v19
  %264 = vmatpush1.msra.mxu0 %v18
  %265 = vmatprep.subr.mxu0 %v27
  %266 = vmatpush1.msra.mxu0 %v26
  %267 = vmatprep.subr.mxu0 %v35
  %268 = vmatpush1.msra.mxu0 %v34
  %269 = vmatprep.subr.mxu0 %v43
  %270 = vmatpush1.msra.mxu0 %v42
  %271 = vmatprep.subr.mxu0 %v51
  %272 = vmatpush1.msra.mxu0 %v50
  %273 = vmatprep.subr.mxu0 %v59
  %274 = vmatpush1.msra.mxu0 %v58
  %275 = vmatprep.subr.mxu0 %v67
  %276 = vmatpush1.msra.mxu0 %v66
  %277 = vmatprep.subr.mxu0 %v75
  %278 = vmatpush1.msra.mxu0 %v74
  %279 = vmatprep.subr.mxu0 %v83
  %280 = vmatpush1.msra.mxu0 %v82
  %281 = vmatprep.subr.mxu0 %v91
  %282 = vmatpush1.msra.mxu0 %v90
  %283 = vmatprep.subr.mxu0 %v99
  %284 = vmatpush1.msra.mxu0 %v98
  %285 = vmatprep.subr.mxu0 %v107
  %286 = vmatpush1.msra.mxu0 %v106
  %287 = vmatprep.subr.mxu0 %v115
  %288 = vmatpush1.msra.mxu0 %v114
  %289 = vmatprep.subr.mxu0 %v123
  %290 = vmatpush1.msra.mxu0 %v122
  %291 = vmatprep.subr.mxu0 %v131
  %292 = vmatpush1.msra.mxu0 %v130
  %293 = vmatprep.subr.mxu0 %v139
  %294 = vmatpush1.msra.mxu0 %v138
  %295 = vmatprep.subr.mxu0 0.0
  %296 = vmatpush1.msra.mxu0 0.0
  %297 = vmatprep.subr.mxu0 0.0
  %298 = vmatpush1.msra.mxu0 0.0
  %299 = vmatprep.subr.mxu0 0.0
  %300 = vmatpush1.msra.mxu0 0.0
  %301 = vmatprep.subr.mxu0 0.0
  %302 = vmatpush1.msra.mxu0 0.0
  %303 = vmatprep.subr.mxu0 0.0
  %304 = vmatpush1.msra.mxu0 0.0
  %305 = vmatprep.subr.mxu0 0.0
  %306 = vmatpush1.msra.mxu0 0.0
  %307 = vmatprep.subr.mxu0 0.0
  %308 = vmatpush1.msra.mxu0 0.0
  %309 = vmatprep.subr.mxu0 0.0
  %310 = vmatpush1.msra.mxu0 0.0
  %311 = vmatprep.subr.mxu0 0.0
  %312 = vmatpush1.msra.mxu0 0.0
  %313 = vmatprep.subr.mxu0 0.0
  %314 = vmatpush1.msra.mxu0 0.0
  %315 = vmatprep.subr.mxu0 0.0
  %316 = vmatpush1.msra.mxu0 0.0
  %317 = vmatprep.subr.mxu0 0.0
  %318 = vmatpush1.msra.mxu0 0.0
  %319 = vmatprep.subr.mxu0 0.0
  %320 = vmatpush1.msra.mxu0 0.0
  %321 = vmatprep.subr.mxu0 0.0
  %322 = vmatpush1.msra.mxu0 0.0
  %323 = vmatprep.subr.mxu0 0.0
  %324 = vmatpush1.msra.mxu0 0.0
  %325 = vmatprep.subr.mxu0 0.0
  %326 = vmatpush1.msra.mxu0 0.0
  %327 = vmatprep.mubr.f32.mxu0 0.0
  %328 = vmatmul.mubr.f32.gmra.mrb[0].mxu0 %v14
  %v329 = vpop.f32.mrb[0].mxu0
  %v330 = vadd.f32 %v157, %v329
  %v331 = vpop.f32.mrb[0].mxu0
  %v332 = vadd.f32 %v161, %v331
  %333 = vmatprep.mubr.f32.mxu0 0.0
  %334 = vmatmul.mubr.f32.gmra.mrb[0].mxu0 %v15
  %v335 = vpop.f32.mrb[0].mxu0
  %v336 = vadd.f32 %v157, %v335
  %v337 = vpop.f32.mrb[0].mxu0
  %v338 = vadd.f32 %v161, %v337
  %339 = vdwg.mxu0
  %340 = vmatprep.subr.mxu0 %v21
  %341 = vmatpush1.msra.mxu0 %v20
  %342 = vmatprep.subr.mxu0 %v29
  %343 = vmatpush1.msra.mxu0 %v28
  %344 = vmatprep.subr.mxu0 %v37
  %345 = vmatpush1.msra.mxu0 %v36
  %346 = vmatprep.subr.mxu0 %v45
  %347 = vmatpush1.msra.mxu0 %v44
  %348 = vmatprep.subr.mxu0 %v53
  %349 = vmatpush1.msra.mxu0 %v52
  %350 = vmatprep.subr.mxu0 %v61
  %351 = vmatpush1.msra.mxu0 %v60
  %352 = vmatprep.subr.mxu0 %v69
  %353 = vmatpush1.msra.mxu0 %v68
  %354 = vmatprep.subr.mxu0 %v77
  %355 = vmatpush1.msra.mxu0 %v76
  %356 = vmatprep.subr.mxu0 %v85
  %357 = vmatpush1.msra.mxu0 %v84
  %358 = vmatprep.subr.mxu0 %v93
  %359 = vmatpush1.msra.mxu0 %v92
  %360 = vmatprep.subr.mxu0 %v101
  %361 = vmatpush1.msra.mxu0 %v100
  %362 = vmatprep.subr.mxu0 %v109
  %363 = vmatpush1.msra.mxu0 %v108
  %364 = vmatprep.subr.mxu0 %v117
  %365 = vmatpush1.msra.mxu0 %v116
  %366 = vmatprep.subr.mxu0 %v125
  %367 = vmatpush1.msra.mxu0 %v124
  %368 = vmatprep.subr.mxu0 %v133
  %369 = vmatpush1.msra.mxu0 %v132
  %370 = vmatprep.subr.mxu0 %v141
  %371 = vmatpush1.msra.mxu0 %v140
  %372 = vmatprep.subr.mxu0 0.0
  %373 = vmatpush1.msra.mxu0 0.0
  %374 = vmatprep.subr.mxu0 0.0
  %375 = vmatpush1.msra.mxu0 0.0
  %376 = vmatprep.subr.mxu0 0.0
  %377 = vmatpush1.msra.mxu0 0.0
  %378 = vmatprep.subr.mxu0 0.0
  %379 = vmatpush1.msra.mxu0 0.0
  %380 = vmatprep.subr.mxu0 0.0
  %381 = vmatpush1.msra.mxu0 0.0
  %382 = vmatprep.subr.mxu0 0.0
  %383 = vmatpush1.msra.mxu0 0.0
  %384 = vmatprep.subr.mxu0 0.0
  %385 = vmatpush1.msra.mxu0 0.0
  %386 = vmatprep.subr.mxu0 0.0
  %387 = vmatpush1.msra.mxu0 0.0
  %388 = vmatprep.subr.mxu0 0.0
  %389 = vmatpush1.msra.mxu0 0.0
  %390 = vmatprep.subr.mxu0 0.0
  %391 = vmatpush1.msra.mxu0 0.0
  %392 = vmatprep.subr.mxu0 0.0
  %393 = vmatpush1.msra.mxu0 0.0
  %394 = vmatprep.subr.mxu0 0.0
  %395 = vmatpush1.msra.mxu0 0.0
  %396 = vmatprep.subr.mxu0 0.0
  %397 = vmatpush1.msra.mxu0 0.0
  %398 = vmatprep.subr.mxu0 0.0
  %399 = vmatpush1.msra.mxu0 0.0
  %400 = vmatprep.subr.mxu0 0.0
  %401 = vmatpush1.msra.mxu0 0.0
  %402 = vmatprep.subr.mxu0 0.0
  %403 = vmatpush1.msra.mxu0 0.0
  %404 = vmatprep.mubr.f32.mxu0 0.0
  %405 = vmatmul.mubr.f32.gmra.mrb[0].mxu0 %v14
  %v406 = vpop.f32.mrb[0].mxu0
  %v407 = vadd.f32 %v165, %v406
  %v408 = vpop.f32.mrb[0].mxu0
  %v409 = vadd.f32 %v169, %v408
  %410 = vmatprep.mubr.f32.mxu0 0.0
  %411 = vmatmul.mubr.f32.gmra.mrb[0].mxu0 %v15
  %v412 = vpop.f32.mrb[0].mxu0
  %v413 = vadd.f32 %v165, %v412
  %v414 = vpop.f32.mrb[0].mxu0
  %v415 = vadd.f32 %v169, %v414
  %416 = vdwg.mxu0
  %417 = vmatprep.subr.mxu0 %v23
  %418 = vmatpush1.msra.mxu0 %v22
  %419 = vmatprep.subr.mxu0 %v31
  %420 = vmatpush1.msra.mxu0 %v30
  %421 = vmatprep.subr.mxu0 %v39
  %422 = vmatpush1.msra.mxu0 %v38
  %423 = vmatprep.subr.mxu0 %v47
  %424 = vmatpush1.msra.mxu0 %v46
  %425 = vmatprep.subr.mxu0 %v55
  %426 = vmatpush1.msra.mxu0 %v54
  %427 = vmatprep.subr.mxu0 %v63
  %428 = vmatpush1.msra.mxu0 %v62
  %429 = vmatprep.subr.mxu0 %v71
  %430 = vmatpush1.msra.mxu0 %v70
  %431 = vmatprep.subr.mxu0 %v79
  %432 = vmatpush1.msra.mxu0 %v78
  %433 = vmatprep.subr.mxu0 %v87
  %434 = vmatpush1.msra.mxu0 %v86
  %435 = vmatprep.subr.mxu0 %v95
  %436 = vmatpush1.msra.mxu0 %v94
  %437 = vmatprep.subr.mxu0 %v103
  %438 = vmatpush1.msra.mxu0 %v102
  %439 = vmatprep.subr.mxu0 %v111
  %440 = vmatpush1.msra.mxu0 %v110
  %441 = vmatprep.subr.mxu0 %v119
  %442 = vmatpush1.msra.mxu0 %v118
  %443 = vmatprep.subr.mxu0 %v127
  %444 = vmatpush1.msra.mxu0 %v126
  %445 = vmatprep.subr.mxu0 %v135
  %446 = vmatpush1.msra.mxu0 %v134
  %447 = vmatprep.subr.mxu0 %v143
  %448 = vmatpush1.msra.mxu0 %v142
  %449 = vmatprep.subr.mxu0 0.0
  %450 = vmatpush1.msra.mxu0 0.0
  %451 = vmatprep.subr.mxu0 0.0
  %452 = vmatpush1.msra.mxu0 0.0
  %453 = vmatprep.subr.mxu0 0.0
  %454 = vmatpush1.msra.mxu0 0.0
  %455 = vmatprep.subr.mxu0 0.0
  %456 = vmatpush1.msra.mxu0 0.0
  %457 = vmatprep.subr.mxu0 0.0
  %458 = vmatpush1.msra.mxu0 0.0
  %459 = vmatprep.subr.mxu0 0.0
  %460 = vmatpush1.msra.mxu0 0.0
  %461 = vmatprep.subr.mxu0 0.0
  %462 = vmatpush1.msra.mxu0 0.0
  %463 = vmatprep.subr.mxu0 0.0
  %464 = vmatpush1.msra.mxu0 0.0
  %465 = vmatprep.subr.mxu0 0.0
  %466 = vmatpush1.msra.mxu0 0.0
  %467 = vmatprep.subr.mxu0 0.0
  %468 = vmatpush1.msra.mxu0 0.0
  %469 = vmatprep.subr.mxu0 0.0
  %470 = vmatpush1.msra.mxu0 0.0
  %471 = vmatprep.subr.mxu0 0.0
  %472 = vmatpush1.msra.mxu0 0.0
  %473 = vmatprep.subr.mxu0 0.0
  %474 = vmatpush1.msra.mxu0 0.0
  %475 = vmatprep.subr.mxu0 0.0
  %476 = vmatpush1.msra.mxu0 0.0
  %477 = vmatprep.subr.mxu0 0.0
  %478 = vmatpush1.msra.mxu0 0.0
  %479 = vmatprep.subr.mxu0 0.0
  %480 = vmatpush1.msra.mxu0 0.0
  %481 = vmatprep.mubr.f32.mxu0 0.0
  %482 = vmatmul.mubr.f32.gmra.mrb[0].mxu0 %v14
  %v483 = vpop.f32.mrb[0].mxu0
  %v484 = vadd.f32 %v173, %v483
  %v485 = vpop.f32.mrb[0].mxu0
  %v486 = vadd.f32 %v177, %v485
  %487 = vmatprep.mubr.f32.mxu0 0.0
  %488 = vmatmul.mubr.f32.gmra.mrb[0].mxu0 %v15
  %v489 = vpop.f32.mrb[0].mxu0
  %v490 = vadd.f32 %v173, %v489
  %v491 = vpop.f32.mrb[0].mxu0
  %v492 = vadd.f32 %v177, %v491
  %493 = vdwg.mxu0
  %494 = vst [vmem:[%s3] sm:$0xff] %v253
  %495 = vst [vmem:[%s3 + $0x8] sm:$0xff] %v255
  %496 = vst [vmem:[%s3 + $0x10] sm:$0xff] %v330
  %497 = vst [vmem:[%s3 + $0x18] sm:$0xff] %v332
  %498 = vst [vmem:[%s3 + $0x20] sm:$0xff] %v407
  %499 = vst [vmem:[%s3 + $0x28] sm:$0xff] %v409
  %500 = vst [vmem:[%s3 + $0x30] sm:$0xff] %v484
  %501 = vst [vmem:[%s3 + $0x38] sm:$0xff] %v486
  %502 = vst [vmem:[%s3 + $0x40] sm:$0xf] %v259
  %503 = vst [vmem:[%s3 + $0x48] sm:$0xf] %v261
  %504 = vst [vmem:[%s3 + $0x50] sm:$0xf] %v336
  %505 = vst [vmem:[%s3 + $0x58] sm:$0xf] %v338
  %506 = vst [vmem:[%s3 + $0x60] sm:$0xf] %v413
  %507 = vst [vmem:[%s3 + $0x68] sm:$0xf] %v415
  %508 = vst [vmem:[%s3 + $0x70] sm:$0xf] %v490
  %509 = vst [vmem:[%s3 + $0x78] sm:$0xf] %v492
  // Predicated region
  $region14: #{transducer_b_forward.9} parent=0 // pred_check
    _
  $region15: #{transducer_b_forward.9} parent=0 // pred_check_branch
    %511 = sbr.rel (0) target = $region17
  $region16: #{transducer_b_forward.9} parent=0 // pred_region
    _
  $region17: #{transducer_b_forward.9} parent=0 // pred_fallthru
    _
  // Predicated region
  $region18: #{transducer_b_forward.9} parent=0 // pred_check
    _
  $region19: #{transducer_b_forward.9} parent=0 // pred_check_branch
    %513 = sbr.rel (0) target = $region21
  $region20: #{transducer_b_forward.9} parent=0 // pred_region
    _
  $region21: #{transducer_b_forward.9} parent=0 // pred_fallthru
    _

// kernel: transducer_b_forward.8
$region0: #{transducer_b_forward.8}
  #allocation0 [shape = 'u32[]', space=smem, size = 0x4, offset = 0x4, fixed_abs, tag = 'smem constant byte address 0x4 - core index']
  #allocation1 [shape = 'u32[144,128]{1,0:T(1,128)}', space=vmem, size = 0x12000, scoped, tag = 'internal scratch']
  #allocation2 [shape = 'f32[12,128]{1,0:T(8,128)}', space=vmem, size = 0x2000, scoped, tag = 'scratch operand']
  #allocation3 [shape = 'f32[12,128]{1,0:T(8,128)}', space=vmem, size = 0x2000, scoped, tag = 'scratch operand']
  %s0 = inlined_call_operand.vmem [shape: f32[8,12,512], index: 0, kind: input, shape index: {}]
  %s1 = inlined_call_operand.vmem [shape: f32[128,512], index: 1, kind: input, shape index: {}]
  %s2 = inlined_call_operand.vmem [shape: s32[12,1], index: 2, kind: input, shape index: {}]
  %s3 = inlined_call_operand.vmem [shape: f32[12,128], index: 3, kind: output, shape index: {}]
  %s4 = sld [smem:[#allocation0]]
  $region22: #{transducer_b_forward.8} parent=0
    _
  %s6 = ssub.s32 1, %s4
  %s7 = scalar_select 0, %s6, %s4
  // Predicated region
  $region2: #{transducer_b_forward.8} parent=0 // pred_check
    _
  $region3: #{transducer_b_forward.8} parent=0 // pred_check_branch
    %9 = sbr.rel (0) target = $region5
  $region4: #{transducer_b_forward.8} parent=0 // pred_region
    _
  $region5: #{transducer_b_forward.8} parent=0 // pred_fallthru
    _
  // Predicated region
  $region6: #{transducer_b_forward.8} parent=0 // pred_check
    _
  $region7: #{transducer_b_forward.8} parent=0 // pred_check_branch
    %11 = sbr.rel (0) target = $region9
  $region8: #{transducer_b_forward.8} parent=0 // pred_region
    _
  $region9: #{transducer_b_forward.8} parent=0 // pred_fallthru
    _
  // Predicated region
  $region10: #{transducer_b_forward.8} parent=0 // pred_check
    _
  $region11: #{transducer_b_forward.8} parent=0 // pred_check_branch
    %13 = sbr.rel (0) target = $region13
  $region12: #{transducer_b_forward.8} parent=0 // pred_region
    _
  $region13: #{transducer_b_forward.8} parent=0 // pred_fallthru
    _
  %14 = vst [vmem:[#allocation2] sm:$0xff] 0.0
  %15 = vst [vmem:[#allocation2 + $0x8] sm:$0xf] 0.0
  %16 = vst [vmem:[#allocation3] sm:$0xff] 0.0
  %17 = vst [vmem:[#allocation3 + $0x8] sm:$0xf] 0.0
  %v18 = vld [vmem:[%s1] sm:$0xff]
  %v19 = vld [vmem:[%s1 + $0x8] sm:$0xff]
  %v20 = vld [vmem:[%s1 + $0x10] sm:$0xff]
  %v21 = vld [vmem:[%s1 + $0x18] sm:$0xff]
  %v22 = vld [vmem:[%s1 + $0x20] sm:$0xff]
  %v23 = vld [vmem:[%s1 + $0x28] sm:$0xff]
  %v24 = vld [vmem:[%s1 + $0x30] sm:$0xff]
  %v25 = vld [vmem:[%s1 + $0x38] sm:$0xff]
  %v26 = vld [vmem:[%s1 + $0x40] sm:$0xff]
  %v27 = vld [vmem:[%s1 + $0x48] sm:$0xff]
  %v28 = vld [vmem:[%s1 + $0x50] sm:$0xff]
  %v29 = vld [vmem:[%s1 + $0x58] sm:$0xff]
  %v30 = vld [vmem:[%s1 + $0x60] sm:$0xff]
  %v31 = vld [vmem:[%s1 + $0x68] sm:$0xff]
  %v32 = vld [vmem:[%s1 + $0x70] sm:$0xff]
  %v33 = vld [vmem:[%s1 + $0x78] sm:$0xff]
  %v34 = vld [vmem:[%s1 + $0x80] sm:$0xff]
  %v35 = vld [vmem:[%s1 + $0x88] sm:$0xff]
  %v36 = vld [vmem:[%s1 + $0x90] sm:$0xff]
  %v37 = vld [vmem:[%s1 + $0x98] sm:$0xff]
  %v38 = vld [vmem:[%s1 + $0xa0] sm:$0xff]
  %v39 = vld [vmem:[%s1 + $0xa8] sm:$0xff]
  %v40 = vld [vmem:[%s1 + $0xb0] sm:$0xff]
  %v41 = vld [vmem:[%s1 + $0xb8] sm:$0xff]
  %v42 = vld [vmem:[%s1 + $0xc0] sm:$0xff]
  %v43 = vld [vmem:[%s1 + $0xc8] sm:$0xff]
  %v44 = vld [vmem:[%s1 + $0xd0] sm:$0xff]
  %v45 = vld [vmem:[%s1 + $0xd8] sm:$0xff]
  %v46 = vld [vmem:[%s1 + $0xe0] sm:$0xff]
  %v47 = vld [vmem:[%s1 + $0xe8] sm:$0xff]
  %v48 = vld [vmem:[%s1 + $0xf0] sm:$0xff]
  %v49 = vld [vmem:[%s1 + $0xf8] sm:$0xff]
  %v50 = vld [vmem:[%s1 + $0x100] sm:$0xff]
  %v51 = vld [vmem:[%s1 + $0x108] sm:$0xff]
  %v52 = vld [vmem:[%s1 + $0x110] sm:$0xff]
  %v53 = vld [vmem:[%s1 + $0x118] sm:$0xff]
  %v54 = vld [vmem:[%s1 + $0x120] sm:$0xff]
  %v55 = vld [vmem:[%s1 + $0x128] sm:$0xff]
  %v56 = vld [vmem:[%s1 + $0x130] sm:$0xff]
  %v57 = vld [vmem:[%s1 + $0x138] sm:$0xff]
  %v58 = vld [vmem:[%s1 + $0x140] sm:$0xff]
  %v59 = vld [vmem:[%s1 + $0x148] sm:$0xff]
  %v60 = vld [vmem:[%s1 + $0x150] sm:$0xff]
  %v61 = vld [vmem:[%s1 + $0x158] sm:$0xff]
  %v62 = vld [vmem:[%s1 + $0x160] sm:$0xff]
  %v63 = vld [vmem:[%s1 + $0x168] sm:$0xff]
  %v64 = vld [vmem:[%s1 + $0x170] sm:$0xff]
  %v65 = vld [vmem:[%s1 + $0x178] sm:$0xff]
  %v66 = vld [vmem:[%s1 + $0x180] sm:$0xff]
  %v67 = vld [vmem:[%s1 + $0x188] sm:$0xff]
  %v68 = vld [vmem:[%s1 + $0x190] sm:$0xff]
  %v69 = vld [vmem:[%s1 + $0x198] sm:$0xff]
  %v70 = vld [vmem:[%s1 + $0x1a0] sm:$0xff]
  %v71 = vld [vmem:[%s1 + $0x1a8] sm:$0xff]
  %v72 = vld [vmem:[%s1 + $0x1b0] sm:$0xff]
  %v73 = vld [vmem:[%s1 + $0x1b8] sm:$0xff]
  %v74 = vld [vmem:[%s1 + $0x1c0] sm:$0xff]
  %v75 = vld [vmem:[%s1 + $0x1c8] sm:$0xff]
  %v76 = vld [vmem:[%s1 + $0x1d0] sm:$0xff]
  %v77 = vld [vmem:[%s1 + $0x1d8] sm:$0xff]
  %v78 = vld [vmem:[%s1 + $0x1e0] sm:$0xff]
  %v79 = vld [vmem:[%s1 + $0x1e8] sm:$0xff]
  %v80 = vld [vmem:[%s1 + $0x1f0] sm:$0xff]
  %v81 = vld [vmem:[%s1 + $0x1f8] sm:$0xff]
  %v82 = vld [vmem:[%s2] sm:$0xff]
  %v83 = vld [vmem:[%s2 + $0x8] sm:$0xf]
  %vm84 = vcmp.gt.s32.totalorder %v82, 0
  %vm85 = vcmp.gt.s32.totalorder %v83, 0
  %v86 = vsel %vm84, 1, 0
  %v87 = vsel %vm85, 1, 0
  %v88 = vcvt.s32.f32 %v86
  %v89 = vcvt.s32.f32 %v87
  %v90 = vld [vmem:[%s0] sm:$0xff]
  %v91 = vld [vmem:[%s0 + $0x8] sm:$0xff]
  %v92 = vld [vmem:[%s0 + $0x10] sm:$0xff]
  %v93 = vld [vmem:[%s0 + $0x18] sm:$0xff]
  %v94 = vld [vmem:[%s0 + $0x20] sm:$0xf]
  %v95 = vld [vmem:[%s0 + $0x28] sm:$0xf]
  %v96 = vld [vmem:[%s0 + $0x30] sm:$0xf]
  %v97 = vld [vmem:[%s0 + $0x38] sm:$0xf]
  %v98 = vld [vmem:[#allocation2] sm:$0xff]
  %v99 = vld [vmem:[#allocation2 + $0x8] sm:$0xf]
  %v100 = vld [vmem:[#allocation3] sm:$0xff]
  %v101 = vld [vmem:[#allocation3 + $0x8] sm:$0xf]
  %102 = vmatprep.subr.mxu0 %v19
  %103 = vmatpush1.msra.mxu0 %v18
  %104 = vmatprep.subr.mxu0 %v23
  %105 = vmatpush1.msra.mxu0 %v22
  %106 = vmatprep.subr.mxu0 %v27
  %107 = vmatpush1.msra.mxu0 %v26
  %108 = vmatprep.subr.mxu0 %v31
  %109 = vmatpush1.msra.mxu0 %v30
  %110 = vmatprep.subr.mxu0 %v35
  %111 = vmatpush1.msra.mxu0 %v34
  %112 = vmatprep.subr.mxu0 %v39
  %113 = vmatpush1.msra.mxu0 %v38
  %114 = vmatprep.subr.mxu0 %v43
  %115 = vmatpush1.msra.mxu0 %v42
  %116 = vmatprep.subr.mxu0 %v47
  %117 = vmatpush1.msra.mxu0 %v46
  %118 = vmatprep.subr.mxu0 %v51
  %119 = vmatpush1.msra.mxu0 %v50
  %120 = vmatprep.subr.mxu0 %v55
  %121 = vmatpush1.msra.mxu0 %v54
  %122 = vmatprep.subr.mxu0 %v59
  %123 = vmatpush1.msra.mxu0 %v58
  %124 = vmatprep.subr.mxu0 %v63
  %125 = vmatpush1.msra.mxu0 %v62
  %126 = vmatprep.subr.mxu0 %v67
  %127 = vmatpush1.msra.mxu0 %v66
  %128 = vmatprep.subr.mxu0 %v71
  %129 = vmatpush1.msra.mxu0 %v70
  %130 = vmatprep.subr.mxu0 %v75
  %131 = vmatpush1.msra.mxu0 %v74
  %132 = vmatprep.subr.mxu0 %v79
  %133 = vmatpush1.msra.mxu0 %v78
  %134 = vmatprep.subr.mxu0 0.0
  %135 = vmatpush1.msra.mxu0 0.0
  %136 = vmatprep.subr.mxu0 0.0
  %137 = vmatpush1.msra.mxu0 0.0
  %138 = vmatprep.subr.mxu0 0.0
  %139 = vmatpush1.msra.mxu0 0.0
  %140 = vmatprep.subr.mxu0 0.0
  %141 = vmatpush1.msra.mxu0 0.0
  %142 = vmatprep.subr.mxu0 0.0
  %143 = vmatpush1.msra.mxu0 0.0
  %144 = vmatprep.subr.mxu0 0.0
  %145 = vmatpush1.msra.mxu0 0.0
  %146 = vmatprep.subr.mxu0 0.0
  %147 = vmatpush1.msra.mxu0 0.0
  %148 = vmatprep.subr.mxu0 0.0
  %149 = vmatpush1.msra.mxu0 0.0
  %150 = vmatprep.subr.mxu0 0.0
  %151 = vmatpush1.msra.mxu0 0.0
  %152 = vmatprep.subr.mxu0 0.0
  %153 = vmatpush1.msra.mxu0 0.0
  %154 = vmatprep.subr.mxu0 0.0
  %155 = vmatpush1.msra.mxu0 0.0
  %156 = vmatprep.subr.mxu0 0.0
  %157 = vmatpush1.msra.mxu0 0.0
  %158 = vmatprep.subr.mxu0 0.0
  %159 = vmatpush1.msra.mxu0 0.0
  %160 = vmatprep.subr.mxu0 0.0
  %161 = vmatpush1.msra.mxu0 0.0
  %162 = vmatprep.subr.mxu0 0.0
  %163 = vmatpush1.msra.mxu0 0.0
  %164 = vmatprep.subr.mxu0 0.0
  %165 = vmatpush1.msra.mxu0 0.0
  %166 = vmatprep.mubr.f32.mxu0 0.0
  %167 = vmatmul.mubr.f32.gmra.mrb[0].mxu0 %v98
  %v168 = vpop.f32.mrb[0].mxu0
  %v169 = vadd.f32 0.0, %v168
  %v170 = vpop.f32.mrb[0].mxu0
  %v171 = vadd.f32 0.0, %v170
  %172 = vmatprep.mubr.f32.mxu0 0.0
  %173 = vmatmul.mubr.f32.gmra.mrb[0].mxu0 %v99
  %v174 = vpop.f32.mrb[0].mxu0
  %v175 = vadd.f32 0.0, %v174
  %v176 = vpop.f32.mrb[0].mxu0
  %v177 = vadd.f32 0.0, %v176
  %178 = vdwg.mxu0
  %179 = vmatprep.subr.mxu0 %v21
  %180 = vmatpush1.msra.mxu0 %v20
  %181 = vmatprep.subr.mxu0 %v25
  %182 = vmatpush1.msra.mxu0 %v24
  %183 = vmatprep.subr.mxu0 %v29
  %184 = vmatpush1.msra.mxu0 %v28
  %185 = vmatprep.subr.mxu0 %v33
  %186 = vmatpush1.msra.mxu0 %v32
  %187 = vmatprep.subr.mxu0 %v37
  %188 = vmatpush1.msra.mxu0 %v36
  %189 = vmatprep.subr.mxu0 %v41
  %190 = vmatpush1.msra.mxu0 %v40
  %191 = vmatprep.subr.mxu0 %v45
  %192 = vmatpush1.msra.mxu0 %v44
  %193 = vmatprep.subr.mxu0 %v49
  %194 = vmatpush1.msra.mxu0 %v48
  %195 = vmatprep.subr.mxu0 %v53
  %196 = vmatpush1.msra.mxu0 %v52
  %197 = vmatprep.subr.mxu0 %v57
  %198 = vmatpush1.msra.mxu0 %v56
  %199 = vmatprep.subr.mxu0 %v61
  %200 = vmatpush1.msra.mxu0 %v60
  %201 = vmatprep.subr.mxu0 %v65
  %202 = vmatpush1.msra.mxu0 %v64
  %203 = vmatprep.subr.mxu0 %v69
  %204 = vmatpush1.msra.mxu0 %v68
  %205 = vmatprep.subr.mxu0 %v73
  %206 = vmatpush1.msra.mxu0 %v72
  %207 = vmatprep.subr.mxu0 %v77
  %208 = vmatpush1.msra.mxu0 %v76
  %209 = vmatprep.subr.mxu0 %v81
  %210 = vmatpush1.msra.mxu0 %v80
  %211 = vmatprep.subr.mxu0 0.0
  %212 = vmatpush1.msra.mxu0 0.0
  %213 = vmatprep.subr.mxu0 0.0
  %214 = vmatpush1.msra.mxu0 0.0
  %215 = vmatprep.subr.mxu0 0.0
  %216 = vmatpush1.msra.mxu0 0.0
  %217 = vmatprep.subr.mxu0 0.0
  %218 = vmatpush1.msra.mxu0 0.0
  %219 = vmatprep.subr.mxu0 0.0
  %220 = vmatpush1.msra.mxu0 0.0
  %221 = vmatprep.subr.mxu0 0.0
  %222 = vmatpush1.msra.mxu0 0.0
  %223 = vmatprep.subr.mxu0 0.0
  %224 = vmatpush1.msra.mxu0 0.0
  %225 = vmatprep.subr.mxu0 0.0
  %226 = vmatpush1.msra.mxu0 0.0
  %227 = vmatprep.subr.mxu0 0.0
  %228 = vmatpush1.msra.mxu0 0.0
  %229 = vmatprep.subr.mxu0 0.0
  %230 = vmatpush1.msra.mxu0 0.0
  %231 = vmatprep.subr.mxu0 0.0
  %232 = vmatpush1.msra.mxu0 0.0
  %233 = vmatprep.subr.mxu0 0.0
  %234 = vmatpush1.msra.mxu0 0.0
  %235 = vmatprep.subr.mxu0 0.0
  %236 = vmatpush1.msra.mxu0 0.0
  %237 = vmatprep.subr.mxu0 0.0
  %238 = vmatpush1.msra.mxu0 0.0
  %239 = vmatprep.subr.mxu0 0.0
  %240 = vmatpush1.msra.mxu0 0.0
  %241 = vmatprep.subr.mxu0 0.0
  %242 = vmatpush1.msra.mxu0 0.0
  %243 = vmatprep.mubr.f32.mxu0 0.0
  %244 = vmatmul.mubr.f32.gmra.mrb[0].mxu0 %v98
  %v245 = vpop.f32.mrb[0].mxu0
  %v246 = vadd.f32 0.0, %v245
  %v247 = vpop.f32.mrb[0].mxu0
  %v248 = vadd.f32 0.0, %v247
  %249 = vmatprep.mubr.f32.mxu0 0.0
  %250 = vmatmul.mubr.f32.gmra.mrb[0].mxu0 %v99
  %v251 = vpop.f32.mrb[0].mxu0
  %v252 = vadd.f32 0.0, %v251
  %v253 = vpop.f32.mrb[0].mxu0
  %v254 = vadd.f32 0.0, %v253
  %255 = vdwg.mxu0
  %v256 = vadd.f32 %v90, %v169
  %v257 = vadd.f32 %v91, %v171
  %v258 = vadd.f32 %v92, %v246
  %v259 = vadd.f32 %v93, %v248
  %v260 = vadd.f32 %v94, %v175
  %v261 = vadd.f32 %v95, %v177
  %v262 = vadd.f32 %v96, %v252
  %v263 = vadd.f32 %v97, %v254
  %v264 = vxor.u32 %v256, 2147483648
  %v265 = vxor.u32 %v260, 2147483648
  %v266 = vmul.f32 %v264, 1.442695
  %v267 = vpow.pop %v266
  %v268 = vmul.f32 %v265, 1.442695
  %v269 = vpow.pop %v268
  %v270 = vadd.f32 %v267, 1.0
  %v271 = vadd.f32 %v269, 1.0
  %v272 = vrcp.pop %v270
  %v273 = vmul.f32 1.0, %v272
  %v274 = vrcp.pop %v271
  %v275 = vmul.f32 1.0, %v274
  %v276 = vxor.u32 %v257, 2147483648
  %v277 = vxor.u32 %v261, 2147483648
  %v278 = vmul.f32 %v276, 1.442695
  %v279 = vpow.pop %v278
  %v280 = vmul.f32 %v277, 1.442695
  %v281 = vpow.pop %v280
  %v282 = vadd.f32 %v279, 1.0
  %v283 = vadd.f32 %v281, 1.0
  %v284 = vrcp.pop %v282
  %v285 = vmul.f32 1.0, %v284
  %v286 = vrcp.pop %v283
  %v287 = vmul.f32 1.0, %v286
  %v288 = vtanh.pop %v258
  %v289 = vtanh.pop %v262
  %v290 = vxor.u32 %v259, 2147483648
  %v291 = vxor.u32 %v263, 2147483648
  %v292 = vmul.f32 %v290, 1.442695
  %v293 = vpow.pop %v292
  %v294 = vmul.f32 %v291, 1.442695
  %v295 = vpow.pop %v294
  %v296 = vadd.f32 %v293, 1.0
  %v297 = vadd.f32 %v295, 1.0
  %v298 = vrcp.pop %v296
  %v299 = vmul.f32 1.0, %v298
  %v300 = vrcp.pop %v297
  %v301 = vmul.f32 1.0, %v300
  %v302 = vmul.f32 %v285, %v100
  %v303 = vmul.f32 %v287, %v101
  %v304 = vmul.f32 %v273, %v288
  %v305 = vmul.f32 %v275, %v289
  %v306 = vadd.f32 %v302, %v304
  %v307 = vadd.f32 %v303, %v305
  %v308 = vtanh.pop %v306
  %v309 = vtanh.pop %v307
  %v310 = vmul.f32 %v299, %v308
  %v311 = vmul.f32 %v301, %v309
  %313 = vset.pattern.permute.xlu0 0
  %314 = vperm.xlu0 %313, %v88
  %v315 = vpop.permute.xlu0 %314
  %318 = vset.pattern.permute.xlu0 0
  %319 = vperm.xlu0 %318, %v89
  %v320 = vpop.permute.xlu0 %319
  %v322 = vmul.f32 %v315, %v310
  %v323 = vmul.f32 %v320, %v311
  %v324 = vsub.f32 1.0, %v88
  %v325 = vsub.f32 1.0, %v89
  %327 = vset.pattern.permute.xlu0 0
  %328 = vperm.xlu0 %327, %v324
  %v329 = vpop.permute.xlu0 %328
  %332 = vset.pattern.permute.xlu0 0
  %333 = vperm.xlu0 %332, %v325
  %v334 = vpop.permute.xlu0 %333
  %v336 = vmul.f32 %v329, %v98
  %v337 = vmul.f32 %v334, %v99
  %v338 = vadd.f32 %v322, %v336
  %v339 = vadd.f32 %v323, %v337
  %v340 = vmul.f32 %v315, %v306
  %v341 = vmul.f32 %v320, %v307
  %v342 = vmul.f32 %v329, %v100
  %v343 = vmul.f32 %v334, %v101
  %v344 = vadd.f32 %v340, %v342
  %v345 = vadd.f32 %v341, %v343
  %346 = vst [vmem:[#allocation2] sm:$0xff] %v338
  %347 = vst [vmem:[#allocation2 + $0x8] sm:$0xf] %v339
  %348 = vst [vmem:[#allocation3] sm:$0xff] %v344
  %349 = vst [vmem:[#allocation3 + $0x8] sm:$0xf] %v345
  %vm350 = vcmp.gt.s32.totalorder %v82, 1
  %vm351 = vcmp.gt.s32.totalorder %v83, 1
  %v352 = vsel %vm350, 1, 0
  %v353 = vsel %vm351, 1, 0
  %v354 = vcvt.s32.f32 %v352
  %v355 = vcvt.s32.f32 %v353
  %s356 = scalar_lea.vmem %s0, 64
  %v357 = vld [vmem:[%s356] sm:$0xff]
  %v358 = vld [vmem:[%s356 + $0x8] sm:$0xff]
  %v359 = vld [vmem:[%s356 + $0x10] sm:$0xff]
  %v360 = vld [vmem:[%s356 + $0x18] sm:$0xff]
  %v361 = vld [vmem:[%s356 + $0x20] sm:$0xf]
  %v362 = vld [vmem:[%s356 + $0x28] sm:$0xf]
  %v363 = vld [vmem:[%s356 + $0x30] sm:$0xf]
  %v364 = vld [vmem:[%s356 + $0x38] sm:$0xf]
  %v365 = vld [vmem:[#allocation2] sm:$0xff]
  %v366 = vld [vmem:[#allocation2 + $0x8] sm:$0xf]
  %v367 = vld [vmem:[#allocation3] sm:$0xff]
  %v368 = vld [vmem:[#allocation3 + $0x8] sm:$0xf]
  %369 = vmatprep.subr.mxu0 %v19
  %370 = vmatpush1.msra.mxu0 %v18
  %371 = vmatprep.subr.mxu0 %v23
  %372 = vmatpush1.msra.mxu0 %v22
  %373 = vmatprep.subr.mxu0 %v27
  %374 = vmatpush1.msra.mxu0 %v26
  %375 = vmatprep.subr.mxu0 %v31
  %376 = vmatpush1.msra.mxu0 %v30
  %377 = vmatprep.subr.mxu0 %v35
  %378 = vmatpush1.msra.mxu0 %v34
  %379 = vmatprep.subr.mxu0 %v39
  %380 = vmatpush1.msra.mxu0 %v38
  %381 = vmatprep.subr.mxu0 %v43
  %382 = vmatpush1.msra.mxu0 %v42
  %383 = vmatprep.subr.mxu0 %v47
  %384 = vmatpush1.msra.mxu0 %v46
  %385 = vmatprep.subr.mxu0 %v51
  %386 = vmatpush1.msra.mxu0 %v50
  %387 = vmatprep.subr.mxu0 %v55
  %388 = vmatpush1.msra.mxu0 %v54
  %389 = vmatprep.subr.mxu0 %v59
  %390 = vmatpush1.msra.mxu0 %v58
  %391 = vmatprep.subr.mxu0 %v63
  %392 = vmatpush1.msra.mxu0 %v62
  %393 = vmatprep.subr.mxu0 %v67
  %394 = vmatpush1.msra.mxu0 %v66
  %395 = vmatprep.subr.mxu0 %v71
  %396 = vmatpush1.msra.mxu0 %v70
  %397 = vmatprep.subr.mxu0 %v75
  %398 = vmatpush1.msra.mxu0 %v74
  %399 = vmatprep.subr.mxu0 %v79
  %400 = vmatpush1.msra.mxu0 %v78
  %401 = vmatprep.subr.mxu0 0.0
  %402 = vmatpush1.msra.mxu0 0.0
  %403 = vmatprep.subr.mxu0 0.0
  %404 = vmatpush1.msra.mxu0 0.0
  %405 = vmatprep.subr.mxu0 0.0
  %406 = vmatpush1.msra.mxu0 0.0
  %407 = vmatprep.subr.mxu0 0.0
  %408 = vmatpush1.msra.mxu0 0.0
  %409 = vmatprep.subr.mxu0 0.0
  %410 = vmatpush1.msra.mxu0 0.0
  %411 = vmatprep.subr.mxu0 0.0
  %412 = vmatpush1.msra.mxu0 0.0
  %413 = vmatprep.subr.mxu0 0.0
  %414 = vmatpush1.msra.mxu0 0.0
  %415 = vmatprep.subr.mxu0 0.0
  %416 = vmatpush1.msra.mxu0 0.0
  %417 = vmatprep.subr.mxu0 0.0
  %418 = vmatpush1.msra.mxu0 0.0
  %419 = vmatprep.subr.mxu0 0.0
  %420 = vmatpush1.msra.mxu0 0.0
  %421 = vmatprep.subr.mxu0 0.0
  %422 = vmatpush1.msra.mxu0 0.0
  %423 = vmatprep.subr.mxu0 0.0
  %424 = vmatpush1.msra.mxu0 0.0
  %425 = vmatprep.subr.mxu0 0.0
  %426 = vmatpush1.msra.mxu0 0.0
  %427 = vmatprep.subr.mxu0 0.0
  %428 = vmatpush1.msra.mxu0 0.0
  %429 = vmatprep.subr.mxu0 0.0
  %430 = vmatpush1.msra.mxu0 0.0
  %431 = vmatprep.subr.mxu0 0.0
  %432 = vmatpush1.msra.mxu0 0.0
  %433 = vmatprep.mubr.f32.mxu0 0.0
  %434 = vmatmul.mubr.f32.gmra.mrb[0].mxu0 %v365
  %v435 = vpop.f32.mrb[0].mxu0
  %v436 = vadd.f32 0.0, %v435
  %v437 = vpop.f32.mrb[0].mxu0
  %v438 = vadd.f32 0.0, %v437
  %439 = vmatprep.mubr.f32.mxu0 0.0
  %440 = vmatmul.mubr.f32.gmra.mrb[0].mxu0 %v366
  %v441 = vpop.f32.mrb[0].mxu0
  %v442 = vadd.f32 0.0, %v441
  %v443 = vpop.f32.mrb[0].mxu0
  %v444 = vadd.f32 0.0, %v443
  %445 = vdwg.mxu0
  %446 = vmatprep.subr.mxu0 %v21
  %447 = vmatpush1.msra.mxu0 %v20
  %448 = vmatprep.subr.mxu0 %v25
  %449 = vmatpush1.msra.mxu0 %v24
  %450 = vmatprep.subr.mxu0 %v29
  %451 = vmatpush1.msra.mxu0 %v28
  %452 = vmatprep.subr.mxu0 %v33
  %453 = vmatpush1.msra.mxu0 %v32
  %454 = vmatprep.subr.mxu0 %v37
  %455 = vmatpush1.msra.mxu0 %v36
  %456 = vmatprep.subr.mxu0 %v41
  %457 = vmatpush1.msra.mxu0 %v40
  %458 = vmatprep.subr.mxu0 %v45
  %459 = vmatpush1.msra.mxu0 %v44
  %460 = vmatprep.subr.mxu0 %v49
  %461 = vmatpush1.msra.mxu0 %v48
  %462 = vmatprep.subr.mxu0 %v53
  %463 = vmatpush1.msra.mxu0 %v52
  %464 = vmatprep.subr.mxu0 %v57
  %465 = vmatpush1.msra.mxu0 %v56
  %466 = vmatprep.subr.mxu0 %v61
  %467 = vmatpush1.msra.mxu0 %v60
  %468 = vmatprep.subr.mxu0 %v65
  %469 = vmatpush1.msra.mxu0 %v64
  %470 = vmatprep.subr.mxu0 %v69
  %471 = vmatpush1.msra.mxu0 %v68
  %472 = vmatprep.subr.mxu0 %v73
  %473 = vmatpush1.msra.mxu0 %v72
  %474 = vmatprep.subr.mxu0 %v77
  %475 = vmatpush1.msra.mxu0 %v76
  %476 = vmatprep.subr.mxu0 %v81
  %477 = vmatpush1.msra.mxu0 %v80
  %478 = vmatprep.subr.mxu0 0.0
  %479 = vmatpush1.msra.mxu0 0.0
  %480 = vmatprep.subr.mxu0 0.0
  %481 = vmatpush1.msra.mxu0 0.0
  %482 = vmatprep.subr.mxu0 0.0
  %483 = vmatpush1.msra.mxu0 0.0
  %484 = vmatprep.subr.mxu0 0.0
  %485 = vmatpush1.msra.mxu0 0.0
  %486 = vmatprep.subr.mxu0 0.0
  %487 = vmatpush1.msra.mxu0 0.0
  %488 = vmatprep.subr.mxu0 0.0
  %489 = vmatpush1.msra.mxu0 0.0
  %490 = vmatprep.subr.mxu0 0.0
  %491 = vmatpush1.msra.mxu0 0.0
  %492 = vmatprep.subr.mxu0 0.0
  %493 = vmatpush1.msra.mxu0 0.0
  %494 = vmatprep.subr.mxu0 0.0
  %495 = vmatpush1.msra.mxu0 0.0
  %496 = vmatprep.subr.mxu0 0.0
  %497 = vmatpush1.msra.mxu0 0.0
  %498 = vmatprep.subr.mxu0 0.0
  %499 = vmatpush1.msra.mxu0 0.0
  %500 = vmatprep.subr.mxu0 0.0
  %501 = vmatpush1.msra.mxu0 0.0
  %502 = vmatprep.subr.mxu0 0.0
  %503 = vmatpush1.msra.mxu0 0.0
  %504 = vmatprep.subr.mxu0 0.0
  %505 = vmatpush1.msra.mxu0 0.0
  %506 = vmatprep.subr.mxu0 0.0
  %507 = vmatpush1.msra.mxu0 0.0
  %508 = vmatprep.subr.mxu0 0.0
  %509 = vmatpush1.msra.mxu0 0.0
  %510 = vmatprep.mubr.f32.mxu0 0.0
  %511 = vmatmul.mubr.f32.gmra.mrb[0].mxu0 %v365
  %v512 = vpop.f32.mrb[0].mxu0
  %v513 = vadd.f32 0.0, %v512
  %v514 = vpop.f32.mrb[0].mxu0
  %v515 = vadd.f32 0.0, %v514
  %516 = vmatprep.mubr.f32.mxu0 0.0
  %517 = vmatmul.mubr.f32.gmra.mrb[0].mxu0 %v366
  %v518 = vpop.f32.mrb[0].mxu0
  %v519 = vadd.f32 0.0, %v518
  %v520 = vpop.f32.mrb[0].mxu0
  %v521 = vadd.f32 0.0, %v520
  %522 = vdwg.mxu0
  %v523 = vadd.f32 %v357, %v436
  %v524 = vadd.f32 %v358, %v438
  %v525 = vadd.f32 %v359, %v513
  %v526 = vadd.f32 %v360, %v515
  %v527 = vadd.f32 %v361, %v442
  %v528 = vadd.f32 %v362, %v444
  %v529 = vadd.f32 %v363, %v519
  %v530 = vadd.f32 %v364, %v521
  %v531 = vxor.u32 %v523, 2147483648
  %v532 = vxor.u32 %v527, 2147483648
  %v533 = vmul.f32 %v531, 1.442695
  %v534 = vpow.pop %v533
  %v535 = vmul.f32 %v532, 1.442695
  %v536 = vpow.pop %v535
  %v537 = vadd.f32 %v534, 1.0
  %v538 = vadd.f32 %v536, 1.0
  %v539 = vrcp.pop %v537
  %v540 = vmul.f32 1.0, %v539
  %v541 = vrcp.pop %v538
  %v542 = vmul.f32 1.0, %v541
  %v543 = vxor.u32 %v524, 2147483648
  %v544 = vxor.u32 %v528, 2147483648
  %v545 = vmul.f32 %v543, 1.442695
  %v546 = vpow.pop %v545
  %v547 = vmul.f32 %v544, 1.442695
  %v548 = vpow.pop %v547
  %v549 = vadd.f32 %v546, 1.0
  %v550 = vadd.f32 %v548, 1.0
  %v551 = vrcp.pop %v549
  %v552 = vmul.f32 1.0, %v551
  %v553 = vrcp.pop %v550
  %v554 = vmul.f32 1.0, %v553
  %v555 = vtanh.pop %v525
  %v556 = vtanh.pop %v529
  %v557 = vxor.u32 %v526, 2147483648
  %v558 = vxor.u32 %v530, 2147483648
  %v559 = vmul.f32 %v557, 1.442695
  %v560 = vpow.pop %v559
  %v561 = vmul.f32 %v558, 1.442695
  %v562 = vpow.pop %v561
  %v563 = vadd.f32 %v560, 1.0
  %v564 = vadd.f32 %v562, 1.0
  %v565 = vrcp.pop %v563
  %v566 = vmul.f32 1.0, %v565
  %v567 = vrcp.pop %v564
  %v568 = vmul.f32 1.0, %v567
  %v569 = vmul.f32 %v552, %v367
  %v570 = vmul.f32 %v554, %v368
  %v571 = vmul.f32 %v540, %v555
  %v572 = vmul.f32 %v542, %v556
  %v573 = vadd.f32 %v569, %v571
  %v574 = vadd.f32 %v570, %v572
  %v575 = vtanh.pop %v573
  %v576 = vtanh.pop %v574
  %v577 = vmul.f32 %v566, %v575
  %v578 = vmul.f32 %v568, %v576
  %580 = vset.pattern.permute.xlu0 0
  %581 = vperm.xlu0 %580, %v354
  %v582 = vpop.permute.xlu0 %581
  %585 = vset.pattern.permute.xlu0 0
  %586 = vperm.xlu0 %585, %v355
  %v587 = vpop.permute.xlu0 %586
  %v589 = vmul.f32 %v582, %v577
  %v590 = vmul.f32 %v587, %v578
  %v591 = vsub.f32 1.0, %v354
  %v592 = vsub.f32 1.0, %v355
  %594 = vset.pattern.permute.xlu0 0
  %595 = vperm.xlu0 %594, %v591
  %v596 = vpop.permute.xlu0 %595
  %599 = vset.pattern.permute.xlu0 0
  %600 = vperm.xlu0 %599, %v592
  %v601 = vpop.permute.xlu0 %600
  %v603 = vmul.f32 %v596, %v365
  %v604 = vmul.f32 %v601, %v366
  %v605 = vadd.f32 %v589, %v603
  %v606 = vadd.f32 %v590, %v604
  %v607 = vmul.f32 %v582, %v573
  %v608 = vmul.f32 %v587, %v574
  %v609 = vmul.f32 %v596, %v367
  %v610 = vmul.f32 %v601, %v368
  %v611 = vadd.f32 %v607, %v609
  %v612 = vadd.f32 %v608, %v610
  %613 = vst [vmem:[#allocation2] sm:$0xff] %v605
  %614 = vst [vmem:[#allocation2 + $0x8] sm:$0xf] %v606
  %615 = vst [vmem:[#allocation3] sm:$0xff] %v611
  %616 = vst [vmem:[#allocation3 + $0x8] sm:$0xf] %v612
  %vm617 = vcmp.gt.s32.totalorder %v82, 2
  %vm618 = vcmp.gt.s32.totalorder %v83, 2
  %v619 = vsel %vm617, 1, 0
  %v620 = vsel %vm618, 1, 0
  %v621 = vcvt.s32.f32 %v619
  %v622 = vcvt.s32.f32 %v620
  %s623 = scalar_lea.vmem %s0, 128
  %v624 = vld [vmem:[%s623] sm:$0xff]
  %v625 = vld [vmem:[%s623 + $0x8] sm:$0xff]
  %v626 = vld [vmem:[%s623 + $0x10] sm:$0xff]
  %v627 = vld [vmem:[%s623 + $0x18] sm:$0xff]
  %v628 = vld [vmem:[%s623 + $0x20] sm:$0xf]
  %v629 = vld [vmem:[%s623 + $0x28] sm:$0xf]
  %v630 = vld [vmem:[%s623 + $0x30] sm:$0xf]
  %v631 = vld [vmem:[%s623 + $0x38] sm:$0xf]
  %v632 = vld [vmem:[#allocation2] sm:$0xff]
  %v633 = vld [vmem:[#allocation2 + $0x8] sm:$0xf]
  %v634 = vld [vmem:[#allocation3] sm:$0xff]
  %v635 = vld [vmem:[#allocation3 + $0x8] sm:$0xf]
  %636 = vmatprep.subr.mxu0 %v19
  %637 = vmatpush1.msra.mxu0 %v18
  %638 = vmatprep.subr.mxu0 %v23
  %639 = vmatpush1.msra.mxu0 %v22
  %640 = vmatprep.subr.mxu0 %v27
  %641 = vmatpush1.msra.mxu0 %v26
  %642 = vmatprep.subr.mxu0 %v31
  %643 = vmatpush1.msra.mxu0 %v30
  %644 = vmatprep.subr.mxu0 %v35
  %645 = vmatpush1.msra.mxu0 %v34
  %646 = vmatprep.subr.mxu0 %v39
  %647 = vmatpush1.msra.mxu0 %v38
  %648 = vmatprep.subr.mxu0 %v43
  %649 = vmatpush1.msra.mxu0 %v42
  %650 = vmatprep.subr.mxu0 %v47
  %651 = vmatpush1.msra.mxu0 %v46
  %652 = vmatprep.subr.mxu0 %v51
  %653 = vmatpush1.msra.mxu0 %v50
  %654 = vmatprep.subr.mxu0 %v55
  %655 = vmatpush1.msra.mxu0 %v54
  %656 = vmatprep.subr.mxu0 %v59
  %657 = vmatpush1.msra.mxu0 %v58
  %658 = vmatprep.subr.mxu0 %v63
  %659 = vmatpush1.msra.mxu0 %v62
  %660 = vmatprep.subr.mxu0 %v67
  %661 = vmatpush1.msra.mxu0 %v66
  %662 = vmatprep.subr.mxu0 %v71
  %663 = vmatpush1.msra.mxu0 %v70
  %664 = vmatprep.subr.mxu0 %v75
  %665 = vmatpush1.msra.mxu0 %v74
  %666 = vmatprep.subr.mxu0 %v79
  %667 = vmatpush1.msra.mxu0 %v78
  %668 = vmatprep.subr.mxu0 0.0
  %669 = vmatpush1.msra.mxu0 0.0
  %670 = vmatprep.subr.mxu0 0.0
  %671 = vmatpush1.msra.mxu0 0.0
  %672 = vmatprep.subr.mxu0 0.0
  %673 = vmatpush1.msra.mxu0 0.0
  %674 = vmatprep.subr.mxu0 0.0
  %675 = vmatpush1.msra.mxu0 0.0
  %676 = vmatprep.subr.mxu0 0.0
  %677 = vmatpush1.msra.mxu0 0.0
  %678 = vmatprep.subr.mxu0 0.0
  %679 = vmatpush1.msra.mxu0 0.0
  %680 = vmatprep.subr.mxu0 0.0
  %681 = vmatpush1.msra.mxu0 0.0
  %682 = vmatprep.subr.mxu0 0.0
  %683 = vmatpush1.msra.mxu0 0.0
  %684 = vmatprep.subr.mxu0 0.0
  %685 = vmatpush1.msra.mxu0 0.0
  %686 = vmatprep.subr.mxu0 0.0
  %687 = vmatpush1.msra.mxu0 0.0
  %688 = vmatprep.subr.mxu0 0.0
  %689 = vmatpush1.msra.mxu0 0.0
  %690 = vmatprep.subr.mxu0 0.0
  %691 = vmatpush1.msra.mxu0 0.0
  %692 = vmatprep.subr.mxu0 0.0
  %693 = vmatpush1.msra.mxu0 0.0
  %694 = vmatprep.subr.mxu0 0.0
  %695 = vmatpush1.msra.mxu0 0.0
  %696 = vmatprep.subr.mxu0 0.0
  %697 = vmatpush1.msra.mxu0 0.0
  %698 = vmatprep.subr.mxu0 0.0
  %699 = vmatpush1.msra.mxu0 0.0
  %700 = vmatprep.mubr.f32.mxu0 0.0
  %701 = vmatmul.mubr.f32.gmra.mrb[0].mxu0 %v632
  %v702 = vpop.f32.mrb[0].mxu0
  %v703 = vadd.f32 0.0, %v702
  %v704 = vpop.f32.mrb[0].mxu0
  %v705 = vadd.f32 0.0, %v704
  %706 = vmatprep.mubr.f32.mxu0 0.0
  %707 = vmatmul.mubr.f32.gmra.mrb[0].mxu0 %v633
  %v708 = vpop.f32.mrb[0].mxu0
  %v709 = vadd.f32 0.0, %v708
  %v710 = vpop.f32.mrb[0].mxu0
  %v711 = vadd.f32 0.0, %v710
  %712 = vdwg.mxu0
  %713 = vmatprep.subr.mxu0 %v21
  %714 = vmatpush1.msra.mxu0 %v20
  %715 = vmatprep.subr.mxu0 %v25
  %716 = vmatpush1.msra.mxu0 %v24
  %717 = vmatprep.subr.mxu0 %v29
  %718 = vmatpush1.msra.mxu0 %v28
  %719 = vmatprep.subr.mxu0 %v33
  %720 = vmatpush1.msra.mxu0 %v32
  %721 = vmatprep.subr.mxu0 %v37
  %722 = vmatpush1.msra.mxu0 %v36
  %723 = vmatprep.subr.mxu0 %v41
  %724 = vmatpush1.msra.mxu0 %v40
  %725 = vmatprep.subr.mxu0 %v45
  %726 = vmatpush1.msra.mxu0 %v44
  %727 = vmatprep.subr.mxu0 %v49
  %728 = vmatpush1.msra.mxu0 %v48
  %729 = vmatprep.subr.mxu0 %v53
  %730 = vmatpush1.msra.mxu0 %v52
  %731 = vmatprep.subr.mxu0 %v57
  %732 = vmatpush1.msra.mxu0 %v56
  %733 = vmatprep.subr.mxu0 %v61
  %734 = vmatpush1.msra.mxu0 %v60
  %735 = vmatprep.subr.mxu0 %v65
  %736 = vmatpush1.msra.mxu0 %v64
  %737 = vmatprep.subr.mxu0 %v69
  %738 = vmatpush1.msra.mxu0 %v68
  %739 = vmatprep.subr.mxu0 %v73
  %740 = vmatpush1.msra.mxu0 %v72
  %741 = vmatprep.subr.mxu0 %v77
  %742 = vmatpush1.msra.mxu0 %v76
  %743 = vmatprep.subr.mxu0 %v81
  %744 = vmatpush1.msra.mxu0 %v80
  %745 = vmatprep.subr.mxu0 0.0
  %746 = vmatpush1.msra.mxu0 0.0
  %747 = vmatprep.subr.mxu0 0.0
  %748 = vmatpush1.msra.mxu0 0.0
  %749 = vmatprep.subr.mxu0 0.0
  %750 = vmatpush1.msra.mxu0 0.0
  %751 = vmatprep.subr.mxu0 0.0
  %752 = vmatpush1.msra.mxu0 0.0
  %753 = vmatprep.subr.mxu0 0.0
  %754 = vmatpush1.msra.mxu0 0.0
  %755 = vmatprep.subr.mxu0 0.0
  %756 = vmatpush1.msra.mxu0 0.0
  %757 = vmatprep.subr.mxu0 0.0
  %758 = vmatpush1.msra.mxu0 0.0
  %759 = vmatprep.subr.mxu0 0.0
  %760 = vmatpush1.msra.mxu0 0.0
  %761 = vmatprep.subr.mxu0 0.0
  %762 = vmatpush1.msra.mxu0 0.0
  %763 = vmatprep.subr.mxu0 0.0
  %764 = vmatpush1.msra.mxu0 0.0
  %765 = vmatprep.subr.mxu0 0.0
  %766 = vmatpush1.msra.mxu0 0.0
  %767 = vmatprep.subr.mxu0 0.0
  %768 = vmatpush1.msra.mxu0 0.0
  %769 = vmatprep.subr.mxu0 0.0
  %770 = vmatpush1.msra.mxu0 0.0
  %771 = vmatprep.subr.mxu0 0.0
  %772 = vmatpush1.msra.mxu0 0.0
  %773 = vmatprep.subr.mxu0 0.0
  %774 = vmatpush1.msra.mxu0 0.0
  %775 = vmatprep.subr.mxu0 0.0
  %776 = vmatpush1.msra.mxu0 0.0
  %777 = vmatprep.mubr.f32.mxu0 0.0
  %778 = vmatmul.mubr.f32.gmra.mrb[0].mxu0 %v632
  %v779 = vpop.f32.mrb[0].mxu0
  %v780 = vadd.f32 0.0, %v779
  %v781 = vpop.f32.mrb[0].mxu0
  %v782 = vadd.f32 0.0, %v781
  %783 = vmatprep.mubr.f32.mxu0 0.0
  %784 = vmatmul.mubr.f32.gmra.mrb[0].mxu0 %v633
  %v785 = vpop.f32.mrb[0].mxu0
  %v786 = vadd.f32 0.0, %v785
  %v787 = vpop.f32.mrb[0].mxu0
  %v788 = vadd.f32 0.0, %v787
  %789 = vdwg.mxu0
  %v790 = vadd.f32 %v624, %v703
  %v791 = vadd.f32 %v625, %v705
  %v792 = vadd.f32 %v626, %v780
  %v793 = vadd.f32 %v627, %v782
  %v794 = vadd.f32 %v628, %v709
  %v795 = vadd.f32 %v629, %v711
  %v796 = vadd.f32 %v630, %v786
  %v797 = vadd.f32 %v631, %v788
  %v798 = vxor.u32 %v790, 2147483648
  %v799 = vxor.u32 %v794, 2147483648
  %v800 = vmul.f32 %v798, 1.442695
  %v801 = vpow.pop %v800
  %v802 = vmul.f32 %v799, 1.442695
  %v803 = vpow.pop %v802
  %v804 = vadd.f32 %v801, 1.0
  %v805 = vadd.f32 %v803, 1.0
  %v806 = vrcp.pop %v804
  %v807 = vmul.f32 1.0, %v806
  %v808 = vrcp.pop %v805
  %v809 = vmul.f32 1.0, %v808
  %v810 = vxor.u32 %v791, 2147483648
  %v811 = vxor.u32 %v795, 2147483648
  %v812 = vmul.f32 %v810, 1.442695
  %v813 = vpow.pop %v812
  %v814 = vmul.f32 %v811, 1.442695
  %v815 = vpow.pop %v814
  %v816 = vadd.f32 %v813, 1.0
  %v817 = vadd.f32 %v815, 1.0
  %v818 = vrcp.pop %v816
  %v819 = vmul.f32 1.0, %v818
  %v820 = vrcp.pop %v817
  %v821 = vmul.f32 1.0, %v820
  %v822 = vtanh.pop %v792
  %v823 = vtanh.pop %v796
  %v824 = vxor.u32 %v793, 2147483648
  %v825 = vxor.u32 %v797, 2147483648
  %v826 = vmul.f32 %v824, 1.442695
  %v827 = vpow.pop %v826
  %v828 = vmul.f32 %v825, 1.442695
  %v829 = vpow.pop %v828
  %v830 = vadd.f32 %v827, 1.0
  %v831 = vadd.f32 %v829, 1.0
  %v832 = vrcp.pop %v830
  %v833 = vmul.f32 1.0, %v832
  %v834 = vrcp.pop %v831
  %v835 = vmul.f32 1.0, %v834
  %v836 = vmul.f32 %v819, %v634
  %v837 = vmul.f32 %v821, %v635
  %v838 = vmul.f32 %v807, %v822
  %v839 = vmul.f32 %v809, %v823
  %v840 = vadd.f32 %v836, %v838
  %v841 = vadd.f32 %v837, %v839
  %v842 = vtanh.pop %v840
  %v843 = vtanh.pop %v841
  %v844 = vmul.f32 %v833, %v842
  %v845 = vmul.f32 %v835, %v843
  %847 = vset.pattern.permute.xlu0 0
  %848 = vperm.xlu0 %847, %v621
  %v849 = vpop.permute.xlu0 %848
  %852 = vset.pattern.permute.xlu0 0
  %853 = vperm.xlu0 %852, %v622
  %v854 = vpop.permute.xlu0 %853
  %v856 = vmul.f32 %v849, %v844
  %v857 = vmul.f32 %v854, %v845
  %v858 = vsub.f32 1.0, %v621
  %v859 = vsub.f32 1.0, %v622
  %861 = vset.pattern.permute.xlu0 0
  %862 = vperm.xlu0 %861, %v858
  %v863 = vpop.permute.xlu0 %862
  %866 = vset.pattern.permute.xlu0 0
  %867 = vperm.xlu0 %866, %v859
  %v868 = vpop.permute.xlu0 %867
  %v870 = vmul.f32 %v863, %v632
  %v871 = vmul.f32 %v868, %v633
  %v872 = vadd.f32 %v856, %v870
  %v873 = vadd.f32 %v857, %v871
  %v874 = vmul.f32 %v849, %v840
  %v875 = vmul.f32 %v854, %v841
  %v876 = vmul.f32 %v863, %v634
  %v877 = vmul.f32 %v868, %v635
  %v878 = vadd.f32 %v874, %v876
  %v879 = vadd.f32 %v875, %v877
  %880 = vst [vmem:[#allocation2] sm:$0xff] %v872
  %881 = vst [vmem:[#allocation2 + $0x8] sm:$0xf] %v873
  %882 = vst [vmem:[#allocation3] sm:$0xff] %v878
  %883 = vst [vmem:[#allocation3 + $0x8] sm:$0xf] %v879
  %vm884 = vcmp.gt.s32.totalorder %v82, 3
  %vm885 = vcmp.gt.s32.totalorder %v83, 3
  %v886 = vsel %vm884, 1, 0
  %v887 = vsel %vm885, 1, 0
  %v888 = vcvt.s32.f32 %v886
  %v889 = vcvt.s32.f32 %v887
  %s890 = scalar_lea.vmem %s0, 192
  %v891 = vld [vmem:[%s890] sm:$0xff]
  %v892 = vld [vmem:[%s890 + $0x8] sm:$0xff]
  %v893 = vld [vmem:[%s890 + $0x10] sm:$0xff]
  %v894 = vld [vmem:[%s890 + $0x18] sm:$0xff]
  %v895 = vld [vmem:[%s890 + $0x20] sm:$0xf]
  %v896 = vld [vmem:[%s890 + $0x28] sm:$0xf]
  %v897 = vld [vmem:[%s890 + $0x30] sm:$0xf]
  %v898 = vld [vmem:[%s890 + $0x38] sm:$0xf]
  %v899 = vld [vmem:[#allocation2] sm:$0xff]
  %v900 = vld [vmem:[#allocation2 + $0x8] sm:$0xf]
  %v901 = vld [vmem:[#allocation3] sm:$0xff]
  %v902 = vld [vmem:[#allocation3 + $0x8] sm:$0xf]
  %903 = vmatprep.subr.mxu0 %v19
  %904 = vmatpush1.msra.mxu0 %v18
  %905 = vmatprep.subr.mxu0 %v23
  %906 = vmatpush1.msra.mxu0 %v22
  %907 = vmatprep.subr.mxu0 %v27
  %908 = vmatpush1.msra.mxu0 %v26
  %909 = vmatprep.subr.mxu0 %v31
  %910 = vmatpush1.msra.mxu0 %v30
  %911 = vmatprep.subr.mxu0 %v35
  %912 = vmatpush1.msra.mxu0 %v34
  %913 = vmatprep.subr.mxu0 %v39
  %914 = vmatpush1.msra.mxu0 %v38
  %915 = vmatprep.subr.mxu0 %v43
  %916 = vmatpush1.msra.mxu0 %v42
  %917 = vmatprep.subr.mxu0 %v47
  %918 = vmatpush1.msra.mxu0 %v46
  %919 = vmatprep.subr.mxu0 %v51
  %920 = vmatpush1.msra.mxu0 %v50
  %921 = vmatprep.subr.mxu0 %v55
  %922 = vmatpush1.msra.mxu0 %v54
  %923 = vmatprep.subr.mxu0 %v59
  %924 = vmatpush1.msra.mxu0 %v58
  %925 = vmatprep.subr.mxu0 %v63
  %926 = vmatpush1.msra.mxu0 %v62
  %927 = vmatprep.subr.mxu0 %v67
  %928 = vmatpush1.msra.mxu0 %v66
  %929 = vmatprep.subr.mxu0 %v71
  %930 = vmatpush1.msra.mxu0 %v70
  %931 = vmatprep.subr.mxu0 %v75
  %932 = vmatpush1.msra.mxu0 %v74
  %933 = vmatprep.subr.mxu0 %v79
  %934 = vmatpush1.msra.mxu0 %v78
  %935 = vmatprep.subr.mxu0 0.0
  %936 = vmatpush1.msra.mxu0 0.0
  %937 = vmatprep.subr.mxu0 0.0
  %938 = vmatpush1.msra.mxu0 0.0
  %939 = vmatprep.subr.mxu0 0.0
  %940 = vmatpush1.msra.mxu0 0.0
  %941 = vmatprep.subr.mxu0 0.0
  %942 = vmatpush1.msra.mxu0 0.0
  %943 = vmatprep.subr.mxu0 0.0
  %944 = vmatpush1.msra.mxu0 0.0
  %945 = vmatprep.subr.mxu0 0.0
  %946 = vmatpush1.msra.mxu0 0.0
  %947 = vmatprep.subr.mxu0 0.0
  %948 = vmatpush1.msra.mxu0 0.0
  %949 = vmatprep.subr.mxu0 0.0
  %950 = vmatpush1.msra.mxu0 0.0
  %951 = vmatprep.subr.mxu0 0.0
  %952 = vmatpush1.msra.mxu0 0.0
  %953 = vmatprep.subr.mxu0 0.0
  %954 = vmatpush1.msra.mxu0 0.0
  %955 = vmatprep.subr.mxu0 0.0
  %956 = vmatpush1.msra.mxu0 0.0
  %957 = vmatprep.subr.mxu0 0.0
  %958 = vmatpush1.msra.mxu0 0.0
  %959 = vmatprep.subr.mxu0 0.0
  %960 = vmatpush1.msra.mxu0 0.0
  %961 = vmatprep.subr.mxu0 0.0
  %962 = vmatpush1.msra.mxu0 0.0
  %963 = vmatprep.subr.mxu0 0.0
  %964 = vmatpush1.msra.mxu0 0.0
  %965 = vmatprep.subr.mxu0 0.0
  %966 = vmatpush1.msra.mxu0 0.0
  %967 = vmatprep.mubr.f32.mxu0 0.0
  %968 = vmatmul.mubr.f32.gmra.mrb[0].mxu0 %v899
  %v969 = vpop.f32.mrb[0].mxu0
  %v970 = vadd.f32 0.0, %v969
  %v971 = vpop.f32.mrb[0].mxu0
  %v972 = vadd.f32 0.0, %v971
  %973 = vmatprep.mubr.f32.mxu0 0.0
  %974 = vmatmul.mubr.f32.gmra.mrb[0].mxu0 %v900
  %v975 = vpop.f32.mrb[0].mxu0
  %v976 = vadd.f32 0.0, %v975
  %v977 = vpop.f32.mrb[0].mxu0
  %v978 = vadd.f32 0.0, %v977
  %979 = vdwg.mxu0
  %980 = vmatprep.subr.mxu0 %v21
  %981 = vmatpush1.msra.mxu0 %v20
  %982 = vmatprep.subr.mxu0 %v25
  %983 = vmatpush1.msra.mxu0 %v24
  %984 = vmatprep.subr.mxu0 %v29
  %985 = vmatpush1.msra.mxu0 %v28
  %986 = vmatprep.subr.mxu0 %v33
  %987 = vmatpush1.msra.mxu0 %v32
  %988 = vmatprep.subr.mxu0 %v37
  %989 = vmatpush1.msra.mxu0 %v36
  %990 = vmatprep.subr.mxu0 %v41
  %991 = vmatpush1.msra.mxu0 %v40
  %992 = vmatprep.subr.mxu0 %v45
  %993 = vmatpush1.msra.mxu0 %v44
  %994 = vmatprep.subr.mxu0 %v49
  %995 = vmatpush1.msra.mxu0 %v48
  %996 = vmatprep.subr.mxu0 %v53
  %997 = vmatpush1.msra.mxu0 %v52
  %998 = vmatprep.subr.mxu0 %v57
  %999 = vmatpush1.msra.mxu0 %v56
  %1000 = vmatprep.subr.mxu0 %v61
  %1001 = vmatpush1.msra.mxu0 %v60
  %1002 = vmatprep.subr.mxu0 %v65
  %1003 = vmatpush1.msra.mxu0 %v64
  %1004 = vmatprep.subr.mxu0 %v69
  %1005 = vmatpush1.msra.mxu0 %v68
  %1006 = vmatprep.subr.mxu0 %v73
  %1007 = vmatpush1.msra.mxu0 %v72
  %1008 = vmatprep.subr.mxu0 %v77
  %1009 = vmatpush1.msra.mxu0 %v76
  %1010 = vmatprep.subr.mxu0 %v81
  %1011 = vmatpush1.msra.mxu0 %v80
  %1012 = vmatprep.subr.mxu0 0.0
  %1013 = vmatpush1.msra.mxu0 0.0
  %1014 = vmatprep.subr.mxu0 0.0
  %1015 = vmatpush1.msra.mxu0 0.0
  %1016 = vmatprep.subr.mxu0 0.0
  %1017 = vmatpush1.msra.mxu0 0.0
  %1018 = vmatprep.subr.mxu0 0.0
  %1019 = vmatpush1.msra.mxu0 0.0
  %1020 = vmatprep.subr.mxu0 0.0
  %1021 = vmatpush1.msra.mxu0 0.0
  %1022 = vmatprep.subr.mxu0 0.0
  %1023 = vmatpush1.msra.mxu0 0.0
  %1024 = vmatprep.subr.mxu0 0.0
  %1025 = vmatpush1.msra.mxu0 0.0
  %1026 = vmatprep.subr.mxu0 0.0
  %1027 = vmatpush1.msra.mxu0 0.0
  %1028 = vmatprep.subr.mxu0 0.0
  %1029 = vmatpush1.msra.mxu0 0.0
  %1030 = vmatprep.subr.mxu0 0.0
  %1031 = vmatpush1.msra.mxu0 0.0
  %1032 = vmatprep.subr.mxu0 0.0
  %1033 = vmatpush1.msra.mxu0 0.0
  %1034 = vmatprep.subr.mxu0 0.0
  %1035 = vmatpush1.msra.mxu0 0.0
  %1036 = vmatprep.subr.mxu0 0.0
  %1037 = vmatpush1.msra.mxu0 0.0
  %1038 = vmatprep.subr.mxu0 0.0
  %1039 = vmatpush1.msra.mxu0 0.0
  %1040 = vmatprep.subr.mxu0 0.0
  %1041 = vmatpush1.msra.mxu0 0.0
  %1042 = vmatprep.subr.mxu0 0.0
  %1043 = vmatpush1.msra.mxu0 0.0
  %1044 = vmatprep.mubr.f32.mxu0 0.0
  %1045 = vmatmul.mubr.f32.gmra.mrb[0].mxu0 %v899
  %v1046 = vpop.f32.mrb[0].mxu0
  %v1047 = vadd.f32 0.0, %v1046
  %v1048 = vpop.f32.mrb[0].mxu0
  %v1049 = vadd.f32 0.0, %v1048
  %1050 = vmatprep.mubr.f32.mxu0 0.0
  %1051 = vmatmul.mubr.f32.gmra.mrb[0].mxu0 %v900
  %v1052 = vpop.f32.mrb[0].mxu0
  %v1053 = vadd.f32 0.0, %v1052
  %v1054 = vpop.f32.mrb[0].mxu0
  %v1055 = vadd.f32 0.0, %v1054
  %1056 = vdwg.mxu0
  %v1057 = vadd.f32 %v891, %v970
  %v1058 = vadd.f32 %v892, %v972
  %v1059 = vadd.f32 %v893, %v1047
  %v1060 = vadd.f32 %v894, %v1049
  %v1061 = vadd.f32 %v895, %v976
  %v1062 = vadd.f32 %v896, %v978
  %v1063 = vadd.f32 %v897, %v1053
  %v1064 = vadd.f32 %v898, %v1055
  %v1065 = vxor.u32 %v1057, 2147483648
  %v1066 = vxor.u32 %v1061, 2147483648
  %v1067 = vmul.f32 %v1065, 1.442695
  %v1068 = vpow.pop %v1067
  %v1069 = vmul.f32 %v1066, 1.442695
  %v1070 = vpow.pop %v1069
  %v1071 = vadd.f32 %v1068, 1.0
  %v1072 = vadd.f32 %v1070, 1.0
  %v1073 = vrcp.pop %v1071
  %v1074 = vmul.f32 1.0, %v1073
  %v1075 = vrcp.pop %v1072
  %v1076 = vmul.f32 1.0, %v1075
  %v1077 = vxor.u32 %v1058, 2147483648
  %v1078 = vxor.u32 %v1062, 2147483648
  %v1079 = vmul.f32 %v1077, 1.442695
  %v1080 = vpow.pop %v1079
  %v1081 = vmul.f32 %v1078, 1.442695
  %v1082 = vpow.pop %v1081
  %v1083 = vadd.f32 %v1080, 1.0
  %v1084 = vadd.f32 %v1082, 1.0
  %v1085 = vrcp.pop %v1083
  %v1086 = vmul.f32 1.0, %v1085
  %v1087 = vrcp.pop %v1084
  %v1088 = vmul.f32 1.0, %v1087
  %v1089 = vtanh.pop %v1059
  %v1090 = vtanh.pop %v1063
  %v1091 = vxor.u32 %v1060, 2147483648
  %v1092 = vxor.u32 %v1064, 2147483648
  %v1093 = vmul.f32 %v1091, 1.442695
  %v1094 = vpow.pop %v1093
  %v1095 = vmul.f32 %v1092, 1.442695
  %v1096 = vpow.pop %v1095
  %v1097 = vadd.f32 %v1094, 1.0
  %v1098 = vadd.f32 %v1096, 1.0
  %v1099 = vrcp.pop %v1097
  %v1100 = vmul.f32 1.0, %v1099
  %v1101 = vrcp.pop %v1098
  %v1102 = vmul.f32 1.0, %v1101
  %v1103 = vmul.f32 %v1086, %v901
  %v1104 = vmul.f32 %v1088, %v902
  %v1105 = vmul.f32 %v1074, %v1089
  %v1106 = vmul.f32 %v1076, %v1090
  %v1107 = vadd.f32 %v1103, %v1105
  %v1108 = vadd.f32 %v1104, %v1106
  %v1109 = vtanh.pop %v1107
  %v1110 = vtanh.pop %v1108
  %v1111 = vmul.f32 %v1100, %v1109
  %v1112 = vmul.f32 %v1102, %v1110
  %1114 = vset.pattern.permute.xlu0 0
  %1115 = vperm.xlu0 %1114, %v888
  %v1116 = vpop.permute.xlu0 %1115
  %1119 = vset.pattern.permute.xlu0 0
  %1120 = vperm.xlu0 %1119, %v889
  %v1121 = vpop.permute.xlu0 %1120
  %v1123 = vmul.f32 %v1116, %v1111
  %v1124 = vmul.f32 %v1121, %v1112
  %v1125 = vsub.f32 1.0, %v888
  %v1126 = vsub.f32 1.0, %v889
  %1128 = vset.pattern.permute.xlu0 0
  %1129 = vperm.xlu0 %1128, %v1125
  %v1130 = vpop.permute.xlu0 %1129
  %1133 = vset.pattern.permute.xlu0 0
  %1134 = vperm.xlu0 %1133, %v1126
  %v1135 = vpop.permute.xlu0 %1134
  %v1137 = vmul.f32 %v1130, %v899
  %v1138 = vmul.f32 %v1135, %v900
  %v1139 = vadd.f32 %v1123, %v1137
  %v1140 = vadd.f32 %v1124, %v1138
  %v1141 = vmul.f32 %v1116, %v1107
  %v1142 = vmul.f32 %v1121, %v1108
  %v1143 = vmul.f32 %v1130, %v901
  %v1144 = vmul.f32 %v1135, %v902
  %v1145 = vadd.f32 %v1141, %v1143
  %v1146 = vadd.f32 %v1142, %v1144
  %1147 = vst [vmem:[#allocation2] sm:$0xff] %v1139
  %1148 = vst [vmem:[#allocation2 + $0x8] sm:$0xf] %v1140
  %1149 = vst [vmem:[#allocation3] sm:$0xff] %v1145
  %1150 = vst [vmem:[#allocation3 + $0x8] sm:$0xf] %v1146
  %vm1151 = vcmp.gt.s32.totalorder %v82, 4
  %vm1152 = vcmp.gt.s32.totalorder %v83, 4
  %v1153 = vsel %vm1151, 1, 0
  %v1154 = vsel %vm1152, 1, 0
  %v1155 = vcvt.s32.f32 %v1153
  %v1156 = vcvt.s32.f32 %v1154
  %s1157 = scalar_lea.vmem %s0, 256
  %v1158 = vld [vmem:[%s1157] sm:$0xff]
  %v1159 = vld [vmem:[%s1157 + $0x8] sm:$0xff]
  %v1160 = vld [vmem:[%s1157 + $0x10] sm:$0xff]
  %v1161 = vld [vmem:[%s1157 + $0x18] sm:$0xff]
  %v1162 = vld [vmem:[%s1157 + $0x20] sm:$0xf]
  %v1163 = vld [vmem:[%s1157 + $0x28] sm:$0xf]
  %v1164 = vld [vmem:[%s1157 + $0x30] sm:$0xf]
  %v1165 = vld [vmem:[%s1157 + $0x38] sm:$0xf]
  %v1166 = vld [vmem:[#allocation2] sm:$0xff]
  %v1167 = vld [vmem:[#allocation2 + $0x8] sm:$0xf]
  %v1168 = vld [vmem:[#allocation3] sm:$0xff]
  %v1169 = vld [vmem:[#allocation3 + $0x8] sm:$0xf]
  %1170 = vmatprep.subr.mxu0 %v19
  %1171 = vmatpush1.msra.mxu0 %v18
  %1172 = vmatprep.subr.mxu0 %v23
  %1173 = vmatpush1.msra.mxu0 %v22
  %1174 = vmatprep.subr.mxu0 %v27
  %1175 = vmatpush1.msra.mxu0 %v26
  %1176 = vmatprep.subr.mxu0 %v31
  %1177 = vmatpush1.msra.mxu0 %v30
  %1178 = vmatprep.subr.mxu0 %v35
  %1179 = vmatpush1.msra.mxu0 %v34
  %1180 = vmatprep.subr.mxu0 %v39
  %1181 = vmatpush1.msra.mxu0 %v38
  %1182 = vmatprep.subr.mxu0 %v43
  %1183 = vmatpush1.msra.mxu0 %v42
  %1184 = vmatprep.subr.mxu0 %v47
  %1185 = vmatpush1.msra.mxu0 %v46
  %1186 = vmatprep.subr.mxu0 %v51
  %1187 = vmatpush1.msra.mxu0 %v50
  %1188 = vmatprep.subr.mxu0 %v55
  %1189 = vmatpush1.msra.mxu0 %v54
  %1190 = vmatprep.subr.mxu0 %v59
  %1191 = vmatpush1.msra.mxu0 %v58
  %1192 = vmatprep.subr.mxu0 %v63
  %1193 = vmatpush1.msra.mxu0 %v62
  %1194 = vmatprep.subr.mxu0 %v67
  %1195 = vmatpush1.msra.mxu0 %v66
  %1196 = vmatprep.subr.mxu0 %v71
  %1197 = vmatpush1.msra.mxu0 %v70
  %1198 = vmatprep.subr.mxu0 %v75
  %1199 = vmatpush1.msra.mxu0 %v74
  %1200 = vmatprep.subr.mxu0 %v79
  %1201 = vmatpush1.msra.mxu0 %v78
  %1202 = vmatprep.subr.mxu0 0.0
  %1203 = vmatpush1.msra.mxu0 0.0
  %1204 = vmatprep.subr.mxu0 0.0
  %1205 = vmatpush1.msra.mxu0 0.0
  %1206 = vmatprep.subr.mxu0 0.0
  %1207 = vmatpush1.msra.mxu0 0.0
  %1208 = vmatprep.subr.mxu0 0.0
  %1209 = vmatpush1.msra.mxu0 0.0
  %1210 = vmatprep.subr.mxu0 0.0
  %1211 = vmatpush1.msra.mxu0 0.0
  %1212 = vmatprep.subr.mxu0 0.0
  %1213 = vmatpush1.msra.mxu0 0.0
  %1214 = vmatprep.subr.mxu0 0.0
  %1215 = vmatpush1.msra.mxu0 0.0
  %1216 = vmatprep.subr.mxu0 0.0
  %1217 = vmatpush1.msra.mxu0 0.0
  %1218 = vmatprep.subr.mxu0 0.0
  %1219 = vmatpush1.msra.mxu0 0.0
  %1220 = vmatprep.subr.mxu0 0.0
  %1221 = vmatpush1.msra.mxu0 0.0
  %1222 = vmatprep.subr.mxu0 0.0
  %1223 = vmatpush1.msra.mxu0 0.0
  %1224 = vmatprep.subr.mxu0 0.0
  %1225 = vmatpush1.msra.mxu0 0.0
  %1226 = vmatprep.subr.mxu0 0.0
  %1227 = vmatpush1.msra.mxu0 0.0
  %1228 = vmatprep.subr.mxu0 0.0
  %1229 = vmatpush1.msra.mxu0 0.0
  %1230 = vmatprep.subr.mxu0 0.0
  %1231 = vmatpush1.msra.mxu0 0.0
  %1232 = vmatprep.subr.mxu0 0.0
  %1233 = vmatpush1.msra.mxu0 0.0
  %1234 = vmatprep.mubr.f32.mxu0 0.0
  %1235 = vmatmul.mubr.f32.gmra.mrb[0].mxu0 %v1166
  %v1236 = vpop.f32.mrb[0].mxu0
  %v1237 = vadd.f32 0.0, %v1236
  %v1238 = vpop.f32.mrb[0].mxu0
  %v1239 = vadd.f32 0.0, %v1238
  %1240 = vmatprep.mubr.f32.mxu0 0.0
  %1241 = vmatmul.mubr.f32.gmra.mrb[0].mxu0 %v1167
  %v1242 = vpop.f32.mrb[0].mxu0
  %v1243 = vadd.f32 0.0, %v1242
  %v1244 = vpop.f32.mrb[0].mxu0
  %v1245 = vadd.f32 0.0, %v1244
  %1246 = vdwg.mxu0
  %1247 = vmatprep.subr.mxu0 %v21
  %1248 = vmatpush1.msra.mxu0 %v20
  %1249 = vmatprep.subr.mxu0 %v25
  %1250 = vmatpush1.msra.mxu0 %v24
  %1251 = vmatprep.subr.mxu0 %v29
  %1252 = vmatpush1.msra.mxu0 %v28
  %1253 = vmatprep.subr.mxu0 %v33
  %1254 = vmatpush1.msra.mxu0 %v32
  %1255 = vmatprep.subr.mxu0 %v37
  %1256 = vmatpush1.msra.mxu0 %v36
  %1257 = vmatprep.subr.mxu0 %v41
  %1258 = vmatpush1.msra.mxu0 %v40
  %1259 = vmatprep.subr.mxu0 %v45
  %1260 = vmatpush1.msra.mxu0 %v44
  %1261 = vmatprep.subr.mxu0 %v49
  %1262 = vmatpush1.msra.mxu0 %v48
  %1263 = vmatprep.subr.mxu0 %v53
  %1264 = vmatpush1.msra.mxu0 %v52
  %1265 = vmatprep.subr.mxu0 %v57
  %1266 = vmatpush1.msra.mxu0 %v56
  %1267 = vmatprep.subr.mxu0 %v61
  %1268 = vmatpush1.msra.mxu0 %v60
  %1269 = vmatprep.subr.mxu0 %v65
  %1270 = vmatpush1.msra.mxu0 %v64
  %1271 = vmatprep.subr.mxu0 %v69
  %1272 = vmatpush1.msra.mxu0 %v68
  %1273 = vmatprep.subr.mxu0 %v73
  %1274 = vmatpush1.msra.mxu0 %v72
  %1275 = vmatprep.subr.mxu0 %v77
  %1276 = vmatpush1.msra.mxu0 %v76
  %1277 = vmatprep.subr.mxu0 %v81
  %1278 = vmatpush1.msra.mxu0 %v80
  %1279 = vmatprep.subr.mxu0 0.0
  %1280 = vmatpush1.msra.mxu0 0.0
  %1281 = vmatprep.subr.mxu0 0.0
  %1282 = vmatpush1.msra.mxu0 0.0
  %1283 = vmatprep.subr.mxu0 0.0
  %1284 = vmatpush1.msra.mxu0 0.0
  %1285 = vmatprep.subr.mxu0 0.0
  %1286 = vmatpush1.msra.mxu0 0.0
  %1287 = vmatprep.subr.mxu0 0.0
  %1288 = vmatpush1.msra.mxu0 0.0
  %1289 = vmatprep.subr.mxu0 0.0
  %1290 = vmatpush1.msra.mxu0 0.0
  %1291 = vmatprep.subr.mxu0 0.0
  %1292 = vmatpush1.msra.mxu0 0.0
  %1293 = vmatprep.subr.mxu0 0.0
  %1294 = vmatpush1.msra.mxu0 0.0
  %1295 = vmatprep.subr.mxu0 0.0
  %1296 = vmatpush1.msra.mxu0 0.0
  %1297 = vmatprep.subr.mxu0 0.0
  %1298 = vmatpush1.msra.mxu0 0.0
  %1299 = vmatprep.subr.mxu0 0.0
  %1300 = vmatpush1.msra.mxu0 0.0
  %1301 = vmatprep.subr.mxu0 0.0
  %1302 = vmatpush1.msra.mxu0 0.0
  %1303 = vmatprep.subr.mxu0 0.0
  %1304 = vmatpush1.msra.mxu0 0.0
  %1305 = vmatprep.subr.mxu0 0.0
  %1306 = vmatpush1.msra.mxu0 0.0
  %1307 = vmatprep.subr.mxu0 0.0
  %1308 = vmatpush1.msra.mxu0 0.0
  %1309 = vmatprep.subr.mxu0 0.0
  %1310 = vmatpush1.msra.mxu0 0.0
  %1311 = vmatprep.mubr.f32.mxu0 0.0
  %1312 = vmatmul.mubr.f32.gmra.mrb[0].mxu0 %v1166
  %v1313 = vpop.f32.mrb[0].mxu0
  %v1314 = vadd.f32 0.0, %v1313
  %v1315 = vpop.f32.mrb[0].mxu0
  %v1316 = vadd.f32 0.0, %v1315
  %1317 = vmatprep.mubr.f32.mxu0 0.0
  %1318 = vmatmul.mubr.f32.gmra.mrb[0].mxu0 %v1167
  %v1319 = vpop.f32.mrb[0].mxu0
  %v1320 = vadd.f32 0.0, %v1319
  %v1321 = vpop.f32.mrb[0].mxu0
  %v1322 = vadd.f32 0.0, %v1321
  %1323 = vdwg.mxu0
  %v1324 = vadd.f32 %v1158, %v1237
  %v1325 = vadd.f32 %v1159, %v1239
  %v1326 = vadd.f32 %v1160, %v1314
  %v1327 = vadd.f32 %v1161, %v1316
  %v1328 = vadd.f32 %v1162, %v1243
  %v1329 = vadd.f32 %v1163, %v1245
  %v1330 = vadd.f32 %v1164, %v1320
  %v1331 = vadd.f32 %v1165, %v1322
  %v1332 = vxor.u32 %v1324, 2147483648
  %v1333 = vxor.u32 %v1328, 2147483648
  %v1334 = vmul.f32 %v1332, 1.442695
  %v1335 = vpow.pop %v1334
  %v1336 = vmul.f32 %v1333, 1.442695
  %v1337 = vpow.pop %v1336
  %v1338 = vadd.f32 %v1335, 1.0
  %v1339 = vadd.f32 %v1337, 1.0
  %v1340 = vrcp.pop %v1338
  %v1341 = vmul.f32 1.0, %v1340
  %v1342 = vrcp.pop %v1339
  %v1343 = vmul.f32 1.0, %v1342
  %v1344 = vxor.u32 %v1325, 2147483648
  %v1345 = vxor.u32 %v1329, 2147483648
  %v1346 = vmul.f32 %v1344, 1.442695
  %v1347 = vpow.pop %v1346
  %v1348 = vmul.f32 %v1345, 1.442695
  %v1349 = vpow.pop %v1348
  %v1350 = vadd.f32 %v1347, 1.0
  %v1351 = vadd.f32 %v1349, 1.0
  %v1352 = vrcp.pop %v1350
  %v1353 = vmul.f32 1.0, %v1352
  %v1354 = vrcp.pop %v1351
  %v1355 = vmul.f32 1.0, %v1354
  %v1356 = vtanh.pop %v1326
  %v1357 = vtanh.pop %v1330
  %v1358 = vxor.u32 %v1327, 2147483648
  %v1359 = vxor.u32 %v1331, 2147483648
  %v1360 = vmul.f32 %v1358, 1.442695
  %v1361 = vpow.pop %v1360
  %v1362 = vmul.f32 %v1359, 1.442695
  %v1363 = vpow.pop %v1362
  %v1364 = vadd.f32 %v1361, 1.0
  %v1365 = vadd.f32 %v1363, 1.0
  %v1366 = vrcp.pop %v1364
  %v1367 = vmul.f32 1.0, %v1366
  %v1368 = vrcp.pop %v1365
  %v1369 = vmul.f32 1.0, %v1368
  %v1370 = vmul.f32 %v1353, %v1168
  %v1371 = vmul.f32 %v1355, %v1169
  %v1372 = vmul.f32 %v1341, %v1356
  %v1373 = vmul.f32 %v1343, %v1357
  %v1374 = vadd.f32 %v1370, %v1372
  %v1375 = vadd.f32 %v1371, %v1373
  %v1376 = vtanh.pop %v1374
  %v1377 = vtanh.pop %v1375
  %v1378 = vmul.f32 %v1367, %v1376
  %v1379 = vmul.f32 %v1369, %v1377
  %1381 = vset.pattern.permute.xlu0 0
  %1382 = vperm.xlu0 %1381, %v1155
  %v1383 = vpop.permute.xlu0 %1382
  %1386 = vset.pattern.permute.xlu0 0
  %1387 = vperm.xlu0 %1386, %v1156
  %v1388 = vpop.permute.xlu0 %1387
  %v1390 = vmul.f32 %v1383, %v1378
  %v1391 = vmul.f32 %v1388, %v1379
  %v1392 = vsub.f32 1.0, %v1155
  %v1393 = vsub.f32 1.0, %v1156
  %1395 = vset.pattern.permute.xlu0 0
  %1396 = vperm.xlu0 %1395, %v1392
  %v1397 = vpop.permute.xlu0 %1396
  %1400 = vset.pattern.permute.xlu0 0
  %1401 = vperm.xlu0 %1400, %v1393
  %v1402 = vpop.permute.xlu0 %1401
  %v1404 = vmul.f32 %v1397, %v1166
  %v1405 = vmul.f32 %v1402, %v1167
  %v1406 = vadd.f32 %v1390, %v1404
  %v1407 = vadd.f32 %v1391, %v1405
  %v1408 = vmul.f32 %v1383, %v1374
  %v1409 = vmul.f32 %v1388, %v1375
  %v1410 = vmul.f32 %v1397, %v1168
  %v1411 = vmul.f32 %v1402, %v1169
  %v1412 = vadd.f32 %v1408, %v1410
  %v1413 = vadd.f32 %v1409, %v1411
  %1414 = vst [vmem:[#allocation2] sm:$0xff] %v1406
  %1415 = vst [vmem:[#allocation2 + $0x8] sm:$0xf] %v1407
  %1416 = vst [vmem:[#allocation3] sm:$0xff] %v1412
  %1417 = vst [vmem:[#allocation3 + $0x8] sm:$0xf] %v1413
  %vm1418 = vcmp.gt.s32.totalorder %v82, 5
  %vm1419 = vcmp.gt.s32.totalorder %v83, 5
  %v1420 = vsel %vm1418, 1, 0
  %v1421 = vsel %vm1419, 1, 0
  %v1422 = vcvt.s32.f32 %v1420
  %v1423 = vcvt.s32.f32 %v1421
  %s1424 = scalar_lea.vmem %s0, 320
  %v1425 = vld [vmem:[%s1424] sm:$0xff]
  %v1426 = vld [vmem:[%s1424 + $0x8] sm:$0xff]
  %v1427 = vld [vmem:[%s1424 + $0x10] sm:$0xff]
  %v1428 = vld [vmem:[%s1424 + $0x18] sm:$0xff]
  %v1429 = vld [vmem:[%s1424 + $0x20] sm:$0xf]
  %v1430 = vld [vmem:[%s1424 + $0x28] sm:$0xf]
  %v1431 = vld [vmem:[%s1424 + $0x30] sm:$0xf]
  %v1432 = vld [vmem:[%s1424 + $0x38] sm:$0xf]
  %v1433 = vld [vmem:[#allocation2] sm:$0xff]
  %v1434 = vld [vmem:[#allocation2 + $0x8] sm:$0xf]
  %v1435 = vld [vmem:[#allocation3] sm:$0xff]
  %v1436 = vld [vmem:[#allocation3 + $0x8] sm:$0xf]
  %1437 = vmatprep.subr.mxu0 %v19
  %1438 = vmatpush1.msra.mxu0 %v18
  %1439 = vmatprep.subr.mxu0 %v23
  %1440 = vmatpush1.msra.mxu0 %v22
  %1441 = vmatprep.subr.mxu0 %v27
  %1442 = vmatpush1.msra.mxu0 %v26
  %1443 = vmatprep.subr.mxu0 %v31
  %1444 = vmatpush1.msra.mxu0 %v30
  %1445 = vmatprep.subr.mxu0 %v35
  %1446 = vmatpush1.msra.mxu0 %v34
  %1447 = vmatprep.subr.mxu0 %v39
  %1448 = vmatpush1.msra.mxu0 %v38
  %1449 = vmatprep.subr.mxu0 %v43
  %1450 = vmatpush1.msra.mxu0 %v42
  %1451 = vmatprep.subr.mxu0 %v47
  %1452 = vmatpush1.msra.mxu0 %v46
  %1453 = vmatprep.subr.mxu0 %v51
  %1454 = vmatpush1.msra.mxu0 %v50
  %1455 = vmatprep.subr.mxu0 %v55
  %1456 = vmatpush1.msra.mxu0 %v54
  %1457 = vmatprep.subr.mxu0 %v59
  %1458 = vmatpush1.msra.mxu0 %v58
  %1459 = vmatprep.subr.mxu0 %v63
  %1460 = vmatpush1.msra.mxu0 %v62
  %1461 = vmatprep.subr.mxu0 %v67
  %1462 = vmatpush1.msra.mxu0 %v66
  %1463 = vmatprep.subr.mxu0 %v71
  %1464 = vmatpush1.msra.mxu0 %v70
  %1465 = vmatprep.subr.mxu0 %v75
  %1466 = vmatpush1.msra.mxu0 %v74
  %1467 = vmatprep.subr.mxu0 %v79
  %1468 = vmatpush1.msra.mxu0 %v78
  %1469 = vmatprep.subr.mxu0 0.0
  %1470 = vmatpush1.msra.mxu0 0.0
  %1471 = vmatprep.subr.mxu0 0.0
  %1472 = vmatpush1.msra.mxu0 0.0
  %1473 = vmatprep.subr.mxu0 0.0
  %1474 = vmatpush1.msra.mxu0 0.0
  %1475 = vmatprep.subr.mxu0 0.0
  %1476 = vmatpush1.msra.mxu0 0.0
  %1477 = vmatprep.subr.mxu0 0.0
  %1478 = vmatpush1.msra.mxu0 0.0
  %1479 = vmatprep.subr.mxu0 0.0
  %1480 = vmatpush1.msra.mxu0 0.0
  %1481 = vmatprep.subr.mxu0 0.0
  %1482 = vmatpush1.msra.mxu0 0.0
  %1483 = vmatprep.subr.mxu0 0.0
  %1484 = vmatpush1.msra.mxu0 0.0
  %1485 = vmatprep.subr.mxu0 0.0
  %1486 = vmatpush1.msra.mxu0 0.0
  %1487 = vmatprep.subr.mxu0 0.0
  %1488 = vmatpush1.msra.mxu0 0.0
  %1489 = vmatprep.subr.mxu0 0.0
  %1490 = vmatpush1.msra.mxu0 0.0
  %1491 = vmatprep.subr.mxu0 0.0
  %1492 = vmatpush1.msra.mxu0 0.0
  %1493 = vmatprep.subr.mxu0 0.0
  %1494 = vmatpush1.msra.mxu0 0.0
  %1495 = vmatprep.subr.mxu0 0.0
  %1496 = vmatpush1.msra.mxu0 0.0
  %1497 = vmatprep.subr.mxu0 0.0
  %1498 = vmatpush1.msra.mxu0 0.0
  %1499 = vmatprep.subr.mxu0 0.0
  %1500 = vmatpush1.msra.mxu0 0.0
  %1501 = vmatprep.mubr.f32.mxu0 0.0
  %1502 = vmatmul.mubr.f32.gmra.mrb[0].mxu0 %v1433
  %v1503 = vpop.f32.mrb[0].mxu0
  %v1504 = vadd.f32 0.0, %v1503
  %v1505 = vpop.f32.mrb[0].mxu0
  %v1506 = vadd.f32 0.0, %v1505
  %1507 = vmatprep.mubr.f32.mxu0 0.0
  %1508 = vmatmul.mubr.f32.gmra.mrb[0].mxu0 %v1434
  %v1509 = vpop.f32.mrb[0].mxu0
  %v1510 = vadd.f32 0.0, %v1509
  %v1511 = vpop.f32.mrb[0].mxu0
  %v1512 = vadd.f32 0.0, %v1511
  %1513 = vdwg.mxu0
  %1514 = vmatprep.subr.mxu0 %v21
  %1515 = vmatpush1.msra.mxu0 %v20
  %1516 = vmatprep.subr.mxu0 %v25
  %1517 = vmatpush1.msra.mxu0 %v24
  %1518 = vmatprep.subr.mxu0 %v29
  %1519 = vmatpush1.msra.mxu0 %v28
  %1520 = vmatprep.subr.mxu0 %v33
  %1521 = vmatpush1.msra.mxu0 %v32
  %1522 = vmatprep.subr.mxu0 %v37
  %1523 = vmatpush1.msra.mxu0 %v36
  %1524 = vmatprep.subr.mxu0 %v41
  %1525 = vmatpush1.msra.mxu0 %v40
  %1526 = vmatprep.subr.mxu0 %v45
  %1527 = vmatpush1.msra.mxu0 %v44
  %1528 = vmatprep.subr.mxu0 %v49
  %1529 = vmatpush1.msra.mxu0 %v48
  %1530 = vmatprep.subr.mxu0 %v53
  %1531 = vmatpush1.msra.mxu0 %v52
  %1532 = vmatprep.subr.mxu0 %v57
  %1533 = vmatpush1.msra.mxu0 %v56
  %1534 = vmatprep.subr.mxu0 %v61
  %1535 = vmatpush1.msra.mxu0 %v60
  %1536 = vmatprep.subr.mxu0 %v65
  %1537 = vmatpush1.msra.mxu0 %v64
  %1538 = vmatprep.subr.mxu0 %v69
  %1539 = vmatpush1.msra.mxu0 %v68
  %1540 = vmatprep.subr.mxu0 %v73
  %1541 = vmatpush1.msra.mxu0 %v72
  %1542 = vmatprep.subr.mxu0 %v77
  %1543 = vmatpush1.msra.mxu0 %v76
  %1544 = vmatprep.subr.mxu0 %v81
  %1545 = vmatpush1.msra.mxu0 %v80
  %1546 = vmatprep.subr.mxu0 0.0
  %1547 = vmatpush1.msra.mxu0 0.0
  %1548 = vmatprep.subr.mxu0 0.0
  %1549 = vmatpush1.msra.mxu0 0.0
  %1550 = vmatprep.subr.mxu0 0.0
  %1551 = vmatpush1.msra.mxu0 0.0
  %1552 = vmatprep.subr.mxu0 0.0
  %1553 = vmatpush1.msra.mxu0 0.0
  %1554 = vmatprep.subr.mxu0 0.0
  %1555 = vmatpush1.msra.mxu0 0.0
  %1556 = vmatprep.subr.mxu0 0.0
  %1557 = vmatpush1.msra.mxu0 0.0
  %1558 = vmatprep.subr.mxu0 0.0
  %1559 = vmatpush1.msra.mxu0 0.0
  %1560 = vmatprep.subr.mxu0 0.0
  %1561 = vmatpush1.msra.mxu0 0.0
  %1562 = vmatprep.subr.mxu0 0.0
  %1563 = vmatpush1.msra.mxu0 0.0
  %1564 = vmatprep.subr.mxu0 0.0
  %1565 = vmatpush1.msra.mxu0 0.0
  %1566 = vmatprep.subr.mxu0 0.0
  %1567 = vmatpush1.msra.mxu0 0.0
  %1568 = vmatprep.subr.mxu0 0.0
  %1569 = vmatpush1.msra.mxu0 0.0
  %1570 = vmatprep.subr.mxu0 0.0
  %1571 = vmatpush1.msra.mxu0 0.0
  %1572 = vmatprep.subr.mxu0 0.0
  %1573 = vmatpush1.msra.mxu0 0.0
  %1574 = vmatprep.subr.mxu0 0.0
  %1575 = vmatpush1.msra.mxu0 0.0
  %1576 = vmatprep.subr.mxu0 0.0
  %1577 = vmatpush1.msra.mxu0 0.0
  %1578 = vmatprep.mubr.f32.mxu0 0.0
  %1579 = vmatmul.mubr.f32.gmra.mrb[0].mxu0 %v1433
  %v1580 = vpop.f32.mrb[0].mxu0
  %v1581 = vadd.f32 0.0, %v1580
  %v1582 = vpop.f32.mrb[0].mxu0
  %v1583 = vadd.f32 0.0, %v1582
  %1584 = vmatprep.mubr.f32.mxu0 0.0
  %1585 = vmatmul.mubr.f32.gmra.mrb[0].mxu0 %v1434
  %v1586 = vpop.f32.mrb[0].mxu0
  %v1587 = vadd.f32 0.0, %v1586
  %v1588 = vpop.f32.mrb[0].mxu0
  %v1589 = vadd.f32 0.0, %v1588
  %1590 = vdwg.mxu0
  %v1591 = vadd.f32 %v1425, %v1504
  %v1592 = vadd.f32 %v1426, %v1506
  %v1593 = vadd.f32 %v1427, %v1581
  %v1594 = vadd.f32 %v1428, %v1583
  %v1595 = vadd.f32 %v1429, %v1510
  %v1596 = vadd.f32 %v1430, %v1512
  %v1597 = vadd.f32 %v1431, %v1587
  %v1598 = vadd.f32 %v1432, %v1589
  %v1599 = vxor.u32 %v1591, 2147483648
  %v1600 = vxor.u32 %v1595, 2147483648
  %v1601 = vmul.f32 %v1599, 1.442695
  %v1602 = vpow.pop %v1601
  %v1603 = vmul.f32 %v1600, 1.442695
  %v1604 = vpow.pop %v1603
  %v1605 = vadd.f32 %v1602, 1.0
  %v1606 = vadd.f32 %v1604, 1.0
  %v1607 = vrcp.pop %v1605
  %v1608 = vmul.f32 1.0, %v1607
  %v1609 = vrcp.pop %v1606
  %v1610 = vmul.f32 1.0, %v1609
  %v1611 = vxor.u32 %v1592, 2147483648
  %v1612 = vxor.u32 %v1596, 2147483648
  %v1613 = vmul.f32 %v1611, 1.442695
  %v1614 = vpow.pop %v1613
  %v1615 = vmul.f32 %v1612, 1.442695
  %v1616 = vpow.pop %v1615
  %v1617 = vadd.f32 %v1614, 1.0
  %v1618 = vadd.f32 %v1616, 1.0
  %v1619 = vrcp.pop %v1617
  %v1620 = vmul.f32 1.0, %v1619
  %v1621 = vrcp.pop %v1618
  %v1622 = vmul.f32 1.0, %v1621
  %v1623 = vtanh.pop %v1593
  %v1624 = vtanh.pop %v1597
  %v1625 = vxor.u32 %v1594, 2147483648
  %v1626 = vxor.u32 %v1598, 2147483648
  %v1627 = vmul.f32 %v1625, 1.442695
  %v1628 = vpow.pop %v1627
  %v1629 = vmul.f32 %v1626, 1.442695
  %v1630 = vpow.pop %v1629
  %v1631 = vadd.f32 %v1628, 1.0
  %v1632 = vadd.f32 %v1630, 1.0
  %v1633 = vrcp.pop %v1631
  %v1634 = vmul.f32 1.0, %v1633
  %v1635 = vrcp.pop %v1632
  %v1636 = vmul.f32 1.0, %v1635
  %v1637 = vmul.f32 %v1620, %v1435
  %v1638 = vmul.f32 %v1622, %v1436
  %v1639 = vmul.f32 %v1608, %v1623
  %v1640 = vmul.f32 %v1610, %v1624
  %v1641 = vadd.f32 %v1637, %v1639
  %v1642 = vadd.f32 %v1638, %v1640
  %v1643 = vtanh.pop %v1641
  %v1644 = vtanh.pop %v1642
  %v1645 = vmul.f32 %v1634, %v1643
  %v1646 = vmul.f32 %v1636, %v1644
  %1648 = vset.pattern.permute.xlu0 0
  %1649 = vperm.xlu0 %1648, %v1422
  %v1650 = vpop.permute.xlu0 %1649
  %1653 = vset.pattern.permute.xlu0 0
  %1654 = vperm.xlu0 %1653, %v1423
  %v1655 = vpop.permute.xlu0 %1654
  %v1657 = vmul.f32 %v1650, %v1645
  %v1658 = vmul.f32 %v1655, %v1646
  %v1659 = vsub.f32 1.0, %v1422
  %v1660 = vsub.f32 1.0, %v1423
  %1662 = vset.pattern.permute.xlu0 0
  %1663 = vperm.xlu0 %1662, %v1659
  %v1664 = vpop.permute.xlu0 %1663
  %1667 = vset.pattern.permute.xlu0 0
  %1668 = vperm.xlu0 %1667, %v1660
  %v1669 = vpop.permute.xlu0 %1668
  %v1671 = vmul.f32 %v1664, %v1433
  %v1672 = vmul.f32 %v1669, %v1434
  %v1673 = vadd.f32 %v1657, %v1671
  %v1674 = vadd.f32 %v1658, %v1672
  %v1675 = vmul.f32 %v1650, %v1641
  %v1676 = vmul.f32 %v1655, %v1642
  %v1677 = vmul.f32 %v1664, %v1435
  %v1678 = vmul.f32 %v1669, %v1436
  %v1679 = vadd.f32 %v1675, %v1677
  %v1680 = vadd.f32 %v1676, %v1678
  %1681 = vst [vmem:[#allocation2] sm:$0xff] %v1673
  %1682 = vst [vmem:[#allocation2 + $0x8] sm:$0xf] %v1674
  %1683 = vst [vmem:[#allocation3] sm:$0xff] %v1679
  %1684 = vst [vmem:[#allocation3 + $0x8] sm:$0xf] %v1680
  %vm1685 = vcmp.gt.s32.totalorder %v82, 6
  %vm1686 = vcmp.gt.s32.totalorder %v83, 6
  %v1687 = vsel %vm1685, 1, 0
  %v1688 = vsel %vm1686, 1, 0
  %v1689 = vcvt.s32.f32 %v1687
  %v1690 = vcvt.s32.f32 %v1688
  %s1691 = scalar_lea.vmem %s0, 384
  %v1692 = vld [vmem:[%s1691] sm:$0xff]
  %v1693 = vld [vmem:[%s1691 + $0x8] sm:$0xff]
  %v1694 = vld [vmem:[%s1691 + $0x10] sm:$0xff]
  %v1695 = vld [vmem:[%s1691 + $0x18] sm:$0xff]
  %v1696 = vld [vmem:[%s1691 + $0x20] sm:$0xf]
  %v1697 = vld [vmem:[%s1691 + $0x28] sm:$0xf]
  %v1698 = vld [vmem:[%s1691 + $0x30] sm:$0xf]
  %v1699 = vld [vmem:[%s1691 + $0x38] sm:$0xf]
  %v1700 = vld [vmem:[#allocation2] sm:$0xff]
  %v1701 = vld [vmem:[#allocation2 + $0x8] sm:$0xf]
  %v1702 = vld [vmem:[#allocation3] sm:$0xff]
  %v1703 = vld [vmem:[#allocation3 + $0x8] sm:$0xf]
  %1704 = vmatprep.subr.mxu0 %v19
  %1705 = vmatpush1.msra.mxu0 %v18
  %1706 = vmatprep.subr.mxu0 %v23
  %1707 = vmatpush1.msra.mxu0 %v22
  %1708 = vmatprep.subr.mxu0 %v27
  %1709 = vmatpush1.msra.mxu0 %v26
  %1710 = vmatprep.subr.mxu0 %v31
  %1711 = vmatpush1.msra.mxu0 %v30
  %1712 = vmatprep.subr.mxu0 %v35
  %1713 = vmatpush1.msra.mxu0 %v34
  %1714 = vmatprep.subr.mxu0 %v39
  %1715 = vmatpush1.msra.mxu0 %v38
  %1716 = vmatprep.subr.mxu0 %v43
  %1717 = vmatpush1.msra.mxu0 %v42
  %1718 = vmatprep.subr.mxu0 %v47
  %1719 = vmatpush1.msra.mxu0 %v46
  %1720 = vmatprep.subr.mxu0 %v51
  %1721 = vmatpush1.msra.mxu0 %v50
  %1722 = vmatprep.subr.mxu0 %v55
  %1723 = vmatpush1.msra.mxu0 %v54
  %1724 = vmatprep.subr.mxu0 %v59
  %1725 = vmatpush1.msra.mxu0 %v58
  %1726 = vmatprep.subr.mxu0 %v63
  %1727 = vmatpush1.msra.mxu0 %v62
  %1728 = vmatprep.subr.mxu0 %v67
  %1729 = vmatpush1.msra.mxu0 %v66
  %1730 = vmatprep.subr.mxu0 %v71
  %1731 = vmatpush1.msra.mxu0 %v70
  %1732 = vmatprep.subr.mxu0 %v75
  %1733 = vmatpush1.msra.mxu0 %v74
  %1734 = vmatprep.subr.mxu0 %v79
  %1735 = vmatpush1.msra.mxu0 %v78
  %1736 = vmatprep.subr.mxu0 0.0
  %1737 = vmatpush1.msra.mxu0 0.0
  %1738 = vmatprep.subr.mxu0 0.0
  %1739 = vmatpush1.msra.mxu0 0.0
  %1740 = vmatprep.subr.mxu0 0.0
  %1741 = vmatpush1.msra.mxu0 0.0
  %1742 = vmatprep.subr.mxu0 0.0
  %1743 = vmatpush1.msra.mxu0 0.0
  %1744 = vmatprep.subr.mxu0 0.0
  %1745 = vmatpush1.msra.mxu0 0.0
  %1746 = vmatprep.subr.mxu0 0.0
  %1747 = vmatpush1.msra.mxu0 0.0
  %1748 = vmatprep.subr.mxu0 0.0
  %1749 = vmatpush1.msra.mxu0 0.0
  %1750 = vmatprep.subr.mxu0 0.0
  %1751 = vmatpush1.msra.mxu0 0.0
  %1752 = vmatprep.subr.mxu0 0.0
  %1753 = vmatpush1.msra.mxu0 0.0
  %1754 = vmatprep.subr.mxu0 0.0
  %1755 = vmatpush1.msra.mxu0 0.0
  %1756 = vmatprep.subr.mxu0 0.0
  %1757 = vmatpush1.msra.mxu0 0.0
  %1758 = vmatprep.subr.mxu0 0.0
  %1759 = vmatpush1.msra.mxu0 0.0
  %1760 = vmatprep.subr.mxu0 0.0
  %1761 = vmatpush1.msra.mxu0 0.0
  %1762 = vmatprep.subr.mxu0 0.0
  %1763 = vmatpush1.msra.mxu0 0.0
  %1764 = vmatprep.subr.mxu0 0.0
  %1765 = vmatpush1.msra.mxu0 0.0
  %1766 = vmatprep.subr.mxu0 0.0
  %1767 = vmatpush1.msra.mxu0 0.0
  %1768 = vmatprep.mubr.f32.mxu0 0.0
  %1769 = vmatmul.mubr.f32.gmra.mrb[0].mxu0 %v1700
  %v1770 = vpop.f32.mrb[0].mxu0
  %v1771 = vadd.f32 0.0, %v1770
  %v1772 = vpop.f32.mrb[0].mxu0
  %v1773 = vadd.f32 0.0, %v1772
  %1774 = vmatprep.mubr.f32.mxu0 0.0
  %1775 = vmatmul.mubr.f32.gmra.mrb[0].mxu0 %v1701
  %v1776 = vpop.f32.mrb[0].mxu0
  %v1777 = vadd.f32 0.0, %v1776
  %v1778 = vpop.f32.mrb[0].mxu0
  %v1779 = vadd.f32 0.0, %v1778
  %1780 = vdwg.mxu0
  %1781 = vmatprep.subr.mxu0 %v21
  %1782 = vmatpush1.msra.mxu0 %v20
  %1783 = vmatprep.subr.mxu0 %v25
  %1784 = vmatpush1.msra.mxu0 %v24
  %1785 = vmatprep.subr.mxu0 %v29
  %1786 = vmatpush1.msra.mxu0 %v28
  %1787 = vmatprep.subr.mxu0 %v33
  %1788 = vmatpush1.msra.mxu0 %v32
  %1789 = vmatprep.subr.mxu0 %v37
  %1790 = vmatpush1.msra.mxu0 %v36
  %1791 = vmatprep.subr.mxu0 %v41
  %1792 = vmatpush1.msra.mxu0 %v40
  %1793 = vmatprep.subr.mxu0 %v45
  %1794 = vmatpush1.msra.mxu0 %v44
  %1795 = vmatprep.subr.mxu0 %v49
  %1796 = vmatpush1.msra.mxu0 %v48
  %1797 = vmatprep.subr.mxu0 %v53
  %1798 = vmatpush1.msra.mxu0 %v52
  %1799 = vmatprep.subr.mxu0 %v57
  %1800 = vmatpush1.msra.mxu0 %v56
  %1801 = vmatprep.subr.mxu0 %v61
  %1802 = vmatpush1.msra.mxu0 %v60
  %1803 = vmatprep.subr.mxu0 %v65
  %1804 = vmatpush1.msra.mxu0 %v64
  %1805 = vmatprep.subr.mxu0 %v69
  %1806 = vmatpush1.msra.mxu0 %v68
  %1807 = vmatprep.subr.mxu0 %v73
  %1808 = vmatpush1.msra.mxu0 %v72
  %1809 = vmatprep.subr.mxu0 %v77
  %1810 = vmatpush1.msra.mxu0 %v76
  %1811 = vmatprep.subr.mxu0 %v81
  %1812 = vmatpush1.msra.mxu0 %v80
  %1813 = vmatprep.subr.mxu0 0.0
  %1814 = vmatpush1.msra.mxu0 0.0
  %1815 = vmatprep.subr.mxu0 0.0
  %1816 = vmatpush1.msra.mxu0 0.0
  %1817 = vmatprep.subr.mxu0 0.0
  %1818 = vmatpush1.msra.mxu0 0.0
  %1819 = vmatprep.subr.mxu0 0.0
  %1820 = vmatpush1.msra.mxu0 0.0
  %1821 = vmatprep.subr.mxu0 0.0
  %1822 = vmatpush1.msra.mxu0 0.0
  %1823 = vmatprep.subr.mxu0 0.0
  %1824 = vmatpush1.msra.mxu0 0.0
  %1825 = vmatprep.subr.mxu0 0.0
  %1826 = vmatpush1.msra.mxu0 0.0
  %1827 = vmatprep.subr.mxu0 0.0
  %1828 = vmatpush1.msra.mxu0 0.0
  %1829 = vmatprep.subr.mxu0 0.0
  %1830 = vmatpush1.msra.mxu0 0.0
  %1831 = vmatprep.subr.mxu0 0.0
  %1832 = vmatpush1.msra.mxu0 0.0
  %1833 = vmatprep.subr.mxu0 0.0
  %1834 = vmatpush1.msra.mxu0 0.0
  %1835 = vmatprep.subr.mxu0 0.0
  %1836 = vmatpush1.msra.mxu0 0.0
  %1837 = vmatprep.subr.mxu0 0.0
  %1838 = vmatpush1.msra.mxu0 0.0
  %1839 = vmatprep.subr.mxu0 0.0
  %1840 = vmatpush1.msra.mxu0 0.0
  %1841 = vmatprep.subr.mxu0 0.0
  %1842 = vmatpush1.msra.mxu0 0.0
  %1843 = vmatprep.subr.mxu0 0.0
  %1844 = vmatpush1.msra.mxu0 0.0
  %1845 = vmatprep.mubr.f32.mxu0 0.0
  %1846 = vmatmul.mubr.f32.gmra.mrb[0].mxu0 %v1700
  %v1847 = vpop.f32.mrb[0].mxu0
  %v1848 = vadd.f32 0.0, %v1847
  %v1849 = vpop.f32.mrb[0].mxu0
  %v1850 = vadd.f32 0.0, %v1849
  %1851 = vmatprep.mubr.f32.mxu0 0.0
  %1852 = vmatmul.mubr.f32.gmra.mrb[0].mxu0 %v1701
  %v1853 = vpop.f32.mrb[0].mxu0
  %v1854 = vadd.f32 0.0, %v1853
  %v1855 = vpop.f32.mrb[0].mxu0
  %v1856 = vadd.f32 0.0, %v1855
  %1857 = vdwg.mxu0
  %v1858 = vadd.f32 %v1692, %v1771
  %v1859 = vadd.f32 %v1693, %v1773
  %v1860 = vadd.f32 %v1694, %v1848
  %v1861 = vadd.f32 %v1695, %v1850
  %v1862 = vadd.f32 %v1696, %v1777
  %v1863 = vadd.f32 %v1697, %v1779
  %v1864 = vadd.f32 %v1698, %v1854
  %v1865 = vadd.f32 %v1699, %v1856
  %v1866 = vxor.u32 %v1858, 2147483648
  %v1867 = vxor.u32 %v1862, 2147483648
  %v1868 = vmul.f32 %v1866, 1.442695
  %v1869 = vpow.pop %v1868
  %v1870 = vmul.f32 %v1867, 1.442695
  %v1871 = vpow.pop %v1870
  %v1872 = vadd.f32 %v1869, 1.0
  %v1873 = vadd.f32 %v1871, 1.0
  %v1874 = vrcp.pop %v1872
  %v1875 = vmul.f32 1.0, %v1874
  %v1876 = vrcp.pop %v1873
  %v1877 = vmul.f32 1.0, %v1876
  %v1878 = vxor.u32 %v1859, 2147483648
  %v1879 = vxor.u32 %v1863, 2147483648
  %v1880 = vmul.f32 %v1878, 1.442695
  %v1881 = vpow.pop %v1880
  %v1882 = vmul.f32 %v1879, 1.442695
  %v1883 = vpow.pop %v1882
  %v1884 = vadd.f32 %v1881, 1.0
  %v1885 = vadd.f32 %v1883, 1.0
  %v1886 = vrcp.pop %v1884
  %v1887 = vmul.f32 1.0, %v1886
  %v1888 = vrcp.pop %v1885
  %v1889 = vmul.f32 1.0, %v1888
  %v1890 = vtanh.pop %v1860
  %v1891 = vtanh.pop %v1864
  %v1892 = vxor.u32 %v1861, 2147483648
  %v1893 = vxor.u32 %v1865, 2147483648
  %v1894 = vmul.f32 %v1892, 1.442695
  %v1895 = vpow.pop %v1894
  %v1896 = vmul.f32 %v1893, 1.442695
  %v1897 = vpow.pop %v1896
  %v1898 = vadd.f32 %v1895, 1.0
  %v1899 = vadd.f32 %v1897, 1.0
  %v1900 = vrcp.pop %v1898
  %v1901 = vmul.f32 1.0, %v1900
  %v1902 = vrcp.pop %v1899
  %v1903 = vmul.f32 1.0, %v1902
  %v1904 = vmul.f32 %v1887, %v1702
  %v1905 = vmul.f32 %v1889, %v1703
  %v1906 = vmul.f32 %v1875, %v1890
  %v1907 = vmul.f32 %v1877, %v1891
  %v1908 = vadd.f32 %v1904, %v1906
  %v1909 = vadd.f32 %v1905, %v1907
  %v1910 = vtanh.pop %v1908
  %v1911 = vtanh.pop %v1909
  %v1912 = vmul.f32 %v1901, %v1910
  %v1913 = vmul.f32 %v1903, %v1911
  %1915 = vset.pattern.permute.xlu0 0
  %1916 = vperm.xlu0 %1915, %v1689
  %v1917 = vpop.permute.xlu0 %1916
  %1920 = vset.pattern.permute.xlu0 0
  %1921 = vperm.xlu0 %1920, %v1690
  %v1922 = vpop.permute.xlu0 %1921
  %v1924 = vmul.f32 %v1917, %v1912
  %v1925 = vmul.f32 %v1922, %v1913
  %v1926 = vsub.f32 1.0, %v1689
  %v1927 = vsub.f32 1.0, %v1690
  %1929 = vset.pattern.permute.xlu0 0
  %1930 = vperm.xlu0 %1929, %v1926
  %v1931 = vpop.permute.xlu0 %1930
  %1934 = vset.pattern.permute.xlu0 0
  %1935 = vperm.xlu0 %1934, %v1927
  %v1936 = vpop.permute.xlu0 %1935
  %v1938 = vmul.f32 %v1931, %v1700
  %v1939 = vmul.f32 %v1936, %v1701
  %v1940 = vadd.f32 %v1924, %v1938
  %v1941 = vadd.f32 %v1925, %v1939
  %v1942 = vmul.f32 %v1917, %v1908
  %v1943 = vmul.f32 %v1922, %v1909
  %v1944 = vmul.f32 %v1931, %v1702
  %v1945 = vmul.f32 %v1936, %v1703
  %v1946 = vadd.f32 %v1942, %v1944
  %v1947 = vadd.f32 %v1943, %v1945
  %1948 = vst [vmem:[#allocation2] sm:$0xff] %v1940
  %1949 = vst [vmem:[#allocation2 + $0x8] sm:$0xf] %v1941
  %1950 = vst [vmem:[#allocation3] sm:$0xff] %v1946
  %1951 = vst [vmem:[#allocation3 + $0x8] sm:$0xf] %v1947
  %vm1952 = vcmp.gt.s32.totalorder %v82, 7
  %vm1953 = vcmp.gt.s32.totalorder %v83, 7
  %v1954 = vsel %vm1952, 1, 0
  %v1955 = vsel %vm1953, 1, 0
  %v1956 = vcvt.s32.f32 %v1954
  %v1957 = vcvt.s32.f32 %v1955
  %s1958 = scalar_lea.vmem %s0, 448
  %v1959 = vld [vmem:[%s1958] sm:$0xff]
  %v1960 = vld [vmem:[%s1958 + $0x8] sm:$0xff]
  %v1961 = vld [vmem:[%s1958 + $0x10] sm:$0xff]
  %v1962 = vld [vmem:[%s1958 + $0x18] sm:$0xff]
  %v1963 = vld [vmem:[%s1958 + $0x20] sm:$0xf]
  %v1964 = vld [vmem:[%s1958 + $0x28] sm:$0xf]
  %v1965 = vld [vmem:[%s1958 + $0x30] sm:$0xf]
  %v1966 = vld [vmem:[%s1958 + $0x38] sm:$0xf]
  %v1967 = vld [vmem:[#allocation2] sm:$0xff]
  %v1968 = vld [vmem:[#allocation2 + $0x8] sm:$0xf]
  %v1969 = vld [vmem:[#allocation3] sm:$0xff]
  %v1970 = vld [vmem:[#allocation3 + $0x8] sm:$0xf]
  %1971 = vmatprep.subr.mxu0 %v19
  %1972 = vmatpush1.msra.mxu0 %v18
  %1973 = vmatprep.subr.mxu0 %v23
  %1974 = vmatpush1.msra.mxu0 %v22
  %1975 = vmatprep.subr.mxu0 %v27
  %1976 = vmatpush1.msra.mxu0 %v26
  %1977 = vmatprep.subr.mxu0 %v31
  %1978 = vmatpush1.msra.mxu0 %v30
  %1979 = vmatprep.subr.mxu0 %v35
  %1980 = vmatpush1.msra.mxu0 %v34
  %1981 = vmatprep.subr.mxu0 %v39
  %1982 = vmatpush1.msra.mxu0 %v38
  %1983 = vmatprep.subr.mxu0 %v43
  %1984 = vmatpush1.msra.mxu0 %v42
  %1985 = vmatprep.subr.mxu0 %v47
  %1986 = vmatpush1.msra.mxu0 %v46
  %1987 = vmatprep.subr.mxu0 %v51
  %1988 = vmatpush1.msra.mxu0 %v50
  %1989 = vmatprep.subr.mxu0 %v55
  %1990 = vmatpush1.msra.mxu0 %v54
  %1991 = vmatprep.subr.mxu0 %v59
  %1992 = vmatpush1.msra.mxu0 %v58
  %1993 = vmatprep.subr.mxu0 %v63
  %1994 = vmatpush1.msra.mxu0 %v62
  %1995 = vmatprep.subr.mxu0 %v67
  %1996 = vmatpush1.msra.mxu0 %v66
  %1997 = vmatprep.subr.mxu0 %v71
  %1998 = vmatpush1.msra.mxu0 %v70
  %1999 = vmatprep.subr.mxu0 %v75
  %2000 = vmatpush1.msra.mxu0 %v74
  %2001 = vmatprep.subr.mxu0 %v79
  %2002 = vmatpush1.msra.mxu0 %v78
  %2003 = vmatprep.subr.mxu0 0.0
  %2004 = vmatpush1.msra.mxu0 0.0
  %2005 = vmatprep.subr.mxu0 0.0
  %2006 = vmatpush1.msra.mxu0 0.0
  %2007 = vmatprep.subr.mxu0 0.0
  %2008 = vmatpush1.msra.mxu0 0.0
  %2009 = vmatprep.subr.mxu0 0.0
  %2010 = vmatpush1.msra.mxu0 0.0
  %2011 = vmatprep.subr.mxu0 0.0
  %2012 = vmatpush1.msra.mxu0 0.0
  %2013 = vmatprep.subr.mxu0 0.0
  %2014 = vmatpush1.msra.mxu0 0.0
  %2015 = vmatprep.subr.mxu0 0.0
  %2016 = vmatpush1.msra.mxu0 0.0
  %2017 = vmatprep.subr.mxu0 0.0
  %2018 = vmatpush1.msra.mxu0 0.0
  %2019 = vmatprep.subr.mxu0 0.0
  %2020 = vmatpush1.msra.mxu0 0.0
  %2021 = vmatprep.subr.mxu0 0.0
  %2022 = vmatpush1.msra.mxu0 0.0
  %2023 = vmatprep.subr.mxu0 0.0
  %2024 = vmatpush1.msra.mxu0 0.0
  %2025 = vmatprep.subr.mxu0 0.0
  %2026 = vmatpush1.msra.mxu0 0.0
  %2027 = vmatprep.subr.mxu0 0.0
  %2028 = vmatpush1.msra.mxu0 0.0
  %2029 = vmatprep.subr.mxu0 0.0
  %2030 = vmatpush1.msra.mxu0 0.0
  %2031 = vmatprep.subr.mxu0 0.0
  %2032 = vmatpush1.msra.mxu0 0.0
  %2033 = vmatprep.subr.mxu0 0.0
  %2034 = vmatpush1.msra.mxu0 0.0
  %2035 = vmatprep.mubr.f32.mxu0 0.0
  %2036 = vmatmul.mubr.f32.gmra.mrb[0].mxu0 %v1967
  %v2037 = vpop.f32.mrb[0].mxu0
  %v2038 = vadd.f32 0.0, %v2037
  %v2039 = vpop.f32.mrb[0].mxu0
  %v2040 = vadd.f32 0.0, %v2039
  %2041 = vmatprep.mubr.f32.mxu0 0.0
  %2042 = vmatmul.mubr.f32.gmra.mrb[0].mxu0 %v1968
  %v2043 = vpop.f32.mrb[0].mxu0
  %v2044 = vadd.f32 0.0, %v2043
  %v2045 = vpop.f32.mrb[0].mxu0
  %v2046 = vadd.f32 0.0, %v2045
  %2047 = vdwg.mxu0
  %2048 = vmatprep.subr.mxu0 %v21
  %2049 = vmatpush1.msra.mxu0 %v20
  %2050 = vmatprep.subr.mxu0 %v25
  %2051 = vmatpush1.msra.mxu0 %v24
  %2052 = vmatprep.subr.mxu0 %v29
  %2053 = vmatpush1.msra.mxu0 %v28
  %2054 = vmatprep.subr.mxu0 %v33
  %2055 = vmatpush1.msra.mxu0 %v32
  %2056 = vmatprep.subr.mxu0 %v37
  %2057 = vmatpush1.msra.mxu0 %v36
  %2058 = vmatprep.subr.mxu0 %v41
  %2059 = vmatpush1.msra.mxu0 %v40
  %2060 = vmatprep.subr.mxu0 %v45
  %2061 = vmatpush1.msra.mxu0 %v44
  %2062 = vmatprep.subr.mxu0 %v49
  %2063 = vmatpush1.msra.mxu0 %v48
  %2064 = vmatprep.subr.mxu0 %v53
  %2065 = vmatpush1.msra.mxu0 %v52
  %2066 = vmatprep.subr.mxu0 %v57
  %2067 = vmatpush1.msra.mxu0 %v56
  %2068 = vmatprep.subr.mxu0 %v61
  %2069 = vmatpush1.msra.mxu0 %v60
  %2070 = vmatprep.subr.mxu0 %v65
  %2071 = vmatpush1.msra.mxu0 %v64
  %2072 = vmatprep.subr.mxu0 %v69
  %2073 = vmatpush1.msra.mxu0 %v68
  %2074 = vmatprep.subr.mxu0 %v73
  %2075 = vmatpush1.msra.mxu0 %v72
  %2076 = vmatprep.subr.mxu0 %v77
  %2077 = vmatpush1.msra.mxu0 %v76
  %2078 = vmatprep.subr.mxu0 %v81
  %2079 = vmatpush1.msra.mxu0 %v80
  %2080 = vmatprep.subr.mxu0 0.0
  %2081 = vmatpush1.msra.mxu0 0.0
  %2082 = vmatprep.subr.mxu0 0.0
  %2083 = vmatpush1.msra.mxu0 0.0
  %2084 = vmatprep.subr.mxu0 0.0
  %2085 = vmatpush1.msra.mxu0 0.0
  %2086 = vmatprep.subr.mxu0 0.0
  %2087 = vmatpush1.msra.mxu0 0.0
  %2088 = vmatprep.subr.mxu0 0.0
  %2089 = vmatpush1.msra.mxu0 0.0
  %2090 = vmatprep.subr.mxu0 0.0
  %2091 = vmatpush1.msra.mxu0 0.0
  %2092 = vmatprep.subr.mxu0 0.0
  %2093 = vmatpush1.msra.mxu0 0.0
  %2094 = vmatprep.subr.mxu0 0.0
  %2095 = vmatpush1.msra.mxu0 0.0
  %2096 = vmatprep.subr.mxu0 0.0
  %2097 = vmatpush1.msra.mxu0 0.0
  %2098 = vmatprep.subr.mxu0 0.0
  %2099 = vmatpush1.msra.mxu0 0.0
  %2100 = vmatprep.subr.mxu0 0.0
  %2101 = vmatpush1.msra.mxu0 0.0
  %2102 = vmatprep.subr.mxu0 0.0
  %2103 = vmatpush1.msra.mxu0 0.0
  %2104 = vmatprep.subr.mxu0 0.0
  %2105 = vmatpush1.msra.mxu0 0.0
  %2106 = vmatprep.subr.mxu0 0.0
  %2107 = vmatpush1.msra.mxu0 0.0
  %2108 = vmatprep.subr.mxu0 0.0
  %2109 = vmatpush1.msra.mxu0 0.0
  %2110 = vmatprep.subr.mxu0 0.0
  %2111 = vmatpush1.msra.mxu0 0.0
  %2112 = vmatprep.mubr.f32.mxu0 0.0
  %2113 = vmatmul.mubr.f32.gmra.mrb[0].mxu0 %v1967
  %v2114 = vpop.f32.mrb[0].mxu0
  %v2115 = vadd.f32 0.0, %v2114
  %v2116 = vpop.f32.mrb[0].mxu0
  %v2117 = vadd.f32 0.0, %v2116
  %2118 = vmatprep.mubr.f32.mxu0 0.0
  %2119 = vmatmul.mubr.f32.gmra.mrb[0].mxu0 %v1968
  %v2120 = vpop.f32.mrb[0].mxu0
  %v2121 = vadd.f32 0.0, %v2120
  %v2122 = vpop.f32.mrb[0].mxu0
  %v2123 = vadd.f32 0.0, %v2122
  %2124 = vdwg.mxu0
  %v2125 = vadd.f32 %v1959, %v2038
  %v2126 = vadd.f32 %v1960, %v2040
  %v2127 = vadd.f32 %v1961, %v2115
  %v2128 = vadd.f32 %v1962, %v2117
  %v2129 = vadd.f32 %v1963, %v2044
  %v2130 = vadd.f32 %v1964, %v2046
  %v2131 = vadd.f32 %v1965, %v2121
  %v2132 = vadd.f32 %v1966, %v2123
  %v2133 = vxor.u32 %v2125, 2147483648
  %v2134 = vxor.u32 %v2129, 2147483648
  %v2135 = vmul.f32 %v2133, 1.442695
  %v2136 = vpow.pop %v2135
  %v2137 = vmul.f32 %v2134, 1.442695
  %v2138 = vpow.pop %v2137
  %v2139 = vadd.f32 %v2136, 1.0
  %v2140 = vadd.f32 %v2138, 1.0
  %v2141 = vrcp.pop %v2139
  %v2142 = vmul.f32 1.0, %v2141
  %v2143 = vrcp.pop %v2140
  %v2144 = vmul.f32 1.0, %v2143
  %v2145 = vxor.u32 %v2126, 2147483648
  %v2146 = vxor.u32 %v2130, 2147483648
  %v2147 = vmul.f32 %v2145, 1.442695
  %v2148 = vpow.pop %v2147
  %v2149 = vmul.f32 %v2146, 1.442695
  %v2150 = vpow.pop %v2149
  %v2151 = vadd.f32 %v2148, 1.0
  %v2152 = vadd.f32 %v2150, 1.0
  %v2153 = vrcp.pop %v2151
  %v2154 = vmul.f32 1.0, %v2153
  %v2155 = vrcp.pop %v2152
  %v2156 = vmul.f32 1.0, %v2155
  %v2157 = vtanh.pop %v2127
  %v2158 = vtanh.pop %v2131
  %v2159 = vxor.u32 %v2128, 2147483648
  %v2160 = vxor.u32 %v2132, 2147483648
  %v2161 = vmul.f32 %v2159, 1.442695
  %v2162 = vpow.pop %v2161
  %v2163 = vmul.f32 %v2160, 1.442695
  %v2164 = vpow.pop %v2163
  %v2165 = vadd.f32 %v2162, 1.0
  %v2166 = vadd.f32 %v2164, 1.0
  %v2167 = vrcp.pop %v2165
  %v2168 = vmul.f32 1.0, %v2167
  %v2169 = vrcp.pop %v2166
  %v2170 = vmul.f32 1.0, %v2169
  %v2171 = vmul.f32 %v2154, %v1969
  %v2172 = vmul.f32 %v2156, %v1970
  %v2173 = vmul.f32 %v2142, %v2157
  %v2174 = vmul.f32 %v2144, %v2158
  %v2175 = vadd.f32 %v2171, %v2173
  %v2176 = vadd.f32 %v2172, %v2174
  %v2177 = vtanh.pop %v2175
  %v2178 = vtanh.pop %v2176
  %v2179 = vmul.f32 %v2168, %v2177
  %v2180 = vmul.f32 %v2170, %v2178
  %2182 = vset.pattern.permute.xlu0 0
  %2183 = vperm.xlu0 %2182, %v1956
  %v2184 = vpop.permute.xlu0 %2183
  %2187 = vset.pattern.permute.xlu0 0
  %2188 = vperm.xlu0 %2187, %v1957
  %v2189 = vpop.permute.xlu0 %2188
  %v2191 = vmul.f32 %v2184, %v2179
  %v2192 = vmul.f32 %v2189, %v2180
  %v2193 = vsub.f32 1.0, %v1956
  %v2194 = vsub.f32 1.0, %v1957
  %2196 = vset.pattern.permute.xlu0 0
  %2197 = vperm.xlu0 %2196, %v2193
  %v2198 = vpop.permute.xlu0 %2197
  %2201 = vset.pattern.permute.xlu0 0
  %2202 = vperm.xlu0 %2201, %v2194
  %v2203 = vpop.permute.xlu0 %2202
  %v2205 = vmul.f32 %v2198, %v1967
  %v2206 = vmul.f32 %v2203, %v1968
  %v2207 = vadd.f32 %v2191, %v2205
  %v2208 = vadd.f32 %v2192, %v2206
  %v2209 = vmul.f32 %v2184, %v2175
  %v2210 = vmul.f32 %v2189, %v2176
  %v2211 = vmul.f32 %v2198, %v1969
  %v2212 = vmul.f32 %v2203, %v1970
  %v2213 = vadd.f32 %v2209, %v2211
  %v2214 = vadd.f32 %v2210, %v2212
  %2215 = vst [vmem:[#allocation2] sm:$0xff] %v2207
  %2216 = vst [vmem:[#allocation2 + $0x8] sm:$0xf] %v2208
  %2217 = vst [vmem:[#allocation3] sm:$0xff] %v2213
  %2218 = vst [vmem:[#allocation3 + $0x8] sm:$0xf] %v2214
  %v2219 = vld [vmem:[#allocation2] sm:$0xff]
  %v2220 = vld [vmem:[#allocation2 + $0x8] sm:$0xf]
  %2221 = vst [vmem:[%s3] sm:$0xff] %v2219
  %2222 = vst [vmem:[%s3 + $0x8] sm:$0xf] %v2220
  // Predicated region
  $region14: #{transducer_b_forward.8} parent=0 // pred_check
    _
  $region15: #{transducer_b_forward.8} parent=0 // pred_check_branch
    %2224 = sbr.rel (0) target = $region17
  $region16: #{transducer_b_forward.8} parent=0 // pred_region
    _
  $region17: #{transducer_b_forward.8} parent=0 // pred_fallthru
    _
  // Predicated region
  $region18: #{transducer_b_forward.8} parent=0 // pred_check
    _
  $region19: #{transducer_b_forward.8} parent=0 // pred_check_branch
    %2226 = sbr.rel (0) target = $region21
  $region20: #{transducer_b_forward.8} parent=0 // pred_region
    _
  $region21: #{transducer_b_forward.8} parent=0 // pred_fallthru
    _

// kernel: transducer_b_forward.11
$region0: #{transducer_b_forward.11}
  #allocation0 [shape = 'u32[]', space=smem, size = 0x4, offset = 0x4, fixed_abs, tag = 'smem constant byte address 0x4 - core index']
  #allocation1 [shape = 'u32[144,128]{1,0:T(1,128)}', space=vmem, size = 0x12000, scoped, tag = 'internal scratch']
  %s0 = inlined_call_operand.vmem [shape: f32[12,256], index: 0, kind: input, shape index: {}]
  %s1 = inlined_call_operand.vmem [shape: f32[256,1024], index: 1, kind: input, shape index: {}]
  %s2 = inlined_call_operand.vmem [shape: f32[1,1024], index: 2, kind: input, shape index: {}]
  %s3 = inlined_call_operand.vmem [shape: f32[12,1024], index: 3, kind: output, shape index: {}]
  %s4 = sld [smem:[#allocation0]]
  $region22: #{transducer_b_forward.11} parent=0
    _
  %s6 = ssub.s32 1, %s4
  %s7 = scalar_select 0, %s6, %s4
  // Predicated region
  $region2: #{transducer_b_forward.11} parent=0 // pred_check
    _
  $region3: #{transducer_b_forward.11} parent=0 // pred_check_branch
    %9 = sbr.rel (0) target = $region5
  $region4: #{transducer_b_forward.11} parent=0 // pred_region
    _
  $region5: #{transducer_b_forward.11} parent=0 // pred_fallthru
    _
  // Predicated region
  $region6: #{transducer_b_forward.11} parent=0 // pred_check
    _
  $region7: #{transducer_b_forward.11} parent=0 // pred_check_branch
    %11 = sbr.rel (0) target = $region9
  $region8: #{transducer_b_forward.11} parent=0 // pred_region
    _
  $region9: #{transducer_b_forward.11} parent=0 // pred_fallthru
    _
  // Predicated region
  $region10: #{transducer_b_forward.11} parent=0 // pred_check
    _
  $region11: #{transducer_b_forward.11} parent=0 // pred_check_branch
    %13 = sbr.rel (0) target = $region13
  $region12: #{transducer_b_forward.11} parent=0 // pred_region
    _
  $region13: #{transducer_b_forward.11} parent=0 // pred_fallthru
    _
  %v14 = vld [vmem:[%s0] sm:$0xff]
  %v15 = vld [vmem:[%s0 + $0x8] sm:$0xff]
  %v16 = vld [vmem:[%s0 + $0x10] sm:$0xf]
  %v17 = vld [vmem:[%s0 + $0x18] sm:$0xf]
  %v18 = vld [vmem:[%s1] sm:$0xff]
  %v19 = vld [vmem:[%s1 + $0x8] sm:$0xff]
  %v20 = vld [vmem:[%s1 + $0x10] sm:$0xff]
  %v21 = vld [vmem:[%s1 + $0x18] sm:$0xff]
  %v22 = vld [vmem:[%s1 + $0x20] sm:$0xff]
  %v23 = vld [vmem:[%s1 + $0x28] sm:$0xff]
  %v24 = vld [vmem:[%s1 + $0x30] sm:$0xff]
  %v25 = vld [vmem:[%s1 + $0x38] sm:$0xff]
  %v26 = vld [vmem:[%s1 + $0x40] sm:$0xff]
  %v27 = vld [vmem:[%s1 + $0x48] sm:$0xff]
  %v28 = vld [vmem:[%s1 + $0x50] sm:$0xff]
  %v29 = vld [vmem:[%s1 + $0x58] sm:$0xff]
  %v30 = vld [vmem:[%s1 + $0x60] sm:$0xff]
  %v31 = vld [vmem:[%s1 + $0x68] sm:$0xff]
  %v32 = vld [vmem:[%s1 + $0x70] sm:$0xff]
  %v33 = vld [vmem:[%s1 + $0x78] sm:$0xff]
  %v34 = vld [vmem:[%s1 + $0x80] sm:$0xff]
  %v35 = vld [vmem:[%s1 + $0x88] sm:$0xff]
  %v36 = vld [vmem:[%s1 + $0x90] sm:$0xff]
  %v37 = vld [vmem:[%s1 + $0x98] sm:$0xff]
  %v38 = vld [vmem:[%s1 + $0xa0] sm:$0xff]
  %v39 = vld [vmem:[%s1 + $0xa8] sm:$0xff]
  %v40 = vld [vmem:[%s1 + $0xb0] sm:$0xff]
  %v41 = vld [vmem:[%s1 + $0xb8] sm:$0xff]
  %v42 = vld [vmem:[%s1 + $0xc0] sm:$0xff]
  %v43 = vld [vmem:[%s1 + $0xc8] sm:$0xff]
  %v44 = vld [vmem:[%s1 + $0xd0] sm:$0xff]
  %v45 = vld [vmem:[%s1 + $0xd8] sm:$0xff]
  %v46 = vld [vmem:[%s1 + $0xe0] sm:$0xff]
  %v47 = vld [vmem:[%s1 + $0xe8] sm:$0xff]
  %v48 = vld [vmem:[%s1 + $0xf0] sm:$0xff]
  %v49 = vld [vmem:[%s1 + $0xf8] sm:$0xff]
  %v50 = vld [vmem:[%s1 + $0x100] sm:$0xff]
  %v51 = vld [vmem:[%s1 + $0x108] sm:$0xff]
  %v52 = vld [vmem:[%s1 + $0x110] sm:$0xff]
  %v53 = vld [vmem:[%s1 + $0x118] sm:$0xff]
  %v54 = vld [vmem:[%s1 + $0x120] sm:$0xff]
  %v55 = vld [vmem:[%s1 + $0x128] sm:$0xff]
  %v56 = vld [vmem:[%s1 + $0x130] sm:$0xff]
  %v57 = vld [vmem:[%s1 + $0x138] sm:$0xff]
  %v58 = vld [vmem:[%s1 + $0x140] sm:$0xff]
  %v59 = vld [vmem:[%s1 + $0x148] sm:$0xff]
  %v60 = vld [vmem:[%s1 + $0x150] sm:$0xff]
  %v61 = vld [vmem:[%s1 + $0x158] sm:$0xff]
  %v62 = vld [vmem:[%s1 + $0x160] sm:$0xff]
  %v63 = vld [vmem:[%s1 + $0x168] sm:$0xff]
  %v64 = vld [vmem:[%s1 + $0x170] sm:$0xff]
  %v65 = vld [vmem:[%s1 + $0x178] sm:$0xff]
  %v66 = vld [vmem:[%s1 + $0x180] sm:$0xff]
  %v67 = vld [vmem:[%s1 + $0x188] sm:$0xff]
  %v68 = vld [vmem:[%s1 + $0x190] sm:$0xff]
  %v69 = vld [vmem:[%s1 + $0x198] sm:$0xff]
  %v70 = vld [vmem:[%s1 + $0x1a0] sm:$0xff]
  %v71 = vld [vmem:[%s1 + $0x1a8] sm:$0xff]
  %v72 = vld [vmem:[%s1 + $0x1b0] sm:$0xff]
  %v73 = vld [vmem:[%s1 + $0x1b8] sm:$0xff]
  %v74 = vld [vmem:[%s1 + $0x1c0] sm:$0xff]
  %v75 = vld [vmem:[%s1 + $0x1c8] sm:$0xff]
  %v76 = vld [vmem:[%s1 + $0x1d0] sm:$0xff]
  %v77 = vld [vmem:[%s1 + $0x1d8] sm:$0xff]
  %v78 = vld [vmem:[%s1 + $0x1e0] sm:$0xff]
  %v79 = vld [vmem:[%s1 + $0x1e8] sm:$0xff]
  %v80 = vld [vmem:[%s1 + $0x1f0] sm:$0xff]
  %v81 = vld [vmem:[%s1 + $0x1f8] sm:$0xff]
  %v82 = vld [vmem:[%s1 + $0x200] sm:$0xff]
  %v83 = vld [vmem:[%s1 + $0x208] sm:$0xff]
  %v84 = vld [vmem:[%s1 + $0x210] sm:$0xff]
  %v85 = vld [vmem:[%s1 + $0x218] sm:$0xff]
  %v86 = vld [vmem:[%s1 + $0x220] sm:$0xff]
  %v87 = vld [vmem:[%s1 + $0x228] sm:$0xff]
  %v88 = vld [vmem:[%s1 + $0x230] sm:$0xff]
  %v89 = vld [vmem:[%s1 + $0x238] sm:$0xff]
  %v90 = vld [vmem:[%s1 + $0x240] sm:$0xff]
  %v91 = vld [vmem:[%s1 + $0x248] sm:$0xff]
  %v92 = vld [vmem:[%s1 + $0x250] sm:$0xff]
  %v93 = vld [vmem:[%s1 + $0x258] sm:$0xff]
  %v94 = vld [vmem:[%s1 + $0x260] sm:$0xff]
  %v95 = vld [vmem:[%s1 + $0x268] sm:$0xff]
  %v96 = vld [vmem:[%s1 + $0x270] sm:$0xff]
  %v97 = vld [vmem:[%s1 + $0x278] sm:$0xff]
  %v98 = vld [vmem:[%s1 + $0x280] sm:$0xff]
  %v99 = vld [vmem:[%s1 + $0x288] sm:$0xff]
  %v100 = vld [vmem:[%s1 + $0x290] sm:$0xff]
  %v101 = vld [vmem:[%s1 + $0x298] sm:$0xff]
  %v102 = vld [vmem:[%s1 + $0x2a0] sm:$0xff]
  %v103 = vld [vmem:[%s1 + $0x2a8] sm:$0xff]
  %v104 = vld [vmem:[%s1 + $0x2b0] sm:$0xff]
  %v105 = vld [vmem:[%s1 + $0x2b8] sm:$0xff]
  %v106 = vld [vmem:[%s1 + $0x2c0] sm:$0xff]
  %v107 = vld [vmem:[%s1 + $0x2c8] sm:$0xff]
  %v108 = vld [vmem:[%s1 + $0x2d0] sm:$0xff]
  %v109 = vld [vmem:[%s1 + $0x2d8] sm:$0xff]
  %v110 = vld [vmem:[%s1 + $0x2e0] sm:$0xff]
  %v111 = vld [vmem:[%s1 + $0x2e8] sm:$0xff]
  %v112 = vld [vmem:[%s1 + $0x2f0] sm:$0xff]
  %v113 = vld [vmem:[%s1 + $0x2f8] sm:$0xff]
  %v114 = vld [vmem:[%s1 + $0x300] sm:$0xff]
  %v115 = vld [vmem:[%s1 + $0x308] sm:$0xff]
  %v116 = vld [vmem:[%s1 + $0x310] sm:$0xff]
  %v117 = vld [vmem:[%s1 + $0x318] sm:$0xff]
  %v118 = vld [vmem:[%s1 + $0x320] sm:$0xff]
  %v119 = vld [vmem:[%s1 + $0x328] sm:$0xff]
  %v120 = vld [vmem:[%s1 + $0x330] sm:$0xff]
  %v121 = vld [vmem:[%s1 + $0x338] sm:$0xff]
  %v122 = vld [vmem:[%s1 + $0x340] sm:$0xff]
  %v123 = vld [vmem:[%s1 + $0x348] sm:$0xff]
  %v124 = vld [vmem:[%s1 + $0x350] sm:$0xff]
  %v125 = vld [vmem:[%s1 + $0x358] sm:$0xff]
  %v126 = vld [vmem:[%s1 + $0x360] sm:$0xff]
  %v127 = vld [vmem:[%s1 + $0x368] sm:$0xff]
  %v128 = vld [vmem:[%s1 + $0x370] sm:$0xff]
  %v129 = vld [vmem:[%s1 + $0x378] sm:$0xff]
  %v130 = vld [vmem:[%s1 + $0x380] sm:$0xff]
  %v131 = vld [vmem:[%s1 + $0x388] sm:$0xff]
  %v132 = vld [vmem:[%s1 + $0x390] sm:$0xff]
  %v133 = vld [vmem:[%s1 + $0x398] sm:$0xff]
  %v134 = vld [vmem:[%s1 + $0x3a0] sm:$0xff]
  %v135 = vld [vmem:[%s1 + $0x3a8] sm:$0xff]
  %v136 = vld [vmem:[%s1 + $0x3b0] sm:$0xff]
  %v137 = vld [vmem:[%s1 + $0x3b8] sm:$0xff]
  %v138 = vld [vmem:[%s1 + $0x3c0] sm:$0xff]
  %v139 = vld [vmem:[%s1 + $0x3c8] sm:$0xff]
  %v140 = vld [vmem:[%s1 + $0x3d0] sm:$0xff]
  %v141 = vld [vmem:[%s1 + $0x3d8] sm:$0xff]
  %v142 = vld [vmem:[%s1 + $0x3e0] sm:$0xff]
  %v143 = vld [vmem:[%s1 + $0x3e8] sm:$0xff]
  %v144 = vld [vmem:[%s1 + $0x3f0] sm:$0xff]
  %v145 = vld [vmem:[%s1 + $0x3f8] sm:$0xff]
  %v146 = vld [vmem:[%s1 + $0x400] sm:$0xff]
  %v147 = vld [vmem:[%s1 + $0x408] sm:$0xff]
  %v148 = vld [vmem:[%s1 + $0x410] sm:$0xff]
  %v149 = vld [vmem:[%s1 + $0x418] sm:$0xff]
  %v150 = vld [vmem:[%s1 + $0x420] sm:$0xff]
  %v151 = vld [vmem:[%s1 + $0x428] sm:$0xff]
  %v152 = vld [vmem:[%s1 + $0x430] sm:$0xff]
  %v153 = vld [vmem:[%s1 + $0x438] sm:$0xff]
  %v154 = vld [vmem:[%s1 + $0x440] sm:$0xff]
  %v155 = vld [vmem:[%s1 + $0x448] sm:$0xff]
  %v156 = vld [vmem:[%s1 + $0x450] sm:$0xff]
  %v157 = vld [vmem:[%s1 + $0x458] sm:$0xff]
  %v158 = vld [vmem:[%s1 + $0x460] sm:$0xff]
  %v159 = vld [vmem:[%s1 + $0x468] sm:$0xff]
  %v160 = vld [vmem:[%s1 + $0x470] sm:$0xff]
  %v161 = vld [vmem:[%s1 + $0x478] sm:$0xff]
  %v162 = vld [vmem:[%s1 + $0x480] sm:$0xff]
  %v163 = vld [vmem:[%s1 + $0x488] sm:$0xff]
  %v164 = vld [vmem:[%s1 + $0x490] sm:$0xff]
  %v165 = vld [vmem:[%s1 + $0x498] sm:$0xff]
  %v166 = vld [vmem:[%s1 + $0x4a0] sm:$0xff]
  %v167 = vld [vmem:[%s1 + $0x4a8] sm:$0xff]
  %v168 = vld [vmem:[%s1 + $0x4b0] sm:$0xff]
  %v169 = vld [vmem:[%s1 + $0x4b8] sm:$0xff]
  %v170 = vld [vmem:[%s1 + $0x4c0] sm:$0xff]
  %v171 = vld [vmem:[%s1 + $0x4c8] sm:$0xff]
  %v172 = vld [vmem:[%s1 + $0x4d0] sm:$0xff]
  %v173 = vld [vmem:[%s1 + $0x4d8] sm:$0xff]
  %v174 = vld [vmem:[%s1 + $0x4e0] sm:$0xff]
  %v175 = vld [vmem:[%s1 + $0x4e8] sm:$0xff]
  %v176 = vld [vmem:[%s1 + $0x4f0] sm:$0xff]
  %v177 = vld [vmem:[%s1 + $0x4f8] sm:$0xff]
  %v178 = vld [vmem:[%s1 + $0x500] sm:$0xff]
  %v179 = vld [vmem:[%s1 + $0x508] sm:$0xff]
  %v180 = vld [vmem:[%s1 + $0x510] sm:$0xff]
  %v181 = vld [vmem:[%s1 + $0x518] sm:$0xff]
  %v182 = vld [vmem:[%s1 + $0x520] sm:$0xff]
  %v183 = vld [vmem:[%s1 + $0x528] sm:$0xff]
  %v184 = vld [vmem:[%s1 + $0x530] sm:$0xff]
  %v185 = vld [vmem:[%s1 + $0x538] sm:$0xff]
  %v186 = vld [vmem:[%s1 + $0x540] sm:$0xff]
  %v187 = vld [vmem:[%s1 + $0x548] sm:$0xff]
  %v188 = vld [vmem:[%s1 + $0x550] sm:$0xff]
  %v189 = vld [vmem:[%s1 + $0x558] sm:$0xff]
  %v190 = vld [vmem:[%s1 + $0x560] sm:$0xff]
  %v191 = vld [vmem:[%s1 + $0x568] sm:$0xff]
  %v192 = vld [vmem:[%s1 + $0x570] sm:$0xff]
  %v193 = vld [vmem:[%s1 + $0x578] sm:$0xff]
  %v194 = vld [vmem:[%s1 + $0x580] sm:$0xff]
  %v195 = vld [vmem:[%s1 + $0x588] sm:$0xff]
  %v196 = vld [vmem:[%s1 + $0x590] sm:$0xff]
  %v197 = vld [vmem:[%s1 + $0x598] sm:$0xff]
  %v198 = vld [vmem:[%s1 + $0x5a0] sm:$0xff]
  %v199 = vld [vmem:[%s1 + $0x5a8] sm:$0xff]
  %v200 = vld [vmem:[%s1 + $0x5b0] sm:$0xff]
  %v201 = vld [vmem:[%s1 + $0x5b8] sm:$0xff]
  %v202 = vld [vmem:[%s1 + $0x5c0] sm:$0xff]
  %v203 = vld [vmem:[%s1 + $0x5c8] sm:$0xff]
  %v204 = vld [vmem:[%s1 + $0x5d0] sm:$0xff]
  %v205 = vld [vmem:[%s1 + $0x5d8] sm:$0xff]
  %v206 = vld [vmem:[%s1 + $0x5e0] sm:$0xff]
  %v207 = vld [vmem:[%s1 + $0x5e8] sm:$0xff]
  %v208 = vld [vmem:[%s1 + $0x5f0] sm:$0xff]
  %v209 = vld [vmem:[%s1 + $0x5f8] sm:$0xff]
  %v210 = vld [vmem:[%s1 + $0x600] sm:$0xff]
  %v211 = vld [vmem:[%s1 + $0x608] sm:$0xff]
  %v212 = vld [vmem:[%s1 + $0x610] sm:$0xff]
  %v213 = vld [vmem:[%s1 + $0x618] sm:$0xff]
  %v214 = vld [vmem:[%s1 + $0x620] sm:$0xff]
  %v215 = vld [vmem:[%s1 + $0x628] sm:$0xff]
  %v216 = vld [vmem:[%s1 + $0x630] sm:$0xff]
  %v217 = vld [vmem:[%s1 + $0x638] sm:$0xff]
  %v218 = vld [vmem:[%s1 + $0x640] sm:$0xff]
  %v219 = vld [vmem:[%s1 + $0x648] sm:$0xff]
  %v220 = vld [vmem:[%s1 + $0x650] sm:$0xff]
  %v221 = vld [vmem:[%s1 + $0x658] sm:$0xff]
  %v222 = vld [vmem:[%s1 + $0x660] sm:$0xff]
  %v223 = vld [vmem:[%s1 + $0x668] sm:$0xff]
  %v224 = vld [vmem:[%s1 + $0x670] sm:$0xff]
  %v225 = vld [vmem:[%s1 + $0x678] sm:$0xff]
  %v226 = vld [vmem:[%s1 + $0x680] sm:$0xff]
  %v227 = vld [vmem:[%s1 + $0x688] sm:$0xff]
  %v228 = vld [vmem:[%s1 + $0x690] sm:$0xff]
  %v229 = vld [vmem:[%s1 + $0x698] sm:$0xff]
  %v230 = vld [vmem:[%s1 + $0x6a0] sm:$0xff]
  %v231 = vld [vmem:[%s1 + $0x6a8] sm:$0xff]
  %v232 = vld [vmem:[%s1 + $0x6b0] sm:$0xff]
  %v233 = vld [vmem:[%s1 + $0x6b8] sm:$0xff]
  %v234 = vld [vmem:[%s1 + $0x6c0] sm:$0xff]
  %v235 = vld [vmem:[%s1 + $0x6c8] sm:$0xff]
  %v236 = vld [vmem:[%s1 + $0x6d0] sm:$0xff]
  %v237 = vld [vmem:[%s1 + $0x6d8] sm:$0xff]
  %v238 = vld [vmem:[%s1 + $0x6e0] sm:$0xff]
  %v239 = vld [vmem:[%s1 + $0x6e8] sm:$0xff]
  %v240 = vld [vmem:[%s1 + $0x6f0] sm:$0xff]
  %v241 = vld [vmem:[%s1 + $0x6f8] sm:$0xff]
  %v242 = vld [vmem:[%s1 + $0x700] sm:$0xff]
  %v243 = vld [vmem:[%s1 + $0x708] sm:$0xff]
  %v244 = vld [vmem:[%s1 + $0x710] sm:$0xff]
  %v245 = vld [vmem:[%s1 + $0x718] sm:$0xff]
  %v246 = vld [vmem:[%s1 + $0x720] sm:$0xff]
  %v247 = vld [vmem:[%s1 + $0x728] sm:$0xff]
  %v248 = vld [vmem:[%s1 + $0x730] sm:$0xff]
  %v249 = vld [vmem:[%s1 + $0x738] sm:$0xff]
  %v250 = vld [vmem:[%s1 + $0x740] sm:$0xff]
  %v251 = vld [vmem:[%s1 + $0x748] sm:$0xff]
  %v252 = vld [vmem:[%s1 + $0x750] sm:$0xff]
  %v253 = vld [vmem:[%s1 + $0x758] sm:$0xff]
  %v254 = vld [vmem:[%s1 + $0x760] sm:$0xff]
  %v255 = vld [vmem:[%s1 + $0x768] sm:$0xff]
  %v256 = vld [vmem:[%s1 + $0x770] sm:$0xff]
  %v257 = vld [vmem:[%s1 + $0x778] sm:$0xff]
  %v258 = vld [vmem:[%s1 + $0x780] sm:$0xff]
  %v259 = vld [vmem:[%s1 + $0x788] sm:$0xff]
  %v260 = vld [vmem:[%s1 + $0x790] sm:$0xff]
  %v261 = vld [vmem:[%s1 + $0x798] sm:$0xff]
  %v262 = vld [vmem:[%s1 + $0x7a0] sm:$0xff]
  %v263 = vld [vmem:[%s1 + $0x7a8] sm:$0xff]
  %v264 = vld [vmem:[%s1 + $0x7b0] sm:$0xff]
  %v265 = vld [vmem:[%s1 + $0x7b8] sm:$0xff]
  %v266 = vld [vmem:[%s1 + $0x7c0] sm:$0xff]
  %v267 = vld [vmem:[%s1 + $0x7c8] sm:$0xff]
  %v268 = vld [vmem:[%s1 + $0x7d0] sm:$0xff]
  %v269 = vld [vmem:[%s1 + $0x7d8] sm:$0xff]
  %v270 = vld [vmem:[%s1 + $0x7e0] sm:$0xff]
  %v271 = vld [vmem:[%s1 + $0x7e8] sm:$0xff]
  %v272 = vld [vmem:[%s1 + $0x7f0] sm:$0xff]
  %v273 = vld [vmem:[%s1 + $0x7f8] sm:$0xff]
  %v274 = vld [vmem:[%s2] sm:$0xff]
  %v276 = vlaneseq
  %v277 = vshrl.u32 %v276, 7
  %v278 = vsub.s32 0, %v277
  %v279 = vrot.slane %v274, %v278
  %v280 = vlaneseq
  %v281 = vshrl.u32 %v280, 7
  %v282 = vsub.s32 1, %v281
  %v283 = vrot.slane %v274, %v282
  %v284 = vlaneseq
  %v285 = vshrl.u32 %v284, 7
  %v286 = vsub.s32 2, %v285
  %v287 = vrot.slane %v274, %v286
  %v288 = vlaneseq
  %v289 = vshrl.u32 %v288, 7
  %v290 = vsub.s32 3, %v289
  %v291 = vrot.slane %v274, %v290
  %v292 = vlaneseq
  %v293 = vshrl.u32 %v292, 7
  %v294 = vsub.s32 4, %v293
  %v295 = vrot.slane %v274, %v294
  %v296 = vlaneseq
  %v297 = vshrl.u32 %v296, 7
  %v298 = vsub.s32 5, %v297
  %v299 = vrot.slane %v274, %v298
  %v300 = vlaneseq
  %v301 = vshrl.u32 %v300, 7
  %v302 = vsub.s32 6, %v301
  %v303 = vrot.slane %v274, %v302
  %v304 = vlaneseq
  %v305 = vshrl.u32 %v304, 7
  %v306 = vsub.s32 7, %v305
  %v307 = vrot.slane %v274, %v306
  %316 = vmatprep.subr.mxu0 %v19
  %317 = vmatpush1.msra.mxu0 %v18
  %318 = vmatprep.subr.mxu0 %v27
  %319 = vmatpush1.msra.mxu0 %v26
  %320 = vmatprep.subr.mxu0 %v35
  %321 = vmatpush1.msra.mxu0 %v34
  %322 = vmatprep.subr.mxu0 %v43
  %323 = vmatpush1.msra.mxu0 %v42
  %324 = vmatprep.subr.mxu0 %v51
  %325 = vmatpush1.msra.mxu0 %v50
  %326 = vmatprep.subr.mxu0 %v59
  %327 = vmatpush1.msra.mxu0 %v58
  %328 = vmatprep.subr.mxu0 %v67
  %329 = vmatpush1.msra.mxu0 %v66
  %330 = vmatprep.subr.mxu0 %v75
  %331 = vmatpush1.msra.mxu0 %v74
  %332 = vmatprep.subr.mxu0 %v83
  %333 = vmatpush1.msra.mxu0 %v82
  %334 = vmatprep.subr.mxu0 %v91
  %335 = vmatpush1.msra.mxu0 %v90
  %336 = vmatprep.subr.mxu0 %v99
  %337 = vmatpush1.msra.mxu0 %v98
  %338 = vmatprep.subr.mxu0 %v107
  %339 = vmatpush1.msra.mxu0 %v106
  %340 = vmatprep.subr.mxu0 %v115
  %341 = vmatpush1.msra.mxu0 %v114
  %342 = vmatprep.subr.mxu0 %v123
  %343 = vmatpush1.msra.mxu0 %v122
  %344 = vmatprep.subr.mxu0 %v131
  %345 = vmatpush1.msra.mxu0 %v130
  %346 = vmatprep.subr.mxu0 %v139
  %347 = vmatpush1.msra.mxu0 %v138
  %348 = vmatprep.subr.mxu0 %v147
  %349 = vmatpush1.msra.mxu0 %v146
  %350 = vmatprep.subr.mxu0 %v155
  %351 = vmatpush1.msra.mxu0 %v154
  %352 = vmatprep.subr.mxu0 %v163
  %353 = vmatpush1.msra.mxu0 %v162
  %354 = vmatprep.subr.mxu0 %v171
  %355 = vmatpush1.msra.mxu0 %v170
  %356 = vmatprep.subr.mxu0 %v179
  %357 = vmatpush1.msra.mxu0 %v178
  %358 = vmatprep.subr.mxu0 %v187
  %359 = vmatpush1.msra.mxu0 %v186
  %360 = vmatprep.subr.mxu0 %v195
  %361 = vmatpush1.msra.mxu0 %v194
  %362 = vmatprep.subr.mxu0 %v203
  %363 = vmatpush1.msra.mxu0 %v202
  %364 = vmatprep.subr.mxu0 %v211
  %365 = vmatpush1.msra.mxu0 %v210
  %366 = vmatprep.subr.mxu0 %v219
  %367 = vmatpush1.msra.mxu0 %v218
  %368 = vmatprep.subr.mxu0 %v227
  %369 = vmatpush1.msra.mxu0 %v226
  %370 = vmatprep.subr.mxu0 %v235
  %371 = vmatpush1.msra.mxu0 %v234
  %372 = vmatprep.subr.mxu0 %v243
  %373 = vmatpush1.msra.mxu0 %v242
  %374 = vmatprep.subr.mxu0 %v251
  %375 = vmatpush1.msra.mxu0 %v250
  %376 = vmatprep.subr.mxu0 %v259
  %377 = vmatpush1.msra.mxu0 %v258
  %378 = vmatprep.subr.mxu0 %v267
  %379 = vmatpush1.msra.mxu0 %v266
  %380 = vmatprep.mubr.f32.mxu0 %v15
  %381 = vmatmul.mubr.f32.gmra.mrb[0].mxu0 %v14
  %v382 = vpop.f32.mrb[0].mxu0
  %v383 = vadd.f32 %v279, %v382
  %v384 = vpop.f32.mrb[0].mxu0
  %v385 = vadd.f32 %v283, %v384
  %386 = vmatprep.mubr.f32.mxu0 %v17
  %387 = vmatmul.mubr.f32.gmra.mrb[0].mxu0 %v16
  %v388 = vpop.f32.mrb[0].mxu0
  %v389 = vadd.f32 %v279, %v388
  %v390 = vpop.f32.mrb[0].mxu0
  %v391 = vadd.f32 %v283, %v390
  %392 = vdwg.mxu0
  %393 = vmatprep.subr.mxu0 %v21
  %394 = vmatpush1.msra.mxu0 %v20
  %395 = vmatprep.subr.mxu0 %v29
  %396 = vmatpush1.msra.mxu0 %v28
  %397 = vmatprep.subr.mxu0 %v37
  %398 = vmatpush1.msra.mxu0 %v36
  %399 = vmatprep.subr.mxu0 %v45
  %400 = vmatpush1.msra.mxu0 %v44
  %401 = vmatprep.subr.mxu0 %v53
  %402 = vmatpush1.msra.mxu0 %v52
  %403 = vmatprep.subr.mxu0 %v61
  %404 = vmatpush1.msra.mxu0 %v60
  %405 = vmatprep.subr.mxu0 %v69
  %406 = vmatpush1.msra.mxu0 %v68
  %407 = vmatprep.subr.mxu0 %v77
  %408 = vmatpush1.msra.mxu0 %v76
  %409 = vmatprep.subr.mxu0 %v85
  %410 = vmatpush1.msra.mxu0 %v84
  %411 = vmatprep.subr.mxu0 %v93
  %412 = vmatpush1.msra.mxu0 %v92
  %413 = vmatprep.subr.mxu0 %v101
  %414 = vmatpush1.msra.mxu0 %v100
  %415 = vmatprep.subr.mxu0 %v109
  %416 = vmatpush1.msra.mxu0 %v108
  %417 = vmatprep.subr.mxu0 %v117
  %418 = vmatpush1.msra.mxu0 %v116
  %419 = vmatprep.subr.mxu0 %v125
  %420 = vmatpush1.msra.mxu0 %v124
  %421 = vmatprep.subr.mxu0 %v133
  %422 = vmatpush1.msra.mxu0 %v132
  %423 = vmatprep.subr.mxu0 %v141
  %424 = vmatpush1.msra.mxu0 %v140
  %425 = vmatprep.subr.mxu0 %v149
  %426 = vmatpush1.msra.mxu0 %v148
  %427 = vmatprep.subr.mxu0 %v157
  %428 = vmatpush1.msra.mxu0 %v156
  %429 = vmatprep.subr.mxu0 %v165
  %430 = vmatpush1.msra.mxu0 %v164
  %431 = vmatprep.subr.mxu0 %v173
  %432 = vmatpush1.msra.mxu0 %v172
  %433 = vmatprep.subr.mxu0 %v181
  %434 = vmatpush1.msra.mxu0 %v180
  %435 = vmatprep.subr.mxu0 %v189
  %436 = vmatpush1.msra.mxu0 %v188
  %437 = vmatprep.subr.mxu0 %v197
  %438 = vmatpush1.msra.mxu0 %v196
  %439 = vmatprep.subr.mxu0 %v205
  %440 = vmatpush1.msra.mxu0 %v204
  %441 = vmatprep.subr.mxu0 %v213
  %442 = vmatpush1.msra.mxu0 %v212
  %443 = vmatprep.subr.mxu0 %v221
  %444 = vmatpush1.msra.mxu0 %v220
  %445 = vmatprep.subr.mxu0 %v229
  %446 = vmatpush1.msra.mxu0 %v228
  %447 = vmatprep.subr.mxu0 %v237
  %448 = vmatpush1.msra.mxu0 %v236
  %449 = vmatprep.subr.mxu0 %v245
  %450 = vmatpush1.msra.mxu0 %v244
  %451 = vmatprep.subr.mxu0 %v253
  %452 = vmatpush1.msra.mxu0 %v252
  %453 = vmatprep.subr.mxu0 %v261
  %454 = vmatpush1.msra.mxu0 %v260
  %455 = vmatprep.subr.mxu0 %v269
  %456 = vmatpush1.msra.mxu0 %v268
  %457 = vmatprep.mubr.f32.mxu0 %v15
  %458 = vmatmul.mubr.f32.gmra.mrb[0].mxu0 %v14
  %v459 = vpop.f32.mrb[0].mxu0
  %v460 = vadd.f32 %v287, %v459
  %v461 = vpop.f32.mrb[0].mxu0
  %v462 = vadd.f32 %v291, %v461
  %463 = vmatprep.mubr.f32.mxu0 %v17
  %464 = vmatmul.mubr.f32.gmra.mrb[0].mxu0 %v16
  %v465 = vpop.f32.mrb[0].mxu0
  %v466 = vadd.f32 %v287, %v465
  %v467 = vpop.f32.mrb[0].mxu0
  %v468 = vadd.f32 %v291, %v467
  %469 = vdwg.mxu0
  %470 = vmatprep.subr.mxu0 %v23
  %471 = vmatpush1.msra.mxu0 %v22
  %472 = vmatprep.subr.mxu0 %v31
  %473 = vmatpush1.msra.mxu0 %v30
  %474 = vmatprep.subr.mxu0 %v39
  %475 = vmatpush1.msra.mxu0 %v38
  %476 = vmatprep.subr.mxu0 %v47
  %477 = vmatpush1.msra.mxu0 %v46
  %478 = vmatprep.subr.mxu0 %v55
  %479 = vmatpush1.msra.mxu0 %v54
  %480 = vmatprep.subr.mxu0 %v63
  %481 = vmatpush1.msra.mxu0 %v62
  %482 = vmatprep.subr.mxu0 %v71
  %483 = vmatpush1.msra.mxu0 %v70
  %484 = vmatprep.subr.mxu0 %v79
  %485 = vmatpush1.msra.mxu0 %v78
  %486 = vmatprep.subr.mxu0 %v87
  %487 = vmatpush1.msra.mxu0 %v86
  %488 = vmatprep.subr.mxu0 %v95
  %489 = vmatpush1.msra.mxu0 %v94
  %490 = vmatprep.subr.mxu0 %v103
  %491 = vmatpush1.msra.mxu0 %v102
  %492 = vmatprep.subr.mxu0 %v111
  %493 = vmatpush1.msra.mxu0 %v110
  %494 = vmatprep.subr.mxu0 %v119
  %495 = vmatpush1.msra.mxu0 %v118
  %496 = vmatprep.subr.mxu0 %v127
  %497 = vmatpush1.msra.mxu0 %v126
  %498 = vmatprep.subr.mxu0 %v135
  %499 = vmatpush1.msra.mxu0 %v134
  %500 = vmatprep.subr.mxu0 %v143
  %501 = vmatpush1.msra.mxu0 %v142
  %502 = vmatprep.subr.mxu0 %v151
  %503 = vmatpush1.msra.mxu0 %v150
  %504 = vmatprep.subr.mxu0 %v159
  %505 = vmatpush1.msra.mxu0 %v158
  %506 = vmatprep.subr.mxu0 %v167
  %507 = vmatpush1.msra.mxu0 %v166
  %508 = vmatprep.subr.mxu0 %v175
  %509 = vmatpush1.msra.mxu0 %v174
  %510 = vmatprep.subr.mxu0 %v183
  %511 = vmatpush1.msra.mxu0 %v182
  %512 = vmatprep.subr.mxu0 %v191
  %513 = vmatpush1.msra.mxu0 %v190
  %514 = vmatprep.subr.mxu0 %v199
  %515 = vmatpush1.msra.mxu0 %v198
  %516 = vmatprep.subr.mxu0 %v207
  %517 = vmatpush1.msra.mxu0 %v206
  %518 = vmatprep.subr.mxu0 %v215
  %519 = vmatpush1.msra.mxu0 %v214
  %520 = vmatprep.subr.mxu0 %v223
  %521 = vmatpush1.msra.mxu0 %v222
  %522 = vmatprep.subr.mxu0 %v231
  %523 = vmatpush1.msra.mxu0 %v230
  %524 = vmatprep.subr.mxu0 %v239
  %525 = vmatpush1.msra.mxu0 %v238
  %526 = vmatprep.subr.mxu0 %v247
  %527 = vmatpush1.msra.mxu0 %v246
  %528 = vmatprep.subr.mxu0 %v255
  %529 = vmatpush1.msra.mxu0 %v254
  %530 = vmatprep.subr.mxu0 %v263
  %531 = vmatpush1.msra.mxu0 %v262
  %532 = vmatprep.subr.mxu0 %v271
  %533 = vmatpush1.msra.mxu0 %v270
  %534 = vmatprep.mubr.f32.mxu0 %v15
  %535 = vmatmul.mubr.f32.gmra.mrb[0].mxu0 %v14
  %v536 = vpop.f32.mrb[0].mxu0
  %v537 = vadd.f32 %v295, %v536
  %v538 = vpop.f32.mrb[0].mxu0
  %v539 = vadd.f32 %v299, %v538
  %540 = vmatprep.mubr.f32.mxu0 %v17
  %541 = vmatmul.mubr.f32.gmra.mrb[0].mxu0 %v16
  %v542 = vpop.f32.mrb[0].mxu0
  %v543 = vadd.f32 %v295, %v542
  %v544 = vpop.f32.mrb[0].mxu0
  %v545 = vadd.f32 %v299, %v544
  %546 = vdwg.mxu0
  %547 = vmatprep.subr.mxu0 %v25
  %548 = vmatpush1.msra.mxu0 %v24
  %549 = vmatprep.subr.mxu0 %v33
  %550 = vmatpush1.msra.mxu0 %v32
  %551 = vmatprep.subr.mxu0 %v41
  %552 = vmatpush1.msra.mxu0 %v40
  %553 = vmatprep.subr.mxu0 %v49
  %554 = vmatpush1.msra.mxu0 %v48
  %555 = vmatprep.subr.mxu0 %v57
  %556 = vmatpush1.msra.mxu0 %v56
  %557 = vmatprep.subr.mxu0 %v65
  %558 = vmatpush1.msra.mxu0 %v64
  %559 = vmatprep.subr.mxu0 %v73
  %560 = vmatpush1.msra.mxu0 %v72
  %561 = vmatprep.subr.mxu0 %v81
  %562 = vmatpush1.msra.mxu0 %v80
  %563 = vmatprep.subr.mxu0 %v89
  %564 = vmatpush1.msra.mxu0 %v88
  %565 = vmatprep.subr.mxu0 %v97
  %566 = vmatpush1.msra.mxu0 %v96
  %567 = vmatprep.subr.mxu0 %v105
  %568 = vmatpush1.msra.mxu0 %v104
  %569 = vmatprep.subr.mxu0 %v113
  %570 = vmatpush1.msra.mxu0 %v112
  %571 = vmatprep.subr.mxu0 %v121
  %572 = vmatpush1.msra.mxu0 %v120
  %573 = vmatprep.subr.mxu0 %v129
  %574 = vmatpush1.msra.mxu0 %v128
  %575 = vmatprep.subr.mxu0 %v137
  %576 = vmatpush1.msra.mxu0 %v136
  %577 = vmatprep.subr.mxu0 %v145
  %578 = vmatpush1.msra.mxu0 %v144
  %579 = vmatprep.subr.mxu0 %v153
  %580 = vmatpush1.msra.mxu0 %v152
  %581 = vmatprep.subr.mxu0 %v161
  %582 = vmatpush1.msra.mxu0 %v160
  %583 = vmatprep.subr.mxu0 %v169
  %584 = vmatpush1.msra.mxu0 %v168
  %585 = vmatprep.subr.mxu0 %v177
  %586 = vmatpush1.msra.mxu0 %v176
  %587 = vmatprep.subr.mxu0 %v185
  %588 = vmatpush1.msra.mxu0 %v184
  %589 = vmatprep.subr.mxu0 %v193
  %590 = vmatpush1.msra.mxu0 %v192
  %591 = vmatprep.subr.mxu0 %v201
  %592 = vmatpush1.msra.mxu0 %v200
  %593 = vmatprep.subr.mxu0 %v209
  %594 = vmatpush1.msra.mxu0 %v208
  %595 = vmatprep.subr.mxu0 %v217
  %596 = vmatpush1.msra.mxu0 %v216
  %597 = vmatprep.subr.mxu0 %v225
  %598 = vmatpush1.msra.mxu0 %v224
  %599 = vmatprep.subr.mxu0 %v233
  %600 = vmatpush1.msra.mxu0 %v232
  %601 = vmatprep.subr.mxu0 %v241
  %602 = vmatpush1.msra.mxu0 %v240
  %603 = vmatprep.subr.mxu0 %v249
  %604 = vmatpush1.msra.mxu0 %v248
  %605 = vmatprep.subr.mxu0 %v257
  %606 = vmatpush1.msra.mxu0 %v256
  %607 = vmatprep.subr.mxu0 %v265
  %608 = vmatpush1.msra.mxu0 %v264
  %609 = vmatprep.subr.mxu0 %v273
  %610 = vmatpush1.msra.mxu0 %v272
  %611 = vmatprep.mubr.f32.mxu0 %v15
  %612 = vmatmul.mubr.f32.gmra.mrb[0].mxu0 %v14
  %v613 = vpop.f32.mrb[0].mxu0
  %v614 = vadd.f32 %v303, %v613
  %v615 = vpop.f32.mrb[0].mxu0
  %v616 = vadd.f32 %v307, %v615
  %617 = vmatprep.mubr.f32.mxu0 %v17
  %618 = vmatmul.mubr.f32.gmra.mrb[0].mxu0 %v16
  %v619 = vpop.f32.mrb[0].mxu0
  %v620 = vadd.f32 %v303, %v619
  %v621 = vpop.f32.mrb[0].mxu0
  %v622 = vadd.f32 %v307, %v621
  %623 = vdwg.mxu0
  %624 = vst [vmem:[%s3] sm:$0xff] %v383
  %625 = vst [vmem:[%s3 + $0x8] sm:$0xff] %v385
  %626 = vst [vmem:[%s3 + $0x10] sm:$0xff] %v460
  %627 = vst [vmem:[%s3 + $0x18] sm:$0xff] %v462
  %628 = vst [vmem:[%s3 + $0x20] sm:$0xff] %v537
  %629 = vst [vmem:[%s3 + $0x28] sm:$0xff] %v539
  %630 = vst [vmem:[%s3 + $0x30] sm:$0xff] %v614
  %631 = vst [vmem:[%s3 + $0x38] sm:$0xff] %v616
  %632 = vst [vmem:[%s3 + $0x40] sm:$0xf] %v389
  %633 = vst [vmem:[%s3 + $0x48] sm:$0xf] %v391
  %634 = vst [vmem:[%s3 + $0x50] sm:$0xf] %v466
  %635 = vst [vmem:[%s3 + $0x58] sm:$0xf] %v468
  %636 = vst [vmem:[%s3 + $0x60] sm:$0xf] %v543
  %637 = vst [vmem:[%s3 + $0x68] sm:$0xf] %v545
  %638 = vst [vmem:[%s3 + $0x70] sm:$0xf] %v620
  %639 = vst [vmem:[%s3 + $0x78] sm:$0xf] %v622
  // Predicated region
  $region14: #{transducer_b_forward.11} parent=0 // pred_check
    _
  $region15: #{transducer_b_forward.11} parent=0 // pred_check_branch
    %641 = sbr.rel (0) target = $region17
  $region16: #{transducer_b_forward.11} parent=0 // pred_region
    _
  $region17: #{transducer_b_forward.11} parent=0 // pred_fallthru
    _
  // Predicated region
  $region18: #{transducer_b_forward.11} parent=0 // pred_check
    _
  $region19: #{transducer_b_forward.11} parent=0 // pred_check_branch
    %643 = sbr.rel (0) target = $region21
  $region20: #{transducer_b_forward.11} parent=0 // pred_region
    _
  $region21: #{transducer_b_forward.11} parent=0 // pred_fallthru
    _

// kernel: transducer_b_forward.13
$region0: #{transducer_b_forward.13}
  #allocation0 [shape = 'u32[]', space=smem, size = 0x4, offset = 0x4, fixed_abs, tag = 'smem constant byte address 0x4 - core index']
  #allocation1 [shape = 'u32[144,128]{1,0:T(1,128)}', space=vmem, size = 0x12000, scoped, tag = 'internal scratch']
  %s0 = inlined_call_operand.vmem [shape: f32[12,256], index: 0, kind: input, shape index: {}]
  %s1 = inlined_call_operand.vmem [shape: f32[256,128], index: 1, kind: input, shape index: {}]
  %s2 = inlined_call_operand.vmem [shape: f32[1,128], index: 2, kind: input, shape index: {}]
  %s3 = inlined_call_operand.vmem [shape: f32[12,128], index: 3, kind: output, shape index: {}]
  %s4 = sld [smem:[#allocation0]]
  $region22: #{transducer_b_forward.13} parent=0
    _
  %s6 = ssub.s32 1, %s4
  %s7 = scalar_select 0, %s6, %s4
  // Predicated region
  $region2: #{transducer_b_forward.13} parent=0 // pred_check
    _
  $region3: #{transducer_b_forward.13} parent=0 // pred_check_branch
    %9 = sbr.rel (0) target = $region5
  $region4: #{transducer_b_forward.13} parent=0 // pred_region
    _
  $region5: #{transducer_b_forward.13} parent=0 // pred_fallthru
    _
  // Predicated region
  $region6: #{transducer_b_forward.13} parent=0 // pred_check
    _
  $region7: #{transducer_b_forward.13} parent=0 // pred_check_branch
    %11 = sbr.rel (0) target = $region9
  $region8: #{transducer_b_forward.13} parent=0 // pred_region
    _
  $region9: #{transducer_b_forward.13} parent=0 // pred_fallthru
    _
  // Predicated region
  $region10: #{transducer_b_forward.13} parent=0 // pred_check
    _
  $region11: #{transducer_b_forward.13} parent=0 // pred_check_branch
    %13 = sbr.rel (0) target = $region13
  $region12: #{transducer_b_forward.13} parent=0 // pred_region
    _
  $region13: #{transducer_b_forward.13} parent=0 // pred_fallthru
    _
  %v14 = vld [vmem:[%s0] sm:$0xff]
  %v15 = vld [vmem:[%s0 + $0x8] sm:$0xff]
  %v16 = vld [vmem:[%s0 + $0x10] sm:$0xf]
  %v17 = vld [vmem:[%s0 + $0x18] sm:$0xf]
  %v18 = vld [vmem:[%s1] sm:$0xff]
  %v19 = vld [vmem:[%s1 + $0x8] sm:$0xff]
  %v20 = vld [vmem:[%s1 + $0x10] sm:$0xff]
  %v21 = vld [vmem:[%s1 + $0x18] sm:$0xff]
  %v22 = vld [vmem:[%s1 + $0x20] sm:$0xff]
  %v23 = vld [vmem:[%s1 + $0x28] sm:$0xff]
  %v24 = vld [vmem:[%s1 + $0x30] sm:$0xff]
  %v25 = vld [vmem:[%s1 + $0x38] sm:$0xff]
  %v26 = vld [vmem:[%s1 + $0x40] sm:$0xff]
  %v27 = vld [vmem:[%s1 + $0x48] sm:$0xff]
  %v28 = vld [vmem:[%s1 + $0x50] sm:$0xff]
  %v29 = vld [vmem:[%s1 + $0x58] sm:$0xff]
  %v30 = vld [vmem:[%s1 + $0x60] sm:$0xff]
  %v31 = vld [vmem:[%s1 + $0x68] sm:$0xff]
  %v32 = vld [vmem:[%s1 + $0x70] sm:$0xff]
  %v33 = vld [vmem:[%s1 + $0x78] sm:$0xff]
  %v34 = vld [vmem:[%s1 + $0x80] sm:$0xff]
  %v35 = vld [vmem:[%s1 + $0x88] sm:$0xff]
  %v36 = vld [vmem:[%s1 + $0x90] sm:$0xff]
  %v37 = vld [vmem:[%s1 + $0x98] sm:$0xff]
  %v38 = vld [vmem:[%s1 + $0xa0] sm:$0xff]
  %v39 = vld [vmem:[%s1 + $0xa8] sm:$0xff]
  %v40 = vld [vmem:[%s1 + $0xb0] sm:$0xff]
  %v41 = vld [vmem:[%s1 + $0xb8] sm:$0xff]
  %v42 = vld [vmem:[%s1 + $0xc0] sm:$0xff]
  %v43 = vld [vmem:[%s1 + $0xc8] sm:$0xff]
  %v44 = vld [vmem:[%s1 + $0xd0] sm:$0xff]
  %v45 = vld [vmem:[%s1 + $0xd8] sm:$0xff]
  %v46 = vld [vmem:[%s1 + $0xe0] sm:$0xff]
  %v47 = vld [vmem:[%s1 + $0xe8] sm:$0xff]
  %v48 = vld [vmem:[%s1 + $0xf0] sm:$0xff]
  %v49 = vld [vmem:[%s1 + $0xf8] sm:$0xff]
  %v50 = vld [vmem:[%s2] sm:$0x1]
  %v52 = vlaneseq
  %v53 = vshrl.u32 %v52, 7
  %v54 = vsub.s32 0, %v53
  %v55 = vrot.slane %v50, %v54
  %57 = vmatprep.subr.mxu0 0.0
  %58 = vmatpush1.msra.mxu0 %v18
  %59 = vmatprep.subr.mxu0 0.0
  %60 = vmatpush1.msra.mxu0 %v19
  %61 = vmatprep.subr.mxu0 0.0
  %62 = vmatpush1.msra.mxu0 %v20
  %63 = vmatprep.subr.mxu0 0.0
  %64 = vmatpush1.msra.mxu0 %v21
  %65 = vmatprep.subr.mxu0 0.0
  %66 = vmatpush1.msra.mxu0 %v22
  %67 = vmatprep.subr.mxu0 0.0
  %68 = vmatpush1.msra.mxu0 %v23
  %69 = vmatprep.subr.mxu0 0.0
  %70 = vmatpush1.msra.mxu0 %v24
  %71 = vmatprep.subr.mxu0 0.0
  %72 = vmatpush1.msra.mxu0 %v25
  %73 = vmatprep.subr.mxu0 0.0
  %74 = vmatpush1.msra.mxu0 %v26
  %75 = vmatprep.subr.mxu0 0.0
  %76 = vmatpush1.msra.mxu0 %v27
  %77 = vmatprep.subr.mxu0 0.0
  %78 = vmatpush1.msra.mxu0 %v28
  %79 = vmatprep.subr.mxu0 0.0
  %80 = vmatpush1.msra.mxu0 %v29
  %81 = vmatprep.subr.mxu0 0.0
  %82 = vmatpush1.msra.mxu0 %v30
  %83 = vmatprep.subr.mxu0 0.0
  %84 = vmatpush1.msra.mxu0 %v31
  %85 = vmatprep.subr.mxu0 0.0
  %86 = vmatpush1.msra.mxu0 %v32
  %87 = vmatprep.subr.mxu0 0.0
  %88 = vmatpush1.msra.mxu0 %v33
  %89 = vmatprep.subr.mxu0 0.0
  %90 = vmatpush1.msra.mxu0 %v34
  %91 = vmatprep.subr.mxu0 0.0
  %92 = vmatpush1.msra.mxu0 %v35
  %93 = vmatprep.subr.mxu0 0.0
  %94 = vmatpush1.msra.mxu0 %v36
  %95 = vmatprep.subr.mxu0 0.0
  %96 = vmatpush1.msra.mxu0 %v37
  %97 = vmatprep.subr.mxu0 0.0
  %98 = vmatpush1.msra.mxu0 %v38
  %99 = vmatprep.subr.mxu0 0.0
  %100 = vmatpush1.msra.mxu0 %v39
  %101 = vmatprep.subr.mxu0 0.0
  %102 = vmatpush1.msra.mxu0 %v40
  %103 = vmatprep.subr.mxu0 0.0
  %104 = vmatpush1.msra.mxu0 %v41
  %105 = vmatprep.subr.mxu0 0.0
  %106 = vmatpush1.msra.mxu0 %v42
  %107 = vmatprep.subr.mxu0 0.0
  %108 = vmatpush1.msra.mxu0 %v43
  %109 = vmatprep.subr.mxu0 0.0
  %110 = vmatpush1.msra.mxu0 %v44
  %111 = vmatprep.subr.mxu0 0.0
  %112 = vmatpush1.msra.mxu0 %v45
  %113 = vmatprep.subr.mxu0 0.0
  %114 = vmatpush1.msra.mxu0 %v46
  %115 = vmatprep.subr.mxu0 0.0
  %116 = vmatpush1.msra.mxu0 %v47
  %117 = vmatprep.subr.mxu0 0.0
  %118 = vmatpush1.msra.mxu0 %v48
  %119 = vmatprep.subr.mxu0 0.0
  %120 = vmatpush1.msra.mxu0 %v49
  %121 = vmatprep.mubr.f32.mxu0 %v15
  %122 = vmatmul.mubr.f32.gmra.mrb[0].mxu0 %v14
  %v123 = vpop.f32.mrb[0].mxu0
  %v124 = vadd.f32 %v55, %v123
  %v125 = vpop.f32.mrb[0].mxu0
  %126 = vmatprep.mubr.f32.mxu0 %v17
  %127 = vmatmul.mubr.f32.gmra.mrb[0].mxu0 %v16
  %v128 = vpop.f32.mrb[0].mxu0
  %v129 = vadd.f32 %v55, %v128
  %v130 = vpop.f32.mrb[0].mxu0
  %131 = vdwg.mxu0
  %v132 = vlaneseq
  %v133 = vand.u32 %v132, 127
  %vm134 = vcmp.lt.s32.totalorder %v133, 10
  %v135 = vsel %vm134, %v124, -1e+30
  %v136 = vsel %vm134, %v129, -1e+30
  %137 = vmax.xlane.f32.xlu0 %v135
  %v138 = vpop.xlane.xlu0 %137
  %vm139 = vcmask 1043456
  %v140 = vsel %vm139, %v136, -inf
  %141 = vmax.xlane.f32.xlu0 %v140
  %v142 = vpop.xlane.xlu0 %141
  %v143 = vsub.f32 %v135, %v138
  %v144 = vsub.f32 %v136, %v142
  %v145 = vmul.f32 %v143, 1.442695
  %v146 = vpow.pop %v145
  %v147 = vmul.f32 %v144, 1.442695
  %v148 = vpow.pop %v147
  %149 = vadd.xlane.f32.xlu0 %v146
  %v150 = vpop.xlane.xlu0 %149
  %v151 = vsel %vm139, %v148, 0.0
  %152 = vadd.xlane.f32.xlu0 %v151
  %v153 = vpop.xlane.xlu0 %152
  %v154 = vrcp.pop %v150
  %v155 = vrcp.pop %v153
  %v156 = vmul.f32 %v146, %v154
  %v157 = vmul.f32 %v148, %v155
  %158 = vst [vmem:[%s3] sm:$0xff] %v156
  %159 = vst [vmem:[%s3 + $0x8] sm:$0xf] %v157
  // Predicated region
  $region14: #{transducer_b_forward.13} parent=0 // pred_check
    _
  $region15: #{transducer_b_forward.13} parent=0 // pred_check_branch
    %161 = sbr.rel (0) target = $region17
  $region16: #{transducer_b_forward.13} parent=0 // pred_region
    _
  $region17: #{transducer_b_forward.13} parent=0 // pred_fallthru
    _
  // Predicated region
  $region18: #{transducer_b_forward.13} parent=0 // pred_check
    _
  $region19: #{transducer_b_forward.13} parent=0 // pred_check_branch
    %163 = sbr.rel (0) target = $region21
  $region20: #{transducer_b_forward.13} parent=0 // pred_region
    _
  $region21: #{transducer_b_forward.13} parent=0 // pred_fallthru
    _

// kernel: transducer_b_forward.10
$region0: #{transducer_b_forward.10}
  #allocation0 [shape = 'u32[]', space=smem, size = 0x4, offset = 0x4, fixed_abs, tag = 'smem constant byte address 0x4 - core index']
  #allocation1 [shape = 'u32[144,128]{1,0:T(1,128)}', space=vmem, size = 0x12000, scoped, tag = 'internal scratch']
  #allocation2 [shape = 'f32[2,128]{1,0:T(2,128)}', space=vmem, size = 0x400, scoped, tag = 'scratch operand']
  #allocation3 [shape = 'f32[2,128]{1,0:T(2,128)}', space=vmem, size = 0x400, scoped, tag = 'scratch operand']
  #allocation4 [shape = 'f32[2,128]{1,0:T(2,128)}', space=vmem, size = 0x400, scoped, tag = 'scratch operand']
  #allocation5 [shape = 'f32[2,128]{1,0:T(2,128)}', space=vmem, size = 0x400, scoped, tag = 'scratch operand']
  %s0 = inlined_call_operand.vmem [shape: f32[6,2,1024], index: 0, kind: input, shape index: {}]
  %s1 = inlined_call_operand.vmem [shape: f32[128,512], index: 1, kind: input, shape index: {}]
  %s2 = inlined_call_operand.vmem [shape: f32[128,512], index: 2, kind: input, shape index: {}]
  %s3 = inlined_call_operand.vmem [shape: s32[2,1], index: 3, kind: input, shape index: {}]
  %s4 = inlined_call_operand.vmem [shape: f32[6,2,128], index: 4, kind: output, shape index: {0}]
  %s5 = inlined_call_operand.vmem [shape: f32[6,2,128], index: 5, kind: output, shape index: {1}]
  %6 = xla_tuple %s4, %s5
  %s7 = sld [smem:[#allocation0]]
  $region34: #{transducer_b_forward.10} parent=0
    _
  %s9 = ssub.s32 1, %s7
  %s10 = scalar_select 0, %s9, %s7
  // Predicated region
  $region2: #{transducer_b_forward.10} parent=0 // pred_check
    _
  $region3: #{transducer_b_forward.10} parent=0 // pred_check_branch
    %12 = sbr.rel (0) target = $region5
  $region4: #{transducer_b_forward.10} parent=0 // pred_region
    _
  $region5: #{transducer_b_forward.10} parent=0 // pred_fallthru
    _
  // Predicated region
  $region6: #{transducer_b_forward.10} parent=0 // pred_check
    _
  $region7: #{transducer_b_forward.10} parent=0 // pred_check_branch
    %14 = sbr.rel (0) target = $region9
  $region8: #{transducer_b_forward.10} parent=0 // pred_region
    _
  $region9: #{transducer_b_forward.10} parent=0 // pred_fallthru
    _
  // Predicated region
  $region10: #{transducer_b_forward.10} parent=0 // pred_check
    _
  $region11: #{transducer_b_forward.10} parent=0 // pred_check_branch
    %16 = sbr.rel (0) target = $region13
  $region12: #{transducer_b_forward.10} parent=0 // pred_region
    _
  $region13: #{transducer_b_forward.10} parent=0 // pred_fallthru
    _
  // Predicated region
  $region14: #{transducer_b_forward.10} parent=0 // pred_check
    _
  $region15: #{transducer_b_forward.10} parent=0 // pred_check_branch
    %18 = sbr.rel (0) target = $region17
  $region16: #{transducer_b_forward.10} parent=0 // pred_region
    _
  $region17: #{transducer_b_forward.10} parent=0 // pred_fallthru
    _
  %19 = vst [vmem:[#allocation2] sm:$0x3] 0.0
  %20 = vst [vmem:[#allocation3] sm:$0x3] 0.0
  %21 = vst [vmem:[#allocation4] sm:$0x3] 0.0
  %22 = vst [vmem:[#allocation5] sm:$0x3] 0.0
  %v23 = vld [vmem:[%s1] sm:$0xff]
  %v24 = vld [vmem:[%s1 + $0x8] sm:$0xff]
  %v25 = vld [vmem:[%s1 + $0x10] sm:$0xff]
  %v26 = vld [vmem:[%s1 + $0x18] sm:$0xff]
  %v27 = vld [vmem:[%s1 + $0x20] sm:$0xff]
  %v28 = vld [vmem:[%s1 + $0x28] sm:$0xff]
  %v29 = vld [vmem:[%s1 + $0x30] sm:$0xff]
  %v30 = vld [vmem:[%s1 + $0x38] sm:$0xff]
  %v31 = vld [vmem:[%s1 + $0x40] sm:$0xff]
  %v32 = vld [vmem:[%s1 + $0x48] sm:$0xff]
  %v33 = vld [vmem:[%s1 + $0x50] sm:$0xff]
  %v34 = vld [vmem:[%s1 + $0x58] sm:$0xff]
  %v35 = vld [vmem:[%s1 + $0x60] sm:$0xff]
  %v36 = vld [vmem:[%s1 + $0x68] sm:$0xff]
  %v37 = vld [vmem:[%s1 + $0x70] sm:$0xff]
  %v38 = vld [vmem:[%s1 + $0x78] sm:$0xff]
  %v39 = vld [vmem:[%s1 + $0x80] sm:$0xff]
  %v40 = vld [vmem:[%s1 + $0x88] sm:$0xff]
  %v41 = vld [vmem:[%s1 + $0x90] sm:$0xff]
  %v42 = vld [vmem:[%s1 + $0x98] sm:$0xff]
  %v43 = vld [vmem:[%s1 + $0xa0] sm:$0xff]
  %v44 = vld [vmem:[%s1 + $0xa8] sm:$0xff]
  %v45 = vld [vmem:[%s1 + $0xb0] sm:$0xff]
  %v46 = vld [vmem:[%s1 + $0xb8] sm:$0xff]
  %v47 = vld [vmem:[%s1 + $0xc0] sm:$0xff]
  %v48 = vld [vmem:[%s1 + $0xc8] sm:$0xff]
  %v49 = vld [vmem:[%s1 + $0xd0] sm:$0xff]
  %v50 = vld [vmem:[%s1 + $0xd8] sm:$0xff]
  %v51 = vld [vmem:[%s1 + $0xe0] sm:$0xff]
  %v52 = vld [vmem:[%s1 + $0xe8] sm:$0xff]
  %v53 = vld [vmem:[%s1 + $0xf0] sm:$0xff]
  %v54 = vld [vmem:[%s1 + $0xf8] sm:$0xff]
  %v55 = vld [vmem:[%s1 + $0x100] sm:$0xff]
  %v56 = vld [vmem:[%s1 + $0x108] sm:$0xff]
  %v57 = vld [vmem:[%s1 + $0x110] sm:$0xff]
  %v58 = vld [vmem:[%s1 + $0x118] sm:$0xff]
  %v59 = vld [vmem:[%s1 + $0x120] sm:$0xff]
  %v60 = vld [vmem:[%s1 + $0x128] sm:$0xff]
  %v61 = vld [vmem:[%s1 + $0x130] sm:$0xff]
  %v62 = vld [vmem:[%s1 + $0x138] sm:$0xff]
  %v63 = vld [vmem:[%s1 + $0x140] sm:$0xff]
  %v64 = vld [vmem:[%s1 + $0x148] sm:$0xff]
  %v65 = vld [vmem:[%s1 + $0x150] sm:$0xff]
  %v66 = vld [vmem:[%s1 + $0x158] sm:$0xff]
  %v67 = vld [vmem:[%s1 + $0x160] sm:$0xff]
  %v68 = vld [vmem:[%s1 + $0x168] sm:$0xff]
  %v69 = vld [vmem:[%s1 + $0x170] sm:$0xff]
  %v70 = vld [vmem:[%s1 + $0x178] sm:$0xff]
  %v71 = vld [vmem:[%s1 + $0x180] sm:$0xff]
  %v72 = vld [vmem:[%s1 + $0x188] sm:$0xff]
  %v73 = vld [vmem:[%s1 + $0x190] sm:$0xff]
  %v74 = vld [vmem:[%s1 + $0x198] sm:$0xff]
  %v75 = vld [vmem:[%s1 + $0x1a0] sm:$0xff]
  %v76 = vld [vmem:[%s1 + $0x1a8] sm:$0xff]
  %v77 = vld [vmem:[%s1 + $0x1b0] sm:$0xff]
  %v78 = vld [vmem:[%s1 + $0x1b8] sm:$0xff]
  %v79 = vld [vmem:[%s1 + $0x1c0] sm:$0xff]
  %v80 = vld [vmem:[%s1 + $0x1c8] sm:$0xff]
  %v81 = vld [vmem:[%s1 + $0x1d0] sm:$0xff]
  %v82 = vld [vmem:[%s1 + $0x1d8] sm:$0xff]
  %v83 = vld [vmem:[%s1 + $0x1e0] sm:$0xff]
  %v84 = vld [vmem:[%s1 + $0x1e8] sm:$0xff]
  %v85 = vld [vmem:[%s1 + $0x1f0] sm:$0xff]
  %v86 = vld [vmem:[%s1 + $0x1f8] sm:$0xff]
  %v87 = vld [vmem:[%s2] sm:$0xff]
  %v88 = vld [vmem:[%s2 + $0x8] sm:$0xff]
  %v89 = vld [vmem:[%s2 + $0x10] sm:$0xff]
  %v90 = vld [vmem:[%s2 + $0x18] sm:$0xff]
  %v91 = vld [vmem:[%s2 + $0x20] sm:$0xff]
  %v92 = vld [vmem:[%s2 + $0x28] sm:$0xff]
  %v93 = vld [vmem:[%s2 + $0x30] sm:$0xff]
  %v94 = vld [vmem:[%s2 + $0x38] sm:$0xff]
  %v95 = vld [vmem:[%s2 + $0x40] sm:$0xff]
  %v96 = vld [vmem:[%s2 + $0x48] sm:$0xff]
  %v97 = vld [vmem:[%s2 + $0x50] sm:$0xff]
  %v98 = vld [vmem:[%s2 + $0x58] sm:$0xff]
  %v99 = vld [vmem:[%s2 + $0x60] sm:$0xff]
  %v100 = vld [vmem:[%s2 + $0x68] sm:$0xff]
  %v101 = vld [vmem:[%s2 + $0x70] sm:$0xff]
  %v102 = vld [vmem:[%s2 + $0x78] sm:$0xff]
  %v103 = vld [vmem:[%s2 + $0x80] sm:$0xff]
  %v104 = vld [vmem:[%s2 + $0x88] sm:$0xff]
  %v105 = vld [vmem:[%s2 + $0x90] sm:$0xff]
  %v106 = vld [vmem:[%s2 + $0x98] sm:$0xff]
  %v107 = vld [vmem:[%s2 + $0xa0] sm:$0xff]
  %v108 = vld [vmem:[%s2 + $0xa8] sm:$0xff]
  %v109 = vld [vmem:[%s2 + $0xb0] sm:$0xff]
  %v110 = vld [vmem:[%s2 + $0xb8] sm:$0xff]
  %v111 = vld [vmem:[%s2 + $0xc0] sm:$0xff]
  %v112 = vld [vmem:[%s2 + $0xc8] sm:$0xff]
  %v113 = vld [vmem:[%s2 + $0xd0] sm:$0xff]
  %v114 = vld [vmem:[%s2 + $0xd8] sm:$0xff]
  %v115 = vld [vmem:[%s2 + $0xe0] sm:$0xff]
  %v116 = vld [vmem:[%s2 + $0xe8] sm:$0xff]
  %v117 = vld [vmem:[%s2 + $0xf0] sm:$0xff]
  %v118 = vld [vmem:[%s2 + $0xf8] sm:$0xff]
  %v119 = vld [vmem:[%s2 + $0x100] sm:$0xff]
  %v120 = vld [vmem:[%s2 + $0x108] sm:$0xff]
  %v121 = vld [vmem:[%s2 + $0x110] sm:$0xff]
  %v122 = vld [vmem:[%s2 + $0x118] sm:$0xff]
  %v123 = vld [vmem:[%s2 + $0x120] sm:$0xff]
  %v124 = vld [vmem:[%s2 + $0x128] sm:$0xff]
  %v125 = vld [vmem:[%s2 + $0x130] sm:$0xff]
  %v126 = vld [vmem:[%s2 + $0x138] sm:$0xff]
  %v127 = vld [vmem:[%s2 + $0x140] sm:$0xff]
  %v128 = vld [vmem:[%s2 + $0x148] sm:$0xff]
  %v129 = vld [vmem:[%s2 + $0x150] sm:$0xff]
  %v130 = vld [vmem:[%s2 + $0x158] sm:$0xff]
  %v131 = vld [vmem:[%s2 + $0x160] sm:$0xff]
  %v132 = vld [vmem:[%s2 + $0x168] sm:$0xff]
  %v133 = vld [vmem:[%s2 + $0x170] sm:$0xff]
  %v134 = vld [vmem:[%s2 + $0x178] sm:$0xff]
  %v135 = vld [vmem:[%s2 + $0x180] sm:$0xff]
  %v136 = vld [vmem:[%s2 + $0x188] sm:$0xff]
  %v137 = vld [vmem:[%s2 + $0x190] sm:$0xff]
  %v138 = vld [vmem:[%s2 + $0x198] sm:$0xff]
  %v139 = vld [vmem:[%s2 + $0x1a0] sm:$0xff]
  %v140 = vld [vmem:[%s2 + $0x1a8] sm:$0xff]
  %v141 = vld [vmem:[%s2 + $0x1b0] sm:$0xff]
  %v142 = vld [vmem:[%s2 + $0x1b8] sm:$0xff]
  %v143 = vld [vmem:[%s2 + $0x1c0] sm:$0xff]
  %v144 = vld [vmem:[%s2 + $0x1c8] sm:$0xff]
  %v145 = vld [vmem:[%s2 + $0x1d0] sm:$0xff]
  %v146 = vld [vmem:[%s2 + $0x1d8] sm:$0xff]
  %v147 = vld [vmem:[%s2 + $0x1e0] sm:$0xff]
  %v148 = vld [vmem:[%s2 + $0x1e8] sm:$0xff]
  %v149 = vld [vmem:[%s2 + $0x1f0] sm:$0xff]
  %v150 = vld [vmem:[%s2 + $0x1f8] sm:$0xff]
  %v151 = vld [vmem:[%s3] sm:$0x3]
  %vm152 = vcmp.gt.s32.totalorder %v151, 0
  %v153 = vsel %vm152, 1, 0
  %v154 = vcvt.s32.f32 %v153
  %vm155 = vcmp.gt.s32.totalorder %v151, 5
  %v156 = vsel %vm155, 1, 0
  %v157 = vcvt.s32.f32 %v156
  %v158 = vld [vmem:[%s0] sm:$0xff]
  %s159 = scalar_lea.vmem %s0, 80
  %v160 = vld [vmem:[%s159 + $0x8] sm:$0xff]
  %v161 = vld [vmem:[#allocation2] sm:$0x3]
  %v162 = vld [vmem:[#allocation3] sm:$0x3]
  %163 = vmatprep.subr.mxu0 %v24
  %164 = vmatpush1.msra.mxu0 %v23
  %165 = vmatprep.subr.mxu0 %v28
  %166 = vmatpush1.msra.mxu0 %v27
  %167 = vmatprep.subr.mxu0 %v32
  %168 = vmatpush1.msra.mxu0 %v31
  %169 = vmatprep.subr.mxu0 %v36
  %170 = vmatpush1.msra.mxu0 %v35
  %171 = vmatprep.subr.mxu0 %v40
  %172 = vmatpush1.msra.mxu0 %v39
  %173 = vmatprep.subr.mxu0 %v44
  %174 = vmatpush1.msra.mxu0 %v43
  %175 = vmatprep.subr.mxu0 %v48
  %176 = vmatpush1.msra.mxu0 %v47
  %177 = vmatprep.subr.mxu0 %v52
  %178 = vmatpush1.msra.mxu0 %v51
  %179 = vmatprep.subr.mxu0 %v56
  %180 = vmatpush1.msra.mxu0 %v55
  %181 = vmatprep.subr.mxu0 %v60
  %182 = vmatpush1.msra.mxu0 %v59
  %183 = vmatprep.subr.mxu0 %v64
  %184 = vmatpush1.msra.mxu0 %v63
  %185 = vmatprep.subr.mxu0 %v68
  %186 = vmatpush1.msra.mxu0 %v67
  %187 = vmatprep.subr.mxu0 %v72
  %188 = vmatpush1.msra.mxu0 %v71
  %189 = vmatprep.subr.mxu0 %v76
  %190 = vmatpush1.msra.mxu0 %v75
  %191 = vmatprep.subr.mxu0 %v80
  %192 = vmatpush1.msra.mxu0 %v79
  %193 = vmatprep.subr.mxu0 %v84
  %194 = vmatpush1.msra.mxu0 %v83
  %195 = vmatprep.subr.mxu0 0.0
  %196 = vmatpush1.msra.mxu0 0.0
  %197 = vmatprep.subr.mxu0 0.0
  %198 = vmatpush1.msra.mxu0 0.0
  %199 = vmatprep.subr.mxu0 0.0
  %200 = vmatpush1.msra.mxu0 0.0
  %201 = vmatprep.subr.mxu0 0.0
  %202 = vmatpush1.msra.mxu0 0.0
  %203 = vmatprep.subr.mxu0 0.0
  %204 = vmatpush1.msra.mxu0 0.0
  %205 = vmatprep.subr.mxu0 0.0
  %206 = vmatpush1.msra.mxu0 0.0
  %207 = vmatprep.subr.mxu0 0.0
  %208 = vmatpush1.msra.mxu0 0.0
  %209 = vmatprep.subr.mxu0 0.0
  %210 = vmatpush1.msra.mxu0 0.0
  %211 = vmatprep.subr.mxu0 0.0
  %212 = vmatpush1.msra.mxu0 0.0
  %213 = vmatprep.subr.mxu0 0.0
  %214 = vmatpush1.msra.mxu0 0.0
  %215 = vmatprep.subr.mxu0 0.0
  %216 = vmatpush1.msra.mxu0 0.0
  %217 = vmatprep.subr.mxu0 0.0
  %218 = vmatpush1.msra.mxu0 0.0
  %219 = vmatprep.subr.mxu0 0.0
  %220 = vmatpush1.msra.mxu0 0.0
  %221 = vmatprep.subr.mxu0 0.0
  %222 = vmatpush1.msra.mxu0 0.0
  %223 = vmatprep.subr.mxu0 0.0
  %224 = vmatpush1.msra.mxu0 0.0
  %225 = vmatprep.subr.mxu0 0.0
  %226 = vmatpush1.msra.mxu0 0.0
  %227 = vmatprep.mubr.f32.mxu0 0.0
  %228 = vmatmul.mubr.f32.gmra.mrb[0].mxu0 %v161
  %v229 = vpop.f32.mrb[0].mxu0
  %v230 = vadd.f32 0.0, %v229
  %v231 = vpop.f32.mrb[0].mxu0
  %v232 = vadd.f32 0.0, %v231
  %233 = vdwg.mxu0
  %234 = vmatprep.subr.mxu0 %v26
  %235 = vmatpush1.msra.mxu0 %v25
  %236 = vmatprep.subr.mxu0 %v30
  %237 = vmatpush1.msra.mxu0 %v29
  %238 = vmatprep.subr.mxu0 %v34
  %239 = vmatpush1.msra.mxu0 %v33
  %240 = vmatprep.subr.mxu0 %v38
  %241 = vmatpush1.msra.mxu0 %v37
  %242 = vmatprep.subr.mxu0 %v42
  %243 = vmatpush1.msra.mxu0 %v41
  %244 = vmatprep.subr.mxu0 %v46
  %245 = vmatpush1.msra.mxu0 %v45
  %246 = vmatprep.subr.mxu0 %v50
  %247 = vmatpush1.msra.mxu0 %v49
  %248 = vmatprep.subr.mxu0 %v54
  %249 = vmatpush1.msra.mxu0 %v53
  %250 = vmatprep.subr.mxu0 %v58
  %251 = vmatpush1.msra.mxu0 %v57
  %252 = vmatprep.subr.mxu0 %v62
  %253 = vmatpush1.msra.mxu0 %v61
  %254 = vmatprep.subr.mxu0 %v66
  %255 = vmatpush1.msra.mxu0 %v65
  %256 = vmatprep.subr.mxu0 %v70
  %257 = vmatpush1.msra.mxu0 %v69
  %258 = vmatprep.subr.mxu0 %v74
  %259 = vmatpush1.msra.mxu0 %v73
  %260 = vmatprep.subr.mxu0 %v78
  %261 = vmatpush1.msra.mxu0 %v77
  %262 = vmatprep.subr.mxu0 %v82
  %263 = vmatpush1.msra.mxu0 %v81
  %264 = vmatprep.subr.mxu0 %v86
  %265 = vmatpush1.msra.mxu0 %v85
  %266 = vmatprep.subr.mxu0 0.0
  %267 = vmatpush1.msra.mxu0 0.0
  %268 = vmatprep.subr.mxu0 0.0
  %269 = vmatpush1.msra.mxu0 0.0
  %270 = vmatprep.subr.mxu0 0.0
  %271 = vmatpush1.msra.mxu0 0.0
  %272 = vmatprep.subr.mxu0 0.0
  %273 = vmatpush1.msra.mxu0 0.0
  %274 = vmatprep.subr.mxu0 0.0
  %275 = vmatpush1.msra.mxu0 0.0
  %276 = vmatprep.subr.mxu0 0.0
  %277 = vmatpush1.msra.mxu0 0.0
  %278 = vmatprep.subr.mxu0 0.0
  %279 = vmatpush1.msra.mxu0 0.0
  %280 = vmatprep.subr.mxu0 0.0
  %281 = vmatpush1.msra.mxu0 0.0
  %282 = vmatprep.subr.mxu0 0.0
  %283 = vmatpush1.msra.mxu0 0.0
  %284 = vmatprep.subr.mxu0 0.0
  %285 = vmatpush1.msra.mxu0 0.0
  %286 = vmatprep.subr.mxu0 0.0
  %287 = vmatpush1.msra.mxu0 0.0
  %288 = vmatprep.subr.mxu0 0.0
  %289 = vmatpush1.msra.mxu0 0.0
  %290 = vmatprep.subr.mxu0 0.0
  %291 = vmatpush1.msra.mxu0 0.0
  %292 = vmatprep.subr.mxu0 0.0
  %293 = vmatpush1.msra.mxu0 0.0
  %294 = vmatprep.subr.mxu0 0.0
  %295 = vmatpush1.msra.mxu0 0.0
  %296 = vmatprep.subr.mxu0 0.0
  %297 = vmatpush1.msra.mxu0 0.0
  %298 = vmatprep.mubr.f32.mxu0 0.0
  %299 = vmatmul.mubr.f32.gmra.mrb[0].mxu0 %v161
  %v300 = vpop.f32.mrb[0].mxu0
  %v301 = vadd.f32 0.0, %v300
  %v302 = vpop.f32.mrb[0].mxu0
  %v303 = vadd.f32 0.0, %v302
  %304 = vdwg.mxu0
  %v309 = vcombine.low %v230, %v232
  %v310 = vcombine.low %v301, %v303
  %v312 = vunpack.c.l.s4 1983009808
  %v313 = vunpack.c.0.s8 %v312
  %v314 = vlaneseq
  %v315 = vshrl.u32 %v314, 7
  %v316 = vsub.s32 %v313, %v315
  %v317 = vrot.slane %v309, %v316
  %v319 = vunpack.c.l.s4 1983009808
  %v320 = vunpack.c.0.s8 %v319
  %v321 = vlaneseq
  %v322 = vshrl.u32 %v321, 7
  %v323 = vsub.s32 %v320, %v322
  %v324 = vrot.slane %v310, %v323
  %v325 = vcombine.low %v317, %v324
  %v327 = vadd.f32 %v158, %v325
  %v328 = vxor.u32 %v327, 2147483648
  %v329 = vmul.f32 %v328, 1.442695
  %v330 = vpow.pop %v329
  %v331 = vadd.f32 %v330, 1.0
  %v332 = vrcp.pop %v331
  %v333 = vmul.f32 1.0, %v332
  %v335 = vrot.slane %v327, 2
  %v337 = vxor.u32 %v335, 2147483648
  %v338 = vmul.f32 %v337, 1.442695
  %v339 = vpow.pop %v338
  %v340 = vadd.f32 %v339, 1.0
  %v341 = vrcp.pop %v340
  %v342 = vmul.f32 1.0, %v341
  %v343 = vrot.slane %v327, 4
  %v345 = vtanh.pop %v343
  %v346 = vrot.slane %v327, 6
  %v348 = vxor.u32 %v346, 2147483648
  %v349 = vmul.f32 %v348, 1.442695
  %v350 = vpow.pop %v349
  %v351 = vadd.f32 %v350, 1.0
  %v352 = vrcp.pop %v351
  %v353 = vmul.f32 1.0, %v352
  %v354 = vmul.f32 %v342, %v162
  %v355 = vmul.f32 %v333, %v345
  %v356 = vadd.f32 %v354, %v355
  %v357 = vtanh.pop %v356
  %v358 = vmul.f32 %v353, %v357
  %360 = vset.pattern.permute.xlu0 0
  %361 = vperm.xlu0 %360, %v154
  %v362 = vpop.permute.xlu0 %361
  %v364 = vmul.f32 %v362, %v358
  %v365 = vsub.f32 1.0, %v154
  %367 = vset.pattern.permute.xlu0 0
  %368 = vperm.xlu0 %367, %v365
  %v369 = vpop.permute.xlu0 %368
  %v371 = vmul.f32 %v369, %v161
  %v372 = vadd.f32 %v364, %v371
  %v373 = vmul.f32 %v362, %v356
  %v374 = vmul.f32 %v369, %v162
  %v375 = vadd.f32 %v373, %v374
  %v376 = vld [vmem:[#allocation4] sm:$0x3]
  %v377 = vld [vmem:[#allocation5] sm:$0x3]
  %378 = vmatprep.subr.mxu0 %v88
  %379 = vmatpush1.msra.mxu0 %v87
  %380 = vmatprep.subr.mxu0 %v92
  %381 = vmatpush1.msra.mxu0 %v91
  %382 = vmatprep.subr.mxu0 %v96
  %383 = vmatpush1.msra.mxu0 %v95
  %384 = vmatprep.subr.mxu0 %v100
  %385 = vmatpush1.msra.mxu0 %v99
  %386 = vmatprep.subr.mxu0 %v104
  %387 = vmatpush1.msra.mxu0 %v103
  %388 = vmatprep.subr.mxu0 %v108
  %389 = vmatpush1.msra.mxu0 %v107
  %390 = vmatprep.subr.mxu0 %v112
  %391 = vmatpush1.msra.mxu0 %v111
  %392 = vmatprep.subr.mxu0 %v116
  %393 = vmatpush1.msra.mxu0 %v115
  %394 = vmatprep.subr.mxu0 %v120
  %395 = vmatpush1.msra.mxu0 %v119
  %396 = vmatprep.subr.mxu0 %v124
  %397 = vmatpush1.msra.mxu0 %v123
  %398 = vmatprep.subr.mxu0 %v128
  %399 = vmatpush1.msra.mxu0 %v127
  %400 = vmatprep.subr.mxu0 %v132
  %401 = vmatpush1.msra.mxu0 %v131
  %402 = vmatprep.subr.mxu0 %v136
  %403 = vmatpush1.msra.mxu0 %v135
  %404 = vmatprep.subr.mxu0 %v140
  %405 = vmatpush1.msra.mxu0 %v139
  %406 = vmatprep.subr.mxu0 %v144
  %407 = vmatpush1.msra.mxu0 %v143
  %408 = vmatprep.subr.mxu0 %v148
  %409 = vmatpush1.msra.mxu0 %v147
  %410 = vmatprep.subr.mxu0 0.0
  %411 = vmatpush1.msra.mxu0 0.0
  %412 = vmatprep.subr.mxu0 0.0
  %413 = vmatpush1.msra.mxu0 0.0
  %414 = vmatprep.subr.mxu0 0.0
  %415 = vmatpush1.msra.mxu0 0.0
  %416 = vmatprep.subr.mxu0 0.0
  %417 = vmatpush1.msra.mxu0 0.0
  %418 = vmatprep.subr.mxu0 0.0
  %419 = vmatpush1.msra.mxu0 0.0
  %420 = vmatprep.subr.mxu0 0.0
  %421 = vmatpush1.msra.mxu0 0.0
  %422 = vmatprep.subr.mxu0 0.0
  %423 = vmatpush1.msra.mxu0 0.0
  %424 = vmatprep.subr.mxu0 0.0
  %425 = vmatpush1.msra.mxu0 0.0
  %426 = vmatprep.subr.mxu0 0.0
  %427 = vmatpush1.msra.mxu0 0.0
  %428 = vmatprep.subr.mxu0 0.0
  %429 = vmatpush1.msra.mxu0 0.0
  %430 = vmatprep.subr.mxu0 0.0
  %431 = vmatpush1.msra.mxu0 0.0
  %432 = vmatprep.subr.mxu0 0.0
  %433 = vmatpush1.msra.mxu0 0.0
  %434 = vmatprep.subr.mxu0 0.0
  %435 = vmatpush1.msra.mxu0 0.0
  %436 = vmatprep.subr.mxu0 0.0
  %437 = vmatpush1.msra.mxu0 0.0
  %438 = vmatprep.subr.mxu0 0.0
  %439 = vmatpush1.msra.mxu0 0.0
  %440 = vmatprep.subr.mxu0 0.0
  %441 = vmatpush1.msra.mxu0 0.0
  %442 = vmatprep.mubr.f32.mxu0 0.0
  %443 = vmatmul.mubr.f32.gmra.mrb[0].mxu0 %v376
  %v444 = vpop.f32.mrb[0].mxu0
  %v445 = vadd.f32 0.0, %v444
  %v446 = vpop.f32.mrb[0].mxu0
  %v447 = vadd.f32 0.0, %v446
  %448 = vdwg.mxu0
  %449 = vmatprep.subr.mxu0 %v90
  %450 = vmatpush1.msra.mxu0 %v89
  %451 = vmatprep.subr.mxu0 %v94
  %452 = vmatpush1.msra.mxu0 %v93
  %453 = vmatprep.subr.mxu0 %v98
  %454 = vmatpush1.msra.mxu0 %v97
  %455 = vmatprep.subr.mxu0 %v102
  %456 = vmatpush1.msra.mxu0 %v101
  %457 = vmatprep.subr.mxu0 %v106
  %458 = vmatpush1.msra.mxu0 %v105
  %459 = vmatprep.subr.mxu0 %v110
  %460 = vmatpush1.msra.mxu0 %v109
  %461 = vmatprep.subr.mxu0 %v114
  %462 = vmatpush1.msra.mxu0 %v113
  %463 = vmatprep.subr.mxu0 %v118
  %464 = vmatpush1.msra.mxu0 %v117
  %465 = vmatprep.subr.mxu0 %v122
  %466 = vmatpush1.msra.mxu0 %v121
  %467 = vmatprep.subr.mxu0 %v126
  %468 = vmatpush1.msra.mxu0 %v125
  %469 = vmatprep.subr.mxu0 %v130
  %470 = vmatpush1.msra.mxu0 %v129
  %471 = vmatprep.subr.mxu0 %v134
  %472 = vmatpush1.msra.mxu0 %v133
  %473 = vmatprep.subr.mxu0 %v138
  %474 = vmatpush1.msra.mxu0 %v137
  %475 = vmatprep.subr.mxu0 %v142
  %476 = vmatpush1.msra.mxu0 %v141
  %477 = vmatprep.subr.mxu0 %v146
  %478 = vmatpush1.msra.mxu0 %v145
  %479 = vmatprep.subr.mxu0 %v150
  %480 = vmatpush1.msra.mxu0 %v149
  %481 = vmatprep.subr.mxu0 0.0
  %482 = vmatpush1.msra.mxu0 0.0
  %483 = vmatprep.subr.mxu0 0.0
  %484 = vmatpush1.msra.mxu0 0.0
  %485 = vmatprep.subr.mxu0 0.0
  %486 = vmatpush1.msra.mxu0 0.0
  %487 = vmatprep.subr.mxu0 0.0
  %488 = vmatpush1.msra.mxu0 0.0
  %489 = vmatprep.subr.mxu0 0.0
  %490 = vmatpush1.msra.mxu0 0.0
  %491 = vmatprep.subr.mxu0 0.0
  %492 = vmatpush1.msra.mxu0 0.0
  %493 = vmatprep.subr.mxu0 0.0
  %494 = vmatpush1.msra.mxu0 0.0
  %495 = vmatprep.subr.mxu0 0.0
  %496 = vmatpush1.msra.mxu0 0.0
  %497 = vmatprep.subr.mxu0 0.0
  %498 = vmatpush1.msra.mxu0 0.0
  %499 = vmatprep.subr.mxu0 0.0
  %500 = vmatpush1.msra.mxu0 0.0
  %501 = vmatprep.subr.mxu0 0.0
  %502 = vmatpush1.msra.mxu0 0.0
  %503 = vmatprep.subr.mxu0 0.0
  %504 = vmatpush1.msra.mxu0 0.0
  %505 = vmatprep.subr.mxu0 0.0
  %506 = vmatpush1.msra.mxu0 0.0
  %507 = vmatprep.subr.mxu0 0.0
  %508 = vmatpush1.msra.mxu0 0.0
  %509 = vmatprep.subr.mxu0 0.0
  %510 = vmatpush1.msra.mxu0 0.0
  %511 = vmatprep.subr.mxu0 0.0
  %512 = vmatpush1.msra.mxu0 0.0
  %513 = vmatprep.mubr.f32.mxu0 0.0
  %514 = vmatmul.mubr.f32.gmra.mrb[0].mxu0 %v376
  %v515 = vpop.f32.mrb[0].mxu0
  %v516 = vadd.f32 0.0, %v515
  %v517 = vpop.f32.mrb[0].mxu0
  %v518 = vadd.f32 0.0, %v517
  %519 = vdwg.mxu0
  %v524 = vcombine.low %v445, %v447
  %v525 = vcombine.low %v516, %v518
  %v527 = vunpack.c.l.s4 1983009808
  %v528 = vunpack.c.0.s8 %v527
  %v529 = vlaneseq
  %v530 = vshrl.u32 %v529, 7
  %v531 = vsub.s32 %v528, %v530
  %v532 = vrot.slane %v524, %v531
  %v534 = vunpack.c.l.s4 1983009808
  %v535 = vunpack.c.0.s8 %v534
  %v536 = vlaneseq
  %v537 = vshrl.u32 %v536, 7
  %v538 = vsub.s32 %v535, %v537
  %v539 = vrot.slane %v525, %v538
  %v540 = vcombine.low %v532, %v539
  %v542 = vadd.f32 %v160, %v540
  %v543 = vxor.u32 %v542, 2147483648
  %v544 = vmul.f32 %v543, 1.442695
  %v545 = vpow.pop %v544
  %v546 = vadd.f32 %v545, 1.0
  %v547 = vrcp.pop %v546
  %v548 = vmul.f32 1.0, %v547
  %v550 = vrot.slane %v542, 2
  %v552 = vxor.u32 %v550, 2147483648
  %v553 = vmul.f32 %v552, 1.442695
  %v554 = vpow.pop %v553
  %v555 = vadd.f32 %v554, 1.0
  %v556 = vrcp.pop %v555
  %v557 = vmul.f32 1.0, %v556
  %v558 = vrot.slane %v542, 4
  %v560 = vtanh.pop %v558
  %v561 = vrot.slane %v542, 6
  %v563 = vxor.u32 %v561, 2147483648
  %v564 = vmul.f32 %v563, 1.442695
  %v565 = vpow.pop %v564
  %v566 = vadd.f32 %v565, 1.0
  %v567 = vrcp.pop %v566
  %v568 = vmul.f32 1.0, %v567
  %v569 = vmul.f32 %v557, %v377
  %v570 = vmul.f32 %v548, %v560
  %v571 = vadd.f32 %v569, %v570
  %v572 = vtanh.pop %v571
  %v573 = vmul.f32 %v568, %v572
  %575 = vset.pattern.permute.xlu0 0
  %576 = vperm.xlu0 %575, %v157
  %v577 = vpop.permute.xlu0 %576
  %v579 = vmul.f32 %v577, %v573
  %v580 = vsub.f32 1.0, %v157
  %582 = vset.pattern.permute.xlu0 0
  %583 = vperm.xlu0 %582, %v580
  %v584 = vpop.permute.xlu0 %583
  %v586 = vmul.f32 %v584, %v376
  %v587 = vadd.f32 %v579, %v586
  %v588 = vmul.f32 %v577, %v571
  %v589 = vmul.f32 %v584, %v377
  %v590 = vadd.f32 %v588, %v589
  %591 = vst [vmem:[#allocation2] sm:$0x3] %v372
  %592 = vst [vmem:[#allocation3] sm:$0x3] %v375
  %593 = vst [vmem:[#allocation4] sm:$0x3] %v587
  %594 = vst [vmem:[#allocation5] sm:$0x3] %v590
  %595 = vst [vmem:[%s4] sm:$0x3] %v364
  %s596 = scalar_lea.vmem %s5, 10
  %597 = vst [vmem:[%s596] sm:$0x3] %v579
  %vm598 = vcmp.gt.s32.totalorder %v151, 1
  %v599 = vsel %vm598, 1, 0
  %v600 = vcvt.s32.f32 %v599
  %vm601 = vcmp.gt.s32.totalorder %v151, 4
  %v602 = vsel %vm601, 1, 0
  %v603 = vcvt.s32.f32 %v602
  %s604 = scalar_lea.vmem %s0, 16
  %v605 = vld [vmem:[%s604] sm:$0xff]
  %s606 = scalar_lea.vmem %s0, 64
  %v607 = vld [vmem:[%s606 + $0x8] sm:$0xff]
  %v608 = vld [vmem:[#allocation2] sm:$0x3]
  %v609 = vld [vmem:[#allocation3] sm:$0x3]
  %610 = vmatprep.subr.mxu0 %v24
  %611 = vmatpush1.msra.mxu0 %v23
  %612 = vmatprep.subr.mxu0 %v28
  %613 = vmatpush1.msra.mxu0 %v27
  %614 = vmatprep.subr.mxu0 %v32
  %615 = vmatpush1.msra.mxu0 %v31
  %616 = vmatprep.subr.mxu0 %v36
  %617 = vmatpush1.msra.mxu0 %v35
  %618 = vmatprep.subr.mxu0 %v40
  %619 = vmatpush1.msra.mxu0 %v39
  %620 = vmatprep.subr.mxu0 %v44
  %621 = vmatpush1.msra.mxu0 %v43
  %622 = vmatprep.subr.mxu0 %v48
  %623 = vmatpush1.msra.mxu0 %v47
  %624 = vmatprep.subr.mxu0 %v52
  %625 = vmatpush1.msra.mxu0 %v51
  %626 = vmatprep.subr.mxu0 %v56
  %627 = vmatpush1.msra.mxu0 %v55
  %628 = vmatprep.subr.mxu0 %v60
  %629 = vmatpush1.msra.mxu0 %v59
  %630 = vmatprep.subr.mxu0 %v64
  %631 = vmatpush1.msra.mxu0 %v63
  %632 = vmatprep.subr.mxu0 %v68
  %633 = vmatpush1.msra.mxu0 %v67
  %634 = vmatprep.subr.mxu0 %v72
  %635 = vmatpush1.msra.mxu0 %v71
  %636 = vmatprep.subr.mxu0 %v76
  %637 = vmatpush1.msra.mxu0 %v75
  %638 = vmatprep.subr.mxu0 %v80
  %639 = vmatpush1.msra.mxu0 %v79
  %640 = vmatprep.subr.mxu0 %v84
  %641 = vmatpush1.msra.mxu0 %v83
  %642 = vmatprep.subr.mxu0 0.0
  %643 = vmatpush1.msra.mxu0 0.0
  %644 = vmatprep.subr.mxu0 0.0
  %645 = vmatpush1.msra.mxu0 0.0
  %646 = vmatprep.subr.mxu0 0.0
  %647 = vmatpush1.msra.mxu0 0.0
  %648 = vmatprep.subr.mxu0 0.0
  %649 = vmatpush1.msra.mxu0 0.0
  %650 = vmatprep.subr.mxu0 0.0
  %651 = vmatpush1.msra.mxu0 0.0
  %652 = vmatprep.subr.mxu0 0.0
  %653 = vmatpush1.msra.mxu0 0.0
  %654 = vmatprep.subr.mxu0 0.0
  %655 = vmatpush1.msra.mxu0 0.0
  %656 = vmatprep.subr.mxu0 0.0
  %657 = vmatpush1.msra.mxu0 0.0
  %658 = vmatprep.subr.mxu0 0.0
  %659 = vmatpush1.msra.mxu0 0.0
  %660 = vmatprep.subr.mxu0 0.0
  %661 = vmatpush1.msra.mxu0 0.0
  %662 = vmatprep.subr.mxu0 0.0
  %663 = vmatpush1.msra.mxu0 0.0
  %664 = vmatprep.subr.mxu0 0.0
  %665 = vmatpush1.msra.mxu0 0.0
  %666 = vmatprep.subr.mxu0 0.0
  %667 = vmatpush1.msra.mxu0 0.0
  %668 = vmatprep.subr.mxu0 0.0
  %669 = vmatpush1.msra.mxu0 0.0
  %670 = vmatprep.subr.mxu0 0.0
  %671 = vmatpush1.msra.mxu0 0.0
  %672 = vmatprep.subr.mxu0 0.0
  %673 = vmatpush1.msra.mxu0 0.0
  %674 = vmatprep.mubr.f32.mxu0 0.0
  %675 = vmatmul.mubr.f32.gmra.mrb[0].mxu0 %v608
  %v676 = vpop.f32.mrb[0].mxu0
  %v677 = vadd.f32 0.0, %v676
  %v678 = vpop.f32.mrb[0].mxu0
  %v679 = vadd.f32 0.0, %v678
  %680 = vdwg.mxu0
  %681 = vmatprep.subr.mxu0 %v26
  %682 = vmatpush1.msra.mxu0 %v25
  %683 = vmatprep.subr.mxu0 %v30
  %684 = vmatpush1.msra.mxu0 %v29
  %685 = vmatprep.subr.mxu0 %v34
  %686 = vmatpush1.msra.mxu0 %v33
  %687 = vmatprep.subr.mxu0 %v38
  %688 = vmatpush1.msra.mxu0 %v37
  %689 = vmatprep.subr.mxu0 %v42
  %690 = vmatpush1.msra.mxu0 %v41
  %691 = vmatprep.subr.mxu0 %v46
  %692 = vmatpush1.msra.mxu0 %v45
  %693 = vmatprep.subr.mxu0 %v50
  %694 = vmatpush1.msra.mxu0 %v49
  %695 = vmatprep.subr.mxu0 %v54
  %696 = vmatpush1.msra.mxu0 %v53
  %697 = vmatprep.subr.mxu0 %v58
  %698 = vmatpush1.msra.mxu0 %v57
  %699 = vmatprep.subr.mxu0 %v62
  %700 = vmatpush1.msra.mxu0 %v61
  %701 = vmatprep.subr.mxu0 %v66
  %702 = vmatpush1.msra.mxu0 %v65
  %703 = vmatprep.subr.mxu0 %v70
  %704 = vmatpush1.msra.mxu0 %v69
  %705 = vmatprep.subr.mxu0 %v74
  %706 = vmatpush1.msra.mxu0 %v73
  %707 = vmatprep.subr.mxu0 %v78
  %708 = vmatpush1.msra.mxu0 %v77
  %709 = vmatprep.subr.mxu0 %v82
  %710 = vmatpush1.msra.mxu0 %v81
  %711 = vmatprep.subr.mxu0 %v86
  %712 = vmatpush1.msra.mxu0 %v85
  %713 = vmatprep.subr.mxu0 0.0
  %714 = vmatpush1.msra.mxu0 0.0
  %715 = vmatprep.subr.mxu0 0.0
  %716 = vmatpush1.msra.mxu0 0.0
  %717 = vmatprep.subr.mxu0 0.0
  %718 = vmatpush1.msra.mxu0 0.0
  %719 = vmatprep.subr.mxu0 0.0
  %720 = vmatpush1.msra.mxu0 0.0
  %721 = vmatprep.subr.mxu0 0.0
  %722 = vmatpush1.msra.mxu0 0.0
  %723 = vmatprep.subr.mxu0 0.0
  %724 = vmatpush1.msra.mxu0 0.0
  %725 = vmatprep.subr.mxu0 0.0
  %726 = vmatpush1.msra.mxu0 0.0
  %727 = vmatprep.subr.mxu0 0.0
  %728 = vmatpush1.msra.mxu0 0.0
  %729 = vmatprep.subr.mxu0 0.0
  %730 = vmatpush1.msra.mxu0 0.0
  %731 = vmatprep.subr.mxu0 0.0
  %732 = vmatpush1.msra.mxu0 0.0
  %733 = vmatprep.subr.mxu0 0.0
  %734 = vmatpush1.msra.mxu0 0.0
  %735 = vmatprep.subr.mxu0 0.0
  %736 = vmatpush1.msra.mxu0 0.0
  %737 = vmatprep.subr.mxu0 0.0
  %738 = vmatpush1.msra.mxu0 0.0
  %739 = vmatprep.subr.mxu0 0.0
  %740 = vmatpush1.msra.mxu0 0.0
  %741 = vmatprep.subr.mxu0 0.0
  %742 = vmatpush1.msra.mxu0 0.0
  %743 = vmatprep.subr.mxu0 0.0
  %744 = vmatpush1.msra.mxu0 0.0
  %745 = vmatprep.mubr.f32.mxu0 0.0
  %746 = vmatmul.mubr.f32.gmra.mrb[0].mxu0 %v608
  %v747 = vpop.f32.mrb[0].mxu0
  %v748 = vadd.f32 0.0, %v747
  %v749 = vpop.f32.mrb[0].mxu0
  %v750 = vadd.f32 0.0, %v749
  %751 = vdwg.mxu0
  %v756 = vcombine.low %v677, %v679
  %v757 = vcombine.low %v748, %v750
  %v759 = vunpack.c.l.s4 1983009808
  %v760 = vunpack.c.0.s8 %v759
  %v761 = vlaneseq
  %v762 = vshrl.u32 %v761, 7
  %v763 = vsub.s32 %v760, %v762
  %v764 = vrot.slane %v756, %v763
  %v766 = vunpack.c.l.s4 1983009808
  %v767 = vunpack.c.0.s8 %v766
  %v768 = vlaneseq
  %v769 = vshrl.u32 %v768, 7
  %v770 = vsub.s32 %v767, %v769
  %v771 = vrot.slane %v757, %v770
  %v772 = vcombine.low %v764, %v771
  %v774 = vadd.f32 %v605, %v772
  %v775 = vxor.u32 %v774, 2147483648
  %v776 = vmul.f32 %v775, 1.442695
  %v777 = vpow.pop %v776
  %v778 = vadd.f32 %v777, 1.0
  %v779 = vrcp.pop %v778
  %v780 = vmul.f32 1.0, %v779
  %v782 = vrot.slane %v774, 2
  %v784 = vxor.u32 %v782, 2147483648
  %v785 = vmul.f32 %v784, 1.442695
  %v786 = vpow.pop %v785
  %v787 = vadd.f32 %v786, 1.0
  %v788 = vrcp.pop %v787
  %v789 = vmul.f32 1.0, %v788
  %v790 = vrot.slane %v774, 4
  %v792 = vtanh.pop %v790
  %v793 = vrot.slane %v774, 6
  %v795 = vxor.u32 %v793, 2147483648
  %v796 = vmul.f32 %v795, 1.442695
  %v797 = vpow.pop %v796
  %v798 = vadd.f32 %v797, 1.0
  %v799 = vrcp.pop %v798
  %v800 = vmul.f32 1.0, %v799
  %v801 = vmul.f32 %v789, %v609
  %v802 = vmul.f32 %v780, %v792
  %v803 = vadd.f32 %v801, %v802
  %v804 = vtanh.pop %v803
  %v805 = vmul.f32 %v800, %v804
  %807 = vset.pattern.permute.xlu0 0
  %808 = vperm.xlu0 %807, %v600
  %v809 = vpop.permute.xlu0 %808
  %v811 = vmul.f32 %v809, %v805
  %v812 = vsub.f32 1.0, %v600
  %814 = vset.pattern.permute.xlu0 0
  %815 = vperm.xlu0 %814, %v812
  %v816 = vpop.permute.xlu0 %815
  %v818 = vmul.f32 %v816, %v608
  %v819 = vadd.f32 %v811, %v818
  %v820 = vmul.f32 %v809, %v803
  %v821 = vmul.f32 %v816, %v609
  %v822 = vadd.f32 %v820, %v821
  %v823 = vld [vmem:[#allocation4] sm:$0x3]
  %v824 = vld [vmem:[#allocation5] sm:$0x3]
  %825 = vmatprep.subr.mxu0 %v88
  %826 = vmatpush1.msra.mxu0 %v87
  %827 = vmatprep.subr.mxu0 %v92
  %828 = vmatpush1.msra.mxu0 %v91
  %829 = vmatprep.subr.mxu0 %v96
  %830 = vmatpush1.msra.mxu0 %v95
  %831 = vmatprep.subr.mxu0 %v100
  %832 = vmatpush1.msra.mxu0 %v99
  %833 = vmatprep.subr.mxu0 %v104
  %834 = vmatpush1.msra.mxu0 %v103
  %835 = vmatprep.subr.mxu0 %v108
  %836 = vmatpush1.msra.mxu0 %v107
  %837 = vmatprep.subr.mxu0 %v112
  %838 = vmatpush1.msra.mxu0 %v111
  %839 = vmatprep.subr.mxu0 %v116
  %840 = vmatpush1.msra.mxu0 %v115
  %841 = vmatprep.subr.mxu0 %v120
  %842 = vmatpush1.msra.mxu0 %v119
  %843 = vmatprep.subr.mxu0 %v124
  %844 = vmatpush1.msra.mxu0 %v123
  %845 = vmatprep.subr.mxu0 %v128
  %846 = vmatpush1.msra.mxu0 %v127
  %847 = vmatprep.subr.mxu0 %v132
  %848 = vmatpush1.msra.mxu0 %v131
  %849 = vmatprep.subr.mxu0 %v136
  %850 = vmatpush1.msra.mxu0 %v135
  %851 = vmatprep.subr.mxu0 %v140
  %852 = vmatpush1.msra.mxu0 %v139
  %853 = vmatprep.subr.mxu0 %v144
  %854 = vmatpush1.msra.mxu0 %v143
  %855 = vmatprep.subr.mxu0 %v148
  %856 = vmatpush1.msra.mxu0 %v147
  %857 = vmatprep.subr.mxu0 0.0
  %858 = vmatpush1.msra.mxu0 0.0
  %859 = vmatprep.subr.mxu0 0.0
  %860 = vmatpush1.msra.mxu0 0.0
  %861 = vmatprep.subr.mxu0 0.0
  %862 = vmatpush1.msra.mxu0 0.0
  %863 = vmatprep.subr.mxu0 0.0
  %864 = vmatpush1.msra.mxu0 0.0
  %865 = vmatprep.subr.mxu0 0.0
  %866 = vmatpush1.msra.mxu0 0.0
  %867 = vmatprep.subr.mxu0 0.0
  %868 = vmatpush1.msra.mxu0 0.0
  %869 = vmatprep.subr.mxu0 0.0
  %870 = vmatpush1.msra.mxu0 0.0
  %871 = vmatprep.subr.mxu0 0.0
  %872 = vmatpush1.msra.mxu0 0.0
  %873 = vmatprep.subr.mxu0 0.0
  %874 = vmatpush1.msra.mxu0 0.0
  %875 = vmatprep.subr.mxu0 0.0
  %876 = vmatpush1.msra.mxu0 0.0
  %877 = vmatprep.subr.mxu0 0.0
  %878 = vmatpush1.msra.mxu0 0.0
  %879 = vmatprep.subr.mxu0 0.0
  %880 = vmatpush1.msra.mxu0 0.0
  %881 = vmatprep.subr.mxu0 0.0
  %882 = vmatpush1.msra.mxu0 0.0
  %883 = vmatprep.subr.mxu0 0.0
  %884 = vmatpush1.msra.mxu0 0.0
  %885 = vmatprep.subr.mxu0 0.0
  %886 = vmatpush1.msra.mxu0 0.0
  %887 = vmatprep.subr.mxu0 0.0
  %888 = vmatpush1.msra.mxu0 0.0
  %889 = vmatprep.mubr.f32.mxu0 0.0
  %890 = vmatmul.mubr.f32.gmra.mrb[0].mxu0 %v823
  %v891 = vpop.f32.mrb[0].mxu0
  %v892 = vadd.f32 0.0, %v891
  %v893 = vpop.f32.mrb[0].mxu0
  %v894 = vadd.f32 0.0, %v893
  %895 = vdwg.mxu0
  %896 = vmatprep.subr.mxu0 %v90
  %897 = vmatpush1.msra.mxu0 %v89
  %898 = vmatprep.subr.mxu0 %v94
  %899 = vmatpush1.msra.mxu0 %v93
  %900 = vmatprep.subr.mxu0 %v98
  %901 = vmatpush1.msra.mxu0 %v97
  %902 = vmatprep.subr.mxu0 %v102
  %903 = vmatpush1.msra.mxu0 %v101
  %904 = vmatprep.subr.mxu0 %v106
  %905 = vmatpush1.msra.mxu0 %v105
  %906 = vmatprep.subr.mxu0 %v110
  %907 = vmatpush1.msra.mxu0 %v109
  %908 = vmatprep.subr.mxu0 %v114
  %909 = vmatpush1.msra.mxu0 %v113
  %910 = vmatprep.subr.mxu0 %v118
  %911 = vmatpush1.msra.mxu0 %v117
  %912 = vmatprep.subr.mxu0 %v122
  %913 = vmatpush1.msra.mxu0 %v121
  %914 = vmatprep.subr.mxu0 %v126
  %915 = vmatpush1.msra.mxu0 %v125
  %916 = vmatprep.subr.mxu0 %v130
  %917 = vmatpush1.msra.mxu0 %v129
  %918 = vmatprep.subr.mxu0 %v134
  %919 = vmatpush1.msra.mxu0 %v133
  %920 = vmatprep.subr.mxu0 %v138
  %921 = vmatpush1.msra.mxu0 %v137
  %922 = vmatprep.subr.mxu0 %v142
  %923 = vmatpush1.msra.mxu0 %v141
  %924 = vmatprep.subr.mxu0 %v146
  %925 = vmatpush1.msra.mxu0 %v145
  %926 = vmatprep.subr.mxu0 %v150
  %927 = vmatpush1.msra.mxu0 %v149
  %928 = vmatprep.subr.mxu0 0.0
  %929 = vmatpush1.msra.mxu0 0.0
  %930 = vmatprep.subr.mxu0 0.0
  %931 = vmatpush1.msra.mxu0 0.0
  %932 = vmatprep.subr.mxu0 0.0
  %933 = vmatpush1.msra.mxu0 0.0
  %934 = vmatprep.subr.mxu0 0.0
  %935 = vmatpush1.msra.mxu0 0.0
  %936 = vmatprep.subr.mxu0 0.0
  %937 = vmatpush1.msra.mxu0 0.0
  %938 = vmatprep.subr.mxu0 0.0
  %939 = vmatpush1.msra.mxu0 0.0
  %940 = vmatprep.subr.mxu0 0.0
  %941 = vmatpush1.msra.mxu0 0.0
  %942 = vmatprep.subr.mxu0 0.0
  %943 = vmatpush1.msra.mxu0 0.0
  %944 = vmatprep.subr.mxu0 0.0
  %945 = vmatpush1.msra.mxu0 0.0
  %946 = vmatprep.subr.mxu0 0.0
  %947 = vmatpush1.msra.mxu0 0.0
  %948 = vmatprep.subr.mxu0 0.0
  %949 = vmatpush1.msra.mxu0 0.0
  %950 = vmatprep.subr.mxu0 0.0
  %951 = vmatpush1.msra.mxu0 0.0
  %952 = vmatprep.subr.mxu0 0.0
  %953 = vmatpush1.msra.mxu0 0.0
  %954 = vmatprep.subr.mxu0 0.0
  %955 = vmatpush1.msra.mxu0 0.0
  %956 = vmatprep.subr.mxu0 0.0
  %957 = vmatpush1.msra.mxu0 0.0
  %958 = vmatprep.subr.mxu0 0.0
  %959 = vmatpush1.msra.mxu0 0.0
  %960 = vmatprep.mubr.f32.mxu0 0.0
  %961 = vmatmul.mubr.f32.gmra.mrb[0].mxu0 %v823
  %v962 = vpop.f32.mrb[0].mxu0
  %v963 = vadd.f32 0.0, %v962
  %v964 = vpop.f32.mrb[0].mxu0
  %v965 = vadd.f32 0.0, %v964
  %966 = vdwg.mxu0
  %v971 = vcombine.low %v892, %v894
  %v972 = vcombine.low %v963, %v965
  %v974 = vunpack.c.l.s4 1983009808
  %v975 = vunpack.c.0.s8 %v974
  %v976 = vlaneseq
  %v977 = vshrl.u32 %v976, 7
  %v978 = vsub.s32 %v975, %v977
  %v979 = vrot.slane %v971, %v978
  %v981 = vunpack.c.l.s4 1983009808
  %v982 = vunpack.c.0.s8 %v981
  %v983 = vlaneseq
  %v984 = vshrl.u32 %v983, 7
  %v985 = vsub.s32 %v982, %v984
  %v986 = vrot.slane %v972, %v985
  %v987 = vcombine.low %v979, %v986
  %v989 = vadd.f32 %v607, %v987
  %v990 = vxor.u32 %v989, 2147483648
  %v991 = vmul.f32 %v990, 1.442695
  %v992 = vpow.pop %v991
  %v993 = vadd.f32 %v992, 1.0
  %v994 = vrcp.pop %v993
  %v995 = vmul.f32 1.0, %v994
  %v997 = vrot.slane %v989, 2
  %v999 = vxor.u32 %v997, 2147483648
  %v1000 = vmul.f32 %v999, 1.442695
  %v1001 = vpow.pop %v1000
  %v1002 = vadd.f32 %v1001, 1.0
  %v1003 = vrcp.pop %v1002
  %v1004 = vmul.f32 1.0, %v1003
  %v1005 = vrot.slane %v989, 4
  %v1007 = vtanh.pop %v1005
  %v1008 = vrot.slane %v989, 6
  %v1010 = vxor.u32 %v1008, 2147483648
  %v1011 = vmul.f32 %v1010, 1.442695
  %v1012 = vpow.pop %v1011
  %v1013 = vadd.f32 %v1012, 1.0
  %v1014 = vrcp.pop %v1013
  %v1015 = vmul.f32 1.0, %v1014
  %v1016 = vmul.f32 %v1004, %v824
  %v1017 = vmul.f32 %v995, %v1007
  %v1018 = vadd.f32 %v1016, %v1017
  %v1019 = vtanh.pop %v1018
  %v1020 = vmul.f32 %v1015, %v1019
  %1022 = vset.pattern.permute.xlu0 0
  %1023 = vperm.xlu0 %1022, %v603
  %v1024 = vpop.permute.xlu0 %1023
  %v1026 = vmul.f32 %v1024, %v1020
  %v1027 = vsub.f32 1.0, %v603
  %1029 = vset.pattern.permute.xlu0 0
  %1030 = vperm.xlu0 %1029, %v1027
  %v1031 = vpop.permute.xlu0 %1030
  %v1033 = vmul.f32 %v1031, %v823
  %v1034 = vadd.f32 %v1026, %v1033
  %v1035 = vmul.f32 %v1024, %v1018
  %v1036 = vmul.f32 %v1031, %v824
  %v1037 = vadd.f32 %v1035, %v1036
  %1038 = vst [vmem:[#allocation2] sm:$0x3] %v819
  %1039 = vst [vmem:[#allocation3] sm:$0x3] %v822
  %1040 = vst [vmem:[#allocation4] sm:$0x3] %v1034
  %1041 = vst [vmem:[#allocation5] sm:$0x3] %v1037
  %s1042 = scalar_lea.vmem %s4, 2
  %1043 = vst [vmem:[%s1042] sm:$0x3] %v811
  %s1044 = scalar_lea.vmem %s5, 8
  %1045 = vst [vmem:[%s1044] sm:$0x3] %v1026
  %vm1046 = vcmp.gt.s32.totalorder %v151, 2
  %v1047 = vsel %vm1046, 1, 0
  %v1048 = vcvt.s32.f32 %v1047
  %vm1049 = vcmp.gt.s32.totalorder %v151, 3
  %v1050 = vsel %vm1049, 1, 0
  %v1051 = vcvt.s32.f32 %v1050
  %s1052 = scalar_lea.vmem %s0, 32
  %v1053 = vld [vmem:[%s1052] sm:$0xff]
  %s1054 = scalar_lea.vmem %s0, 48
  %v1055 = vld [vmem:[%s1054 + $0x8] sm:$0xff]
  %v1056 = vld [vmem:[#allocation2] sm:$0x3]
  %v1057 = vld [vmem:[#allocation3] sm:$0x3]
  %1058 = vmatprep.subr.mxu0 %v24
  %1059 = vmatpush1.msra.mxu0 %v23
  %1060 = vmatprep.subr.mxu0 %v28
  %1061 = vmatpush1.msra.mxu0 %v27
  %1062 = vmatprep.subr.mxu0 %v32
  %1063 = vmatpush1.msra.mxu0 %v31
  %1064 = vmatprep.subr.mxu0 %v36
  %1065 = vmatpush1.msra.mxu0 %v35
  %1066 = vmatprep.subr.mxu0 %v40
  %1067 = vmatpush1.msra.mxu0 %v39
  %1068 = vmatprep.subr.mxu0 %v44
  %1069 = vmatpush1.msra.mxu0 %v43
  %1070 = vmatprep.subr.mxu0 %v48
  %1071 = vmatpush1.msra.mxu0 %v47
  %1072 = vmatprep.subr.mxu0 %v52
  %1073 = vmatpush1.msra.mxu0 %v51
  %1074 = vmatprep.subr.mxu0 %v56
  %1075 = vmatpush1.msra.mxu0 %v55
  %1076 = vmatprep.subr.mxu0 %v60
  %1077 = vmatpush1.msra.mxu0 %v59
  %1078 = vmatprep.subr.mxu0 %v64
  %1079 = vmatpush1.msra.mxu0 %v63
  %1080 = vmatprep.subr.mxu0 %v68
  %1081 = vmatpush1.msra.mxu0 %v67
  %1082 = vmatprep.subr.mxu0 %v72
  %1083 = vmatpush1.msra.mxu0 %v71
  %1084 = vmatprep.subr.mxu0 %v76
  %1085 = vmatpush1.msra.mxu0 %v75
  %1086 = vmatprep.subr.mxu0 %v80
  %1087 = vmatpush1.msra.mxu0 %v79
  %1088 = vmatprep.subr.mxu0 %v84
  %1089 = vmatpush1.msra.mxu0 %v83
  %1090 = vmatprep.subr.mxu0 0.0
  %1091 = vmatpush1.msra.mxu0 0.0
  %1092 = vmatprep.subr.mxu0 0.0
  %1093 = vmatpush1.msra.mxu0 0.0
  %1094 = vmatprep.subr.mxu0 0.0
  %1095 = vmatpush1.msra.mxu0 0.0
  %1096 = vmatprep.subr.mxu0 0.0
  %1097 = vmatpush1.msra.mxu0 0.0
  %1098 = vmatprep.subr.mxu0 0.0
  %1099 = vmatpush1.msra.mxu0 0.0
  %1100 = vmatprep.subr.mxu0 0.0
  %1101 = vmatpush1.msra.mxu0 0.0
  %1102 = vmatprep.subr.mxu0 0.0
  %1103 = vmatpush1.msra.mxu0 0.0
  %1104 = vmatprep.subr.mxu0 0.0
  %1105 = vmatpush1.msra.mxu0 0.0
  %1106 = vmatprep.subr.mxu0 0.0
  %1107 = vmatpush1.msra.mxu0 0.0
  %1108 = vmatprep.subr.mxu0 0.0
  %1109 = vmatpush1.msra.mxu0 0.0
  %1110 = vmatprep.subr.mxu0 0.0
  %1111 = vmatpush1.msra.mxu0 0.0
  %1112 = vmatprep.subr.mxu0 0.0
  %1113 = vmatpush1.msra.mxu0 0.0
  %1114 = vmatprep.subr.mxu0 0.0
  %1115 = vmatpush1.msra.mxu0 0.0
  %1116 = vmatprep.subr.mxu0 0.0
  %1117 = vmatpush1.msra.mxu0 0.0
  %1118 = vmatprep.subr.mxu0 0.0
  %1119 = vmatpush1.msra.mxu0 0.0
  %1120 = vmatprep.subr.mxu0 0.0
  %1121 = vmatpush1.msra.mxu0 0.0
  %1122 = vmatprep.mubr.f32.mxu0 0.0
  %1123 = vmatmul.mubr.f32.gmra.mrb[0].mxu0 %v1056
  %v1124 = vpop.f32.mrb[0].mxu0
  %v1125 = vadd.f32 0.0, %v1124
  %v1126 = vpop.f32.mrb[0].mxu0
  %v1127 = vadd.f32 0.0, %v1126
  %1128 = vdwg.mxu0
  %1129 = vmatprep.subr.mxu0 %v26
  %1130 = vmatpush1.msra.mxu0 %v25
  %1131 = vmatprep.subr.mxu0 %v30
  %1132 = vmatpush1.msra.mxu0 %v29
  %1133 = vmatprep.subr.mxu0 %v34
  %1134 = vmatpush1.msra.mxu0 %v33
  %1135 = vmatprep.subr.mxu0 %v38
  %1136 = vmatpush1.msra.mxu0 %v37
  %1137 = vmatprep.subr.mxu0 %v42
  %1138 = vmatpush1.msra.mxu0 %v41
  %1139 = vmatprep.subr.mxu0 %v46
  %1140 = vmatpush1.msra.mxu0 %v45
  %1141 = vmatprep.subr.mxu0 %v50
  %1142 = vmatpush1.msra.mxu0 %v49
  %1143 = vmatprep.subr.mxu0 %v54
  %1144 = vmatpush1.msra.mxu0 %v53
  %1145 = vmatprep.subr.mxu0 %v58
  %1146 = vmatpush1.msra.mxu0 %v57
  %1147 = vmatprep.subr.mxu0 %v62
  %1148 = vmatpush1.msra.mxu0 %v61
  %1149 = vmatprep.subr.mxu0 %v66
  %1150 = vmatpush1.msra.mxu0 %v65
  %1151 = vmatprep.subr.mxu0 %v70
  %1152 = vmatpush1.msra.mxu0 %v69
  %1153 = vmatprep.subr.mxu0 %v74
  %1154 = vmatpush1.msra.mxu0 %v73
  %1155 = vmatprep.subr.mxu0 %v78
  %1156 = vmatpush1.msra.mxu0 %v77
  %1157 = vmatprep.subr.mxu0 %v82
  %1158 = vmatpush1.msra.mxu0 %v81
  %1159 = vmatprep.subr.mxu0 %v86
  %1160 = vmatpush1.msra.mxu0 %v85
  %1161 = vmatprep.subr.mxu0 0.0
  %1162 = vmatpush1.msra.mxu0 0.0
  %1163 = vmatprep.subr.mxu0 0.0
  %1164 = vmatpush1.msra.mxu0 0.0
  %1165 = vmatprep.subr.mxu0 0.0
  %1166 = vmatpush1.msra.mxu0 0.0
  %1167 = vmatprep.subr.mxu0 0.0
  %1168 = vmatpush1.msra.mxu0 0.0
  %1169 = vmatprep.subr.mxu0 0.0
  %1170 = vmatpush1.msra.mxu0 0.0
  %1171 = vmatprep.subr.mxu0 0.0
  %1172 = vmatpush1.msra.mxu0 0.0
  %1173 = vmatprep.subr.mxu0 0.0
  %1174 = vmatpush1.msra.mxu0 0.0
  %1175 = vmatprep.subr.mxu0 0.0
  %1176 = vmatpush1.msra.mxu0 0.0
  %1177 = vmatprep.subr.mxu0 0.0
  %1178 = vmatpush1.msra.mxu0 0.0
  %1179 = vmatprep.subr.mxu0 0.0
  %1180 = vmatpush1.msra.mxu0 0.0
  %1181 = vmatprep.subr.mxu0 0.0
  %1182 = vmatpush1.msra.mxu0 0.0
  %1183 = vmatprep.subr.mxu0 0.0
  %1184 = vmatpush1.msra.mxu0 0.0
  %1185 = vmatprep.subr.mxu0 0.0
  %1186 = vmatpush1.msra.mxu0 0.0
  %1187 = vmatprep.subr.mxu0 0.0
  %1188 = vmatpush1.msra.mxu0 0.0
  %1189 = vmatprep.subr.mxu0 0.0
  %1190 = vmatpush1.msra.mxu0 0.0
  %1191 = vmatprep.subr.mxu0 0.0
  %1192 = vmatpush1.msra.mxu0 0.0
  %1193 = vmatprep.mubr.f32.mxu0 0.0
  %1194 = vmatmul.mubr.f32.gmra.mrb[0].mxu0 %v1056
  %v1195 = vpop.f32.mrb[0].mxu0
  %v1196 = vadd.f32 0.0, %v1195
  %v1197 = vpop.f32.mrb[0].mxu0
  %v1198 = vadd.f32 0.0, %v1197
  %1199 = vdwg.mxu0
  %v1204 = vcombine.low %v1125, %v1127
  %v1205 = vcombine.low %v1196, %v1198
  %v1207 = vunpack.c.l.s4 1983009808
  %v1208 = vunpack.c.0.s8 %v1207
  %v1209 = vlaneseq
  %v1210 = vshrl.u32 %v1209, 7
  %v1211 = vsub.s32 %v1208, %v1210
  %v1212 = vrot.slane %v1204, %v1211
  %v1214 = vunpack.c.l.s4 1983009808
  %v1215 = vunpack.c.0.s8 %v1214
  %v1216 = vlaneseq
  %v1217 = vshrl.u32 %v1216, 7
  %v1218 = vsub.s32 %v1215, %v1217
  %v1219 = vrot.slane %v1205, %v1218
  %v1220 = vcombine.low %v1212, %v1219
  %v1222 = vadd.f32 %v1053, %v1220
  %v1223 = vxor.u32 %v1222, 2147483648
  %v1224 = vmul.f32 %v1223, 1.442695
  %v1225 = vpow.pop %v1224
  %v1226 = vadd.f32 %v1225, 1.0
  %v1227 = vrcp.pop %v1226
  %v1228 = vmul.f32 1.0, %v1227
  %v1230 = vrot.slane %v1222, 2
  %v1232 = vxor.u32 %v1230, 2147483648
  %v1233 = vmul.f32 %v1232, 1.442695
  %v1234 = vpow.pop %v1233
  %v1235 = vadd.f32 %v1234, 1.0
  %v1236 = vrcp.pop %v1235
  %v1237 = vmul.f32 1.0, %v1236
  %v1238 = vrot.slane %v1222, 4
  %v1240 = vtanh.pop %v1238
  %v1241 = vrot.slane %v1222, 6
  %v1243 = vxor.u32 %v1241, 2147483648
  %v1244 = vmul.f32 %v1243, 1.442695
  %v1245 = vpow.pop %v1244
  %v1246 = vadd.f32 %v1245, 1.0
  %v1247 = vrcp.pop %v1246
  %v1248 = vmul.f32 1.0, %v1247
  %v1249 = vmul.f32 %v1237, %v1057
  %v1250 = vmul.f32 %v1228, %v1240
  %v1251 = vadd.f32 %v1249, %v1250
  %v1252 = vtanh.pop %v1251
  %v1253 = vmul.f32 %v1248, %v1252
  %1255 = vset.pattern.permute.xlu0 0
  %1256 = vperm.xlu0 %1255, %v1048
  %v1257 = vpop.permute.xlu0 %1256
  %v1259 = vmul.f32 %v1257, %v1253
  %v1260 = vsub.f32 1.0, %v1048
  %1262 = vset.pattern.permute.xlu0 0
  %1263 = vperm.xlu0 %1262, %v1260
  %v1264 = vpop.permute.xlu0 %1263
  %v1266 = vmul.f32 %v1264, %v1056
  %v1267 = vadd.f32 %v1259, %v1266
  %v1268 = vmul.f32 %v1257, %v1251
  %v1269 = vmul.f32 %v1264, %v1057
  %v1270 = vadd.f32 %v1268, %v1269
  %v1271 = vld [vmem:[#allocation4] sm:$0x3]
  %v1272 = vld [vmem:[#allocation5] sm:$0x3]
  %1273 = vmatprep.subr.mxu0 %v88
  %1274 = vmatpush1.msra.mxu0 %v87
  %1275 = vmatprep.subr.mxu0 %v92
  %1276 = vmatpush1.msra.mxu0 %v91
  %1277 = vmatprep.subr.mxu0 %v96
  %1278 = vmatpush1.msra.mxu0 %v95
  %1279 = vmatprep.subr.mxu0 %v100
  %1280 = vmatpush1.msra.mxu0 %v99
  %1281 = vmatprep.subr.mxu0 %v104
  %1282 = vmatpush1.msra.mxu0 %v103
  %1283 = vmatprep.subr.mxu0 %v108
  %1284 = vmatpush1.msra.mxu0 %v107
  %1285 = vmatprep.subr.mxu0 %v112
  %1286 = vmatpush1.msra.mxu0 %v111
  %1287 = vmatprep.subr.mxu0 %v116
  %1288 = vmatpush1.msra.mxu0 %v115
  %1289 = vmatprep.subr.mxu0 %v120
  %1290 = vmatpush1.msra.mxu0 %v119
  %1291 = vmatprep.subr.mxu0 %v124
  %1292 = vmatpush1.msra.mxu0 %v123
  %1293 = vmatprep.subr.mxu0 %v128
  %1294 = vmatpush1.msra.mxu0 %v127
  %1295 = vmatprep.subr.mxu0 %v132
  %1296 = vmatpush1.msra.mxu0 %v131
  %1297 = vmatprep.subr.mxu0 %v136
  %1298 = vmatpush1.msra.mxu0 %v135
  %1299 = vmatprep.subr.mxu0 %v140
  %1300 = vmatpush1.msra.mxu0 %v139
  %1301 = vmatprep.subr.mxu0 %v144
  %1302 = vmatpush1.msra.mxu0 %v143
  %1303 = vmatprep.subr.mxu0 %v148
  %1304 = vmatpush1.msra.mxu0 %v147
  %1305 = vmatprep.subr.mxu0 0.0
  %1306 = vmatpush1.msra.mxu0 0.0
  %1307 = vmatprep.subr.mxu0 0.0
  %1308 = vmatpush1.msra.mxu0 0.0
  %1309 = vmatprep.subr.mxu0 0.0
  %1310 = vmatpush1.msra.mxu0 0.0
  %1311 = vmatprep.subr.mxu0 0.0
  %1312 = vmatpush1.msra.mxu0 0.0
  %1313 = vmatprep.subr.mxu0 0.0
  %1314 = vmatpush1.msra.mxu0 0.0
  %1315 = vmatprep.subr.mxu0 0.0
  %1316 = vmatpush1.msra.mxu0 0.0
  %1317 = vmatprep.subr.mxu0 0.0
  %1318 = vmatpush1.msra.mxu0 0.0
  %1319 = vmatprep.subr.mxu0 0.0
  %1320 = vmatpush1.msra.mxu0 0.0
  %1321 = vmatprep.subr.mxu0 0.0
  %1322 = vmatpush1.msra.mxu0 0.0
  %1323 = vmatprep.subr.mxu0 0.0
  %1324 = vmatpush1.msra.mxu0 0.0
  %1325 = vmatprep.subr.mxu0 0.0
  %1326 = vmatpush1.msra.mxu0 0.0
  %1327 = vmatprep.subr.mxu0 0.0
  %1328 = vmatpush1.msra.mxu0 0.0
  %1329 = vmatprep.subr.mxu0 0.0
  %1330 = vmatpush1.msra.mxu0 0.0
  %1331 = vmatprep.subr.mxu0 0.0
  %1332 = vmatpush1.msra.mxu0 0.0
  %1333 = vmatprep.subr.mxu0 0.0
  %1334 = vmatpush1.msra.mxu0 0.0
  %1335 = vmatprep.subr.mxu0 0.0
  %1336 = vmatpush1.msra.mxu0 0.0
  %1337 = vmatprep.mubr.f32.mxu0 0.0
  %1338 = vmatmul.mubr.f32.gmra.mrb[0].mxu0 %v1271
  %v1339 = vpop.f32.mrb[0].mxu0
  %v1340 = vadd.f32 0.0, %v1339
  %v1341 = vpop.f32.mrb[0].mxu0
  %v1342 = vadd.f32 0.0, %v1341
  %1343 = vdwg.mxu0
  %1344 = vmatprep.subr.mxu0 %v90
  %1345 = vmatpush1.msra.mxu0 %v89
  %1346 = vmatprep.subr.mxu0 %v94
  %1347 = vmatpush1.msra.mxu0 %v93
  %1348 = vmatprep.subr.mxu0 %v98
  %1349 = vmatpush1.msra.mxu0 %v97
  %1350 = vmatprep.subr.mxu0 %v102
  %1351 = vmatpush1.msra.mxu0 %v101
  %1352 = vmatprep.subr.mxu0 %v106
  %1353 = vmatpush1.msra.mxu0 %v105
  %1354 = vmatprep.subr.mxu0 %v110
  %1355 = vmatpush1.msra.mxu0 %v109
  %1356 = vmatprep.subr.mxu0 %v114
  %1357 = vmatpush1.msra.mxu0 %v113
  %1358 = vmatprep.subr.mxu0 %v118
  %1359 = vmatpush1.msra.mxu0 %v117
  %1360 = vmatprep.subr.mxu0 %v122
  %1361 = vmatpush1.msra.mxu0 %v121
  %1362 = vmatprep.subr.mxu0 %v126
  %1363 = vmatpush1.msra.mxu0 %v125
  %1364 = vmatprep.subr.mxu0 %v130
  %1365 = vmatpush1.msra.mxu0 %v129
  %1366 = vmatprep.subr.mxu0 %v134
  %1367 = vmatpush1.msra.mxu0 %v133
  %1368 = vmatprep.subr.mxu0 %v138
  %1369 = vmatpush1.msra.mxu0 %v137
  %1370 = vmatprep.subr.mxu0 %v142
  %1371 = vmatpush1.msra.mxu0 %v141
  %1372 = vmatprep.subr.mxu0 %v146
  %1373 = vmatpush1.msra.mxu0 %v145
  %1374 = vmatprep.subr.mxu0 %v150
  %1375 = vmatpush1.msra.mxu0 %v149
  %1376 = vmatprep.subr.mxu0 0.0
  %1377 = vmatpush1.msra.mxu0 0.0
  %1378 = vmatprep.subr.mxu0 0.0
  %1379 = vmatpush1.msra.mxu0 0.0
  %1380 = vmatprep.subr.mxu0 0.0
  %1381 = vmatpush1.msra.mxu0 0.0
  %1382 = vmatprep.subr.mxu0 0.0
  %1383 = vmatpush1.msra.mxu0 0.0
  %1384 = vmatprep.subr.mxu0 0.0
  %1385 = vmatpush1.msra.mxu0 0.0
  %1386 = vmatprep.subr.mxu0 0.0
  %1387 = vmatpush1.msra.mxu0 0.0
  %1388 = vmatprep.subr.mxu0 0.0
  %1389 = vmatpush1.msra.mxu0 0.0
  %1390 = vmatprep.subr.mxu0 0.0
  %1391 = vmatpush1.msra.mxu0 0.0
  %1392 = vmatprep.subr.mxu0 0.0
  %1393 = vmatpush1.msra.mxu0 0.0
  %1394 = vmatprep.subr.mxu0 0.0
  %1395 = vmatpush1.msra.mxu0 0.0
  %1396 = vmatprep.subr.mxu0 0.0
  %1397 = vmatpush1.msra.mxu0 0.0
  %1398 = vmatprep.subr.mxu0 0.0
  %1399 = vmatpush1.msra.mxu0 0.0
  %1400 = vmatprep.subr.mxu0 0.0
  %1401 = vmatpush1.msra.mxu0 0.0
  %1402 = vmatprep.subr.mxu0 0.0
  %1403 = vmatpush1.msra.mxu0 0.0
  %1404 = vmatprep.subr.mxu0 0.0
  %1405 = vmatpush1.msra.mxu0 0.0
  %1406 = vmatprep.subr.mxu0 0.0
  %1407 = vmatpush1.msra.mxu0 0.0
  %1408 = vmatprep.mubr.f32.mxu0 0.0
  %1409 = vmatmul.mubr.f32.gmra.mrb[0].mxu0 %v1271
  %v1410 = vpop.f32.mrb[0].mxu0
  %v1411 = vadd.f32 0.0, %v1410
  %v1412 = vpop.f32.mrb[0].mxu0
  %v1413 = vadd.f32 0.0, %v1412
  %1414 = vdwg.mxu0
  %v1419 = vcombine.low %v1340, %v1342
  %v1420 = vcombine.low %v1411, %v1413
  %v1422 = vunpack.c.l.s4 1983009808
  %v1423 = vunpack.c.0.s8 %v1422
  %v1424 = vlaneseq
  %v1425 = vshrl.u32 %v1424, 7
  %v1426 = vsub.s32 %v1423, %v1425
  %v1427 = vrot.slane %v1419, %v1426
  %v1429 = vunpack.c.l.s4 1983009808
  %v1430 = vunpack.c.0.s8 %v1429
  %v1431 = vlaneseq
  %v1432 = vshrl.u32 %v1431, 7
  %v1433 = vsub.s32 %v1430, %v1432
  %v1434 = vrot.slane %v1420, %v1433
  %v1435 = vcombine.low %v1427, %v1434
  %v1437 = vadd.f32 %v1055, %v1435
  %v1438 = vxor.u32 %v1437, 2147483648
  %v1439 = vmul.f32 %v1438, 1.442695
  %v1440 = vpow.pop %v1439
  %v1441 = vadd.f32 %v1440, 1.0
  %v1442 = vrcp.pop %v1441
  %v1443 = vmul.f32 1.0, %v1442
  %v1445 = vrot.slane %v1437, 2
  %v1447 = vxor.u32 %v1445, 2147483648
  %v1448 = vmul.f32 %v1447, 1.442695
  %v1449 = vpow.pop %v1448
  %v1450 = vadd.f32 %v1449, 1.0
  %v1451 = vrcp.pop %v1450
  %v1452 = vmul.f32 1.0, %v1451
  %v1453 = vrot.slane %v1437, 4
  %v1455 = vtanh.pop %v1453
  %v1456 = vrot.slane %v1437, 6
  %v1458 = vxor.u32 %v1456, 2147483648
  %v1459 = vmul.f32 %v1458, 1.442695
  %v1460 = vpow.pop %v1459
  %v1461 = vadd.f32 %v1460, 1.0
  %v1462 = vrcp.pop %v1461
  %v1463 = vmul.f32 1.0, %v1462
  %v1464 = vmul.f32 %v1452, %v1272
  %v1465 = vmul.f32 %v1443, %v1455
  %v1466 = vadd.f32 %v1464, %v1465
  %v1467 = vtanh.pop %v1466
  %v1468 = vmul.f32 %v1463, %v1467
  %1470 = vset.pattern.permute.xlu0 0
  %1471 = vperm.xlu0 %1470, %v1051
  %v1472 = vpop.permute.xlu0 %1471
  %v1474 = vmul.f32 %v1472, %v1468
  %v1475 = vsub.f32 1.0, %v1051
  %1477 = vset.pattern.permute.xlu0 0
  %1478 = vperm.xlu0 %1477, %v1475
  %v1479 = vpop.permute.xlu0 %1478
  %v1481 = vmul.f32 %v1479, %v1271
  %v1482 = vadd.f32 %v1474, %v1481
  %v1483 = vmul.f32 %v1472, %v1466
  %v1484 = vmul.f32 %v1479, %v1272
  %v1485 = vadd.f32 %v1483, %v1484
  %1486 = vst [vmem:[#allocation2] sm:$0x3] %v1267
  %1487 = vst [vmem:[#allocation3] sm:$0x3] %v1270
  %1488 = vst [vmem:[#allocation4] sm:$0x3] %v1482
  %1489 = vst [vmem:[#allocation5] sm:$0x3] %v1485
  %s1490 = scalar_lea.vmem %s4, 4
  %1491 = vst [vmem:[%s1490] sm:$0x3] %v1259
  %s1492 = scalar_lea.vmem %s5, 6
  %1493 = vst [vmem:[%s1492] sm:$0x3] %v1474
  %v1494 = vld [vmem:[%s1054] sm:$0xff]
  %v1495 = vld [vmem:[%s1052 + $0x8] sm:$0xff]
  %v1496 = vld [vmem:[#allocation2] sm:$0x3]
  %v1497 = vld [vmem:[#allocation3] sm:$0x3]
  %1498 = vmatprep.subr.mxu0 %v24
  %1499 = vmatpush1.msra.mxu0 %v23
  %1500 = vmatprep.subr.mxu0 %v28
  %1501 = vmatpush1.msra.mxu0 %v27
  %1502 = vmatprep.subr.mxu0 %v32
  %1503 = vmatpush1.msra.mxu0 %v31
  %1504 = vmatprep.subr.mxu0 %v36
  %1505 = vmatpush1.msra.mxu0 %v35
  %1506 = vmatprep.subr.mxu0 %v40
  %1507 = vmatpush1.msra.mxu0 %v39
  %1508 = vmatprep.subr.mxu0 %v44
  %1509 = vmatpush1.msra.mxu0 %v43
  %1510 = vmatprep.subr.mxu0 %v48
  %1511 = vmatpush1.msra.mxu0 %v47
  %1512 = vmatprep.subr.mxu0 %v52
  %1513 = vmatpush1.msra.mxu0 %v51
  %1514 = vmatprep.subr.mxu0 %v56
  %1515 = vmatpush1.msra.mxu0 %v55
  %1516 = vmatprep.subr.mxu0 %v60
  %1517 = vmatpush1.msra.mxu0 %v59
  %1518 = vmatprep.subr.mxu0 %v64
  %1519 = vmatpush1.msra.mxu0 %v63
  %1520 = vmatprep.subr.mxu0 %v68
  %1521 = vmatpush1.msra.mxu0 %v67
  %1522 = vmatprep.subr.mxu0 %v72
  %1523 = vmatpush1.msra.mxu0 %v71
  %1524 = vmatprep.subr.mxu0 %v76
  %1525 = vmatpush1.msra.mxu0 %v75
  %1526 = vmatprep.subr.mxu0 %v80
  %1527 = vmatpush1.msra.mxu0 %v79
  %1528 = vmatprep.subr.mxu0 %v84
  %1529 = vmatpush1.msra.mxu0 %v83
  %1530 = vmatprep.subr.mxu0 0.0
  %1531 = vmatpush1.msra.mxu0 0.0
  %1532 = vmatprep.subr.mxu0 0.0
  %1533 = vmatpush1.msra.mxu0 0.0
  %1534 = vmatprep.subr.mxu0 0.0
  %1535 = vmatpush1.msra.mxu0 0.0
  %1536 = vmatprep.subr.mxu0 0.0
  %1537 = vmatpush1.msra.mxu0 0.0
  %1538 = vmatprep.subr.mxu0 0.0
  %1539 = vmatpush1.msra.mxu0 0.0
  %1540 = vmatprep.subr.mxu0 0.0
  %1541 = vmatpush1.msra.mxu0 0.0
  %1542 = vmatprep.subr.mxu0 0.0
  %1543 = vmatpush1.msra.mxu0 0.0
  %1544 = vmatprep.subr.mxu0 0.0
  %1545 = vmatpush1.msra.mxu0 0.0
  %1546 = vmatprep.subr.mxu0 0.0
  %1547 = vmatpush1.msra.mxu0 0.0
  %1548 = vmatprep.subr.mxu0 0.0
  %1549 = vmatpush1.msra.mxu0 0.0
  %1550 = vmatprep.subr.mxu0 0.0
  %1551 = vmatpush1.msra.mxu0 0.0
  %1552 = vmatprep.subr.mxu0 0.0
  %1553 = vmatpush1.msra.mxu0 0.0
  %1554 = vmatprep.subr.mxu0 0.0
  %1555 = vmatpush1.msra.mxu0 0.0
  %1556 = vmatprep.subr.mxu0 0.0
  %1557 = vmatpush1.msra.mxu0 0.0
  %1558 = vmatprep.subr.mxu0 0.0
  %1559 = vmatpush1.msra.mxu0 0.0
  %1560 = vmatprep.subr.mxu0 0.0
  %1561 = vmatpush1.msra.mxu0 0.0
  %1562 = vmatprep.mubr.f32.mxu0 0.0
  %1563 = vmatmul.mubr.f32.gmra.mrb[0].mxu0 %v1496
  %v1564 = vpop.f32.mrb[0].mxu0
  %v1565 = vadd.f32 0.0, %v1564
  %v1566 = vpop.f32.mrb[0].mxu0
  %v1567 = vadd.f32 0.0, %v1566
  %1568 = vdwg.mxu0
  %1569 = vmatprep.subr.mxu0 %v26
  %1570 = vmatpush1.msra.mxu0 %v25
  %1571 = vmatprep.subr.mxu0 %v30
  %1572 = vmatpush1.msra.mxu0 %v29
  %1573 = vmatprep.subr.mxu0 %v34
  %1574 = vmatpush1.msra.mxu0 %v33
  %1575 = vmatprep.subr.mxu0 %v38
  %1576 = vmatpush1.msra.mxu0 %v37
  %1577 = vmatprep.subr.mxu0 %v42
  %1578 = vmatpush1.msra.mxu0 %v41
  %1579 = vmatprep.subr.mxu0 %v46
  %1580 = vmatpush1.msra.mxu0 %v45
  %1581 = vmatprep.subr.mxu0 %v50
  %1582 = vmatpush1.msra.mxu0 %v49
  %1583 = vmatprep.subr.mxu0 %v54
  %1584 = vmatpush1.msra.mxu0 %v53
  %1585 = vmatprep.subr.mxu0 %v58
  %1586 = vmatpush1.msra.mxu0 %v57
  %1587 = vmatprep.subr.mxu0 %v62
  %1588 = vmatpush1.msra.mxu0 %v61
  %1589 = vmatprep.subr.mxu0 %v66
  %1590 = vmatpush1.msra.mxu0 %v65
  %1591 = vmatprep.subr.mxu0 %v70
  %1592 = vmatpush1.msra.mxu0 %v69
  %1593 = vmatprep.subr.mxu0 %v74
  %1594 = vmatpush1.msra.mxu0 %v73
  %1595 = vmatprep.subr.mxu0 %v78
  %1596 = vmatpush1.msra.mxu0 %v77
  %1597 = vmatprep.subr.mxu0 %v82
  %1598 = vmatpush1.msra.mxu0 %v81
  %1599 = vmatprep.subr.mxu0 %v86
  %1600 = vmatpush1.msra.mxu0 %v85
  %1601 = vmatprep.subr.mxu0 0.0
  %1602 = vmatpush1.msra.mxu0 0.0
  %1603 = vmatprep.subr.mxu0 0.0
  %1604 = vmatpush1.msra.mxu0 0.0
  %1605 = vmatprep.subr.mxu0 0.0
  %1606 = vmatpush1.msra.mxu0 0.0
  %1607 = vmatprep.subr.mxu0 0.0
  %1608 = vmatpush1.msra.mxu0 0.0
  %1609 = vmatprep.subr.mxu0 0.0
  %1610 = vmatpush1.msra.mxu0 0.0
  %1611 = vmatprep.subr.mxu0 0.0
  %1612 = vmatpush1.msra.mxu0 0.0
  %1613 = vmatprep.subr.mxu0 0.0
  %1614 = vmatpush1.msra.mxu0 0.0
  %1615 = vmatprep.subr.mxu0 0.0
  %1616 = vmatpush1.msra.mxu0 0.0
  %1617 = vmatprep.subr.mxu0 0.0
  %1618 = vmatpush1.msra.mxu0 0.0
  %1619 = vmatprep.subr.mxu0 0.0
  %1620 = vmatpush1.msra.mxu0 0.0
  %1621 = vmatprep.subr.mxu0 0.0
  %1622 = vmatpush1.msra.mxu0 0.0
  %1623 = vmatprep.subr.mxu0 0.0
  %1624 = vmatpush1.msra.mxu0 0.0
  %1625 = vmatprep.subr.mxu0 0.0
  %1626 = vmatpush1.msra.mxu0 0.0
  %1627 = vmatprep.subr.mxu0 0.0
  %1628 = vmatpush1.msra.mxu0 0.0
  %1629 = vmatprep.subr.mxu0 0.0
  %1630 = vmatpush1.msra.mxu0 0.0
  %1631 = vmatprep.subr.mxu0 0.0
  %1632 = vmatpush1.msra.mxu0 0.0
  %1633 = vmatprep.mubr.f32.mxu0 0.0
  %1634 = vmatmul.mubr.f32.gmra.mrb[0].mxu0 %v1496
  %v1635 = vpop.f32.mrb[0].mxu0
  %v1636 = vadd.f32 0.0, %v1635
  %v1637 = vpop.f32.mrb[0].mxu0
  %v1638 = vadd.f32 0.0, %v1637
  %1639 = vdwg.mxu0
  %v1644 = vcombine.low %v1565, %v1567
  %v1645 = vcombine.low %v1636, %v1638
  %v1647 = vunpack.c.l.s4 1983009808
  %v1648 = vunpack.c.0.s8 %v1647
  %v1649 = vlaneseq
  %v1650 = vshrl.u32 %v1649, 7
  %v1651 = vsub.s32 %v1648, %v1650
  %v1652 = vrot.slane %v1644, %v1651
  %v1654 = vunpack.c.l.s4 1983009808
  %v1655 = vunpack.c.0.s8 %v1654
  %v1656 = vlaneseq
  %v1657 = vshrl.u32 %v1656, 7
  %v1658 = vsub.s32 %v1655, %v1657
  %v1659 = vrot.slane %v1645, %v1658
  %v1660 = vcombine.low %v1652, %v1659
  %v1662 = vadd.f32 %v1494, %v1660
  %v1663 = vxor.u32 %v1662, 2147483648
  %v1664 = vmul.f32 %v1663, 1.442695
  %v1665 = vpow.pop %v1664
  %v1666 = vadd.f32 %v1665, 1.0
  %v1667 = vrcp.pop %v1666
  %v1668 = vmul.f32 1.0, %v1667
  %v1670 = vrot.slane %v1662, 2
  %v1672 = vxor.u32 %v1670, 2147483648
  %v1673 = vmul.f32 %v1672, 1.442695
  %v1674 = vpow.pop %v1673
  %v1675 = vadd.f32 %v1674, 1.0
  %v1676 = vrcp.pop %v1675
  %v1677 = vmul.f32 1.0, %v1676
  %v1678 = vrot.slane %v1662, 4
  %v1680 = vtanh.pop %v1678
  %v1681 = vrot.slane %v1662, 6
  %v1683 = vxor.u32 %v1681, 2147483648
  %v1684 = vmul.f32 %v1683, 1.442695
  %v1685 = vpow.pop %v1684
  %v1686 = vadd.f32 %v1685, 1.0
  %v1687 = vrcp.pop %v1686
  %v1688 = vmul.f32 1.0, %v1687
  %v1689 = vmul.f32 %v1677, %v1497
  %v1690 = vmul.f32 %v1668, %v1680
  %v1691 = vadd.f32 %v1689, %v1690
  %v1692 = vtanh.pop %v1691
  %v1693 = vmul.f32 %v1688, %v1692
  %v1694 = vmul.f32 %v1472, %v1693
  %v1695 = vmul.f32 %v1479, %v1496
  %v1696 = vadd.f32 %v1694, %v1695
  %v1697 = vmul.f32 %v1472, %v1691
  %v1698 = vmul.f32 %v1479, %v1497
  %v1699 = vadd.f32 %v1697, %v1698
  %v1700 = vld [vmem:[#allocation4] sm:$0x3]
  %v1701 = vld [vmem:[#allocation5] sm:$0x3]
  %1702 = vmatprep.subr.mxu0 %v88
  %1703 = vmatpush1.msra.mxu0 %v87
  %1704 = vmatprep.subr.mxu0 %v92
  %1705 = vmatpush1.msra.mxu0 %v91
  %1706 = vmatprep.subr.mxu0 %v96
  %1707 = vmatpush1.msra.mxu0 %v95
  %1708 = vmatprep.subr.mxu0 %v100
  %1709 = vmatpush1.msra.mxu0 %v99
  %1710 = vmatprep.subr.mxu0 %v104
  %1711 = vmatpush1.msra.mxu0 %v103
  %1712 = vmatprep.subr.mxu0 %v108
  %1713 = vmatpush1.msra.mxu0 %v107
  %1714 = vmatprep.subr.mxu0 %v112
  %1715 = vmatpush1.msra.mxu0 %v111
  %1716 = vmatprep.subr.mxu0 %v116
  %1717 = vmatpush1.msra.mxu0 %v115
  %1718 = vmatprep.subr.mxu0 %v120
  %1719 = vmatpush1.msra.mxu0 %v119
  %1720 = vmatprep.subr.mxu0 %v124
  %1721 = vmatpush1.msra.mxu0 %v123
  %1722 = vmatprep.subr.mxu0 %v128
  %1723 = vmatpush1.msra.mxu0 %v127
  %1724 = vmatprep.subr.mxu0 %v132
  %1725 = vmatpush1.msra.mxu0 %v131
  %1726 = vmatprep.subr.mxu0 %v136
  %1727 = vmatpush1.msra.mxu0 %v135
  %1728 = vmatprep.subr.mxu0 %v140
  %1729 = vmatpush1.msra.mxu0 %v139
  %1730 = vmatprep.subr.mxu0 %v144
  %1731 = vmatpush1.msra.mxu0 %v143
  %1732 = vmatprep.subr.mxu0 %v148
  %1733 = vmatpush1.msra.mxu0 %v147
  %1734 = vmatprep.subr.mxu0 0.0
  %1735 = vmatpush1.msra.mxu0 0.0
  %1736 = vmatprep.subr.mxu0 0.0
  %1737 = vmatpush1.msra.mxu0 0.0
  %1738 = vmatprep.subr.mxu0 0.0
  %1739 = vmatpush1.msra.mxu0 0.0
  %1740 = vmatprep.subr.mxu0 0.0
  %1741 = vmatpush1.msra.mxu0 0.0
  %1742 = vmatprep.subr.mxu0 0.0
  %1743 = vmatpush1.msra.mxu0 0.0
  %1744 = vmatprep.subr.mxu0 0.0
  %1745 = vmatpush1.msra.mxu0 0.0
  %1746 = vmatprep.subr.mxu0 0.0
  %1747 = vmatpush1.msra.mxu0 0.0
  %1748 = vmatprep.subr.mxu0 0.0
  %1749 = vmatpush1.msra.mxu0 0.0
  %1750 = vmatprep.subr.mxu0 0.0
  %1751 = vmatpush1.msra.mxu0 0.0
  %1752 = vmatprep.subr.mxu0 0.0
  %1753 = vmatpush1.msra.mxu0 0.0
  %1754 = vmatprep.subr.mxu0 0.0
  %1755 = vmatpush1.msra.mxu0 0.0
  %1756 = vmatprep.subr.mxu0 0.0
  %1757 = vmatpush1.msra.mxu0 0.0
  %1758 = vmatprep.subr.mxu0 0.0
  %1759 = vmatpush1.msra.mxu0 0.0
  %1760 = vmatprep.subr.mxu0 0.0
  %1761 = vmatpush1.msra.mxu0 0.0
  %1762 = vmatprep.subr.mxu0 0.0
  %1763 = vmatpush1.msra.mxu0 0.0
  %1764 = vmatprep.subr.mxu0 0.0
  %1765 = vmatpush1.msra.mxu0 0.0
  %1766 = vmatprep.mubr.f32.mxu0 0.0
  %1767 = vmatmul.mubr.f32.gmra.mrb[0].mxu0 %v1700
  %v1768 = vpop.f32.mrb[0].mxu0
  %v1769 = vadd.f32 0.0, %v1768
  %v1770 = vpop.f32.mrb[0].mxu0
  %v1771 = vadd.f32 0.0, %v1770
  %1772 = vdwg.mxu0
  %1773 = vmatprep.subr.mxu0 %v90
  %1774 = vmatpush1.msra.mxu0 %v89
  %1775 = vmatprep.subr.mxu0 %v94
  %1776 = vmatpush1.msra.mxu0 %v93
  %1777 = vmatprep.subr.mxu0 %v98
  %1778 = vmatpush1.msra.mxu0 %v97
  %1779 = vmatprep.subr.mxu0 %v102
  %1780 = vmatpush1.msra.mxu0 %v101
  %1781 = vmatprep.subr.mxu0 %v106
  %1782 = vmatpush1.msra.mxu0 %v105
  %1783 = vmatprep.subr.mxu0 %v110
  %1784 = vmatpush1.msra.mxu0 %v109
  %1785 = vmatprep.subr.mxu0 %v114
  %1786 = vmatpush1.msra.mxu0 %v113
  %1787 = vmatprep.subr.mxu0 %v118
  %1788 = vmatpush1.msra.mxu0 %v117
  %1789 = vmatprep.subr.mxu0 %v122
  %1790 = vmatpush1.msra.mxu0 %v121
  %1791 = vmatprep.subr.mxu0 %v126
  %1792 = vmatpush1.msra.mxu0 %v125
  %1793 = vmatprep.subr.mxu0 %v130
  %1794 = vmatpush1.msra.mxu0 %v129
  %1795 = vmatprep.subr.mxu0 %v134
  %1796 = vmatpush1.msra.mxu0 %v133
  %1797 = vmatprep.subr.mxu0 %v138
  %1798 = vmatpush1.msra.mxu0 %v137
  %1799 = vmatprep.subr.mxu0 %v142
  %1800 = vmatpush1.msra.mxu0 %v141
  %1801 = vmatprep.subr.mxu0 %v146
  %1802 = vmatpush1.msra.mxu0 %v145
  %1803 = vmatprep.subr.mxu0 %v150
  %1804 = vmatpush1.msra.mxu0 %v149
  %1805 = vmatprep.subr.mxu0 0.0
  %1806 = vmatpush1.msra.mxu0 0.0
  %1807 = vmatprep.subr.mxu0 0.0
  %1808 = vmatpush1.msra.mxu0 0.0
  %1809 = vmatprep.subr.mxu0 0.0
  %1810 = vmatpush1.msra.mxu0 0.0
  %1811 = vmatprep.subr.mxu0 0.0
  %1812 = vmatpush1.msra.mxu0 0.0
  %1813 = vmatprep.subr.mxu0 0.0
  %1814 = vmatpush1.msra.mxu0 0.0
  %1815 = vmatprep.subr.mxu0 0.0
  %1816 = vmatpush1.msra.mxu0 0.0
  %1817 = vmatprep.subr.mxu0 0.0
  %1818 = vmatpush1.msra.mxu0 0.0
  %1819 = vmatprep.subr.mxu0 0.0
  %1820 = vmatpush1.msra.mxu0 0.0
  %1821 = vmatprep.subr.mxu0 0.0
  %1822 = vmatpush1.msra.mxu0 0.0
  %1823 = vmatprep.subr.mxu0 0.0
  %1824 = vmatpush1.msra.mxu0 0.0
  %1825 = vmatprep.subr.mxu0 0.0
  %1826 = vmatpush1.msra.mxu0 0.0
  %1827 = vmatprep.subr.mxu0 0.0
  %1828 = vmatpush1.msra.mxu0 0.0
  %1829 = vmatprep.subr.mxu0 0.0
  %1830 = vmatpush1.msra.mxu0 0.0
  %1831 = vmatprep.subr.mxu0 0.0
  %1832 = vmatpush1.msra.mxu0 0.0
  %1833 = vmatprep.subr.mxu0 0.0
  %1834 = vmatpush1.msra.mxu0 0.0
  %1835 = vmatprep.subr.mxu0 0.0
  %1836 = vmatpush1.msra.mxu0 0.0
  %1837 = vmatprep.mubr.f32.mxu0 0.0
  %1838 = vmatmul.mubr.f32.gmra.mrb[0].mxu0 %v1700
  %v1839 = vpop.f32.mrb[0].mxu0
  %v1840 = vadd.f32 0.0, %v1839
  %v1841 = vpop.f32.mrb[0].mxu0
  %v1842 = vadd.f32 0.0, %v1841
  %1843 = vdwg.mxu0
  %v1848 = vcombine.low %v1769, %v1771
  %v1849 = vcombine.low %v1840, %v1842
  %v1851 = vunpack.c.l.s4 1983009808
  %v1852 = vunpack.c.0.s8 %v1851
  %v1853 = vlaneseq
  %v1854 = vshrl.u32 %v1853, 7
  %v1855 = vsub.s32 %v1852, %v1854
  %v1856 = vrot.slane %v1848, %v1855
  %v1858 = vunpack.c.l.s4 1983009808
  %v1859 = vunpack.c.0.s8 %v1858
  %v1860 = vlaneseq
  %v1861 = vshrl.u32 %v1860, 7
  %v1862 = vsub.s32 %v1859, %v1861
  %v1863 = vrot.slane %v1849, %v1862
  %v1864 = vcombine.low %v1856, %v1863
  %v1866 = vadd.f32 %v1495, %v1864
  %v1867 = vxor.u32 %v1866, 2147483648
  %v1868 = vmul.f32 %v1867, 1.442695
  %v1869 = vpow.pop %v1868
  %v1870 = vadd.f32 %v1869, 1.0
  %v1871 = vrcp.pop %v1870
  %v1872 = vmul.f32 1.0, %v1871
  %v1874 = vrot.slane %v1866, 2
  %v1876 = vxor.u32 %v1874, 2147483648
  %v1877 = vmul.f32 %v1876, 1.442695
  %v1878 = vpow.pop %v1877
  %v1879 = vadd.f32 %v1878, 1.0
  %v1880 = vrcp.pop %v1879
  %v1881 = vmul.f32 1.0, %v1880
  %v1882 = vrot.slane %v1866, 4
  %v1884 = vtanh.pop %v1882
  %v1885 = vrot.slane %v1866, 6
  %v1887 = vxor.u32 %v1885, 2147483648
  %v1888 = vmul.f32 %v1887, 1.442695
  %v1889 = vpow.pop %v1888
  %v1890 = vadd.f32 %v1889, 1.0
  %v1891 = vrcp.pop %v1890
  %v1892 = vmul.f32 1.0, %v1891
  %v1893 = vmul.f32 %v1881, %v1701
  %v1894 = vmul.f32 %v1872, %v1884
  %v1895 = vadd.f32 %v1893, %v1894
  %v1896 = vtanh.pop %v1895
  %v1897 = vmul.f32 %v1892, %v1896
  %v1898 = vmul.f32 %v1257, %v1897
  %v1899 = vmul.f32 %v1264, %v1700
  %v1900 = vadd.f32 %v1898, %v1899
  %v1901 = vmul.f32 %v1257, %v1895
  %v1902 = vmul.f32 %v1264, %v1701
  %v1903 = vadd.f32 %v1901, %v1902
  %1904 = vst [vmem:[#allocation2] sm:$0x3] %v1696
  %1905 = vst [vmem:[#allocation3] sm:$0x3] %v1699
  %1906 = vst [vmem:[#allocation4] sm:$0x3] %v1900
  %1907 = vst [vmem:[#allocation5] sm:$0x3] %v1903
  %s1908 = scalar_lea.vmem %s4, 6
  %1909 = vst [vmem:[%s1908] sm:$0x3] %v1694
  %s1910 = scalar_lea.vmem %s5, 4
  %1911 = vst [vmem:[%s1910] sm:$0x3] %v1898
  %v1912 = vld [vmem:[%s606] sm:$0xff]
  %v1913 = vld [vmem:[%s604 + $0x8] sm:$0xff]
  %v1914 = vld [vmem:[#allocation2] sm:$0x3]
  %v1915 = vld [vmem:[#allocation3] sm:$0x3]
  %1916 = vmatprep.subr.mxu0 %v24
  %1917 = vmatpush1.msra.mxu0 %v23
  %1918 = vmatprep.subr.mxu0 %v28
  %1919 = vmatpush1.msra.mxu0 %v27
  %1920 = vmatprep.subr.mxu0 %v32
  %1921 = vmatpush1.msra.mxu0 %v31
  %1922 = vmatprep.subr.mxu0 %v36
  %1923 = vmatpush1.msra.mxu0 %v35
  %1924 = vmatprep.subr.mxu0 %v40
  %1925 = vmatpush1.msra.mxu0 %v39
  %1926 = vmatprep.subr.mxu0 %v44
  %1927 = vmatpush1.msra.mxu0 %v43
  %1928 = vmatprep.subr.mxu0 %v48
  %1929 = vmatpush1.msra.mxu0 %v47
  %1930 = vmatprep.subr.mxu0 %v52
  %1931 = vmatpush1.msra.mxu0 %v51
  %1932 = vmatprep.subr.mxu0 %v56
  %1933 = vmatpush1.msra.mxu0 %v55
  %1934 = vmatprep.subr.mxu0 %v60
  %1935 = vmatpush1.msra.mxu0 %v59
  %1936 = vmatprep.subr.mxu0 %v64
  %1937 = vmatpush1.msra.mxu0 %v63
  %1938 = vmatprep.subr.mxu0 %v68
  %1939 = vmatpush1.msra.mxu0 %v67
  %1940 = vmatprep.subr.mxu0 %v72
  %1941 = vmatpush1.msra.mxu0 %v71
  %1942 = vmatprep.subr.mxu0 %v76
  %1943 = vmatpush1.msra.mxu0 %v75
  %1944 = vmatprep.subr.mxu0 %v80
  %1945 = vmatpush1.msra.mxu0 %v79
  %1946 = vmatprep.subr.mxu0 %v84
  %1947 = vmatpush1.msra.mxu0 %v83
  %1948 = vmatprep.subr.mxu0 0.0
  %1949 = vmatpush1.msra.mxu0 0.0
  %1950 = vmatprep.subr.mxu0 0.0
  %1951 = vmatpush1.msra.mxu0 0.0
  %1952 = vmatprep.subr.mxu0 0.0
  %1953 = vmatpush1.msra.mxu0 0.0
  %1954 = vmatprep.subr.mxu0 0.0
  %1955 = vmatpush1.msra.mxu0 0.0
  %1956 = vmatprep.subr.mxu0 0.0
  %1957 = vmatpush1.msra.mxu0 0.0
  %1958 = vmatprep.subr.mxu0 0.0
  %1959 = vmatpush1.msra.mxu0 0.0
  %1960 = vmatprep.subr.mxu0 0.0
  %1961 = vmatpush1.msra.mxu0 0.0
  %1962 = vmatprep.subr.mxu0 0.0
  %1963 = vmatpush1.msra.mxu0 0.0
  %1964 = vmatprep.subr.mxu0 0.0
  %1965 = vmatpush1.msra.mxu0 0.0
  %1966 = vmatprep.subr.mxu0 0.0
  %1967 = vmatpush1.msra.mxu0 0.0
  %1968 = vmatprep.subr.mxu0 0.0
  %1969 = vmatpush1.msra.mxu0 0.0
  %1970 = vmatprep.subr.mxu0 0.0
  %1971 = vmatpush1.msra.mxu0 0.0
  %1972 = vmatprep.subr.mxu0 0.0
  %1973 = vmatpush1.msra.mxu0 0.0
  %1974 = vmatprep.subr.mxu0 0.0
  %1975 = vmatpush1.msra.mxu0 0.0
  %1976 = vmatprep.subr.mxu0 0.0
  %1977 = vmatpush1.msra.mxu0 0.0
  %1978 = vmatprep.subr.mxu0 0.0
  %1979 = vmatpush1.msra.mxu0 0.0
  %1980 = vmatprep.mubr.f32.mxu0 0.0
  %1981 = vmatmul.mubr.f32.gmra.mrb[0].mxu0 %v1914
  %v1982 = vpop.f32.mrb[0].mxu0
  %v1983 = vadd.f32 0.0, %v1982
  %v1984 = vpop.f32.mrb[0].mxu0
  %v1985 = vadd.f32 0.0, %v1984
  %1986 = vdwg.mxu0
  %1987 = vmatprep.subr.mxu0 %v26
  %1988 = vmatpush1.msra.mxu0 %v25
  %1989 = vmatprep.subr.mxu0 %v30
  %1990 = vmatpush1.msra.mxu0 %v29
  %1991 = vmatprep.subr.mxu0 %v34
  %1992 = vmatpush1.msra.mxu0 %v33
  %1993 = vmatprep.subr.mxu0 %v38
  %1994 = vmatpush1.msra.mxu0 %v37
  %1995 = vmatprep.subr.mxu0 %v42
  %1996 = vmatpush1.msra.mxu0 %v41
  %1997 = vmatprep.subr.mxu0 %v46
  %1998 = vmatpush1.msra.mxu0 %v45
  %1999 = vmatprep.subr.mxu0 %v50
  %2000 = vmatpush1.msra.mxu0 %v49
  %2001 = vmatprep.subr.mxu0 %v54
  %2002 = vmatpush1.msra.mxu0 %v53
  %2003 = vmatprep.subr.mxu0 %v58
  %2004 = vmatpush1.msra.mxu0 %v57
  %2005 = vmatprep.subr.mxu0 %v62
  %2006 = vmatpush1.msra.mxu0 %v61
  %2007 = vmatprep.subr.mxu0 %v66
  %2008 = vmatpush1.msra.mxu0 %v65
  %2009 = vmatprep.subr.mxu0 %v70
  %2010 = vmatpush1.msra.mxu0 %v69
  %2011 = vmatprep.subr.mxu0 %v74
  %2012 = vmatpush1.msra.mxu0 %v73
  %2013 = vmatprep.subr.mxu0 %v78
  %2014 = vmatpush1.msra.mxu0 %v77
  %2015 = vmatprep.subr.mxu0 %v82
  %2016 = vmatpush1.msra.mxu0 %v81
  %2017 = vmatprep.subr.mxu0 %v86
  %2018 = vmatpush1.msra.mxu0 %v85
  %2019 = vmatprep.subr.mxu0 0.0
  %2020 = vmatpush1.msra.mxu0 0.0
  %2021 = vmatprep.subr.mxu0 0.0
  %2022 = vmatpush1.msra.mxu0 0.0
  %2023 = vmatprep.subr.mxu0 0.0
  %2024 = vmatpush1.msra.mxu0 0.0
  %2025 = vmatprep.subr.mxu0 0.0
  %2026 = vmatpush1.msra.mxu0 0.0
  %2027 = vmatprep.subr.mxu0 0.0
  %2028 = vmatpush1.msra.mxu0 0.0
  %2029 = vmatprep.subr.mxu0 0.0
  %2030 = vmatpush1.msra.mxu0 0.0
  %2031 = vmatprep.subr.mxu0 0.0
  %2032 = vmatpush1.msra.mxu0 0.0
  %2033 = vmatprep.subr.mxu0 0.0
  %2034 = vmatpush1.msra.mxu0 0.0
  %2035 = vmatprep.subr.mxu0 0.0
  %2036 = vmatpush1.msra.mxu0 0.0
  %2037 = vmatprep.subr.mxu0 0.0
  %2038 = vmatpush1.msra.mxu0 0.0
  %2039 = vmatprep.subr.mxu0 0.0
  %2040 = vmatpush1.msra.mxu0 0.0
  %2041 = vmatprep.subr.mxu0 0.0
  %2042 = vmatpush1.msra.mxu0 0.0
  %2043 = vmatprep.subr.mxu0 0.0
  %2044 = vmatpush1.msra.mxu0 0.0
  %2045 = vmatprep.subr.mxu0 0.0
  %2046 = vmatpush1.msra.mxu0 0.0
  %2047 = vmatprep.subr.mxu0 0.0
  %2048 = vmatpush1.msra.mxu0 0.0
  %2049 = vmatprep.subr.mxu0 0.0
  %2050 = vmatpush1.msra.mxu0 0.0
  %2051 = vmatprep.mubr.f32.mxu0 0.0
  %2052 = vmatmul.mubr.f32.gmra.mrb[0].mxu0 %v1914
  %v2053 = vpop.f32.mrb[0].mxu0
  %v2054 = vadd.f32 0.0, %v2053
  %v2055 = vpop.f32.mrb[0].mxu0
  %v2056 = vadd.f32 0.0, %v2055
  %2057 = vdwg.mxu0
  %v2062 = vcombine.low %v1983, %v1985
  %v2063 = vcombine.low %v2054, %v2056
  %v2065 = vunpack.c.l.s4 1983009808
  %v2066 = vunpack.c.0.s8 %v2065
  %v2067 = vlaneseq
  %v2068 = vshrl.u32 %v2067, 7
  %v2069 = vsub.s32 %v2066, %v2068
  %v2070 = vrot.slane %v2062, %v2069
  %v2072 = vunpack.c.l.s4 1983009808
  %v2073 = vunpack.c.0.s8 %v2072
  %v2074 = vlaneseq
  %v2075 = vshrl.u32 %v2074, 7
  %v2076 = vsub.s32 %v2073, %v2075
  %v2077 = vrot.slane %v2063, %v2076
  %v2078 = vcombine.low %v2070, %v2077
  %v2080 = vadd.f32 %v1912, %v2078
  %v2081 = vxor.u32 %v2080, 2147483648
  %v2082 = vmul.f32 %v2081, 1.442695
  %v2083 = vpow.pop %v2082
  %v2084 = vadd.f32 %v2083, 1.0
  %v2085 = vrcp.pop %v2084
  %v2086 = vmul.f32 1.0, %v2085
  %v2088 = vrot.slane %v2080, 2
  %v2090 = vxor.u32 %v2088, 2147483648
  %v2091 = vmul.f32 %v2090, 1.442695
  %v2092 = vpow.pop %v2091
  %v2093 = vadd.f32 %v2092, 1.0
  %v2094 = vrcp.pop %v2093
  %v2095 = vmul.f32 1.0, %v2094
  %v2096 = vrot.slane %v2080, 4
  %v2098 = vtanh.pop %v2096
  %v2099 = vrot.slane %v2080, 6
  %v2101 = vxor.u32 %v2099, 2147483648
  %v2102 = vmul.f32 %v2101, 1.442695
  %v2103 = vpow.pop %v2102
  %v2104 = vadd.f32 %v2103, 1.0
  %v2105 = vrcp.pop %v2104
  %v2106 = vmul.f32 1.0, %v2105
  %v2107 = vmul.f32 %v2095, %v1915
  %v2108 = vmul.f32 %v2086, %v2098
  %v2109 = vadd.f32 %v2107, %v2108
  %v2110 = vtanh.pop %v2109
  %v2111 = vmul.f32 %v2106, %v2110
  %v2112 = vmul.f32 %v1024, %v2111
  %v2113 = vmul.f32 %v1031, %v1914
  %v2114 = vadd.f32 %v2112, %v2113
  %v2115 = vmul.f32 %v1024, %v2109
  %v2116 = vmul.f32 %v1031, %v1915
  %v2117 = vadd.f32 %v2115, %v2116
  %v2118 = vld [vmem:[#allocation4] sm:$0x3]
  %v2119 = vld [vmem:[#allocation5] sm:$0x3]
  %2120 = vmatprep.subr.mxu0 %v88
  %2121 = vmatpush1.msra.mxu0 %v87
  %2122 = vmatprep.subr.mxu0 %v92
  %2123 = vmatpush1.msra.mxu0 %v91
  %2124 = vmatprep.subr.mxu0 %v96
  %2125 = vmatpush1.msra.mxu0 %v95
  %2126 = vmatprep.subr.mxu0 %v100
  %2127 = vmatpush1.msra.mxu0 %v99
  %2128 = vmatprep.subr.mxu0 %v104
  %2129 = vmatpush1.msra.mxu0 %v103
  %2130 = vmatprep.subr.mxu0 %v108
  %2131 = vmatpush1.msra.mxu0 %v107
  %2132 = vmatprep.subr.mxu0 %v112
  %2133 = vmatpush1.msra.mxu0 %v111
  %2134 = vmatprep.subr.mxu0 %v116
  %2135 = vmatpush1.msra.mxu0 %v115
  %2136 = vmatprep.subr.mxu0 %v120
  %2137 = vmatpush1.msra.mxu0 %v119
  %2138 = vmatprep.subr.mxu0 %v124
  %2139 = vmatpush1.msra.mxu0 %v123
  %2140 = vmatprep.subr.mxu0 %v128
  %2141 = vmatpush1.msra.mxu0 %v127
  %2142 = vmatprep.subr.mxu0 %v132
  %2143 = vmatpush1.msra.mxu0 %v131
  %2144 = vmatprep.subr.mxu0 %v136
  %2145 = vmatpush1.msra.mxu0 %v135
  %2146 = vmatprep.subr.mxu0 %v140
  %2147 = vmatpush1.msra.mxu0 %v139
  %2148 = vmatprep.subr.mxu0 %v144
  %2149 = vmatpush1.msra.mxu0 %v143
  %2150 = vmatprep.subr.mxu0 %v148
  %2151 = vmatpush1.msra.mxu0 %v147
  %2152 = vmatprep.subr.mxu0 0.0
  %2153 = vmatpush1.msra.mxu0 0.0
  %2154 = vmatprep.subr.mxu0 0.0
  %2155 = vmatpush1.msra.mxu0 0.0
  %2156 = vmatprep.subr.mxu0 0.0
  %2157 = vmatpush1.msra.mxu0 0.0
  %2158 = vmatprep.subr.mxu0 0.0
  %2159 = vmatpush1.msra.mxu0 0.0
  %2160 = vmatprep.subr.mxu0 0.0
  %2161 = vmatpush1.msra.mxu0 0.0
  %2162 = vmatprep.subr.mxu0 0.0
  %2163 = vmatpush1.msra.mxu0 0.0
  %2164 = vmatprep.subr.mxu0 0.0
  %2165 = vmatpush1.msra.mxu0 0.0
  %2166 = vmatprep.subr.mxu0 0.0
  %2167 = vmatpush1.msra.mxu0 0.0
  %2168 = vmatprep.subr.mxu0 0.0
  %2169 = vmatpush1.msra.mxu0 0.0
  %2170 = vmatprep.subr.mxu0 0.0
  %2171 = vmatpush1.msra.mxu0 0.0
  %2172 = vmatprep.subr.mxu0 0.0
  %2173 = vmatpush1.msra.mxu0 0.0
  %2174 = vmatprep.subr.mxu0 0.0
  %2175 = vmatpush1.msra.mxu0 0.0
  %2176 = vmatprep.subr.mxu0 0.0
  %2177 = vmatpush1.msra.mxu0 0.0
  %2178 = vmatprep.subr.mxu0 0.0
  %2179 = vmatpush1.msra.mxu0 0.0
  %2180 = vmatprep.subr.mxu0 0.0
  %2181 = vmatpush1.msra.mxu0 0.0
  %2182 = vmatprep.subr.mxu0 0.0
  %2183 = vmatpush1.msra.mxu0 0.0
  %2184 = vmatprep.mubr.f32.mxu0 0.0
  %2185 = vmatmul.mubr.f32.gmra.mrb[0].mxu0 %v2118
  %v2186 = vpop.f32.mrb[0].mxu0
  %v2187 = vadd.f32 0.0, %v2186
  %v2188 = vpop.f32.mrb[0].mxu0
  %v2189 = vadd.f32 0.0, %v2188
  %2190 = vdwg.mxu0
  %2191 = vmatprep.subr.mxu0 %v90
  %2192 = vmatpush1.msra.mxu0 %v89
  %2193 = vmatprep.subr.mxu0 %v94
  %2194 = vmatpush1.msra.mxu0 %v93
  %2195 = vmatprep.subr.mxu0 %v98
  %2196 = vmatpush1.msra.mxu0 %v97
  %2197 = vmatprep.subr.mxu0 %v102
  %2198 = vmatpush1.msra.mxu0 %v101
  %2199 = vmatprep.subr.mxu0 %v106
  %2200 = vmatpush1.msra.mxu0 %v105
  %2201 = vmatprep.subr.mxu0 %v110
  %2202 = vmatpush1.msra.mxu0 %v109
  %2203 = vmatprep.subr.mxu0 %v114
  %2204 = vmatpush1.msra.mxu0 %v113
  %2205 = vmatprep.subr.mxu0 %v118
  %2206 = vmatpush1.msra.mxu0 %v117
  %2207 = vmatprep.subr.mxu0 %v122
  %2208 = vmatpush1.msra.mxu0 %v121
  %2209 = vmatprep.subr.mxu0 %v126
  %2210 = vmatpush1.msra.mxu0 %v125
  %2211 = vmatprep.subr.mxu0 %v130
  %2212 = vmatpush1.msra.mxu0 %v129
  %2213 = vmatprep.subr.mxu0 %v134
  %2214 = vmatpush1.msra.mxu0 %v133
  %2215 = vmatprep.subr.mxu0 %v138
  %2216 = vmatpush1.msra.mxu0 %v137
  %2217 = vmatprep.subr.mxu0 %v142
  %2218 = vmatpush1.msra.mxu0 %v141
  %2219 = vmatprep.subr.mxu0 %v146
  %2220 = vmatpush1.msra.mxu0 %v145
  %2221 = vmatprep.subr.mxu0 %v150
  %2222 = vmatpush1.msra.mxu0 %v149
  %2223 = vmatprep.subr.mxu0 0.0
  %2224 = vmatpush1.msra.mxu0 0.0
  %2225 = vmatprep.subr.mxu0 0.0
  %2226 = vmatpush1.msra.mxu0 0.0
  %2227 = vmatprep.subr.mxu0 0.0
  %2228 = vmatpush1.msra.mxu0 0.0
  %2229 = vmatprep.subr.mxu0 0.0
  %2230 = vmatpush1.msra.mxu0 0.0
  %2231 = vmatprep.subr.mxu0 0.0
  %2232 = vmatpush1.msra.mxu0 0.0
  %2233 = vmatprep.subr.mxu0 0.0
  %2234 = vmatpush1.msra.mxu0 0.0
  %2235 = vmatprep.subr.mxu0 0.0
  %2236 = vmatpush1.msra.mxu0 0.0
  %2237 = vmatprep.subr.mxu0 0.0
  %2238 = vmatpush1.msra.mxu0 0.0
  %2239 = vmatprep.subr.mxu0 0.0
  %2240 = vmatpush1.msra.mxu0 0.0
  %2241 = vmatprep.subr.mxu0 0.0
  %2242 = vmatpush1.msra.mxu0 0.0
  %2243 = vmatprep.subr.mxu0 0.0
  %2244 = vmatpush1.msra.mxu0 0.0
  %2245 = vmatprep.subr.mxu0 0.0
  %2246 = vmatpush1.msra.mxu0 0.0
  %2247 = vmatprep.subr.mxu0 0.0
  %2248 = vmatpush1.msra.mxu0 0.0
  %2249 = vmatprep.subr.mxu0 0.0
  %2250 = vmatpush1.msra.mxu0 0.0
  %2251 = vmatprep.subr.mxu0 0.0
  %2252 = vmatpush1.msra.mxu0 0.0
  %2253 = vmatprep.subr.mxu0 0.0
  %2254 = vmatpush1.msra.mxu0 0.0
  %2255 = vmatprep.mubr.f32.mxu0 0.0
  %2256 = vmatmul.mubr.f32.gmra.mrb[0].mxu0 %v2118
  %v2257 = vpop.f32.mrb[0].mxu0
  %v2258 = vadd.f32 0.0, %v2257
  %v2259 = vpop.f32.mrb[0].mxu0
  %v2260 = vadd.f32 0.0, %v2259
  %2261 = vdwg.mxu0
  %v2266 = vcombine.low %v2187, %v2189
  %v2267 = vcombine.low %v2258, %v2260
  %v2269 = vunpack.c.l.s4 1983009808
  %v2270 = vunpack.c.0.s8 %v2269
  %v2271 = vlaneseq
  %v2272 = vshrl.u32 %v2271, 7
  %v2273 = vsub.s32 %v2270, %v2272
  %v2274 = vrot.slane %v2266, %v2273
  %v2276 = vunpack.c.l.s4 1983009808
  %v2277 = vunpack.c.0.s8 %v2276
  %v2278 = vlaneseq
  %v2279 = vshrl.u32 %v2278, 7
  %v2280 = vsub.s32 %v2277, %v2279
  %v2281 = vrot.slane %v2267, %v2280
  %v2282 = vcombine.low %v2274, %v2281
  %v2284 = vadd.f32 %v1913, %v2282
  %v2285 = vxor.u32 %v2284, 2147483648
  %v2286 = vmul.f32 %v2285, 1.442695
  %v2287 = vpow.pop %v2286
  %v2288 = vadd.f32 %v2287, 1.0
  %v2289 = vrcp.pop %v2288
  %v2290 = vmul.f32 1.0, %v2289
  %v2292 = vrot.slane %v2284, 2
  %v2294 = vxor.u32 %v2292, 2147483648
  %v2295 = vmul.f32 %v2294, 1.442695
  %v2296 = vpow.pop %v2295
  %v2297 = vadd.f32 %v2296, 1.0
  %v2298 = vrcp.pop %v2297
  %v2299 = vmul.f32 1.0, %v2298
  %v2300 = vrot.slane %v2284, 4
  %v2302 = vtanh.pop %v2300
  %v2303 = vrot.slane %v2284, 6
  %v2305 = vxor.u32 %v2303, 2147483648
  %v2306 = vmul.f32 %v2305, 1.442695
  %v2307 = vpow.pop %v2306
  %v2308 = vadd.f32 %v2307, 1.0
  %v2309 = vrcp.pop %v2308
  %v2310 = vmul.f32 1.0, %v2309
  %v2311 = vmul.f32 %v2299, %v2119
  %v2312 = vmul.f32 %v2290, %v2302
  %v2313 = vadd.f32 %v2311, %v2312
  %v2314 = vtanh.pop %v2313
  %v2315 = vmul.f32 %v2310, %v2314
  %v2316 = vmul.f32 %v809, %v2315
  %v2317 = vmul.f32 %v816, %v2118
  %v2318 = vadd.f32 %v2316, %v2317
  %v2319 = vmul.f32 %v809, %v2313
  %v2320 = vmul.f32 %v816, %v2119
  %v2321 = vadd.f32 %v2319, %v2320
  %2322 = vst [vmem:[#allocation2] sm:$0x3] %v2114
  %2323 = vst [vmem:[#allocation3] sm:$0x3] %v2117
  %2324 = vst [vmem:[#allocation4] sm:$0x3] %v2318
  %2325 = vst [vmem:[#allocation5] sm:$0x3] %v2321
  %s2326 = scalar_lea.vmem %s4, 8
  %2327 = vst [vmem:[%s2326] sm:$0x3] %v2112
  %s2328 = scalar_lea.vmem %s5, 2
  %2329 = vst [vmem:[%s2328] sm:$0x3] %v2316
  %v2330 = vld [vmem:[%s159] sm:$0xff]
  %v2331 = vld [vmem:[%s0 + $0x8] sm:$0xff]
  %v2332 = vld [vmem:[#allocation2] sm:$0x3]
  %v2333 = vld [vmem:[#allocation3] sm:$0x3]
  %2334 = vmatprep.subr.mxu0 %v24
  %2335 = vmatpush1.msra.mxu0 %v23
  %2336 = vmatprep.subr.mxu0 %v28
  %2337 = vmatpush1.msra.mxu0 %v27
  %2338 = vmatprep.subr.mxu0 %v32
  %2339 = vmatpush1.msra.mxu0 %v31
  %2340 = vmatprep.subr.mxu0 %v36
  %2341 = vmatpush1.msra.mxu0 %v35
  %2342 = vmatprep.subr.mxu0 %v40
  %2343 = vmatpush1.msra.mxu0 %v39
  %2344 = vmatprep.subr.mxu0 %v44
  %2345 = vmatpush1.msra.mxu0 %v43
  %2346 = vmatprep.subr.mxu0 %v48
  %2347 = vmatpush1.msra.mxu0 %v47
  %2348 = vmatprep.subr.mxu0 %v52
  %2349 = vmatpush1.msra.mxu0 %v51
  %2350 = vmatprep.subr.mxu0 %v56
  %2351 = vmatpush1.msra.mxu0 %v55
  %2352 = vmatprep.subr.mxu0 %v60
  %2353 = vmatpush1.msra.mxu0 %v59
  %2354 = vmatprep.subr.mxu0 %v64
  %2355 = vmatpush1.msra.mxu0 %v63
  %2356 = vmatprep.subr.mxu0 %v68
  %2357 = vmatpush1.msra.mxu0 %v67
  %2358 = vmatprep.subr.mxu0 %v72
  %2359 = vmatpush1.msra.mxu0 %v71
  %2360 = vmatprep.subr.mxu0 %v76
  %2361 = vmatpush1.msra.mxu0 %v75
  %2362 = vmatprep.subr.mxu0 %v80
  %2363 = vmatpush1.msra.mxu0 %v79
  %2364 = vmatprep.subr.mxu0 %v84
  %2365 = vmatpush1.msra.mxu0 %v83
  %2366 = vmatprep.subr.mxu0 0.0
  %2367 = vmatpush1.msra.mxu0 0.0
  %2368 = vmatprep.subr.mxu0 0.0
  %2369 = vmatpush1.msra.mxu0 0.0
  %2370 = vmatprep.subr.mxu0 0.0
  %2371 = vmatpush1.msra.mxu0 0.0
  %2372 = vmatprep.subr.mxu0 0.0
  %2373 = vmatpush1.msra.mxu0 0.0
  %2374 = vmatprep.subr.mxu0 0.0
  %2375 = vmatpush1.msra.mxu0 0.0
  %2376 = vmatprep.subr.mxu0 0.0
  %2377 = vmatpush1.msra.mxu0 0.0
  %2378 = vmatprep.subr.mxu0 0.0
  %2379 = vmatpush1.msra.mxu0 0.0
  %2380 = vmatprep.subr.mxu0 0.0
  %2381 = vmatpush1.msra.mxu0 0.0
  %2382 = vmatprep.subr.mxu0 0.0
  %2383 = vmatpush1.msra.mxu0 0.0
  %2384 = vmatprep.subr.mxu0 0.0
  %2385 = vmatpush1.msra.mxu0 0.0
  %2386 = vmatprep.subr.mxu0 0.0
  %2387 = vmatpush1.msra.mxu0 0.0
  %2388 = vmatprep.subr.mxu0 0.0
  %2389 = vmatpush1.msra.mxu0 0.0
  %2390 = vmatprep.subr.mxu0 0.0
  %2391 = vmatpush1.msra.mxu0 0.0
  %2392 = vmatprep.subr.mxu0 0.0
  %2393 = vmatpush1.msra.mxu0 0.0
  %2394 = vmatprep.subr.mxu0 0.0
  %2395 = vmatpush1.msra.mxu0 0.0
  %2396 = vmatprep.subr.mxu0 0.0
  %2397 = vmatpush1.msra.mxu0 0.0
  %2398 = vmatprep.mubr.f32.mxu0 0.0
  %2399 = vmatmul.mubr.f32.gmra.mrb[0].mxu0 %v2332
  %v2400 = vpop.f32.mrb[0].mxu0
  %v2401 = vadd.f32 0.0, %v2400
  %v2402 = vpop.f32.mrb[0].mxu0
  %v2403 = vadd.f32 0.0, %v2402
  %2404 = vdwg.mxu0
  %2405 = vmatprep.subr.mxu0 %v26
  %2406 = vmatpush1.msra.mxu0 %v25
  %2407 = vmatprep.subr.mxu0 %v30
  %2408 = vmatpush1.msra.mxu0 %v29
  %2409 = vmatprep.subr.mxu0 %v34
  %2410 = vmatpush1.msra.mxu0 %v33
  %2411 = vmatprep.subr.mxu0 %v38
  %2412 = vmatpush1.msra.mxu0 %v37
  %2413 = vmatprep.subr.mxu0 %v42
  %2414 = vmatpush1.msra.mxu0 %v41
  %2415 = vmatprep.subr.mxu0 %v46
  %2416 = vmatpush1.msra.mxu0 %v45
  %2417 = vmatprep.subr.mxu0 %v50
  %2418 = vmatpush1.msra.mxu0 %v49
  %2419 = vmatprep.subr.mxu0 %v54
  %2420 = vmatpush1.msra.mxu0 %v53
  %2421 = vmatprep.subr.mxu0 %v58
  %2422 = vmatpush1.msra.mxu0 %v57
  %2423 = vmatprep.subr.mxu0 %v62
  %2424 = vmatpush1.msra.mxu0 %v61
  %2425 = vmatprep.subr.mxu0 %v66
  %2426 = vmatpush1.msra.mxu0 %v65
  %2427 = vmatprep.subr.mxu0 %v70
  %2428 = vmatpush1.msra.mxu0 %v69
  %2429 = vmatprep.subr.mxu0 %v74
  %2430 = vmatpush1.msra.mxu0 %v73
  %2431 = vmatprep.subr.mxu0 %v78
  %2432 = vmatpush1.msra.mxu0 %v77
  %2433 = vmatprep.subr.mxu0 %v82
  %2434 = vmatpush1.msra.mxu0 %v81
  %2435 = vmatprep.subr.mxu0 %v86
  %2436 = vmatpush1.msra.mxu0 %v85
  %2437 = vmatprep.subr.mxu0 0.0
  %2438 = vmatpush1.msra.mxu0 0.0
  %2439 = vmatprep.subr.mxu0 0.0
  %2440 = vmatpush1.msra.mxu0 0.0
  %2441 = vmatprep.subr.mxu0 0.0
  %2442 = vmatpush1.msra.mxu0 0.0
  %2443 = vmatprep.subr.mxu0 0.0
  %2444 = vmatpush1.msra.mxu0 0.0
  %2445 = vmatprep.subr.mxu0 0.0
  %2446 = vmatpush1.msra.mxu0 0.0
  %2447 = vmatprep.subr.mxu0 0.0
  %2448 = vmatpush1.msra.mxu0 0.0
  %2449 = vmatprep.subr.mxu0 0.0
  %2450 = vmatpush1.msra.mxu0 0.0
  %2451 = vmatprep.subr.mxu0 0.0
  %2452 = vmatpush1.msra.mxu0 0.0
  %2453 = vmatprep.subr.mxu0 0.0
  %2454 = vmatpush1.msra.mxu0 0.0
  %2455 = vmatprep.subr.mxu0 0.0
  %2456 = vmatpush1.msra.mxu0 0.0
  %2457 = vmatprep.subr.mxu0 0.0
  %2458 = vmatpush1.msra.mxu0 0.0
  %2459 = vmatprep.subr.mxu0 0.0
  %2460 = vmatpush1.msra.mxu0 0.0
  %2461 = vmatprep.subr.mxu0 0.0
  %2462 = vmatpush1.msra.mxu0 0.0
  %2463 = vmatprep.subr.mxu0 0.0
  %2464 = vmatpush1.msra.mxu0 0.0
  %2465 = vmatprep.subr.mxu0 0.0
  %2466 = vmatpush1.msra.mxu0 0.0
  %2467 = vmatprep.subr.mxu0 0.0
  %2468 = vmatpush1.msra.mxu0 0.0
  %2469 = vmatprep.mubr.f32.mxu0 0.0
  %2470 = vmatmul.mubr.f32.gmra.mrb[0].mxu0 %v2332
  %v2471 = vpop.f32.mrb[0].mxu0
  %v2472 = vadd.f32 0.0, %v2471
  %v2473 = vpop.f32.mrb[0].mxu0
  %v2474 = vadd.f32 0.0, %v2473
  %2475 = vdwg.mxu0
  %v2480 = vcombine.low %v2401, %v2403
  %v2481 = vcombine.low %v2472, %v2474
  %v2483 = vunpack.c.l.s4 1983009808
  %v2484 = vunpack.c.0.s8 %v2483
  %v2485 = vlaneseq
  %v2486 = vshrl.u32 %v2485, 7
  %v2487 = vsub.s32 %v2484, %v2486
  %v2488 = vrot.slane %v2480, %v2487
  %v2490 = vunpack.c.l.s4 1983009808
  %v2491 = vunpack.c.0.s8 %v2490
  %v2492 = vlaneseq
  %v2493 = vshrl.u32 %v2492, 7
  %v2494 = vsub.s32 %v2491, %v2493
  %v2495 = vrot.slane %v2481, %v2494
  %v2496 = vcombine.low %v2488, %v2495
  %v2498 = vadd.f32 %v2330, %v2496
  %v2499 = vxor.u32 %v2498, 2147483648
  %v2500 = vmul.f32 %v2499, 1.442695
  %v2501 = vpow.pop %v2500
  %v2502 = vadd.f32 %v2501, 1.0
  %v2503 = vrcp.pop %v2502
  %v2504 = vmul.f32 1.0, %v2503
  %v2506 = vrot.slane %v2498, 2
  %v2508 = vxor.u32 %v2506, 2147483648
  %v2509 = vmul.f32 %v2508, 1.442695
  %v2510 = vpow.pop %v2509
  %v2511 = vadd.f32 %v2510, 1.0
  %v2512 = vrcp.pop %v2511
  %v2513 = vmul.f32 1.0, %v2512
  %v2514 = vrot.slane %v2498, 4
  %v2516 = vtanh.pop %v2514
  %v2517 = vrot.slane %v2498, 6
  %v2519 = vxor.u32 %v2517, 2147483648
  %v2520 = vmul.f32 %v2519, 1.442695
  %v2521 = vpow.pop %v2520
  %v2522 = vadd.f32 %v2521, 1.0
  %v2523 = vrcp.pop %v2522
  %v2524 = vmul.f32 1.0, %v2523
  %v2525 = vmul.f32 %v2513, %v2333
  %v2526 = vmul.f32 %v2504, %v2516
  %v2527 = vadd.f32 %v2525, %v2526
  %v2528 = vtanh.pop %v2527
  %v2529 = vmul.f32 %v2524, %v2528
  %v2530 = vmul.f32 %v577, %v2529
  %v2531 = vmul.f32 %v584, %v2332
  %v2532 = vadd.f32 %v2530, %v2531
  %v2533 = vmul.f32 %v577, %v2527
  %v2534 = vmul.f32 %v584, %v2333
  %v2535 = vadd.f32 %v2533, %v2534
  %v2536 = vld [vmem:[#allocation4] sm:$0x3]
  %v2537 = vld [vmem:[#allocation5] sm:$0x3]
  %2538 = vmatprep.subr.mxu0 %v88
  %2539 = vmatpush1.msra.mxu0 %v87
  %2540 = vmatprep.subr.mxu0 %v92
  %2541 = vmatpush1.msra.mxu0 %v91
  %2542 = vmatprep.subr.mxu0 %v96
  %2543 = vmatpush1.msra.mxu0 %v95
  %2544 = vmatprep.subr.mxu0 %v100
  %2545 = vmatpush1.msra.mxu0 %v99
  %2546 = vmatprep.subr.mxu0 %v104
  %2547 = vmatpush1.msra.mxu0 %v103
  %2548 = vmatprep.subr.mxu0 %v108
  %2549 = vmatpush1.msra.mxu0 %v107
  %2550 = vmatprep.subr.mxu0 %v112
  %2551 = vmatpush1.msra.mxu0 %v111
  %2552 = vmatprep.subr.mxu0 %v116
  %2553 = vmatpush1.msra.mxu0 %v115
  %2554 = vmatprep.subr.mxu0 %v120
  %2555 = vmatpush1.msra.mxu0 %v119
  %2556 = vmatprep.subr.mxu0 %v124
  %2557 = vmatpush1.msra.mxu0 %v123
  %2558 = vmatprep.subr.mxu0 %v128
  %2559 = vmatpush1.msra.mxu0 %v127
  %2560 = vmatprep.subr.mxu0 %v132
  %2561 = vmatpush1.msra.mxu0 %v131
  %2562 = vmatprep.subr.mxu0 %v136
  %2563 = vmatpush1.msra.mxu0 %v135
  %2564 = vmatprep.subr.mxu0 %v140
  %2565 = vmatpush1.msra.mxu0 %v139
  %2566 = vmatprep.subr.mxu0 %v144
  %2567 = vmatpush1.msra.mxu0 %v143
  %2568 = vmatprep.subr.mxu0 %v148
  %2569 = vmatpush1.msra.mxu0 %v147
  %2570 = vmatprep.subr.mxu0 0.0
  %2571 = vmatpush1.msra.mxu0 0.0
  %2572 = vmatprep.subr.mxu0 0.0
  %2573 = vmatpush1.msra.mxu0 0.0
  %2574 = vmatprep.subr.mxu0 0.0
  %2575 = vmatpush1.msra.mxu0 0.0
  %2576 = vmatprep.subr.mxu0 0.0
  %2577 = vmatpush1.msra.mxu0 0.0
  %2578 = vmatprep.subr.mxu0 0.0
  %2579 = vmatpush1.msra.mxu0 0.0
  %2580 = vmatprep.subr.mxu0 0.0
  %2581 = vmatpush1.msra.mxu0 0.0
  %2582 = vmatprep.subr.mxu0 0.0
  %2583 = vmatpush1.msra.mxu0 0.0
  %2584 = vmatprep.subr.mxu0 0.0
  %2585 = vmatpush1.msra.mxu0 0.0
  %2586 = vmatprep.subr.mxu0 0.0
  %2587 = vmatpush1.msra.mxu0 0.0
  %2588 = vmatprep.subr.mxu0 0.0
  %2589 = vmatpush1.msra.mxu0 0.0
  %2590 = vmatprep.subr.mxu0 0.0
  %2591 = vmatpush1.msra.mxu0 0.0
  %2592 = vmatprep.subr.mxu0 0.0
  %2593 = vmatpush1.msra.mxu0 0.0
  %2594 = vmatprep.subr.mxu0 0.0
  %2595 = vmatpush1.msra.mxu0 0.0
  %2596 = vmatprep.subr.mxu0 0.0
  %2597 = vmatpush1.msra.mxu0 0.0
  %2598 = vmatprep.subr.mxu0 0.0
  %2599 = vmatpush1.msra.mxu0 0.0
  %2600 = vmatprep.subr.mxu0 0.0
  %2601 = vmatpush1.msra.mxu0 0.0
  %2602 = vmatprep.mubr.f32.mxu0 0.0
  %2603 = vmatmul.mubr.f32.gmra.mrb[0].mxu0 %v2536
  %v2604 = vpop.f32.mrb[0].mxu0
  %v2605 = vadd.f32 0.0, %v2604
  %v2606 = vpop.f32.mrb[0].mxu0
  %v2607 = vadd.f32 0.0, %v2606
  %2608 = vdwg.mxu0
  %2609 = vmatprep.subr.mxu0 %v90
  %2610 = vmatpush1.msra.mxu0 %v89
  %2611 = vmatprep.subr.mxu0 %v94
  %2612 = vmatpush1.msra.mxu0 %v93
  %2613 = vmatprep.subr.mxu0 %v98
  %2614 = vmatpush1.msra.mxu0 %v97
  %2615 = vmatprep.subr.mxu0 %v102
  %2616 = vmatpush1.msra.mxu0 %v101
  %2617 = vmatprep.subr.mxu0 %v106
  %2618 = vmatpush1.msra.mxu0 %v105
  %2619 = vmatprep.subr.mxu0 %v110
  %2620 = vmatpush1.msra.mxu0 %v109
  %2621 = vmatprep.subr.mxu0 %v114
  %2622 = vmatpush1.msra.mxu0 %v113
  %2623 = vmatprep.subr.mxu0 %v118
  %2624 = vmatpush1.msra.mxu0 %v117
  %2625 = vmatprep.subr.mxu0 %v122
  %2626 = vmatpush1.msra.mxu0 %v121
  %2627 = vmatprep.subr.mxu0 %v126
  %2628 = vmatpush1.msra.mxu0 %v125
  %2629 = vmatprep.subr.mxu0 %v130
  %2630 = vmatpush1.msra.mxu0 %v129
  %2631 = vmatprep.subr.mxu0 %v134
  %2632 = vmatpush1.msra.mxu0 %v133
  %2633 = vmatprep.subr.mxu0 %v138
  %2634 = vmatpush1.msra.mxu0 %v137
  %2635 = vmatprep.subr.mxu0 %v142
  %2636 = vmatpush1.msra.mxu0 %v141
  %2637 = vmatprep.subr.mxu0 %v146
  %2638 = vmatpush1.msra.mxu0 %v145
  %2639 = vmatprep.subr.mxu0 %v150
  %2640 = vmatpush1.msra.mxu0 %v149
  %2641 = vmatprep.subr.mxu0 0.0
  %2642 = vmatpush1.msra.mxu0 0.0
  %2643 = vmatprep.subr.mxu0 0.0
  %2644 = vmatpush1.msra.mxu0 0.0
  %2645 = vmatprep.subr.mxu0 0.0
  %2646 = vmatpush1.msra.mxu0 0.0
  %2647 = vmatprep.subr.mxu0 0.0
  %2648 = vmatpush1.msra.mxu0 0.0
  %2649 = vmatprep.subr.mxu0 0.0
  %2650 = vmatpush1.msra.mxu0 0.0
  %2651 = vmatprep.subr.mxu0 0.0
  %2652 = vmatpush1.msra.mxu0 0.0
  %2653 = vmatprep.subr.mxu0 0.0
  %2654 = vmatpush1.msra.mxu0 0.0
  %2655 = vmatprep.subr.mxu0 0.0
  %2656 = vmatpush1.msra.mxu0 0.0
  %2657 = vmatprep.subr.mxu0 0.0
  %2658 = vmatpush1.msra.mxu0 0.0
  %2659 = vmatprep.subr.mxu0 0.0
  %2660 = vmatpush1.msra.mxu0 0.0
  %2661 = vmatprep.subr.mxu0 0.0
  %2662 = vmatpush1.msra.mxu0 0.0
  %2663 = vmatprep.subr.mxu0 0.0
  %2664 = vmatpush1.msra.mxu0 0.0
  %2665 = vmatprep.subr.mxu0 0.0
  %2666 = vmatpush1.msra.mxu0 0.0
  %2667 = vmatprep.subr.mxu0 0.0
  %2668 = vmatpush1.msra.mxu0 0.0
  %2669 = vmatprep.subr.mxu0 0.0
  %2670 = vmatpush1.msra.mxu0 0.0
  %2671 = vmatprep.subr.mxu0 0.0
  %2672 = vmatpush1.msra.mxu0 0.0
  %2673 = vmatprep.mubr.f32.mxu0 0.0
  %2674 = vmatmul.mubr.f32.gmra.mrb[0].mxu0 %v2536
  %v2675 = vpop.f32.mrb[0].mxu0
  %v2676 = vadd.f32 0.0, %v2675
  %v2677 = vpop.f32.mrb[0].mxu0
  %v2678 = vadd.f32 0.0, %v2677
  %2679 = vdwg.mxu0
  %v2684 = vcombine.low %v2605, %v2607
  %v2685 = vcombine.low %v2676, %v2678
  %v2687 = vunpack.c.l.s4 1983009808
  %v2688 = vunpack.c.0.s8 %v2687
  %v2689 = vlaneseq
  %v2690 = vshrl.u32 %v2689, 7
  %v2691 = vsub.s32 %v2688, %v2690
  %v2692 = vrot.slane %v2684, %v2691
  %v2694 = vunpack.c.l.s4 1983009808
  %v2695 = vunpack.c.0.s8 %v2694
  %v2696 = vlaneseq
  %v2697 = vshrl.u32 %v2696, 7
  %v2698 = vsub.s32 %v2695, %v2697
  %v2699 = vrot.slane %v2685, %v2698
  %v2700 = vcombine.low %v2692, %v2699
  %v2702 = vadd.f32 %v2331, %v2700
  %v2703 = vxor.u32 %v2702, 2147483648
  %v2704 = vmul.f32 %v2703, 1.442695
  %v2705 = vpow.pop %v2704
  %v2706 = vadd.f32 %v2705, 1.0
  %v2707 = vrcp.pop %v2706
  %v2708 = vmul.f32 1.0, %v2707
  %v2710 = vrot.slane %v2702, 2
  %v2712 = vxor.u32 %v2710, 2147483648
  %v2713 = vmul.f32 %v2712, 1.442695
  %v2714 = vpow.pop %v2713
  %v2715 = vadd.f32 %v2714, 1.0
  %v2716 = vrcp.pop %v2715
  %v2717 = vmul.f32 1.0, %v2716
  %v2718 = vrot.slane %v2702, 4
  %v2720 = vtanh.pop %v2718
  %v2721 = vrot.slane %v2702, 6
  %v2723 = vxor.u32 %v2721, 2147483648
  %v2724 = vmul.f32 %v2723, 1.442695
  %v2725 = vpow.pop %v2724
  %v2726 = vadd.f32 %v2725, 1.0
  %v2727 = vrcp.pop %v2726
  %v2728 = vmul.f32 1.0, %v2727
  %v2729 = vmul.f32 %v2717, %v2537
  %v2730 = vmul.f32 %v2708, %v2720
  %v2731 = vadd.f32 %v2729, %v2730
  %v2732 = vtanh.pop %v2731
  %v2733 = vmul.f32 %v2728, %v2732
  %v2734 = vmul.f32 %v362, %v2733
  %v2735 = vmul.f32 %v369, %v2536
  %v2736 = vadd.f32 %v2734, %v2735
  %v2737 = vmul.f32 %v362, %v2731
  %v2738 = vmul.f32 %v369, %v2537
  %v2739 = vadd.f32 %v2737, %v2738
  %2740 = vst [vmem:[#allocation2] sm:$0x3] %v2532
  %2741 = vst [vmem:[#allocation3] sm:$0x3] %v2535
  %2742 = vst [vmem:[#allocation4] sm:$0x3] %v2736
  %2743 = vst [vmem:[#allocation5] sm:$0x3] %v2739
  %s2744 = scalar_lea.vmem %s4, 10
  %2745 = vst [vmem:[%s2744] sm:$0x3] %v2530
  %2746 = vst [vmem:[%s5] sm:$0x3] %v2734
  // Predicated region
  $region18: #{transducer_b_forward.10} parent=0 // pred_check
    _
  $region19: #{transducer_b_forward.10} parent=0 // pred_check_branch
    %2748 = sbr.rel (0) target = $region21
  $region20: #{transducer_b_forward.10} parent=0 // pred_region
    _
  $region21: #{transducer_b_forward.10} parent=0 // pred_fallthru
    _
  // Predicated region
  $region22: #{transducer_b_forward.10} parent=0 // pred_check
    _
  $region23: #{transducer_b_forward.10} parent=0 // pred_check_branch
    %2750 = sbr.rel (0) target = $region25
  $region24: #{transducer_b_forward.10} parent=0 // pred_region
    _
  $region25: #{transducer_b_forward.10} parent=0 // pred_fallthru
    _
  // Predicated region
  $region26: #{transducer_b_forward.10} parent=0 // pred_check
    _
  $region27: #{transducer_b_forward.10} parent=0 // pred_check_branch
    %2752 = sbr.rel (0) target = $region29
  $region28: #{transducer_b_forward.10} parent=0 // pred_region
    _
  $region29: #{transducer_b_forward.10} parent=0 // pred_fallthru
    _
  // Predicated region
  $region30: #{transducer_b_forward.10} parent=0 // pred_check
    _
  $region31: #{transducer_b_forward.10} parent=0 // pred_check_branch
    %2754 = sbr.rel (0) target = $region33
  $region32: #{transducer_b_forward.10} parent=0 // pred_region
    _
  $region33: #{transducer_b_forward.10} parent=0 // pred_fallthru
    _

</llo_original>
